<compile_context>
chip_gen: v6e
topology: v6e:2x2x1
jax: 0.10.0
libtpu: 0.0.40
codegen_flags: <defaults>
</compile_context>

<pallas_src>
import functools
import math

import jax
import jax.numpy as jnp
from jax.experimental import pallas as pl
from jax.experimental.pallas import tpu as pltpu


def caps_routing_kernel(x_ref, w_ref, b_ref, v_ref, c_ref, *,
                        input_caps, input_dim, output_caps, output_dim,
                        n_iterations, block_diag):
    """One batch tile of CapsLayer.forward + AgreementRouting.forward.

    x_ref: (IC*ID, TB)                         f32  primary caps output, batch on lanes
    w_ref: (IC*ID, IC*OC*OD)  if block_diag    f32  block-diagonal weight (resident)
           (IC, ID, OC*OD)    otherwise        f32  original lane-dense weight (resident)
    b_ref: (IC, OC)                            f32  routing logits (batch invariant)
    v_ref: (OC, OD, TB)                        f32  output capsules
    c_ref: (IC, OC, TB)                        f32  final coupling coefficients
    """
    IC, ID, OC, OD = input_caps, input_dim, output_caps, output_dim
    TB = x_ref.shape[-1]

    x = x_ref[...]                                                 # (IC*ID, TB)

    # ---- hot path 1: prediction matmul on the MXU (f32 in, f32 acc) ------------
    if block_diag:
        # One K = IC*ID matmul against the block-diagonal weight. W keeps its big dim
        # (IC*OC*OD) lane-dense; contraction is on the sublane axis of both operands
        # (trans-A) and the batch tile rides the MXU N dimension.
        u_flat = jnp.einsum('kn,kb->nb', w_ref[...], x,
                            preferred_element_type=jnp.float32)   # (IC*OC*OD, TB)
        u4 = u_flat.reshape(IC, OC, OD, TB)
    else:
        # Batched-over-IC matmul with W in its original lane-dense orientation.
        xr = x.reshape(IC, ID, TB)
        u = jnp.einsum('ijn,ijb->inb', w_ref[...], xr,
                       preferred_element_type=jnp.float32)        # (IC, OC*OD, TB)
        u4 = u.reshape(IC, OC, OD, TB)

    def softmax_over_oc(logits):                  # softmax along the OC axis (axis=1)
        m = jnp.max(logits, axis=1, keepdims=True)
        e = jnp.exp(logits - m)
        return e / jnp.sum(e, axis=1, keepdims=True)

    def squash(s):                                # (OC, OD, TB), capsule dim = OD
        l2 = jnp.sum(s * s, axis=1, keepdims=True)                # (OC, 1, TB)
        # eps keeps zero-padded batch lanes finite; negligible for real data.
        scale = l2 / (1.0 + l2) * jax.lax.rsqrt(l2 + 1e-12)
        return s * scale

    def route(c):                                 # c: (IC, OC, X) with X in {1, TB}
        s = jnp.sum(c[:, :, None, :] * u4, axis=0)                # (OC, OD, TB)
        return squash(s)

    # ---- initial couplings: batch-invariant softmax on the tiny (IC, OC) logits ----
    b0 = b_ref[...]                                               # (IC, OC)
    c0 = softmax_over_oc(b0[:, :, None])                          # (IC, OC, 1)
    v = route(c0)

    if n_iterations == 0:
        c = jnp.broadcast_to(c0, (IC, OC, TB))
    else:
        b_batch = b0[:, :, None]                                  # (IC, OC, 1)
        c = c0
        # ---- hot path 2: agreement-routing iterations (whole-tensor math) ----
        for _ in range(n_iterations):
            agree = jnp.sum(u4 * v[None, :, :, :], axis=2)        # (IC, OC, TB)
            b_batch = b_batch + agree                             # -> (IC, OC, TB)
            c = softmax_over_oc(b_batch)
            v = route(c)

    # lane-dense stores: batch tile on the last (lane) dim of both outputs
    v_ref[...] = v.astype(v_ref.dtype)
    c_ref[...] = c.astype(c_ref.dtype)


@functools.partial(jax.jit, static_argnames=('output_caps', 'output_dim',
                                             'n_iterations', 'batch_tile',
                                             'max_block_diag_bytes'))
def caps_layer_forward(caps_output, weights, b_logits, *, output_caps, output_dim,
                       n_iterations=3, batch_tile=512,
                       max_block_diag_bytes=8 * 1024 * 1024):
    """caps_output: (B, IC, ID) f32; weights: (IC, ID, OC*OD) f32; b_logits: (IC, OC).

    Returns (v, c) with v: (B, OC, OD) and c: (B, IC, OC, 1), matching the PyTorch
    CapsLayer + AgreementRouting forward for n_iterations >= 1 (for n_iterations == 0
    the values match but c is returned batch-broadcast).
    """
    B, IC, ID = caps_output.shape
    OC, OD = output_caps, output_dim
    assert weights.shape == (IC, ID, OC * OD)
    assert b_logits.shape == (IC, OC)

    # Batch tiling: batch rides the lane dim. Whole batch in one block when small;
    # otherwise fat tiles that are multiples of 256 (fills the 256-wide v6e/v7x MXU N
    # dim) and >= 2 blocks so the "parallel" axis can shard across v7x's 2 TensorCores.
    if B <= batch_tile:
        tb = b_pad = B
    else:
        assert batch_tile % 256 == 0, "batch_tile must be a multiple of 256"
        tb = batch_tile
        b_pad = pl.cdiv(B, tb) * tb
    n_blocks = b_pad // tb

    f32 = jnp.float32
    # Wrapper-side layout plumbing (outside the kernel): batch to the last (lane) dim,
    # capsule inputs flattened so the kernel sees (IC*ID, B).
    x_flat = jnp.transpose(caps_output.astype(f32), (1, 2, 0)).reshape(IC * ID, B)
    if b_pad != B:
        x_flat = jnp.pad(x_flat, ((0, 0), (0, b_pad - B)))
    b2 = b_logits.astype(f32)                                       # (IC, OC)

    # Collapse the IC small (K = ID) matmuls into one K = IC*ID matmul against a
    # block-diagonal weight when that weight is small enough to stay VMEM-resident
    # (IC is small in this config); otherwise keep W in its original layout.
    block_diag = IC * ID * IC * OC * OD * 4 <= max_block_diag_bytes
    if block_diag:
        eye = jnp.eye(IC, dtype=f32)
        w_in = jnp.einsum('ik,ijn->ijkn', eye, weights.astype(f32)).reshape(
            IC * ID, IC * OC * OD)
        w_spec = pl.BlockSpec((IC * ID, IC * OC * OD), lambda nb: (0, 0))
    else:
        w_in = weights.astype(f32)                                  # (IC, ID, OC*OD)
        w_spec = pl.BlockSpec((IC, ID, OC * OD), lambda nb: (0, 0, 0))

    kern = functools.partial(
        caps_routing_kernel, input_caps=IC, input_dim=ID, output_caps=OC,
        output_dim=OD, n_iterations=n_iterations, block_diag=block_diag)

    v_t, c_t = pl.pallas_call(
        kern,
        grid=(n_blocks,),
        in_specs=[
            pl.BlockSpec((IC * ID, tb), lambda nb: (0, nb)),        # x tile
            w_spec,                                                 # W (resident)
            pl.BlockSpec((IC, OC), lambda nb: (0, 0)),              # b (resident)
        ],
        out_specs=(
            pl.BlockSpec((OC, OD, tb), lambda nb: (0, 0, nb)),
            pl.BlockSpec((IC, OC, tb), lambda nb: (0, 0, nb)),
        ),
        out_shape=(
            jax.ShapeDtypeStruct((OC, OD, b_pad), jnp.float32),
            jax.ShapeDtypeStruct((IC, OC, b_pad), jnp.float32),
        ),
        compiler_params=pltpu.CompilerParams(
            dimension_semantics=("parallel",),
            # explicit scoped-VMEM cap, <= physical on all gens (64 MiB on v7x)
            vmem_limit_bytes=64 * 1024 * 1024),
    )(x_flat, w_in, b2)

    v = jnp.transpose(v_t, (2, 0, 1))[:B]                           # (B, OC, OD)
    c = jnp.transpose(c_t, (2, 0, 1))[:B, :, :, None]               # (B, IC, OC, 1)
    return v, c


def _reference_forward(caps_output, weights, b_logits, *, output_caps, output_dim,
                       n_iterations=3):
    # Pure-JAX (f32) re-implementation of the PyTorch forward, verification only.
    B, IC, ID = caps_output.shape
    OC, OD = output_caps, output_dim
    u = jnp.einsum('bij,ijk->bik', caps_output.astype(jnp.float32),
                   weights.astype(jnp.float32),
                   preferred_element_type=jnp.float32).reshape(B, IC, OC, OD)

    def squash(s):
        l2 = jnp.sum(s * s, axis=2, keepdims=True)
        return s * (l2 / (1.0 + l2) / jnp.sqrt(l2))

    c = jax.nn.softmax(b_logits, axis=1)                            # (IC, OC)
    s = jnp.sum(c[None, :, :, None] * u, axis=1)                    # (B, OC, OD)
    v = squash(s)
    c_full = jnp.broadcast_to(c[None, :, :, None], (B, IC, OC, 1))
    b_batch = jnp.broadcast_to(b_logits[None], (B, IC, OC))
    for _ in range(n_iterations):
        b_batch = b_batch + jnp.sum(u * v[:, None, :, :], axis=-1)
        c_full = jax.nn.softmax(b_batch, axis=-1)[..., None]        # (B, IC, OC, 1)
        s = jnp.sum(c_full * u, axis=1)
        v = squash(s)
    return v, c_full


def _check(B, IC, ID, OC, OD, n_iter, batch_tile, key,
           max_block_diag_bytes=8 * 1024 * 1024):
    kx, kw = jax.random.split(key)
    stdv = 1.0 / math.sqrt(IC)                    # CapsLayer.reset_parameters()
    weights = jax.random.uniform(kw, (IC, ID, OC * OD), minval=-stdv, maxval=stdv,
                                 dtype=jnp.float32)
    b_logits = jnp.zeros((IC, OC), jnp.float32)   # AgreementRouting.b init
    caps_output = jax.random.normal(kx, (B, IC, ID), dtype=jnp.float32)

    v, c = caps_layer_forward(caps_output, weights, b_logits, output_caps=OC,
                              output_dim=OD, n_iterations=n_iter,
                              batch_tile=batch_tile,
                              max_block_diag_bytes=max_block_diag_bytes)
    jax.block_until_ready((v, c))
    probs = jnp.sqrt(jnp.sum(v * v, axis=2))      # forward_main: capsule lengths

    v_ref, c_ref = _reference_forward(caps_output, weights, b_logits, output_caps=OC,
                                      output_dim=OD, n_iterations=n_iter)
    probs_ref = jnp.sqrt(jnp.sum(v_ref * v_ref, axis=2))

    assert v.shape == (B, OC, OD) and c.shape == (B, IC, OC, 1)
    assert bool(jnp.all(jnp.isfinite(v))) and bool(jnp.all(jnp.isfinite(c)))
    assert jnp.allclose(v, v_ref, rtol=1e-2, atol=1e-2), \
        f"v mismatch: {jnp.max(jnp.abs(v - v_ref))}"
    assert jnp.allclose(c, c_ref, rtol=1e-2, atol=1e-2), \
        f"c mismatch: {jnp.max(jnp.abs(c - c_ref))}"
    assert jnp.allclose(probs, probs_ref, rtol=1e-2, atol=1e-2)


if __name__ == "__main__":
    key = jax.random.PRNGKey(0)
    k1, k2, k3 = jax.random.split(key, 3)
    # Small config implied by the module: capsule_dimention=8 (ID), 16-dim digit
    # capsules, n_classes=10, a handful of primary capsules, batch 2 (whole-batch tile).
    _check(B=2, IC=8, ID=8, OC=10, OD=16, n_iter=3, batch_tile=512, key=k1)
    # Batch-tiled grid: two "parallel" 256-lane blocks (exercises tiling + lane padding).
    _check(B=384, IC=8, ID=8, OC=10, OD=16, n_iter=3, batch_tile=256, key=k2)
    # Fallback path for large capsule counts: batched-over-IC matmul with W kept in its
    # original lane-dense layout (forced here by disabling the block-diagonal collapse).
    _check(B=2, IC=8, ID=8, OC=10, OD=16, n_iter=3, batch_tile=512, key=k3,
           max_block_diag_bytes=0)
    print("KERNEL_OK")
</pallas_src>

<mosaic_0001>
module attributes {stable_mosaic.version = 11 : i64} {
  func.func @caps_routing_kernel(%arg0: i32, %arg1: memref<64x2xf32, #tpu.memory_space<vmem>>, %arg2: memref<64x1280xf32, #tpu.memory_space<vmem>>, %arg3: memref<8x10xf32, #tpu.memory_space<vmem>>, %arg4: memref<10x16x2xf32, #tpu.memory_space<vmem>>, %arg5: memref<8x10x2xf32, #tpu.memory_space<vmem>>) attributes {dimension_semantics = [#tpu.dimension_semantics<parallel>], iteration_bounds = array<i64: 1>, scalar_prefetch = 0 : i64, scratch_operands = 0 : i64, tpu.core_type = #tpu.core_type<tc>, window_params = [{transform_indices = @transform_0, window_bounds = array<i64: 64, 2>}, {pipeline_mode = #tpu.pipeline_mode<synchronous>, transform_indices = @transform_1, window_bounds = array<i64: 64, 1280>}, {pipeline_mode = #tpu.pipeline_mode<synchronous>, transform_indices = @transform_2, window_bounds = array<i64: 8, 10>}, {transform_indices = @transform_3, window_bounds = array<i64: 10, 16, 2>}, {transform_indices = @transform_4, window_bounds = array<i64: 8, 10, 2>}]} {
    %c0 = arith.constant 0 : index
    %c0_0 = arith.constant 0 : index
    %0 = vector.load %arg1[%c0, %c0_0] : memref<64x2xf32, #tpu.memory_space<vmem>>, vector<64x2xf32>
    %c0_1 = arith.constant 0 : index
    %c0_2 = arith.constant 0 : index
    %1 = vector.load %arg2[%c0_1, %c0_2] : memref<64x1280xf32, #tpu.memory_space<vmem>>, vector<64x1280xf32>
    "tpu.trace_start"() <{level = 10 : i32, message = "kn,kb->nb"}> : () -> ()
    %cst = arith.constant dense<0.000000e+00> : vector<1280x2xf32>
    %2 = tpu.matmul %1, %0, %cst {dimension_numbers = #tpu.dot_dimension_numbers<[0], [0], [1], [1], [0, 1, 1, 1], [], []>} : vector<64x1280xf32>, vector<64x2xf32>, vector<1280x2xf32> -> vector<1280x2xf32>
    "tpu.trace_stop"() : () -> ()
    %3 = vector.shape_cast %2 : vector<1280x2xf32> to vector<8x10x16x2xf32>
    %c0_3 = arith.constant 0 : index
    %c0_4 = arith.constant 0 : index
    %4 = vector.load %arg3[%c0_3, %c0_4] : memref<8x10xf32, #tpu.memory_space<vmem>>, vector<8x10xf32>
    %5 = vector.shape_cast %4 : vector<8x10xf32> to vector<8x10x1xf32>
    %cst_5 = arith.constant dense<0xFF800000> : vector<8x1xf32>
    %6 = vector.multi_reduction <maximumf>, %5, %cst_5 [1] : vector<8x10x1xf32> to vector<8x1xf32>
    %7 = vector.shape_cast %6 : vector<8x1xf32> to vector<8x1x1xf32>
    %8 = vector.broadcast %7 : vector<8x1x1xf32> to vector<8x10x1xf32>
    %9 = arith.subf %5, %8 : vector<8x10x1xf32>
    %10 = math.exp %9 : vector<8x10x1xf32>
    %cst_6 = arith.constant dense<0.000000e+00> : vector<8x1xf32>
    %11 = vector.multi_reduction <add>, %10, %cst_6 [1] : vector<8x10x1xf32> to vector<8x1xf32>
    %12 = vector.shape_cast %11 : vector<8x1xf32> to vector<8x1x1xf32>
    %13 = vector.broadcast %12 : vector<8x1x1xf32> to vector<8x10x1xf32>
    %14 = arith.divf %10, %13 : vector<8x10x1xf32>
    %15 = vector.shape_cast %14 : vector<8x10x1xf32> to vector<8x10x1x1xf32>
    %16 = vector.broadcast %15 : vector<8x10x1x1xf32> to vector<8x10x16x2xf32>
    %17 = arith.mulf %16, %3 : vector<8x10x16x2xf32>
    %cst_7 = arith.constant dense<0.000000e+00> : vector<10x16x2xf32>
    %18 = vector.multi_reduction <add>, %17, %cst_7 [0] : vector<8x10x16x2xf32> to vector<10x16x2xf32>
    %19 = arith.mulf %18, %18 : vector<10x16x2xf32>
    %cst_8 = arith.constant dense<0.000000e+00> : vector<10x2xf32>
    %20 = vector.multi_reduction <add>, %19, %cst_8 [1] : vector<10x16x2xf32> to vector<10x2xf32>
    %21 = vector.shape_cast %20 : vector<10x2xf32> to vector<10x1x2xf32>
    %cst_9 = arith.constant 1.000000e+00 : f32
    %22 = vector.broadcast %cst_9 : f32 to vector<10x1x2xf32>
    %23 = arith.addf %22, %21 : vector<10x1x2xf32>
    %24 = arith.divf %21, %23 : vector<10x1x2xf32>
    %cst_10 = arith.constant 9.99999996E-13 : f32
    %25 = vector.broadcast %cst_10 : f32 to vector<10x1x2xf32>
    %26 = arith.addf %21, %25 : vector<10x1x2xf32>
    %27 = math.rsqrt %26 : vector<10x1x2xf32>
    %28 = arith.mulf %24, %27 : vector<10x1x2xf32>
    %29 = vector.broadcast %28 : vector<10x1x2xf32> to vector<10x16x2xf32>
    %30 = arith.mulf %18, %29 : vector<10x16x2xf32>
    %31 = vector.shape_cast %4 : vector<8x10xf32> to vector<8x10x1xf32>
    %32 = vector.shape_cast %30 : vector<10x16x2xf32> to vector<1x10x16x2xf32>
    %33 = vector.broadcast %32 : vector<1x10x16x2xf32> to vector<8x10x16x2xf32>
    %34 = arith.mulf %3, %33 : vector<8x10x16x2xf32>
    %cst_11 = arith.constant dense<0.000000e+00> : vector<8x10x2xf32>
    %35 = vector.multi_reduction <add>, %34, %cst_11 [2] : vector<8x10x16x2xf32> to vector<8x10x2xf32>
    %36 = vector.broadcast %31 : vector<8x10x1xf32> to vector<8x10x2xf32>
    %37 = arith.addf %36, %35 : vector<8x10x2xf32>
    %cst_12 = arith.constant dense<0xFF800000> : vector<8x2xf32>
    %38 = vector.multi_reduction <maximumf>, %37, %cst_12 [1] : vector<8x10x2xf32> to vector<8x2xf32>
    %39 = vector.shape_cast %38 : vector<8x2xf32> to vector<8x1x2xf32>
    %40 = vector.broadcast %39 : vector<8x1x2xf32> to vector<8x10x2xf32>
    %41 = arith.subf %37, %40 : vector<8x10x2xf32>
    %42 = math.exp %41 : vector<8x10x2xf32>
    %cst_13 = arith.constant dense<0.000000e+00> : vector<8x2xf32>
    %43 = vector.multi_reduction <add>, %42, %cst_13 [1] : vector<8x10x2xf32> to vector<8x2xf32>
    %44 = vector.shape_cast %43 : vector<8x2xf32> to vector<8x1x2xf32>
    %45 = vector.broadcast %44 : vector<8x1x2xf32> to vector<8x10x2xf32>
    %46 = arith.divf %42, %45 : vector<8x10x2xf32>
    %47 = vector.shape_cast %46 : vector<8x10x2xf32> to vector<8x10x1x2xf32>
    %48 = vector.broadcast %47 : vector<8x10x1x2xf32> to vector<8x10x16x2xf32>
    %49 = arith.mulf %48, %3 : vector<8x10x16x2xf32>
    %cst_14 = arith.constant dense<0.000000e+00> : vector<10x16x2xf32>
    %50 = vector.multi_reduction <add>, %49, %cst_14 [0] : vector<8x10x16x2xf32> to vector<10x16x2xf32>
    %51 = arith.mulf %50, %50 : vector<10x16x2xf32>
    %cst_15 = arith.constant dense<0.000000e+00> : vector<10x2xf32>
    %52 = vector.multi_reduction <add>, %51, %cst_15 [1] : vector<10x16x2xf32> to vector<10x2xf32>
    %53 = vector.shape_cast %52 : vector<10x2xf32> to vector<10x1x2xf32>
    %cst_16 = arith.constant 1.000000e+00 : f32
    %54 = vector.broadcast %cst_16 : f32 to vector<10x1x2xf32>
    %55 = arith.addf %54, %53 : vector<10x1x2xf32>
    %56 = arith.divf %53, %55 : vector<10x1x2xf32>
    %cst_17 = arith.constant 9.99999996E-13 : f32
    %57 = vector.broadcast %cst_17 : f32 to vector<10x1x2xf32>
    %58 = arith.addf %53, %57 : vector<10x1x2xf32>
    %59 = math.rsqrt %58 : vector<10x1x2xf32>
    %60 = arith.mulf %56, %59 : vector<10x1x2xf32>
    %61 = vector.broadcast %60 : vector<10x1x2xf32> to vector<10x16x2xf32>
    %62 = arith.mulf %50, %61 : vector<10x16x2xf32>
    %63 = vector.shape_cast %62 : vector<10x16x2xf32> to vector<1x10x16x2xf32>
    %64 = vector.broadcast %63 : vector<1x10x16x2xf32> to vector<8x10x16x2xf32>
    %65 = arith.mulf %3, %64 : vector<8x10x16x2xf32>
    %cst_18 = arith.constant dense<0.000000e+00> : vector<8x10x2xf32>
    %66 = vector.multi_reduction <add>, %65, %cst_18 [2] : vector<8x10x16x2xf32> to vector<8x10x2xf32>
    %67 = arith.addf %37, %66 : vector<8x10x2xf32>
    %cst_19 = arith.constant dense<0xFF800000> : vector<8x2xf32>
    %68 = vector.multi_reduction <maximumf>, %67, %cst_19 [1] : vector<8x10x2xf32> to vector<8x2xf32>
    %69 = vector.shape_cast %68 : vector<8x2xf32> to vector<8x1x2xf32>
    %70 = vector.broadcast %69 : vector<8x1x2xf32> to vector<8x10x2xf32>
    %71 = arith.subf %67, %70 : vector<8x10x2xf32>
    %72 = math.exp %71 : vector<8x10x2xf32>
    %cst_20 = arith.constant dense<0.000000e+00> : vector<8x2xf32>
    %73 = vector.multi_reduction <add>, %72, %cst_20 [1] : vector<8x10x2xf32> to vector<8x2xf32>
    %74 = vector.shape_cast %73 : vector<8x2xf32> to vector<8x1x2xf32>
    %75 = vector.broadcast %74 : vector<8x1x2xf32> to vector<8x10x2xf32>
    %76 = arith.divf %72, %75 : vector<8x10x2xf32>
    %77 = vector.shape_cast %76 : vector<8x10x2xf32> to vector<8x10x1x2xf32>
    %78 = vector.broadcast %77 : vector<8x10x1x2xf32> to vector<8x10x16x2xf32>
    %79 = arith.mulf %78, %3 : vector<8x10x16x2xf32>
    %cst_21 = arith.constant dense<0.000000e+00> : vector<10x16x2xf32>
    %80 = vector.multi_reduction <add>, %79, %cst_21 [0] : vector<8x10x16x2xf32> to vector<10x16x2xf32>
    %81 = arith.mulf %80, %80 : vector<10x16x2xf32>
    %cst_22 = arith.constant dense<0.000000e+00> : vector<10x2xf32>
    %82 = vector.multi_reduction <add>, %81, %cst_22 [1] : vector<10x16x2xf32> to vector<10x2xf32>
    %83 = vector.shape_cast %82 : vector<10x2xf32> to vector<10x1x2xf32>
    %cst_23 = arith.constant 1.000000e+00 : f32
    %84 = vector.broadcast %cst_23 : f32 to vector<10x1x2xf32>
    %85 = arith.addf %84, %83 : vector<10x1x2xf32>
    %86 = arith.divf %83, %85 : vector<10x1x2xf32>
    %cst_24 = arith.constant 9.99999996E-13 : f32
    %87 = vector.broadcast %cst_24 : f32 to vector<10x1x2xf32>
    %88 = arith.addf %83, %87 : vector<10x1x2xf32>
    %89 = math.rsqrt %88 : vector<10x1x2xf32>
    %90 = arith.mulf %86, %89 : vector<10x1x2xf32>
    %91 = vector.broadcast %90 : vector<10x1x2xf32> to vector<10x16x2xf32>
    %92 = arith.mulf %80, %91 : vector<10x16x2xf32>
    %93 = vector.shape_cast %92 : vector<10x16x2xf32> to vector<1x10x16x2xf32>
    %94 = vector.broadcast %93 : vector<1x10x16x2xf32> to vector<8x10x16x2xf32>
    %95 = arith.mulf %3, %94 : vector<8x10x16x2xf32>
    %cst_25 = arith.constant dense<0.000000e+00> : vector<8x10x2xf32>
    %96 = vector.multi_reduction <add>, %95, %cst_25 [2] : vector<8x10x16x2xf32> to vector<8x10x2xf32>
    %97 = arith.addf %67, %96 : vector<8x10x2xf32>
    %cst_26 = arith.constant dense<0xFF800000> : vector<8x2xf32>
    %98 = vector.multi_reduction <maximumf>, %97, %cst_26 [1] : vector<8x10x2xf32> to vector<8x2xf32>
    %99 = vector.shape_cast %98 : vector<8x2xf32> to vector<8x1x2xf32>
    %100 = vector.broadcast %99 : vector<8x1x2xf32> to vector<8x10x2xf32>
    %101 = arith.subf %97, %100 : vector<8x10x2xf32>
    %102 = math.exp %101 : vector<8x10x2xf32>
    %cst_27 = arith.constant dense<0.000000e+00> : vector<8x2xf32>
    %103 = vector.multi_reduction <add>, %102, %cst_27 [1] : vector<8x10x2xf32> to vector<8x2xf32>
    %104 = vector.shape_cast %103 : vector<8x2xf32> to vector<8x1x2xf32>
    %105 = vector.broadcast %104 : vector<8x1x2xf32> to vector<8x10x2xf32>
    %106 = arith.divf %102, %105 : vector<8x10x2xf32>
    %107 = vector.shape_cast %106 : vector<8x10x2xf32> to vector<8x10x1x2xf32>
    %108 = vector.broadcast %107 : vector<8x10x1x2xf32> to vector<8x10x16x2xf32>
    %109 = arith.mulf %108, %3 : vector<8x10x16x2xf32>
    %cst_28 = arith.constant dense<0.000000e+00> : vector<10x16x2xf32>
    %110 = vector.multi_reduction <add>, %109, %cst_28 [0] : vector<8x10x16x2xf32> to vector<10x16x2xf32>
    %111 = arith.mulf %110, %110 : vector<10x16x2xf32>
    %cst_29 = arith.constant dense<0.000000e+00> : vector<10x2xf32>
    %112 = vector.multi_reduction <add>, %111, %cst_29 [1] : vector<10x16x2xf32> to vector<10x2xf32>
    %113 = vector.shape_cast %112 : vector<10x2xf32> to vector<10x1x2xf32>
    %cst_30 = arith.constant 1.000000e+00 : f32
    %114 = vector.broadcast %cst_30 : f32 to vector<10x1x2xf32>
    %115 = arith.addf %114, %113 : vector<10x1x2xf32>
    %116 = arith.divf %113, %115 : vector<10x1x2xf32>
    %cst_31 = arith.constant 9.99999996E-13 : f32
    %117 = vector.broadcast %cst_31 : f32 to vector<10x1x2xf32>
    %118 = arith.addf %113, %117 : vector<10x1x2xf32>
    %119 = math.rsqrt %118 : vector<10x1x2xf32>
    %120 = arith.mulf %116, %119 : vector<10x1x2xf32>
    %121 = vector.broadcast %120 : vector<10x1x2xf32> to vector<10x16x2xf32>
    %122 = arith.mulf %110, %121 : vector<10x16x2xf32>
    %c0_32 = arith.constant 0 : index
    %c0_33 = arith.constant 0 : index
    %c0_34 = arith.constant 0 : index
    %123 = vector.load %arg4[%c0_32, %c0_33, %c0_34] : memref<10x16x2xf32, #tpu.memory_space<vmem>>, vector<10x16x2xf32>
    tpu.vector_store %arg4[%c0_32, %c0_33, %c0_34], %122 {strides = array<i32>} : memref<10x16x2xf32, #tpu.memory_space<vmem>>, vector<10x16x2xf32>,
    %c0_35 = arith.constant 0 : index
    %c0_36 = arith.constant 0 : index
    %c0_37 = arith.constant 0 : index
    %124 = vector.load %arg5[%c0_35, %c0_36, %c0_37] : memref<8x10x2xf32, #tpu.memory_space<vmem>>, vector<8x10x2xf32>
    tpu.vector_store %arg5[%c0_35, %c0_36, %c0_37], %106 {strides = array<i32>} : memref<8x10x2xf32, #tpu.memory_space<vmem>>, vector<8x10x2xf32>,
    return
  }
  func.func @transform_0(%arg0: i32) -> (i32, i32) {
    %c0_i32 = arith.constant 0 : i32
    %c0_i32_0 = arith.constant 0 : i32
    return %c0_i32, %arg0 : i32, i32
  }
  func.func @transform_1(%arg0: i32) -> (i32, i32) {
    %c0_i32 = arith.constant 0 : i32
    %c0_i32_0 = arith.constant 0 : i32
    %c0_i32_1 = arith.constant 0 : i32
    return %c0_i32, %c0_i32_0 : i32, i32
  }
  func.func @transform_2(%arg0: i32) -> (i32, i32) {
    %c0_i32 = arith.constant 0 : i32
    %c0_i32_0 = arith.constant 0 : i32
    %c0_i32_1 = arith.constant 0 : i32
    return %c0_i32, %c0_i32_0 : i32, i32
  }
  func.func @transform_3(%arg0: i32) -> (i32, i32, i32) {
    %c0_i32 = arith.constant 0 : i32
    %c0_i32_0 = arith.constant 0 : i32
    %c0_i32_1 = arith.constant 0 : i32
    return %c0_i32, %c0_i32_0, %arg0 : i32, i32, i32
  }
  func.func @transform_4(%arg0: i32) -> (i32, i32, i32) {
    %c0_i32 = arith.constant 0 : i32
    %c0_i32_0 = arith.constant 0 : i32
    %c0_i32_1 = arith.constant 0 : i32
    return %c0_i32, %c0_i32_0, %arg0 : i32, i32, i32
  }
}

</mosaic_0001>

<llo_original>
// kernel: caps_layer_forward.1
$region0: #{caps_layer_forward.1}
  #allocation0 [shape = 'u32[]', space=smem, size = 0x4, offset = 0x4, fixed_abs, tag = 'smem constant byte address 0x4 - core index']
  #allocation1 [shape = 'u32[144,128]{1,0:T(1,128)}', space=vmem, size = 0x12000, scoped, tag = 'internal scratch']
  %s0 = inlined_call_operand.vmem [shape: f32[64,2], index: 0, kind: input, shape index: {}]
  %s1 = inlined_call_operand.vmem [shape: f32[64,1280], index: 1, kind: input, shape index: {}]
  %s2 = inlined_call_operand.vmem [shape: f32[8,10], index: 2, kind: input, shape index: {}]
  %s3 = inlined_call_operand.vmem [shape: f32[10,16,2], index: 3, kind: output, shape index: {0}]
  %s4 = inlined_call_operand.vmem [shape: f32[8,10,2], index: 4, kind: output, shape index: {1}]
  %5 = xla_tuple %s3, %s4
  %s6 = sld [smem:[#allocation0]]
  $region30: #{caps_layer_forward.1} parent=0
    _
  %s8 = ssub.s32 1, %s6
  %s9 = scalar_select 0, %s8, %s6
  // Predicated region
  $region2: #{caps_layer_forward.1} parent=0 // pred_check
    _
  $region3: #{caps_layer_forward.1} parent=0 // pred_check_branch
    %11 = sbr.rel (0) target = $region5
  $region4: #{caps_layer_forward.1} parent=0 // pred_region
    _
  $region5: #{caps_layer_forward.1} parent=0 // pred_fallthru
    _
  // Predicated region
  $region6: #{caps_layer_forward.1} parent=0 // pred_check
    _
  $region7: #{caps_layer_forward.1} parent=0 // pred_check_branch
    %13 = sbr.rel (0) target = $region9
  $region8: #{caps_layer_forward.1} parent=0 // pred_region
    _
  $region9: #{caps_layer_forward.1} parent=0 // pred_fallthru
    _
  // Predicated region
  $region10: #{caps_layer_forward.1} parent=0 // pred_check
    _
  $region11: #{caps_layer_forward.1} parent=0 // pred_check_branch
    %15 = sbr.rel (0) target = $region13
  $region12: #{caps_layer_forward.1} parent=0 // pred_region
    _
  $region13: #{caps_layer_forward.1} parent=0 // pred_fallthru
    _
  %v16 = vld [vmem:[%s0] sm:$0xff]
  %v17 = vld [vmem:[%s0 + $0x8] sm:$0xff]
  %v18 = vld [vmem:[%s0 + $0x10] sm:$0xff]
  %v19 = vld [vmem:[%s0 + $0x18] sm:$0xff]
  %v20 = vld [vmem:[%s0 + $0x20] sm:$0xff]
  %v21 = vld [vmem:[%s0 + $0x28] sm:$0xff]
  %v22 = vld [vmem:[%s0 + $0x30] sm:$0xff]
  %v23 = vld [vmem:[%s0 + $0x38] sm:$0xff]
  %v24 = vld [vmem:[%s1] sm:$0xff]
  %v25 = vld [vmem:[%s1 + $0x8] sm:$0xff]
  %v26 = vld [vmem:[%s1 + $0x10] sm:$0xff]
  %v27 = vld [vmem:[%s1 + $0x18] sm:$0xff]
  %v28 = vld [vmem:[%s1 + $0x20] sm:$0xff]
  %v29 = vld [vmem:[%s1 + $0x28] sm:$0xff]
  %v30 = vld [vmem:[%s1 + $0x30] sm:$0xff]
  %v31 = vld [vmem:[%s1 + $0x38] sm:$0xff]
  %v32 = vld [vmem:[%s1 + $0x40] sm:$0xff]
  %v33 = vld [vmem:[%s1 + $0x48] sm:$0xff]
  %v34 = vld [vmem:[%s1 + $0x50] sm:$0xff]
  %v35 = vld [vmem:[%s1 + $0x58] sm:$0xff]
  %v36 = vld [vmem:[%s1 + $0x60] sm:$0xff]
  %v37 = vld [vmem:[%s1 + $0x68] sm:$0xff]
  %v38 = vld [vmem:[%s1 + $0x70] sm:$0xff]
  %v39 = vld [vmem:[%s1 + $0x78] sm:$0xff]
  %v40 = vld [vmem:[%s1 + $0x80] sm:$0xff]
  %v41 = vld [vmem:[%s1 + $0x88] sm:$0xff]
  %v42 = vld [vmem:[%s1 + $0x90] sm:$0xff]
  %v43 = vld [vmem:[%s1 + $0x98] sm:$0xff]
  %v44 = vld [vmem:[%s1 + $0xa0] sm:$0xff]
  %v45 = vld [vmem:[%s1 + $0xa8] sm:$0xff]
  %v46 = vld [vmem:[%s1 + $0xb0] sm:$0xff]
  %v47 = vld [vmem:[%s1 + $0xb8] sm:$0xff]
  %v48 = vld [vmem:[%s1 + $0xc0] sm:$0xff]
  %v49 = vld [vmem:[%s1 + $0xc8] sm:$0xff]
  %v50 = vld [vmem:[%s1 + $0xd0] sm:$0xff]
  %v51 = vld [vmem:[%s1 + $0xd8] sm:$0xff]
  %v52 = vld [vmem:[%s1 + $0xe0] sm:$0xff]
  %v53 = vld [vmem:[%s1 + $0xe8] sm:$0xff]
  %v54 = vld [vmem:[%s1 + $0xf0] sm:$0xff]
  %v55 = vld [vmem:[%s1 + $0xf8] sm:$0xff]
  %v56 = vld [vmem:[%s1 + $0x100] sm:$0xff]
  %v57 = vld [vmem:[%s1 + $0x108] sm:$0xff]
  %v58 = vld [vmem:[%s1 + $0x110] sm:$0xff]
  %v59 = vld [vmem:[%s1 + $0x118] sm:$0xff]
  %v60 = vld [vmem:[%s1 + $0x120] sm:$0xff]
  %v61 = vld [vmem:[%s1 + $0x128] sm:$0xff]
  %v62 = vld [vmem:[%s1 + $0x130] sm:$0xff]
  %v63 = vld [vmem:[%s1 + $0x138] sm:$0xff]
  %v64 = vld [vmem:[%s1 + $0x140] sm:$0xff]
  %v65 = vld [vmem:[%s1 + $0x148] sm:$0xff]
  %v66 = vld [vmem:[%s1 + $0x150] sm:$0xff]
  %v67 = vld [vmem:[%s1 + $0x158] sm:$0xff]
  %v68 = vld [vmem:[%s1 + $0x160] sm:$0xff]
  %v69 = vld [vmem:[%s1 + $0x168] sm:$0xff]
  %v70 = vld [vmem:[%s1 + $0x170] sm:$0xff]
  %v71 = vld [vmem:[%s1 + $0x178] sm:$0xff]
  %v72 = vld [vmem:[%s1 + $0x180] sm:$0xff]
  %v73 = vld [vmem:[%s1 + $0x188] sm:$0xff]
  %v74 = vld [vmem:[%s1 + $0x190] sm:$0xff]
  %v75 = vld [vmem:[%s1 + $0x198] sm:$0xff]
  %v76 = vld [vmem:[%s1 + $0x1a0] sm:$0xff]
  %v77 = vld [vmem:[%s1 + $0x1a8] sm:$0xff]
  %v78 = vld [vmem:[%s1 + $0x1b0] sm:$0xff]
  %v79 = vld [vmem:[%s1 + $0x1b8] sm:$0xff]
  %v80 = vld [vmem:[%s1 + $0x1c0] sm:$0xff]
  %v81 = vld [vmem:[%s1 + $0x1c8] sm:$0xff]
  %v82 = vld [vmem:[%s1 + $0x1d0] sm:$0xff]
  %v83 = vld [vmem:[%s1 + $0x1d8] sm:$0xff]
  %v84 = vld [vmem:[%s1 + $0x1e0] sm:$0xff]
  %v85 = vld [vmem:[%s1 + $0x1e8] sm:$0xff]
  %v86 = vld [vmem:[%s1 + $0x1f0] sm:$0xff]
  %v87 = vld [vmem:[%s1 + $0x1f8] sm:$0xff]
  %v88 = vld [vmem:[%s1 + $0x200] sm:$0xff]
  %v89 = vld [vmem:[%s1 + $0x208] sm:$0xff]
  %v90 = vld [vmem:[%s1 + $0x210] sm:$0xff]
  %v91 = vld [vmem:[%s1 + $0x218] sm:$0xff]
  %v92 = vld [vmem:[%s1 + $0x220] sm:$0xff]
  %v93 = vld [vmem:[%s1 + $0x228] sm:$0xff]
  %v94 = vld [vmem:[%s1 + $0x230] sm:$0xff]
  %v95 = vld [vmem:[%s1 + $0x238] sm:$0xff]
  %v96 = vld [vmem:[%s1 + $0x240] sm:$0xff]
  %v97 = vld [vmem:[%s1 + $0x248] sm:$0xff]
  %v98 = vld [vmem:[%s1 + $0x250] sm:$0xff]
  %v99 = vld [vmem:[%s1 + $0x258] sm:$0xff]
  %v100 = vld [vmem:[%s1 + $0x260] sm:$0xff]
  %v101 = vld [vmem:[%s1 + $0x268] sm:$0xff]
  %v102 = vld [vmem:[%s1 + $0x270] sm:$0xff]
  %v103 = vld [vmem:[%s1 + $0x278] sm:$0xff]
  %104 = vxpose.xlu0.b32.start [1/16] %v24, 128
  %105 = vxpose.xlu0.b32.cont [2/16] %v34, 128
  %106 = vxpose.xlu0.b32.cont [3/16] %v44, 128
  %107 = vxpose.xlu0.b32.cont [4/16] %v54, 128
  %108 = vxpose.xlu0.b32.cont [5/16] %v64, 128
  %109 = vxpose.xlu0.b32.cont [6/16] %v74, 128
  %110 = vxpose.xlu0.b32.cont [7/16] %v84, 128
  %111 = vxpose.xlu0.b32.cont [8/16] %v94, 128
  %112 = vxpose.xlu0.b32.cont [9/16] 0.0, 128
  %113 = vxpose.xlu0.b32.cont [10/16] 0.0, 128
  %114 = vxpose.xlu0.b32.cont [11/16] 0.0, 128
  %115 = vxpose.xlu0.b32.cont [12/16] 0.0, 128
  %116 = vxpose.xlu0.b32.cont [13/16] 0.0, 128
  %117 = vxpose.xlu0.b32.cont [14/16] 0.0, 128
  %118 = vxpose.xlu0.b32.cont [15/16] 0.0, 128
  %119 = vxpose.xlu0.b32.end [16/16] 0.0, 128
  %v120 = vpop.trf.xlu0
  %v121 = vpop.trf.xlu0
  %v122 = vpop.trf.xlu0
  %v123 = vpop.trf.xlu0
  %v124 = vpop.trf.xlu0
  %v125 = vpop.trf.xlu0
  %v126 = vpop.trf.xlu0
  %v127 = vpop.trf.xlu0
  %v128 = vpop.trf.xlu0
  %v129 = vpop.trf.xlu0
  %v130 = vpop.trf.xlu0
  %v131 = vpop.trf.xlu0
  %v132 = vpop.trf.xlu0
  %v133 = vpop.trf.xlu0
  %v134 = vpop.trf.xlu0
  %v135 = vpop.trf.xlu0
  %136 = vxpose.xlu0.b32.start [1/16] %v25, 128
  %137 = vxpose.xlu0.b32.cont [2/16] %v35, 128
  %138 = vxpose.xlu0.b32.cont [3/16] %v45, 128
  %139 = vxpose.xlu0.b32.cont [4/16] %v55, 128
  %140 = vxpose.xlu0.b32.cont [5/16] %v65, 128
  %141 = vxpose.xlu0.b32.cont [6/16] %v75, 128
  %142 = vxpose.xlu0.b32.cont [7/16] %v85, 128
  %143 = vxpose.xlu0.b32.cont [8/16] %v95, 128
  %144 = vxpose.xlu0.b32.cont [9/16] 0.0, 128
  %145 = vxpose.xlu0.b32.cont [10/16] 0.0, 128
  %146 = vxpose.xlu0.b32.cont [11/16] 0.0, 128
  %147 = vxpose.xlu0.b32.cont [12/16] 0.0, 128
  %148 = vxpose.xlu0.b32.cont [13/16] 0.0, 128
  %149 = vxpose.xlu0.b32.cont [14/16] 0.0, 128
  %150 = vxpose.xlu0.b32.cont [15/16] 0.0, 128
  %151 = vxpose.xlu0.b32.end [16/16] 0.0, 128
  %v152 = vpop.trf.xlu0
  %v153 = vpop.trf.xlu0
  %v154 = vpop.trf.xlu0
  %v155 = vpop.trf.xlu0
  %v156 = vpop.trf.xlu0
  %v157 = vpop.trf.xlu0
  %v158 = vpop.trf.xlu0
  %v159 = vpop.trf.xlu0
  %v160 = vpop.trf.xlu0
  %v161 = vpop.trf.xlu0
  %v162 = vpop.trf.xlu0
  %v163 = vpop.trf.xlu0
  %v164 = vpop.trf.xlu0
  %v165 = vpop.trf.xlu0
  %v166 = vpop.trf.xlu0
  %v167 = vpop.trf.xlu0
  %168 = vxpose.xlu0.b32.start [1/16] %v26, 128
  %169 = vxpose.xlu0.b32.cont [2/16] %v36, 128
  %170 = vxpose.xlu0.b32.cont [3/16] %v46, 128
  %171 = vxpose.xlu0.b32.cont [4/16] %v56, 128
  %172 = vxpose.xlu0.b32.cont [5/16] %v66, 128
  %173 = vxpose.xlu0.b32.cont [6/16] %v76, 128
  %174 = vxpose.xlu0.b32.cont [7/16] %v86, 128
  %175 = vxpose.xlu0.b32.cont [8/16] %v96, 128
  %176 = vxpose.xlu0.b32.cont [9/16] 0.0, 128
  %177 = vxpose.xlu0.b32.cont [10/16] 0.0, 128
  %178 = vxpose.xlu0.b32.cont [11/16] 0.0, 128
  %179 = vxpose.xlu0.b32.cont [12/16] 0.0, 128
  %180 = vxpose.xlu0.b32.cont [13/16] 0.0, 128
  %181 = vxpose.xlu0.b32.cont [14/16] 0.0, 128
  %182 = vxpose.xlu0.b32.cont [15/16] 0.0, 128
  %183 = vxpose.xlu0.b32.end [16/16] 0.0, 128
  %v184 = vpop.trf.xlu0
  %v185 = vpop.trf.xlu0
  %v186 = vpop.trf.xlu0
  %v187 = vpop.trf.xlu0
  %v188 = vpop.trf.xlu0
  %v189 = vpop.trf.xlu0
  %v190 = vpop.trf.xlu0
  %v191 = vpop.trf.xlu0
  %v192 = vpop.trf.xlu0
  %v193 = vpop.trf.xlu0
  %v194 = vpop.trf.xlu0
  %v195 = vpop.trf.xlu0
  %v196 = vpop.trf.xlu0
  %v197 = vpop.trf.xlu0
  %v198 = vpop.trf.xlu0
  %v199 = vpop.trf.xlu0
  %200 = vxpose.xlu0.b32.start [1/16] %v27, 128
  %201 = vxpose.xlu0.b32.cont [2/16] %v37, 128
  %202 = vxpose.xlu0.b32.cont [3/16] %v47, 128
  %203 = vxpose.xlu0.b32.cont [4/16] %v57, 128
  %204 = vxpose.xlu0.b32.cont [5/16] %v67, 128
  %205 = vxpose.xlu0.b32.cont [6/16] %v77, 128
  %206 = vxpose.xlu0.b32.cont [7/16] %v87, 128
  %207 = vxpose.xlu0.b32.cont [8/16] %v97, 128
  %208 = vxpose.xlu0.b32.cont [9/16] 0.0, 128
  %209 = vxpose.xlu0.b32.cont [10/16] 0.0, 128
  %210 = vxpose.xlu0.b32.cont [11/16] 0.0, 128
  %211 = vxpose.xlu0.b32.cont [12/16] 0.0, 128
  %212 = vxpose.xlu0.b32.cont [13/16] 0.0, 128
  %213 = vxpose.xlu0.b32.cont [14/16] 0.0, 128
  %214 = vxpose.xlu0.b32.cont [15/16] 0.0, 128
  %215 = vxpose.xlu0.b32.end [16/16] 0.0, 128
  %v216 = vpop.trf.xlu0
  %v217 = vpop.trf.xlu0
  %v218 = vpop.trf.xlu0
  %v219 = vpop.trf.xlu0
  %v220 = vpop.trf.xlu0
  %v221 = vpop.trf.xlu0
  %v222 = vpop.trf.xlu0
  %v223 = vpop.trf.xlu0
  %v224 = vpop.trf.xlu0
  %v225 = vpop.trf.xlu0
  %v226 = vpop.trf.xlu0
  %v227 = vpop.trf.xlu0
  %v228 = vpop.trf.xlu0
  %v229 = vpop.trf.xlu0
  %v230 = vpop.trf.xlu0
  %v231 = vpop.trf.xlu0
  %232 = vxpose.xlu0.b32.start [1/16] %v28, 128
  %233 = vxpose.xlu0.b32.cont [2/16] %v38, 128
  %234 = vxpose.xlu0.b32.cont [3/16] %v48, 128
  %235 = vxpose.xlu0.b32.cont [4/16] %v58, 128
  %236 = vxpose.xlu0.b32.cont [5/16] %v68, 128
  %237 = vxpose.xlu0.b32.cont [6/16] %v78, 128
  %238 = vxpose.xlu0.b32.cont [7/16] %v88, 128
  %239 = vxpose.xlu0.b32.cont [8/16] %v98, 128
  %240 = vxpose.xlu0.b32.cont [9/16] 0.0, 128
  %241 = vxpose.xlu0.b32.cont [10/16] 0.0, 128
  %242 = vxpose.xlu0.b32.cont [11/16] 0.0, 128
  %243 = vxpose.xlu0.b32.cont [12/16] 0.0, 128
  %244 = vxpose.xlu0.b32.cont [13/16] 0.0, 128
  %245 = vxpose.xlu0.b32.cont [14/16] 0.0, 128
  %246 = vxpose.xlu0.b32.cont [15/16] 0.0, 128
  %247 = vxpose.xlu0.b32.end [16/16] 0.0, 128
  %v248 = vpop.trf.xlu0
  %v249 = vpop.trf.xlu0
  %v250 = vpop.trf.xlu0
  %v251 = vpop.trf.xlu0
  %v252 = vpop.trf.xlu0
  %v253 = vpop.trf.xlu0
  %v254 = vpop.trf.xlu0
  %v255 = vpop.trf.xlu0
  %v256 = vpop.trf.xlu0
  %v257 = vpop.trf.xlu0
  %v258 = vpop.trf.xlu0
  %v259 = vpop.trf.xlu0
  %v260 = vpop.trf.xlu0
  %v261 = vpop.trf.xlu0
  %v262 = vpop.trf.xlu0
  %v263 = vpop.trf.xlu0
  %264 = vxpose.xlu0.b32.start [1/16] %v29, 128
  %265 = vxpose.xlu0.b32.cont [2/16] %v39, 128
  %266 = vxpose.xlu0.b32.cont [3/16] %v49, 128
  %267 = vxpose.xlu0.b32.cont [4/16] %v59, 128
  %268 = vxpose.xlu0.b32.cont [5/16] %v69, 128
  %269 = vxpose.xlu0.b32.cont [6/16] %v79, 128
  %270 = vxpose.xlu0.b32.cont [7/16] %v89, 128
  %271 = vxpose.xlu0.b32.cont [8/16] %v99, 128
  %272 = vxpose.xlu0.b32.cont [9/16] 0.0, 128
  %273 = vxpose.xlu0.b32.cont [10/16] 0.0, 128
  %274 = vxpose.xlu0.b32.cont [11/16] 0.0, 128
  %275 = vxpose.xlu0.b32.cont [12/16] 0.0, 128
  %276 = vxpose.xlu0.b32.cont [13/16] 0.0, 128
  %277 = vxpose.xlu0.b32.cont [14/16] 0.0, 128
  %278 = vxpose.xlu0.b32.cont [15/16] 0.0, 128
  %279 = vxpose.xlu0.b32.end [16/16] 0.0, 128
  %v280 = vpop.trf.xlu0
  %v281 = vpop.trf.xlu0
  %v282 = vpop.trf.xlu0
  %v283 = vpop.trf.xlu0
  %v284 = vpop.trf.xlu0
  %v285 = vpop.trf.xlu0
  %v286 = vpop.trf.xlu0
  %v287 = vpop.trf.xlu0
  %v288 = vpop.trf.xlu0
  %v289 = vpop.trf.xlu0
  %v290 = vpop.trf.xlu0
  %v291 = vpop.trf.xlu0
  %v292 = vpop.trf.xlu0
  %v293 = vpop.trf.xlu0
  %v294 = vpop.trf.xlu0
  %v295 = vpop.trf.xlu0
  %296 = vxpose.xlu0.b32.start [1/16] %v30, 128
  %297 = vxpose.xlu0.b32.cont [2/16] %v40, 128
  %298 = vxpose.xlu0.b32.cont [3/16] %v50, 128
  %299 = vxpose.xlu0.b32.cont [4/16] %v60, 128
  %300 = vxpose.xlu0.b32.cont [5/16] %v70, 128
  %301 = vxpose.xlu0.b32.cont [6/16] %v80, 128
  %302 = vxpose.xlu0.b32.cont [7/16] %v90, 128
  %303 = vxpose.xlu0.b32.cont [8/16] %v100, 128
  %304 = vxpose.xlu0.b32.cont [9/16] 0.0, 128
  %305 = vxpose.xlu0.b32.cont [10/16] 0.0, 128
  %306 = vxpose.xlu0.b32.cont [11/16] 0.0, 128
  %307 = vxpose.xlu0.b32.cont [12/16] 0.0, 128
  %308 = vxpose.xlu0.b32.cont [13/16] 0.0, 128
  %309 = vxpose.xlu0.b32.cont [14/16] 0.0, 128
  %310 = vxpose.xlu0.b32.cont [15/16] 0.0, 128
  %311 = vxpose.xlu0.b32.end [16/16] 0.0, 128
  %v312 = vpop.trf.xlu0
  %v313 = vpop.trf.xlu0
  %v314 = vpop.trf.xlu0
  %v315 = vpop.trf.xlu0
  %v316 = vpop.trf.xlu0
  %v317 = vpop.trf.xlu0
  %v318 = vpop.trf.xlu0
  %v319 = vpop.trf.xlu0
  %v320 = vpop.trf.xlu0
  %v321 = vpop.trf.xlu0
  %v322 = vpop.trf.xlu0
  %v323 = vpop.trf.xlu0
  %v324 = vpop.trf.xlu0
  %v325 = vpop.trf.xlu0
  %v326 = vpop.trf.xlu0
  %v327 = vpop.trf.xlu0
  %328 = vxpose.xlu0.b32.start [1/16] %v31, 128
  %329 = vxpose.xlu0.b32.cont [2/16] %v41, 128
  %330 = vxpose.xlu0.b32.cont [3/16] %v51, 128
  %331 = vxpose.xlu0.b32.cont [4/16] %v61, 128
  %332 = vxpose.xlu0.b32.cont [5/16] %v71, 128
  %333 = vxpose.xlu0.b32.cont [6/16] %v81, 128
  %334 = vxpose.xlu0.b32.cont [7/16] %v91, 128
  %335 = vxpose.xlu0.b32.cont [8/16] %v101, 128
  %336 = vxpose.xlu0.b32.cont [9/16] 0.0, 128
  %337 = vxpose.xlu0.b32.cont [10/16] 0.0, 128
  %338 = vxpose.xlu0.b32.cont [11/16] 0.0, 128
  %339 = vxpose.xlu0.b32.cont [12/16] 0.0, 128
  %340 = vxpose.xlu0.b32.cont [13/16] 0.0, 128
  %341 = vxpose.xlu0.b32.cont [14/16] 0.0, 128
  %342 = vxpose.xlu0.b32.cont [15/16] 0.0, 128
  %343 = vxpose.xlu0.b32.end [16/16] 0.0, 128
  %v344 = vpop.trf.xlu0
  %v345 = vpop.trf.xlu0
  %v346 = vpop.trf.xlu0
  %v347 = vpop.trf.xlu0
  %v348 = vpop.trf.xlu0
  %v349 = vpop.trf.xlu0
  %v350 = vpop.trf.xlu0
  %v351 = vpop.trf.xlu0
  %v352 = vpop.trf.xlu0
  %v353 = vpop.trf.xlu0
  %v354 = vpop.trf.xlu0
  %v355 = vpop.trf.xlu0
  %v356 = vpop.trf.xlu0
  %v357 = vpop.trf.xlu0
  %v358 = vpop.trf.xlu0
  %v359 = vpop.trf.xlu0
  %360 = vxpose.xlu0.b32.start [1/16] %v32, 128
  %361 = vxpose.xlu0.b32.cont [2/16] %v42, 128
  %362 = vxpose.xlu0.b32.cont [3/16] %v52, 128
  %363 = vxpose.xlu0.b32.cont [4/16] %v62, 128
  %364 = vxpose.xlu0.b32.cont [5/16] %v72, 128
  %365 = vxpose.xlu0.b32.cont [6/16] %v82, 128
  %366 = vxpose.xlu0.b32.cont [7/16] %v92, 128
  %367 = vxpose.xlu0.b32.cont [8/16] %v102, 128
  %368 = vxpose.xlu0.b32.cont [9/16] 0.0, 128
  %369 = vxpose.xlu0.b32.cont [10/16] 0.0, 128
  %370 = vxpose.xlu0.b32.cont [11/16] 0.0, 128
  %371 = vxpose.xlu0.b32.cont [12/16] 0.0, 128
  %372 = vxpose.xlu0.b32.cont [13/16] 0.0, 128
  %373 = vxpose.xlu0.b32.cont [14/16] 0.0, 128
  %374 = vxpose.xlu0.b32.cont [15/16] 0.0, 128
  %375 = vxpose.xlu0.b32.end [16/16] 0.0, 128
  %v376 = vpop.trf.xlu0
  %v377 = vpop.trf.xlu0
  %v378 = vpop.trf.xlu0
  %v379 = vpop.trf.xlu0
  %v380 = vpop.trf.xlu0
  %v381 = vpop.trf.xlu0
  %v382 = vpop.trf.xlu0
  %v383 = vpop.trf.xlu0
  %v384 = vpop.trf.xlu0
  %v385 = vpop.trf.xlu0
  %v386 = vpop.trf.xlu0
  %v387 = vpop.trf.xlu0
  %v388 = vpop.trf.xlu0
  %v389 = vpop.trf.xlu0
  %v390 = vpop.trf.xlu0
  %v391 = vpop.trf.xlu0
  %392 = vxpose.xlu0.b32.start [1/16] %v33, 128
  %393 = vxpose.xlu0.b32.cont [2/16] %v43, 128
  %394 = vxpose.xlu0.b32.cont [3/16] %v53, 128
  %395 = vxpose.xlu0.b32.cont [4/16] %v63, 128
  %396 = vxpose.xlu0.b32.cont [5/16] %v73, 128
  %397 = vxpose.xlu0.b32.cont [6/16] %v83, 128
  %398 = vxpose.xlu0.b32.cont [7/16] %v93, 128
  %399 = vxpose.xlu0.b32.cont [8/16] %v103, 128
  %400 = vxpose.xlu0.b32.cont [9/16] 0.0, 128
  %401 = vxpose.xlu0.b32.cont [10/16] 0.0, 128
  %402 = vxpose.xlu0.b32.cont [11/16] 0.0, 128
  %403 = vxpose.xlu0.b32.cont [12/16] 0.0, 128
  %404 = vxpose.xlu0.b32.cont [13/16] 0.0, 128
  %405 = vxpose.xlu0.b32.cont [14/16] 0.0, 128
  %406 = vxpose.xlu0.b32.cont [15/16] 0.0, 128
  %407 = vxpose.xlu0.b32.end [16/16] 0.0, 128
  %v408 = vpop.trf.xlu0
  %v409 = vpop.trf.xlu0
  %v410 = vpop.trf.xlu0
  %v411 = vpop.trf.xlu0
  %v412 = vpop.trf.xlu0
  %v413 = vpop.trf.xlu0
  %v414 = vpop.trf.xlu0
  %v415 = vpop.trf.xlu0
  %v416 = vpop.trf.xlu0
  %v417 = vpop.trf.xlu0
  %v418 = vpop.trf.xlu0
  %v419 = vpop.trf.xlu0
  %v420 = vpop.trf.xlu0
  %v421 = vpop.trf.xlu0
  %v422 = vpop.trf.xlu0
  %v423 = vpop.trf.xlu0
  %vm424 = vcmask 523264
  %v426 = vsel %vm424, %v120, 0
  %v429 = vsel %vm424, %v121, 0
  %v432 = vsel %vm424, %v122, 0
  %v435 = vsel %vm424, %v123, 0
  %v438 = vsel %vm424, %v124, 0
  %v441 = vsel %vm424, %v125, 0
  %v444 = vsel %vm424, %v126, 0
  %v447 = vsel %vm424, %v127, 0
  %v450 = vsel %vm424, %v128, 0
  %v453 = vsel %vm424, %v129, 0
  %v456 = vsel %vm424, %v130, 0
  %v459 = vsel %vm424, %v131, 0
  %v462 = vsel %vm424, %v132, 0
  %v465 = vsel %vm424, %v133, 0
  %v468 = vsel %vm424, %v134, 0
  %v471 = vsel %vm424, %v135, 0
  %v474 = vsel %vm424, %v152, 0
  %v477 = vsel %vm424, %v153, 0
  %v480 = vsel %vm424, %v154, 0
  %v483 = vsel %vm424, %v155, 0
  %v486 = vsel %vm424, %v156, 0
  %v489 = vsel %vm424, %v157, 0
  %v492 = vsel %vm424, %v158, 0
  %v495 = vsel %vm424, %v159, 0
  %v498 = vsel %vm424, %v160, 0
  %v501 = vsel %vm424, %v161, 0
  %v504 = vsel %vm424, %v162, 0
  %v507 = vsel %vm424, %v163, 0
  %v510 = vsel %vm424, %v164, 0
  %v513 = vsel %vm424, %v165, 0
  %v516 = vsel %vm424, %v166, 0
  %v519 = vsel %vm424, %v167, 0
  %v522 = vsel %vm424, %v184, 0
  %v525 = vsel %vm424, %v185, 0
  %v528 = vsel %vm424, %v186, 0
  %v531 = vsel %vm424, %v187, 0
  %v534 = vsel %vm424, %v188, 0
  %v537 = vsel %vm424, %v189, 0
  %v540 = vsel %vm424, %v190, 0
  %v543 = vsel %vm424, %v191, 0
  %v546 = vsel %vm424, %v192, 0
  %v549 = vsel %vm424, %v193, 0
  %v552 = vsel %vm424, %v194, 0
  %v555 = vsel %vm424, %v195, 0
  %v558 = vsel %vm424, %v196, 0
  %v561 = vsel %vm424, %v197, 0
  %v564 = vsel %vm424, %v198, 0
  %v567 = vsel %vm424, %v199, 0
  %v570 = vsel %vm424, %v216, 0
  %v573 = vsel %vm424, %v217, 0
  %v576 = vsel %vm424, %v218, 0
  %v579 = vsel %vm424, %v219, 0
  %v582 = vsel %vm424, %v220, 0
  %v585 = vsel %vm424, %v221, 0
  %v588 = vsel %vm424, %v222, 0
  %v591 = vsel %vm424, %v223, 0
  %v594 = vsel %vm424, %v224, 0
  %v597 = vsel %vm424, %v225, 0
  %v600 = vsel %vm424, %v226, 0
  %v603 = vsel %vm424, %v227, 0
  %v606 = vsel %vm424, %v228, 0
  %v609 = vsel %vm424, %v229, 0
  %v612 = vsel %vm424, %v230, 0
  %v615 = vsel %vm424, %v231, 0
  %v618 = vsel %vm424, %v248, 0
  %v621 = vsel %vm424, %v249, 0
  %v624 = vsel %vm424, %v250, 0
  %v627 = vsel %vm424, %v251, 0
  %v630 = vsel %vm424, %v252, 0
  %v633 = vsel %vm424, %v253, 0
  %v636 = vsel %vm424, %v254, 0
  %v639 = vsel %vm424, %v255, 0
  %v642 = vsel %vm424, %v256, 0
  %v645 = vsel %vm424, %v257, 0
  %v648 = vsel %vm424, %v258, 0
  %v651 = vsel %vm424, %v259, 0
  %v654 = vsel %vm424, %v260, 0
  %v657 = vsel %vm424, %v261, 0
  %v660 = vsel %vm424, %v262, 0
  %v663 = vsel %vm424, %v263, 0
  %v666 = vsel %vm424, %v280, 0
  %v669 = vsel %vm424, %v281, 0
  %v672 = vsel %vm424, %v282, 0
  %v675 = vsel %vm424, %v283, 0
  %v678 = vsel %vm424, %v284, 0
  %v681 = vsel %vm424, %v285, 0
  %v684 = vsel %vm424, %v286, 0
  %v687 = vsel %vm424, %v287, 0
  %v690 = vsel %vm424, %v288, 0
  %v693 = vsel %vm424, %v289, 0
  %v696 = vsel %vm424, %v290, 0
  %v699 = vsel %vm424, %v291, 0
  %v702 = vsel %vm424, %v292, 0
  %v705 = vsel %vm424, %v293, 0
  %v708 = vsel %vm424, %v294, 0
  %v711 = vsel %vm424, %v295, 0
  %v714 = vsel %vm424, %v312, 0
  %v717 = vsel %vm424, %v313, 0
  %v720 = vsel %vm424, %v314, 0
  %v723 = vsel %vm424, %v315, 0
  %v726 = vsel %vm424, %v316, 0
  %v729 = vsel %vm424, %v317, 0
  %v732 = vsel %vm424, %v318, 0
  %v735 = vsel %vm424, %v319, 0
  %v738 = vsel %vm424, %v320, 0
  %v741 = vsel %vm424, %v321, 0
  %v744 = vsel %vm424, %v322, 0
  %v747 = vsel %vm424, %v323, 0
  %v750 = vsel %vm424, %v324, 0
  %v753 = vsel %vm424, %v325, 0
  %v756 = vsel %vm424, %v326, 0
  %v759 = vsel %vm424, %v327, 0
  %v762 = vsel %vm424, %v344, 0
  %v765 = vsel %vm424, %v345, 0
  %v768 = vsel %vm424, %v346, 0
  %v771 = vsel %vm424, %v347, 0
  %v774 = vsel %vm424, %v348, 0
  %v777 = vsel %vm424, %v349, 0
  %v780 = vsel %vm424, %v350, 0
  %v783 = vsel %vm424, %v351, 0
  %v786 = vsel %vm424, %v352, 0
  %v789 = vsel %vm424, %v353, 0
  %v792 = vsel %vm424, %v354, 0
  %v795 = vsel %vm424, %v355, 0
  %v798 = vsel %vm424, %v356, 0
  %v801 = vsel %vm424, %v357, 0
  %v804 = vsel %vm424, %v358, 0
  %v807 = vsel %vm424, %v359, 0
  %v810 = vsel %vm424, %v376, 0
  %v813 = vsel %vm424, %v377, 0
  %v816 = vsel %vm424, %v378, 0
  %v819 = vsel %vm424, %v379, 0
  %v822 = vsel %vm424, %v380, 0
  %v825 = vsel %vm424, %v381, 0
  %v828 = vsel %vm424, %v382, 0
  %v831 = vsel %vm424, %v383, 0
  %v834 = vsel %vm424, %v384, 0
  %v837 = vsel %vm424, %v385, 0
  %v840 = vsel %vm424, %v386, 0
  %v843 = vsel %vm424, %v387, 0
  %v846 = vsel %vm424, %v388, 0
  %v849 = vsel %vm424, %v389, 0
  %v852 = vsel %vm424, %v390, 0
  %v855 = vsel %vm424, %v391, 0
  %v858 = vsel %vm424, %v408, 0
  %v861 = vsel %vm424, %v409, 0
  %v864 = vsel %vm424, %v410, 0
  %v867 = vsel %vm424, %v411, 0
  %v870 = vsel %vm424, %v412, 0
  %v873 = vsel %vm424, %v413, 0
  %v876 = vsel %vm424, %v414, 0
  %v879 = vsel %vm424, %v415, 0
  %v882 = vsel %vm424, %v416, 0
  %v885 = vsel %vm424, %v417, 0
  %v888 = vsel %vm424, %v418, 0
  %v891 = vsel %vm424, %v419, 0
  %v894 = vsel %vm424, %v420, 0
  %v897 = vsel %vm424, %v421, 0
  %v900 = vsel %vm424, %v422, 0
  %v903 = vsel %vm424, %v423, 0
  %905 = vmatprep.subr.mxu0 0.0
  %906 = vmatpush1.msra.mxu0 0.0
  %907 = vmatprep.subr.mxu0 0.0
  %908 = vmatpush1.msra.mxu0 0.0
  %909 = vmatprep.subr.mxu0 0.0
  %910 = vmatpush1.msra.mxu0 0.0
  %911 = vmatprep.subr.mxu0 0.0
  %912 = vmatpush1.msra.mxu0 0.0
  %913 = vmatprep.subr.mxu0 0.0
  %914 = vmatpush1.msra.mxu0 0.0
  %915 = vmatprep.subr.mxu0 0.0
  %916 = vmatpush1.msra.mxu0 0.0
  %917 = vmatprep.subr.mxu0 0.0
  %918 = vmatpush1.msra.mxu0 0.0
  %919 = vmatprep.subr.mxu0 0.0
  %920 = vmatpush1.msra.mxu0 0.0
  %921 = vmatprep.subr.mxu0 0.0
  %922 = vmatpush1.msra.mxu0 %v23
  %923 = vmatprep.subr.mxu0 0.0
  %924 = vmatpush1.msra.mxu0 %v22
  %925 = vmatprep.subr.mxu0 0.0
  %926 = vmatpush1.msra.mxu0 %v21
  %927 = vmatprep.subr.mxu0 0.0
  %928 = vmatpush1.msra.mxu0 %v20
  %929 = vmatprep.subr.mxu0 0.0
  %930 = vmatpush1.msra.mxu0 %v19
  %931 = vmatprep.subr.mxu0 0.0
  %932 = vmatpush1.msra.mxu0 %v18
  %933 = vmatprep.subr.mxu0 0.0
  %934 = vmatpush1.msra.mxu0 %v17
  %935 = vmatprep.subr.mxu0 0.0
  %936 = vmatpush1.msra.mxu0 %v16
  %937 = vmatprep.subr.mxu0 0.0
  %938 = vmatpush2.msra.mxu0 0.0
  %939 = vmatprep.subr.mxu0 0.0
  %940 = vmatpush2.msra.mxu0 0.0
  %941 = vmatprep.subr.mxu0 0.0
  %942 = vmatpush2.msra.mxu0 0.0
  %943 = vmatprep.subr.mxu0 0.0
  %944 = vmatpush2.msra.mxu0 0.0
  %945 = vmatprep.subr.mxu0 0.0
  %946 = vmatpush2.msra.mxu0 0.0
  %947 = vmatprep.subr.mxu0 0.0
  %948 = vmatpush2.msra.mxu0 0.0
  %949 = vmatprep.subr.mxu0 0.0
  %950 = vmatpush2.msra.mxu0 0.0
  %951 = vmatprep.subr.mxu0 0.0
  %952 = vmatpush2.msra.mxu0 0.0
  %953 = vmatprep.subr.mxu0 0.0
  %954 = vmatpush2.msra.mxu0 0.0
  %955 = vmatprep.subr.mxu0 0.0
  %956 = vmatpush2.msra.mxu0 0.0
  %957 = vmatprep.subr.mxu0 0.0
  %958 = vmatpush2.msra.mxu0 0.0
  %959 = vmatprep.subr.mxu0 0.0
  %960 = vmatpush2.msra.mxu0 0.0
  %961 = vmatprep.subr.mxu0 0.0
  %962 = vmatpush2.msra.mxu0 0.0
  %963 = vmatprep.subr.mxu0 0.0
  %964 = vmatpush2.msra.mxu0 0.0
  %965 = vmatprep.subr.mxu0 0.0
  %966 = vmatpush2.msra.mxu0 0.0
  %967 = vmatprep.subr.mxu0 0.0
  %968 = vmatpush2.msra.mxu0 0.0
  %969 = vmatprep.mubr.f32.mxu0 0.0
  %970 = vmatmul.mubr.f32.gmra.mxu0 %v426
  %v971 = vpop.f32.mrf.mxu0
  %v972 = vadd.f32 0.0, %v971
  %v973 = vpop.f32.mrf.mxu0
  %974 = vmatprep.mubr.f32.mxu0 0.0
  %975 = vmatmul.mubr.f32.gmra.mxu0 %v429
  %v976 = vpop.f32.mrf.mxu0
  %v977 = vadd.f32 0.0, %v976
  %v978 = vpop.f32.mrf.mxu0
  %979 = vmatprep.mubr.f32.mxu0 0.0
  %980 = vmatmul.mubr.f32.gmra.mxu0 %v432
  %v981 = vpop.f32.mrf.mxu0
  %v982 = vadd.f32 0.0, %v981
  %v983 = vpop.f32.mrf.mxu0
  %984 = vmatprep.mubr.f32.mxu0 0.0
  %985 = vmatmul.mubr.f32.gmra.mxu0 %v435
  %v986 = vpop.f32.mrf.mxu0
  %v987 = vadd.f32 0.0, %v986
  %v988 = vpop.f32.mrf.mxu0
  %989 = vmatprep.mubr.f32.mxu0 0.0
  %990 = vmatmul.mubr.f32.gmra.mxu0 %v438
  %v991 = vpop.f32.mrf.mxu0
  %v992 = vadd.f32 0.0, %v991
  %v993 = vpop.f32.mrf.mxu0
  %994 = vmatprep.mubr.f32.mxu0 0.0
  %995 = vmatmul.mubr.f32.gmra.mxu0 %v441
  %v996 = vpop.f32.mrf.mxu0
  %v997 = vadd.f32 0.0, %v996
  %v998 = vpop.f32.mrf.mxu0
  %999 = vmatprep.mubr.f32.mxu0 0.0
  %1000 = vmatmul.mubr.f32.gmra.mxu0 %v444
  %v1001 = vpop.f32.mrf.mxu0
  %v1002 = vadd.f32 0.0, %v1001
  %v1003 = vpop.f32.mrf.mxu0
  %1004 = vmatprep.mubr.f32.mxu0 0.0
  %1005 = vmatmul.mubr.f32.gmra.mxu0 %v447
  %v1006 = vpop.f32.mrf.mxu0
  %v1007 = vadd.f32 0.0, %v1006
  %v1008 = vpop.f32.mrf.mxu0
  %1009 = vmatprep.mubr.f32.mxu0 0.0
  %1010 = vmatmul.mubr.f32.gmra.mxu0 %v450
  %v1011 = vpop.f32.mrf.mxu0
  %v1012 = vadd.f32 0.0, %v1011
  %v1013 = vpop.f32.mrf.mxu0
  %1014 = vmatprep.mubr.f32.mxu0 0.0
  %1015 = vmatmul.mubr.f32.gmra.mxu0 %v453
  %v1016 = vpop.f32.mrf.mxu0
  %v1017 = vadd.f32 0.0, %v1016
  %v1018 = vpop.f32.mrf.mxu0
  %1019 = vmatprep.mubr.f32.mxu0 0.0
  %1020 = vmatmul.mubr.f32.gmra.mxu0 %v456
  %v1021 = vpop.f32.mrf.mxu0
  %v1022 = vadd.f32 0.0, %v1021
  %v1023 = vpop.f32.mrf.mxu0
  %1024 = vmatprep.mubr.f32.mxu0 0.0
  %1025 = vmatmul.mubr.f32.gmra.mxu0 %v459
  %v1026 = vpop.f32.mrf.mxu0
  %v1027 = vadd.f32 0.0, %v1026
  %v1028 = vpop.f32.mrf.mxu0
  %1029 = vmatprep.mubr.f32.mxu0 0.0
  %1030 = vmatmul.mubr.f32.gmra.mxu0 %v462
  %v1031 = vpop.f32.mrf.mxu0
  %v1032 = vadd.f32 0.0, %v1031
  %v1033 = vpop.f32.mrf.mxu0
  %1034 = vmatprep.mubr.f32.mxu0 0.0
  %1035 = vmatmul.mubr.f32.gmra.mxu0 %v465
  %v1036 = vpop.f32.mrf.mxu0
  %v1037 = vadd.f32 0.0, %v1036
  %v1038 = vpop.f32.mrf.mxu0
  %1039 = vmatprep.mubr.f32.mxu0 0.0
  %1040 = vmatmul.mubr.f32.gmra.mxu0 %v468
  %v1041 = vpop.f32.mrf.mxu0
  %v1042 = vadd.f32 0.0, %v1041
  %v1043 = vpop.f32.mrf.mxu0
  %1044 = vmatprep.mubr.f32.mxu0 0.0
  %1045 = vmatmul.mubr.f32.gmra.mxu0 %v471
  %v1046 = vpop.f32.mrf.mxu0
  %v1047 = vadd.f32 0.0, %v1046
  %v1048 = vpop.f32.mrf.mxu0
  %1049 = vmatprep.mubr.f32.mxu0 0.0
  %1050 = vmatmul.mubr.f32.gmra.mxu0 %v474
  %v1051 = vpop.f32.mrf.mxu0
  %v1052 = vadd.f32 0.0, %v1051
  %v1053 = vpop.f32.mrf.mxu0
  %1054 = vmatprep.mubr.f32.mxu0 0.0
  %1055 = vmatmul.mubr.f32.gmra.mxu0 %v477
  %v1056 = vpop.f32.mrf.mxu0
  %v1057 = vadd.f32 0.0, %v1056
  %v1058 = vpop.f32.mrf.mxu0
  %1059 = vmatprep.mubr.f32.mxu0 0.0
  %1060 = vmatmul.mubr.f32.gmra.mxu0 %v480
  %v1061 = vpop.f32.mrf.mxu0
  %v1062 = vadd.f32 0.0, %v1061
  %v1063 = vpop.f32.mrf.mxu0
  %1064 = vmatprep.mubr.f32.mxu0 0.0
  %1065 = vmatmul.mubr.f32.gmra.mxu0 %v483
  %v1066 = vpop.f32.mrf.mxu0
  %v1067 = vadd.f32 0.0, %v1066
  %v1068 = vpop.f32.mrf.mxu0
  %1069 = vmatprep.mubr.f32.mxu0 0.0
  %1070 = vmatmul.mubr.f32.gmra.mxu0 %v486
  %v1071 = vpop.f32.mrf.mxu0
  %v1072 = vadd.f32 0.0, %v1071
  %v1073 = vpop.f32.mrf.mxu0
  %1074 = vmatprep.mubr.f32.mxu0 0.0
  %1075 = vmatmul.mubr.f32.gmra.mxu0 %v489
  %v1076 = vpop.f32.mrf.mxu0
  %v1077 = vadd.f32 0.0, %v1076
  %v1078 = vpop.f32.mrf.mxu0
  %1079 = vmatprep.mubr.f32.mxu0 0.0
  %1080 = vmatmul.mubr.f32.gmra.mxu0 %v492
  %v1081 = vpop.f32.mrf.mxu0
  %v1082 = vadd.f32 0.0, %v1081
  %v1083 = vpop.f32.mrf.mxu0
  %1084 = vmatprep.mubr.f32.mxu0 0.0
  %1085 = vmatmul.mubr.f32.gmra.mxu0 %v495
  %v1086 = vpop.f32.mrf.mxu0
  %v1087 = vadd.f32 0.0, %v1086
  %v1088 = vpop.f32.mrf.mxu0
  %1089 = vmatprep.mubr.f32.mxu0 0.0
  %1090 = vmatmul.mubr.f32.gmra.mxu0 %v498
  %v1091 = vpop.f32.mrf.mxu0
  %v1092 = vadd.f32 0.0, %v1091
  %v1093 = vpop.f32.mrf.mxu0
  %1094 = vmatprep.mubr.f32.mxu0 0.0
  %1095 = vmatmul.mubr.f32.gmra.mxu0 %v501
  %v1096 = vpop.f32.mrf.mxu0
  %v1097 = vadd.f32 0.0, %v1096
  %v1098 = vpop.f32.mrf.mxu0
  %1099 = vmatprep.mubr.f32.mxu0 0.0
  %1100 = vmatmul.mubr.f32.gmra.mxu0 %v504
  %v1101 = vpop.f32.mrf.mxu0
  %v1102 = vadd.f32 0.0, %v1101
  %v1103 = vpop.f32.mrf.mxu0
  %1104 = vmatprep.mubr.f32.mxu0 0.0
  %1105 = vmatmul.mubr.f32.gmra.mxu0 %v507
  %v1106 = vpop.f32.mrf.mxu0
  %v1107 = vadd.f32 0.0, %v1106
  %v1108 = vpop.f32.mrf.mxu0
  %1109 = vmatprep.mubr.f32.mxu0 0.0
  %1110 = vmatmul.mubr.f32.gmra.mxu0 %v510
  %v1111 = vpop.f32.mrf.mxu0
  %v1112 = vadd.f32 0.0, %v1111
  %v1113 = vpop.f32.mrf.mxu0
  %1114 = vmatprep.mubr.f32.mxu0 0.0
  %1115 = vmatmul.mubr.f32.gmra.mxu0 %v513
  %v1116 = vpop.f32.mrf.mxu0
  %v1117 = vadd.f32 0.0, %v1116
  %v1118 = vpop.f32.mrf.mxu0
  %1119 = vmatprep.mubr.f32.mxu0 0.0
  %1120 = vmatmul.mubr.f32.gmra.mxu0 %v516
  %v1121 = vpop.f32.mrf.mxu0
  %v1122 = vadd.f32 0.0, %v1121
  %v1123 = vpop.f32.mrf.mxu0
  %1124 = vmatprep.mubr.f32.mxu0 0.0
  %1125 = vmatmul.mubr.f32.gmra.mxu0 %v519
  %v1126 = vpop.f32.mrf.mxu0
  %v1127 = vadd.f32 0.0, %v1126
  %v1128 = vpop.f32.mrf.mxu0
  %1129 = vmatprep.mubr.f32.mxu0 0.0
  %1130 = vmatmul.mubr.f32.gmra.mxu0 %v522
  %v1131 = vpop.f32.mrf.mxu0
  %v1132 = vadd.f32 0.0, %v1131
  %v1133 = vpop.f32.mrf.mxu0
  %1134 = vmatprep.mubr.f32.mxu0 0.0
  %1135 = vmatmul.mubr.f32.gmra.mxu0 %v525
  %v1136 = vpop.f32.mrf.mxu0
  %v1137 = vadd.f32 0.0, %v1136
  %v1138 = vpop.f32.mrf.mxu0
  %1139 = vmatprep.mubr.f32.mxu0 0.0
  %1140 = vmatmul.mubr.f32.gmra.mxu0 %v528
  %v1141 = vpop.f32.mrf.mxu0
  %v1142 = vadd.f32 0.0, %v1141
  %v1143 = vpop.f32.mrf.mxu0
  %1144 = vmatprep.mubr.f32.mxu0 0.0
  %1145 = vmatmul.mubr.f32.gmra.mxu0 %v531
  %v1146 = vpop.f32.mrf.mxu0
  %v1147 = vadd.f32 0.0, %v1146
  %v1148 = vpop.f32.mrf.mxu0
  %1149 = vmatprep.mubr.f32.mxu0 0.0
  %1150 = vmatmul.mubr.f32.gmra.mxu0 %v534
  %v1151 = vpop.f32.mrf.mxu0
  %v1152 = vadd.f32 0.0, %v1151
  %v1153 = vpop.f32.mrf.mxu0
  %1154 = vmatprep.mubr.f32.mxu0 0.0
  %1155 = vmatmul.mubr.f32.gmra.mxu0 %v537
  %v1156 = vpop.f32.mrf.mxu0
  %v1157 = vadd.f32 0.0, %v1156
  %v1158 = vpop.f32.mrf.mxu0
  %1159 = vmatprep.mubr.f32.mxu0 0.0
  %1160 = vmatmul.mubr.f32.gmra.mxu0 %v540
  %v1161 = vpop.f32.mrf.mxu0
  %v1162 = vadd.f32 0.0, %v1161
  %v1163 = vpop.f32.mrf.mxu0
  %1164 = vmatprep.mubr.f32.mxu0 0.0
  %1165 = vmatmul.mubr.f32.gmra.mxu0 %v543
  %v1166 = vpop.f32.mrf.mxu0
  %v1167 = vadd.f32 0.0, %v1166
  %v1168 = vpop.f32.mrf.mxu0
  %1169 = vmatprep.mubr.f32.mxu0 0.0
  %1170 = vmatmul.mubr.f32.gmra.mxu0 %v546
  %v1171 = vpop.f32.mrf.mxu0
  %v1172 = vadd.f32 0.0, %v1171
  %v1173 = vpop.f32.mrf.mxu0
  %1174 = vmatprep.mubr.f32.mxu0 0.0
  %1175 = vmatmul.mubr.f32.gmra.mxu0 %v549
  %v1176 = vpop.f32.mrf.mxu0
  %v1177 = vadd.f32 0.0, %v1176
  %v1178 = vpop.f32.mrf.mxu0
  %1179 = vmatprep.mubr.f32.mxu0 0.0
  %1180 = vmatmul.mubr.f32.gmra.mxu0 %v552
  %v1181 = vpop.f32.mrf.mxu0
  %v1182 = vadd.f32 0.0, %v1181
  %v1183 = vpop.f32.mrf.mxu0
  %1184 = vmatprep.mubr.f32.mxu0 0.0
  %1185 = vmatmul.mubr.f32.gmra.mxu0 %v555
  %v1186 = vpop.f32.mrf.mxu0
  %v1187 = vadd.f32 0.0, %v1186
  %v1188 = vpop.f32.mrf.mxu0
  %1189 = vmatprep.mubr.f32.mxu0 0.0
  %1190 = vmatmul.mubr.f32.gmra.mxu0 %v558
  %v1191 = vpop.f32.mrf.mxu0
  %v1192 = vadd.f32 0.0, %v1191
  %v1193 = vpop.f32.mrf.mxu0
  %1194 = vmatprep.mubr.f32.mxu0 0.0
  %1195 = vmatmul.mubr.f32.gmra.mxu0 %v561
  %v1196 = vpop.f32.mrf.mxu0
  %v1197 = vadd.f32 0.0, %v1196
  %v1198 = vpop.f32.mrf.mxu0
  %1199 = vmatprep.mubr.f32.mxu0 0.0
  %1200 = vmatmul.mubr.f32.gmra.mxu0 %v564
  %v1201 = vpop.f32.mrf.mxu0
  %v1202 = vadd.f32 0.0, %v1201
  %v1203 = vpop.f32.mrf.mxu0
  %1204 = vmatprep.mubr.f32.mxu0 0.0
  %1205 = vmatmul.mubr.f32.gmra.mxu0 %v567
  %v1206 = vpop.f32.mrf.mxu0
  %v1207 = vadd.f32 0.0, %v1206
  %v1208 = vpop.f32.mrf.mxu0
  %1209 = vmatprep.mubr.f32.mxu0 0.0
  %1210 = vmatmul.mubr.f32.gmra.mxu0 %v570
  %v1211 = vpop.f32.mrf.mxu0
  %v1212 = vadd.f32 0.0, %v1211
  %v1213 = vpop.f32.mrf.mxu0
  %1214 = vmatprep.mubr.f32.mxu0 0.0
  %1215 = vmatmul.mubr.f32.gmra.mxu0 %v573
  %v1216 = vpop.f32.mrf.mxu0
  %v1217 = vadd.f32 0.0, %v1216
  %v1218 = vpop.f32.mrf.mxu0
  %1219 = vmatprep.mubr.f32.mxu0 0.0
  %1220 = vmatmul.mubr.f32.gmra.mxu0 %v576
  %v1221 = vpop.f32.mrf.mxu0
  %v1222 = vadd.f32 0.0, %v1221
  %v1223 = vpop.f32.mrf.mxu0
  %1224 = vmatprep.mubr.f32.mxu0 0.0
  %1225 = vmatmul.mubr.f32.gmra.mxu0 %v579
  %v1226 = vpop.f32.mrf.mxu0
  %v1227 = vadd.f32 0.0, %v1226
  %v1228 = vpop.f32.mrf.mxu0
  %1229 = vmatprep.mubr.f32.mxu0 0.0
  %1230 = vmatmul.mubr.f32.gmra.mxu0 %v582
  %v1231 = vpop.f32.mrf.mxu0
  %v1232 = vadd.f32 0.0, %v1231
  %v1233 = vpop.f32.mrf.mxu0
  %1234 = vmatprep.mubr.f32.mxu0 0.0
  %1235 = vmatmul.mubr.f32.gmra.mxu0 %v585
  %v1236 = vpop.f32.mrf.mxu0
  %v1237 = vadd.f32 0.0, %v1236
  %v1238 = vpop.f32.mrf.mxu0
  %1239 = vmatprep.mubr.f32.mxu0 0.0
  %1240 = vmatmul.mubr.f32.gmra.mxu0 %v588
  %v1241 = vpop.f32.mrf.mxu0
  %v1242 = vadd.f32 0.0, %v1241
  %v1243 = vpop.f32.mrf.mxu0
  %1244 = vmatprep.mubr.f32.mxu0 0.0
  %1245 = vmatmul.mubr.f32.gmra.mxu0 %v591
  %v1246 = vpop.f32.mrf.mxu0
  %v1247 = vadd.f32 0.0, %v1246
  %v1248 = vpop.f32.mrf.mxu0
  %1249 = vmatprep.mubr.f32.mxu0 0.0
  %1250 = vmatmul.mubr.f32.gmra.mxu0 %v594
  %v1251 = vpop.f32.mrf.mxu0
  %v1252 = vadd.f32 0.0, %v1251
  %v1253 = vpop.f32.mrf.mxu0
  %1254 = vmatprep.mubr.f32.mxu0 0.0
  %1255 = vmatmul.mubr.f32.gmra.mxu0 %v597
  %v1256 = vpop.f32.mrf.mxu0
  %v1257 = vadd.f32 0.0, %v1256
  %v1258 = vpop.f32.mrf.mxu0
  %1259 = vmatprep.mubr.f32.mxu0 0.0
  %1260 = vmatmul.mubr.f32.gmra.mxu0 %v600
  %v1261 = vpop.f32.mrf.mxu0
  %v1262 = vadd.f32 0.0, %v1261
  %v1263 = vpop.f32.mrf.mxu0
  %1264 = vmatprep.mubr.f32.mxu0 0.0
  %1265 = vmatmul.mubr.f32.gmra.mxu0 %v603
  %v1266 = vpop.f32.mrf.mxu0
  %v1267 = vadd.f32 0.0, %v1266
  %v1268 = vpop.f32.mrf.mxu0
  %1269 = vmatprep.mubr.f32.mxu0 0.0
  %1270 = vmatmul.mubr.f32.gmra.mxu0 %v606
  %v1271 = vpop.f32.mrf.mxu0
  %v1272 = vadd.f32 0.0, %v1271
  %v1273 = vpop.f32.mrf.mxu0
  %1274 = vmatprep.mubr.f32.mxu0 0.0
  %1275 = vmatmul.mubr.f32.gmra.mxu0 %v609
  %v1276 = vpop.f32.mrf.mxu0
  %v1277 = vadd.f32 0.0, %v1276
  %v1278 = vpop.f32.mrf.mxu0
  %1279 = vmatprep.mubr.f32.mxu0 0.0
  %1280 = vmatmul.mubr.f32.gmra.mxu0 %v612
  %v1281 = vpop.f32.mrf.mxu0
  %v1282 = vadd.f32 0.0, %v1281
  %v1283 = vpop.f32.mrf.mxu0
  %1284 = vmatprep.mubr.f32.mxu0 0.0
  %1285 = vmatmul.mubr.f32.gmra.mxu0 %v615
  %v1286 = vpop.f32.mrf.mxu0
  %v1287 = vadd.f32 0.0, %v1286
  %v1288 = vpop.f32.mrf.mxu0
  %1289 = vmatprep.mubr.f32.mxu0 0.0
  %1290 = vmatmul.mubr.f32.gmra.mxu0 %v618
  %v1291 = vpop.f32.mrf.mxu0
  %v1292 = vadd.f32 0.0, %v1291
  %v1293 = vpop.f32.mrf.mxu0
  %1294 = vmatprep.mubr.f32.mxu0 0.0
  %1295 = vmatmul.mubr.f32.gmra.mxu0 %v621
  %v1296 = vpop.f32.mrf.mxu0
  %v1297 = vadd.f32 0.0, %v1296
  %v1298 = vpop.f32.mrf.mxu0
  %1299 = vmatprep.mubr.f32.mxu0 0.0
  %1300 = vmatmul.mubr.f32.gmra.mxu0 %v624
  %v1301 = vpop.f32.mrf.mxu0
  %v1302 = vadd.f32 0.0, %v1301
  %v1303 = vpop.f32.mrf.mxu0
  %1304 = vmatprep.mubr.f32.mxu0 0.0
  %1305 = vmatmul.mubr.f32.gmra.mxu0 %v627
  %v1306 = vpop.f32.mrf.mxu0
  %v1307 = vadd.f32 0.0, %v1306
  %v1308 = vpop.f32.mrf.mxu0
  %1309 = vmatprep.mubr.f32.mxu0 0.0
  %1310 = vmatmul.mubr.f32.gmra.mxu0 %v630
  %v1311 = vpop.f32.mrf.mxu0
  %v1312 = vadd.f32 0.0, %v1311
  %v1313 = vpop.f32.mrf.mxu0
  %1314 = vmatprep.mubr.f32.mxu0 0.0
  %1315 = vmatmul.mubr.f32.gmra.mxu0 %v633
  %v1316 = vpop.f32.mrf.mxu0
  %v1317 = vadd.f32 0.0, %v1316
  %v1318 = vpop.f32.mrf.mxu0
  %1319 = vmatprep.mubr.f32.mxu0 0.0
  %1320 = vmatmul.mubr.f32.gmra.mxu0 %v636
  %v1321 = vpop.f32.mrf.mxu0
  %v1322 = vadd.f32 0.0, %v1321
  %v1323 = vpop.f32.mrf.mxu0
  %1324 = vmatprep.mubr.f32.mxu0 0.0
  %1325 = vmatmul.mubr.f32.gmra.mxu0 %v639
  %v1326 = vpop.f32.mrf.mxu0
  %v1327 = vadd.f32 0.0, %v1326
  %v1328 = vpop.f32.mrf.mxu0
  %1329 = vmatprep.mubr.f32.mxu0 0.0
  %1330 = vmatmul.mubr.f32.gmra.mxu0 %v642
  %v1331 = vpop.f32.mrf.mxu0
  %v1332 = vadd.f32 0.0, %v1331
  %v1333 = vpop.f32.mrf.mxu0
  %1334 = vmatprep.mubr.f32.mxu0 0.0
  %1335 = vmatmul.mubr.f32.gmra.mxu0 %v645
  %v1336 = vpop.f32.mrf.mxu0
  %v1337 = vadd.f32 0.0, %v1336
  %v1338 = vpop.f32.mrf.mxu0
  %1339 = vmatprep.mubr.f32.mxu0 0.0
  %1340 = vmatmul.mubr.f32.gmra.mxu0 %v648
  %v1341 = vpop.f32.mrf.mxu0
  %v1342 = vadd.f32 0.0, %v1341
  %v1343 = vpop.f32.mrf.mxu0
  %1344 = vmatprep.mubr.f32.mxu0 0.0
  %1345 = vmatmul.mubr.f32.gmra.mxu0 %v651
  %v1346 = vpop.f32.mrf.mxu0
  %v1347 = vadd.f32 0.0, %v1346
  %v1348 = vpop.f32.mrf.mxu0
  %1349 = vmatprep.mubr.f32.mxu0 0.0
  %1350 = vmatmul.mubr.f32.gmra.mxu0 %v654
  %v1351 = vpop.f32.mrf.mxu0
  %v1352 = vadd.f32 0.0, %v1351
  %v1353 = vpop.f32.mrf.mxu0
  %1354 = vmatprep.mubr.f32.mxu0 0.0
  %1355 = vmatmul.mubr.f32.gmra.mxu0 %v657
  %v1356 = vpop.f32.mrf.mxu0
  %v1357 = vadd.f32 0.0, %v1356
  %v1358 = vpop.f32.mrf.mxu0
  %1359 = vmatprep.mubr.f32.mxu0 0.0
  %1360 = vmatmul.mubr.f32.gmra.mxu0 %v660
  %v1361 = vpop.f32.mrf.mxu0
  %v1362 = vadd.f32 0.0, %v1361
  %v1363 = vpop.f32.mrf.mxu0
  %1364 = vmatprep.mubr.f32.mxu0 0.0
  %1365 = vmatmul.mubr.f32.gmra.mxu0 %v663
  %v1366 = vpop.f32.mrf.mxu0
  %v1367 = vadd.f32 0.0, %v1366
  %v1368 = vpop.f32.mrf.mxu0
  %1369 = vmatprep.mubr.f32.mxu0 0.0
  %1370 = vmatmul.mubr.f32.gmra.mxu0 %v666
  %v1371 = vpop.f32.mrf.mxu0
  %v1372 = vadd.f32 0.0, %v1371
  %v1373 = vpop.f32.mrf.mxu0
  %1374 = vmatprep.mubr.f32.mxu0 0.0
  %1375 = vmatmul.mubr.f32.gmra.mxu0 %v669
  %v1376 = vpop.f32.mrf.mxu0
  %v1377 = vadd.f32 0.0, %v1376
  %v1378 = vpop.f32.mrf.mxu0
  %1379 = vmatprep.mubr.f32.mxu0 0.0
  %1380 = vmatmul.mubr.f32.gmra.mxu0 %v672
  %v1381 = vpop.f32.mrf.mxu0
  %v1382 = vadd.f32 0.0, %v1381
  %v1383 = vpop.f32.mrf.mxu0
  %1384 = vmatprep.mubr.f32.mxu0 0.0
  %1385 = vmatmul.mubr.f32.gmra.mxu0 %v675
  %v1386 = vpop.f32.mrf.mxu0
  %v1387 = vadd.f32 0.0, %v1386
  %v1388 = vpop.f32.mrf.mxu0
  %1389 = vmatprep.mubr.f32.mxu0 0.0
  %1390 = vmatmul.mubr.f32.gmra.mxu0 %v678
  %v1391 = vpop.f32.mrf.mxu0
  %v1392 = vadd.f32 0.0, %v1391
  %v1393 = vpop.f32.mrf.mxu0
  %1394 = vmatprep.mubr.f32.mxu0 0.0
  %1395 = vmatmul.mubr.f32.gmra.mxu0 %v681
  %v1396 = vpop.f32.mrf.mxu0
  %v1397 = vadd.f32 0.0, %v1396
  %v1398 = vpop.f32.mrf.mxu0
  %1399 = vmatprep.mubr.f32.mxu0 0.0
  %1400 = vmatmul.mubr.f32.gmra.mxu0 %v684
  %v1401 = vpop.f32.mrf.mxu0
  %v1402 = vadd.f32 0.0, %v1401
  %v1403 = vpop.f32.mrf.mxu0
  %1404 = vmatprep.mubr.f32.mxu0 0.0
  %1405 = vmatmul.mubr.f32.gmra.mxu0 %v687
  %v1406 = vpop.f32.mrf.mxu0
  %v1407 = vadd.f32 0.0, %v1406
  %v1408 = vpop.f32.mrf.mxu0
  %1409 = vmatprep.mubr.f32.mxu0 0.0
  %1410 = vmatmul.mubr.f32.gmra.mxu0 %v690
  %v1411 = vpop.f32.mrf.mxu0
  %v1412 = vadd.f32 0.0, %v1411
  %v1413 = vpop.f32.mrf.mxu0
  %1414 = vmatprep.mubr.f32.mxu0 0.0
  %1415 = vmatmul.mubr.f32.gmra.mxu0 %v693
  %v1416 = vpop.f32.mrf.mxu0
  %v1417 = vadd.f32 0.0, %v1416
  %v1418 = vpop.f32.mrf.mxu0
  %1419 = vmatprep.mubr.f32.mxu0 0.0
  %1420 = vmatmul.mubr.f32.gmra.mxu0 %v696
  %v1421 = vpop.f32.mrf.mxu0
  %v1422 = vadd.f32 0.0, %v1421
  %v1423 = vpop.f32.mrf.mxu0
  %1424 = vmatprep.mubr.f32.mxu0 0.0
  %1425 = vmatmul.mubr.f32.gmra.mxu0 %v699
  %v1426 = vpop.f32.mrf.mxu0
  %v1427 = vadd.f32 0.0, %v1426
  %v1428 = vpop.f32.mrf.mxu0
  %1429 = vmatprep.mubr.f32.mxu0 0.0
  %1430 = vmatmul.mubr.f32.gmra.mxu0 %v702
  %v1431 = vpop.f32.mrf.mxu0
  %v1432 = vadd.f32 0.0, %v1431
  %v1433 = vpop.f32.mrf.mxu0
  %1434 = vmatprep.mubr.f32.mxu0 0.0
  %1435 = vmatmul.mubr.f32.gmra.mxu0 %v705
  %v1436 = vpop.f32.mrf.mxu0
  %v1437 = vadd.f32 0.0, %v1436
  %v1438 = vpop.f32.mrf.mxu0
  %1439 = vmatprep.mubr.f32.mxu0 0.0
  %1440 = vmatmul.mubr.f32.gmra.mxu0 %v708
  %v1441 = vpop.f32.mrf.mxu0
  %v1442 = vadd.f32 0.0, %v1441
  %v1443 = vpop.f32.mrf.mxu0
  %1444 = vmatprep.mubr.f32.mxu0 0.0
  %1445 = vmatmul.mubr.f32.gmra.mxu0 %v711
  %v1446 = vpop.f32.mrf.mxu0
  %v1447 = vadd.f32 0.0, %v1446
  %v1448 = vpop.f32.mrf.mxu0
  %1449 = vmatprep.mubr.f32.mxu0 0.0
  %1450 = vmatmul.mubr.f32.gmra.mxu0 %v714
  %v1451 = vpop.f32.mrf.mxu0
  %v1452 = vadd.f32 0.0, %v1451
  %v1453 = vpop.f32.mrf.mxu0
  %1454 = vmatprep.mubr.f32.mxu0 0.0
  %1455 = vmatmul.mubr.f32.gmra.mxu0 %v717
  %v1456 = vpop.f32.mrf.mxu0
  %v1457 = vadd.f32 0.0, %v1456
  %v1458 = vpop.f32.mrf.mxu0
  %1459 = vmatprep.mubr.f32.mxu0 0.0
  %1460 = vmatmul.mubr.f32.gmra.mxu0 %v720
  %v1461 = vpop.f32.mrf.mxu0
  %v1462 = vadd.f32 0.0, %v1461
  %v1463 = vpop.f32.mrf.mxu0
  %1464 = vmatprep.mubr.f32.mxu0 0.0
  %1465 = vmatmul.mubr.f32.gmra.mxu0 %v723
  %v1466 = vpop.f32.mrf.mxu0
  %v1467 = vadd.f32 0.0, %v1466
  %v1468 = vpop.f32.mrf.mxu0
  %1469 = vmatprep.mubr.f32.mxu0 0.0
  %1470 = vmatmul.mubr.f32.gmra.mxu0 %v726
  %v1471 = vpop.f32.mrf.mxu0
  %v1472 = vadd.f32 0.0, %v1471
  %v1473 = vpop.f32.mrf.mxu0
  %1474 = vmatprep.mubr.f32.mxu0 0.0
  %1475 = vmatmul.mubr.f32.gmra.mxu0 %v729
  %v1476 = vpop.f32.mrf.mxu0
  %v1477 = vadd.f32 0.0, %v1476
  %v1478 = vpop.f32.mrf.mxu0
  %1479 = vmatprep.mubr.f32.mxu0 0.0
  %1480 = vmatmul.mubr.f32.gmra.mxu0 %v732
  %v1481 = vpop.f32.mrf.mxu0
  %v1482 = vadd.f32 0.0, %v1481
  %v1483 = vpop.f32.mrf.mxu0
  %1484 = vmatprep.mubr.f32.mxu0 0.0
  %1485 = vmatmul.mubr.f32.gmra.mxu0 %v735
  %v1486 = vpop.f32.mrf.mxu0
  %v1487 = vadd.f32 0.0, %v1486
  %v1488 = vpop.f32.mrf.mxu0
  %1489 = vmatprep.mubr.f32.mxu0 0.0
  %1490 = vmatmul.mubr.f32.gmra.mxu0 %v738
  %v1491 = vpop.f32.mrf.mxu0
  %v1492 = vadd.f32 0.0, %v1491
  %v1493 = vpop.f32.mrf.mxu0
  %1494 = vmatprep.mubr.f32.mxu0 0.0
  %1495 = vmatmul.mubr.f32.gmra.mxu0 %v741
  %v1496 = vpop.f32.mrf.mxu0
  %v1497 = vadd.f32 0.0, %v1496
  %v1498 = vpop.f32.mrf.mxu0
  %1499 = vmatprep.mubr.f32.mxu0 0.0
  %1500 = vmatmul.mubr.f32.gmra.mxu0 %v744
  %v1501 = vpop.f32.mrf.mxu0
  %v1502 = vadd.f32 0.0, %v1501
  %v1503 = vpop.f32.mrf.mxu0
  %1504 = vmatprep.mubr.f32.mxu0 0.0
  %1505 = vmatmul.mubr.f32.gmra.mxu0 %v747
  %v1506 = vpop.f32.mrf.mxu0
  %v1507 = vadd.f32 0.0, %v1506
  %v1508 = vpop.f32.mrf.mxu0
  %1509 = vmatprep.mubr.f32.mxu0 0.0
  %1510 = vmatmul.mubr.f32.gmra.mxu0 %v750
  %v1511 = vpop.f32.mrf.mxu0
  %v1512 = vadd.f32 0.0, %v1511
  %v1513 = vpop.f32.mrf.mxu0
  %1514 = vmatprep.mubr.f32.mxu0 0.0
  %1515 = vmatmul.mubr.f32.gmra.mxu0 %v753
  %v1516 = vpop.f32.mrf.mxu0
  %v1517 = vadd.f32 0.0, %v1516
  %v1518 = vpop.f32.mrf.mxu0
  %1519 = vmatprep.mubr.f32.mxu0 0.0
  %1520 = vmatmul.mubr.f32.gmra.mxu0 %v756
  %v1521 = vpop.f32.mrf.mxu0
  %v1522 = vadd.f32 0.0, %v1521
  %v1523 = vpop.f32.mrf.mxu0
  %1524 = vmatprep.mubr.f32.mxu0 0.0
  %1525 = vmatmul.mubr.f32.gmra.mxu0 %v759
  %v1526 = vpop.f32.mrf.mxu0
  %v1527 = vadd.f32 0.0, %v1526
  %v1528 = vpop.f32.mrf.mxu0
  %1529 = vmatprep.mubr.f32.mxu0 0.0
  %1530 = vmatmul.mubr.f32.gmra.mxu0 %v762
  %v1531 = vpop.f32.mrf.mxu0
  %v1532 = vadd.f32 0.0, %v1531
  %v1533 = vpop.f32.mrf.mxu0
  %1534 = vmatprep.mubr.f32.mxu0 0.0
  %1535 = vmatmul.mubr.f32.gmra.mxu0 %v765
  %v1536 = vpop.f32.mrf.mxu0
  %v1537 = vadd.f32 0.0, %v1536
  %v1538 = vpop.f32.mrf.mxu0
  %1539 = vmatprep.mubr.f32.mxu0 0.0
  %1540 = vmatmul.mubr.f32.gmra.mxu0 %v768
  %v1541 = vpop.f32.mrf.mxu0
  %v1542 = vadd.f32 0.0, %v1541
  %v1543 = vpop.f32.mrf.mxu0
  %1544 = vmatprep.mubr.f32.mxu0 0.0
  %1545 = vmatmul.mubr.f32.gmra.mxu0 %v771
  %v1546 = vpop.f32.mrf.mxu0
  %v1547 = vadd.f32 0.0, %v1546
  %v1548 = vpop.f32.mrf.mxu0
  %1549 = vmatprep.mubr.f32.mxu0 0.0
  %1550 = vmatmul.mubr.f32.gmra.mxu0 %v774
  %v1551 = vpop.f32.mrf.mxu0
  %v1552 = vadd.f32 0.0, %v1551
  %v1553 = vpop.f32.mrf.mxu0
  %1554 = vmatprep.mubr.f32.mxu0 0.0
  %1555 = vmatmul.mubr.f32.gmra.mxu0 %v777
  %v1556 = vpop.f32.mrf.mxu0
  %v1557 = vadd.f32 0.0, %v1556
  %v1558 = vpop.f32.mrf.mxu0
  %1559 = vmatprep.mubr.f32.mxu0 0.0
  %1560 = vmatmul.mubr.f32.gmra.mxu0 %v780
  %v1561 = vpop.f32.mrf.mxu0
  %v1562 = vadd.f32 0.0, %v1561
  %v1563 = vpop.f32.mrf.mxu0
  %1564 = vmatprep.mubr.f32.mxu0 0.0
  %1565 = vmatmul.mubr.f32.gmra.mxu0 %v783
  %v1566 = vpop.f32.mrf.mxu0
  %v1567 = vadd.f32 0.0, %v1566
  %v1568 = vpop.f32.mrf.mxu0
  %1569 = vmatprep.mubr.f32.mxu0 0.0
  %1570 = vmatmul.mubr.f32.gmra.mxu0 %v786
  %v1571 = vpop.f32.mrf.mxu0
  %v1572 = vadd.f32 0.0, %v1571
  %v1573 = vpop.f32.mrf.mxu0
  %1574 = vmatprep.mubr.f32.mxu0 0.0
  %1575 = vmatmul.mubr.f32.gmra.mxu0 %v789
  %v1576 = vpop.f32.mrf.mxu0
  %v1577 = vadd.f32 0.0, %v1576
  %v1578 = vpop.f32.mrf.mxu0
  %1579 = vmatprep.mubr.f32.mxu0 0.0
  %1580 = vmatmul.mubr.f32.gmra.mxu0 %v792
  %v1581 = vpop.f32.mrf.mxu0
  %v1582 = vadd.f32 0.0, %v1581
  %v1583 = vpop.f32.mrf.mxu0
  %1584 = vmatprep.mubr.f32.mxu0 0.0
  %1585 = vmatmul.mubr.f32.gmra.mxu0 %v795
  %v1586 = vpop.f32.mrf.mxu0
  %v1587 = vadd.f32 0.0, %v1586
  %v1588 = vpop.f32.mrf.mxu0
  %1589 = vmatprep.mubr.f32.mxu0 0.0
  %1590 = vmatmul.mubr.f32.gmra.mxu0 %v798
  %v1591 = vpop.f32.mrf.mxu0
  %v1592 = vadd.f32 0.0, %v1591
  %v1593 = vpop.f32.mrf.mxu0
  %1594 = vmatprep.mubr.f32.mxu0 0.0
  %1595 = vmatmul.mubr.f32.gmra.mxu0 %v801
  %v1596 = vpop.f32.mrf.mxu0
  %v1597 = vadd.f32 0.0, %v1596
  %v1598 = vpop.f32.mrf.mxu0
  %1599 = vmatprep.mubr.f32.mxu0 0.0
  %1600 = vmatmul.mubr.f32.gmra.mxu0 %v804
  %v1601 = vpop.f32.mrf.mxu0
  %v1602 = vadd.f32 0.0, %v1601
  %v1603 = vpop.f32.mrf.mxu0
  %1604 = vmatprep.mubr.f32.mxu0 0.0
  %1605 = vmatmul.mubr.f32.gmra.mxu0 %v807
  %v1606 = vpop.f32.mrf.mxu0
  %v1607 = vadd.f32 0.0, %v1606
  %v1608 = vpop.f32.mrf.mxu0
  %1609 = vmatprep.mubr.f32.mxu0 0.0
  %1610 = vmatmul.mubr.f32.gmra.mxu0 %v810
  %v1611 = vpop.f32.mrf.mxu0
  %v1612 = vadd.f32 0.0, %v1611
  %v1613 = vpop.f32.mrf.mxu0
  %1614 = vmatprep.mubr.f32.mxu0 0.0
  %1615 = vmatmul.mubr.f32.gmra.mxu0 %v813
  %v1616 = vpop.f32.mrf.mxu0
  %v1617 = vadd.f32 0.0, %v1616
  %v1618 = vpop.f32.mrf.mxu0
  %1619 = vmatprep.mubr.f32.mxu0 0.0
  %1620 = vmatmul.mubr.f32.gmra.mxu0 %v816
  %v1621 = vpop.f32.mrf.mxu0
  %v1622 = vadd.f32 0.0, %v1621
  %v1623 = vpop.f32.mrf.mxu0
  %1624 = vmatprep.mubr.f32.mxu0 0.0
  %1625 = vmatmul.mubr.f32.gmra.mxu0 %v819
  %v1626 = vpop.f32.mrf.mxu0
  %v1627 = vadd.f32 0.0, %v1626
  %v1628 = vpop.f32.mrf.mxu0
  %1629 = vmatprep.mubr.f32.mxu0 0.0
  %1630 = vmatmul.mubr.f32.gmra.mxu0 %v822
  %v1631 = vpop.f32.mrf.mxu0
  %v1632 = vadd.f32 0.0, %v1631
  %v1633 = vpop.f32.mrf.mxu0
  %1634 = vmatprep.mubr.f32.mxu0 0.0
  %1635 = vmatmul.mubr.f32.gmra.mxu0 %v825
  %v1636 = vpop.f32.mrf.mxu0
  %v1637 = vadd.f32 0.0, %v1636
  %v1638 = vpop.f32.mrf.mxu0
  %1639 = vmatprep.mubr.f32.mxu0 0.0
  %1640 = vmatmul.mubr.f32.gmra.mxu0 %v828
  %v1641 = vpop.f32.mrf.mxu0
  %v1642 = vadd.f32 0.0, %v1641
  %v1643 = vpop.f32.mrf.mxu0
  %1644 = vmatprep.mubr.f32.mxu0 0.0
  %1645 = vmatmul.mubr.f32.gmra.mxu0 %v831
  %v1646 = vpop.f32.mrf.mxu0
  %v1647 = vadd.f32 0.0, %v1646
  %v1648 = vpop.f32.mrf.mxu0
  %1649 = vmatprep.mubr.f32.mxu0 0.0
  %1650 = vmatmul.mubr.f32.gmra.mxu0 %v834
  %v1651 = vpop.f32.mrf.mxu0
  %v1652 = vadd.f32 0.0, %v1651
  %v1653 = vpop.f32.mrf.mxu0
  %1654 = vmatprep.mubr.f32.mxu0 0.0
  %1655 = vmatmul.mubr.f32.gmra.mxu0 %v837
  %v1656 = vpop.f32.mrf.mxu0
  %v1657 = vadd.f32 0.0, %v1656
  %v1658 = vpop.f32.mrf.mxu0
  %1659 = vmatprep.mubr.f32.mxu0 0.0
  %1660 = vmatmul.mubr.f32.gmra.mxu0 %v840
  %v1661 = vpop.f32.mrf.mxu0
  %v1662 = vadd.f32 0.0, %v1661
  %v1663 = vpop.f32.mrf.mxu0
  %1664 = vmatprep.mubr.f32.mxu0 0.0
  %1665 = vmatmul.mubr.f32.gmra.mxu0 %v843
  %v1666 = vpop.f32.mrf.mxu0
  %v1667 = vadd.f32 0.0, %v1666
  %v1668 = vpop.f32.mrf.mxu0
  %1669 = vmatprep.mubr.f32.mxu0 0.0
  %1670 = vmatmul.mubr.f32.gmra.mxu0 %v846
  %v1671 = vpop.f32.mrf.mxu0
  %v1672 = vadd.f32 0.0, %v1671
  %v1673 = vpop.f32.mrf.mxu0
  %1674 = vmatprep.mubr.f32.mxu0 0.0
  %1675 = vmatmul.mubr.f32.gmra.mxu0 %v849
  %v1676 = vpop.f32.mrf.mxu0
  %v1677 = vadd.f32 0.0, %v1676
  %v1678 = vpop.f32.mrf.mxu0
  %1679 = vmatprep.mubr.f32.mxu0 0.0
  %1680 = vmatmul.mubr.f32.gmra.mxu0 %v852
  %v1681 = vpop.f32.mrf.mxu0
  %v1682 = vadd.f32 0.0, %v1681
  %v1683 = vpop.f32.mrf.mxu0
  %1684 = vmatprep.mubr.f32.mxu0 0.0
  %1685 = vmatmul.mubr.f32.gmra.mxu0 %v855
  %v1686 = vpop.f32.mrf.mxu0
  %v1687 = vadd.f32 0.0, %v1686
  %v1688 = vpop.f32.mrf.mxu0
  %1689 = vmatprep.mubr.f32.mxu0 0.0
  %1690 = vmatmul.mubr.f32.gmra.mxu0 %v858
  %v1691 = vpop.f32.mrf.mxu0
  %v1692 = vadd.f32 0.0, %v1691
  %v1693 = vpop.f32.mrf.mxu0
  %1694 = vmatprep.mubr.f32.mxu0 0.0
  %1695 = vmatmul.mubr.f32.gmra.mxu0 %v861
  %v1696 = vpop.f32.mrf.mxu0
  %v1697 = vadd.f32 0.0, %v1696
  %v1698 = vpop.f32.mrf.mxu0
  %1699 = vmatprep.mubr.f32.mxu0 0.0
  %1700 = vmatmul.mubr.f32.gmra.mxu0 %v864
  %v1701 = vpop.f32.mrf.mxu0
  %v1702 = vadd.f32 0.0, %v1701
  %v1703 = vpop.f32.mrf.mxu0
  %1704 = vmatprep.mubr.f32.mxu0 0.0
  %1705 = vmatmul.mubr.f32.gmra.mxu0 %v867
  %v1706 = vpop.f32.mrf.mxu0
  %v1707 = vadd.f32 0.0, %v1706
  %v1708 = vpop.f32.mrf.mxu0
  %1709 = vmatprep.mubr.f32.mxu0 0.0
  %1710 = vmatmul.mubr.f32.gmra.mxu0 %v870
  %v1711 = vpop.f32.mrf.mxu0
  %v1712 = vadd.f32 0.0, %v1711
  %v1713 = vpop.f32.mrf.mxu0
  %1714 = vmatprep.mubr.f32.mxu0 0.0
  %1715 = vmatmul.mubr.f32.gmra.mxu0 %v873
  %v1716 = vpop.f32.mrf.mxu0
  %v1717 = vadd.f32 0.0, %v1716
  %v1718 = vpop.f32.mrf.mxu0
  %1719 = vmatprep.mubr.f32.mxu0 0.0
  %1720 = vmatmul.mubr.f32.gmra.mxu0 %v876
  %v1721 = vpop.f32.mrf.mxu0
  %v1722 = vadd.f32 0.0, %v1721
  %v1723 = vpop.f32.mrf.mxu0
  %1724 = vmatprep.mubr.f32.mxu0 0.0
  %1725 = vmatmul.mubr.f32.gmra.mxu0 %v879
  %v1726 = vpop.f32.mrf.mxu0
  %v1727 = vadd.f32 0.0, %v1726
  %v1728 = vpop.f32.mrf.mxu0
  %1729 = vmatprep.mubr.f32.mxu0 0.0
  %1730 = vmatmul.mubr.f32.gmra.mxu0 %v882
  %v1731 = vpop.f32.mrf.mxu0
  %v1732 = vadd.f32 0.0, %v1731
  %v1733 = vpop.f32.mrf.mxu0
  %1734 = vmatprep.mubr.f32.mxu0 0.0
  %1735 = vmatmul.mubr.f32.gmra.mxu0 %v885
  %v1736 = vpop.f32.mrf.mxu0
  %v1737 = vadd.f32 0.0, %v1736
  %v1738 = vpop.f32.mrf.mxu0
  %1739 = vmatprep.mubr.f32.mxu0 0.0
  %1740 = vmatmul.mubr.f32.gmra.mxu0 %v888
  %v1741 = vpop.f32.mrf.mxu0
  %v1742 = vadd.f32 0.0, %v1741
  %v1743 = vpop.f32.mrf.mxu0
  %1744 = vmatprep.mubr.f32.mxu0 0.0
  %1745 = vmatmul.mubr.f32.gmra.mxu0 %v891
  %v1746 = vpop.f32.mrf.mxu0
  %v1747 = vadd.f32 0.0, %v1746
  %v1748 = vpop.f32.mrf.mxu0
  %1749 = vmatprep.mubr.f32.mxu0 0.0
  %1750 = vmatmul.mubr.f32.gmra.mxu0 %v894
  %v1751 = vpop.f32.mrf.mxu0
  %v1752 = vadd.f32 0.0, %v1751
  %v1753 = vpop.f32.mrf.mxu0
  %1754 = vmatprep.mubr.f32.mxu0 0.0
  %1755 = vmatmul.mubr.f32.gmra.mxu0 %v897
  %v1756 = vpop.f32.mrf.mxu0
  %v1757 = vadd.f32 0.0, %v1756
  %v1758 = vpop.f32.mrf.mxu0
  %1759 = vmatprep.mubr.f32.mxu0 0.0
  %1760 = vmatmul.mubr.f32.gmra.mxu0 %v900
  %v1761 = vpop.f32.mrf.mxu0
  %v1762 = vadd.f32 0.0, %v1761
  %v1763 = vpop.f32.mrf.mxu0
  %1764 = vmatprep.mubr.f32.mxu0 0.0
  %1765 = vmatmul.mubr.f32.gmra.mxu0 %v903
  %v1766 = vpop.f32.mrf.mxu0
  %v1767 = vadd.f32 0.0, %v1766
  %v1768 = vpop.f32.mrf.mxu0
  %1769 = vdwg.mxu0
  %v1770 = vld [vmem:[%s2] sm:$0xff]
  %v1771 = vlaneseq
  %v1772 = vshrl.u32 %v1771, 7
  %v1773 = vsub.s32 0, %v1772
  %v1774 = vrot.slane %v1770, %v1773
  %1776 = vbcast.lane.b32.xlu0 %v1774, 256
  %v1777 = vpop.permute.xlu0 %1776
  %s1779 = sor.u32 256, 8
  %1780 = vbcast.lane.b32.xlu0 %v1774, %s1779
  %v1781 = vpop.permute.xlu0 %1780
  %v1782 = vlaneseq
  %v1783 = vshrl.u32 %v1782, 7
  %v1784 = vsub.s32 1, %v1783
  %v1785 = vrot.slane %v1770, %v1784
  %1787 = vbcast.lane.b32.xlu0 %v1785, 256
  %v1788 = vpop.permute.xlu0 %1787
  %s1790 = sor.u32 256, 8
  %1791 = vbcast.lane.b32.xlu0 %v1785, %s1790
  %v1792 = vpop.permute.xlu0 %1791
  %v1793 = vlaneseq
  %v1794 = vshrl.u32 %v1793, 7
  %v1795 = vsub.s32 2, %v1794
  %v1796 = vrot.slane %v1770, %v1795
  %1798 = vbcast.lane.b32.xlu0 %v1796, 256
  %v1799 = vpop.permute.xlu0 %1798
  %s1801 = sor.u32 256, 8
  %1802 = vbcast.lane.b32.xlu0 %v1796, %s1801
  %v1803 = vpop.permute.xlu0 %1802
  %v1804 = vlaneseq
  %v1805 = vshrl.u32 %v1804, 7
  %v1806 = vsub.s32 3, %v1805
  %v1807 = vrot.slane %v1770, %v1806
  %1809 = vbcast.lane.b32.xlu0 %v1807, 256
  %v1810 = vpop.permute.xlu0 %1809
  %s1812 = sor.u32 256, 8
  %1813 = vbcast.lane.b32.xlu0 %v1807, %s1812
  %v1814 = vpop.permute.xlu0 %1813
  %v1815 = vlaneseq
  %v1816 = vshrl.u32 %v1815, 7
  %v1817 = vsub.s32 4, %v1816
  %v1818 = vrot.slane %v1770, %v1817
  %1820 = vbcast.lane.b32.xlu0 %v1818, 256
  %v1821 = vpop.permute.xlu0 %1820
  %s1823 = sor.u32 256, 8
  %1824 = vbcast.lane.b32.xlu0 %v1818, %s1823
  %v1825 = vpop.permute.xlu0 %1824
  %v1826 = vlaneseq
  %v1827 = vshrl.u32 %v1826, 7
  %v1828 = vsub.s32 5, %v1827
  %v1829 = vrot.slane %v1770, %v1828
  %1831 = vbcast.lane.b32.xlu0 %v1829, 256
  %v1832 = vpop.permute.xlu0 %1831
  %s1834 = sor.u32 256, 8
  %1835 = vbcast.lane.b32.xlu0 %v1829, %s1834
  %v1836 = vpop.permute.xlu0 %1835
  %v1837 = vlaneseq
  %v1838 = vshrl.u32 %v1837, 7
  %v1839 = vsub.s32 6, %v1838
  %v1840 = vrot.slane %v1770, %v1839
  %1842 = vbcast.lane.b32.xlu0 %v1840, 256
  %v1843 = vpop.permute.xlu0 %1842
  %s1845 = sor.u32 256, 8
  %1846 = vbcast.lane.b32.xlu0 %v1840, %s1845
  %v1847 = vpop.permute.xlu0 %1846
  %v1848 = vlaneseq
  %v1849 = vshrl.u32 %v1848, 7
  %v1850 = vsub.s32 7, %v1849
  %v1851 = vrot.slane %v1770, %v1850
  %1853 = vbcast.lane.b32.xlu0 %v1851, 256
  %v1854 = vpop.permute.xlu0 %1853
  %s1856 = sor.u32 256, 8
  %1857 = vbcast.lane.b32.xlu0 %v1851, %s1856
  %v1858 = vpop.permute.xlu0 %1857
  %vm1859 = vcmask 1041408
  %v1860 = vsel %vm1859, %v1781, -inf
  %v1861 = vmax.f32 %v1777, %v1860
  %v1862 = vrot.slane %v1861, 4
  %v1863 = vmax.f32 %v1861, %v1862
  %v1864 = vrot.slane %v1863, 2
  %v1865 = vmax.f32 %v1863, %v1864
  %v1866 = vrot.slane %v1865, 1
  %v1867 = vmax.f32 %v1865, %v1866
  %v1868 = vsel %vm1859, %v1792, -inf
  %v1869 = vmax.f32 %v1788, %v1868
  %v1870 = vrot.slane %v1869, 4
  %v1871 = vmax.f32 %v1869, %v1870
  %v1872 = vrot.slane %v1871, 2
  %v1873 = vmax.f32 %v1871, %v1872
  %v1874 = vrot.slane %v1873, 1
  %v1875 = vmax.f32 %v1873, %v1874
  %v1876 = vsel %vm1859, %v1803, -inf
  %v1877 = vmax.f32 %v1799, %v1876
  %v1878 = vrot.slane %v1877, 4
  %v1879 = vmax.f32 %v1877, %v1878
  %v1880 = vrot.slane %v1879, 2
  %v1881 = vmax.f32 %v1879, %v1880
  %v1882 = vrot.slane %v1881, 1
  %v1883 = vmax.f32 %v1881, %v1882
  %v1884 = vsel %vm1859, %v1814, -inf
  %v1885 = vmax.f32 %v1810, %v1884
  %v1886 = vrot.slane %v1885, 4
  %v1887 = vmax.f32 %v1885, %v1886
  %v1888 = vrot.slane %v1887, 2
  %v1889 = vmax.f32 %v1887, %v1888
  %v1890 = vrot.slane %v1889, 1
  %v1891 = vmax.f32 %v1889, %v1890
  %v1892 = vsel %vm1859, %v1825, -inf
  %v1893 = vmax.f32 %v1821, %v1892
  %v1894 = vrot.slane %v1893, 4
  %v1895 = vmax.f32 %v1893, %v1894
  %v1896 = vrot.slane %v1895, 2
  %v1897 = vmax.f32 %v1895, %v1896
  %v1898 = vrot.slane %v1897, 1
  %v1899 = vmax.f32 %v1897, %v1898
  %v1900 = vsel %vm1859, %v1836, -inf
  %v1901 = vmax.f32 %v1832, %v1900
  %v1902 = vrot.slane %v1901, 4
  %v1903 = vmax.f32 %v1901, %v1902
  %v1904 = vrot.slane %v1903, 2
  %v1905 = vmax.f32 %v1903, %v1904
  %v1906 = vrot.slane %v1905, 1
  %v1907 = vmax.f32 %v1905, %v1906
  %v1908 = vsel %vm1859, %v1847, -inf
  %v1909 = vmax.f32 %v1843, %v1908
  %v1910 = vrot.slane %v1909, 4
  %v1911 = vmax.f32 %v1909, %v1910
  %v1912 = vrot.slane %v1911, 2
  %v1913 = vmax.f32 %v1911, %v1912
  %v1914 = vrot.slane %v1913, 1
  %v1915 = vmax.f32 %v1913, %v1914
  %v1916 = vsel %vm1859, %v1858, -inf
  %v1917 = vmax.f32 %v1854, %v1916
  %v1918 = vrot.slane %v1917, 4
  %v1919 = vmax.f32 %v1917, %v1918
  %v1920 = vrot.slane %v1919, 2
  %v1921 = vmax.f32 %v1919, %v1920
  %v1922 = vrot.slane %v1921, 1
  %v1923 = vmax.f32 %v1921, %v1922
  %v1924 = vsub.f32 %v1777, %v1867
  %v1925 = vsub.f32 %v1781, %v1867
  %v1926 = vsub.f32 %v1788, %v1875
  %v1927 = vsub.f32 %v1792, %v1875
  %v1928 = vsub.f32 %v1799, %v1883
  %v1929 = vsub.f32 %v1803, %v1883
  %v1930 = vsub.f32 %v1810, %v1891
  %v1931 = vsub.f32 %v1814, %v1891
  %v1932 = vsub.f32 %v1821, %v1899
  %v1933 = vsub.f32 %v1825, %v1899
  %v1934 = vsub.f32 %v1832, %v1907
  %v1935 = vsub.f32 %v1836, %v1907
  %v1936 = vsub.f32 %v1843, %v1915
  %v1937 = vsub.f32 %v1847, %v1915
  %v1938 = vsub.f32 %v1854, %v1923
  %v1939 = vsub.f32 %v1858, %v1923
  %v1940 = vmul.f32 %v1924, 1.442695
  %v1941 = vpow.pop %v1940
  %v1942 = vmul.f32 %v1925, 1.442695
  %v1943 = vpow.pop %v1942
  %v1944 = vmul.f32 %v1926, 1.442695
  %v1945 = vpow.pop %v1944
  %v1946 = vmul.f32 %v1927, 1.442695
  %v1947 = vpow.pop %v1946
  %v1948 = vmul.f32 %v1928, 1.442695
  %v1949 = vpow.pop %v1948
  %v1950 = vmul.f32 %v1929, 1.442695
  %v1951 = vpow.pop %v1950
  %v1952 = vmul.f32 %v1930, 1.442695
  %v1953 = vpow.pop %v1952
  %v1954 = vmul.f32 %v1931, 1.442695
  %v1955 = vpow.pop %v1954
  %v1956 = vmul.f32 %v1932, 1.442695
  %v1957 = vpow.pop %v1956
  %v1958 = vmul.f32 %v1933, 1.442695
  %v1959 = vpow.pop %v1958
  %v1960 = vmul.f32 %v1934, 1.442695
  %v1961 = vpow.pop %v1960
  %v1962 = vmul.f32 %v1935, 1.442695
  %v1963 = vpow.pop %v1962
  %v1964 = vmul.f32 %v1936, 1.442695
  %v1965 = vpow.pop %v1964
  %v1966 = vmul.f32 %v1937, 1.442695
  %v1967 = vpow.pop %v1966
  %v1968 = vmul.f32 %v1938, 1.442695
  %v1969 = vpow.pop %v1968
  %v1970 = vmul.f32 %v1939, 1.442695
  %v1971 = vpow.pop %v1970
  %v1972 = vsel %vm1859, %v1943, 0.0
  %v1973 = vadd.f32 %v1941, %v1972
  %v1974 = vrot.slane %v1973, 4
  %v1975 = vadd.f32 %v1973, %v1974
  %v1976 = vrot.slane %v1975, 2
  %v1977 = vadd.f32 %v1975, %v1976
  %v1978 = vrot.slane %v1977, 1
  %v1979 = vadd.f32 %v1977, %v1978
  %v1980 = vsel %vm1859, %v1947, 0.0
  %v1981 = vadd.f32 %v1945, %v1980
  %v1982 = vrot.slane %v1981, 4
  %v1983 = vadd.f32 %v1981, %v1982
  %v1984 = vrot.slane %v1983, 2
  %v1985 = vadd.f32 %v1983, %v1984
  %v1986 = vrot.slane %v1985, 1
  %v1987 = vadd.f32 %v1985, %v1986
  %v1988 = vsel %vm1859, %v1951, 0.0
  %v1989 = vadd.f32 %v1949, %v1988
  %v1990 = vrot.slane %v1989, 4
  %v1991 = vadd.f32 %v1989, %v1990
  %v1992 = vrot.slane %v1991, 2
  %v1993 = vadd.f32 %v1991, %v1992
  %v1994 = vrot.slane %v1993, 1
  %v1995 = vadd.f32 %v1993, %v1994
  %v1996 = vsel %vm1859, %v1955, 0.0
  %v1997 = vadd.f32 %v1953, %v1996
  %v1998 = vrot.slane %v1997, 4
  %v1999 = vadd.f32 %v1997, %v1998
  %v2000 = vrot.slane %v1999, 2
  %v2001 = vadd.f32 %v1999, %v2000
  %v2002 = vrot.slane %v2001, 1
  %v2003 = vadd.f32 %v2001, %v2002
  %v2004 = vsel %vm1859, %v1959, 0.0
  %v2005 = vadd.f32 %v1957, %v2004
  %v2006 = vrot.slane %v2005, 4
  %v2007 = vadd.f32 %v2005, %v2006
  %v2008 = vrot.slane %v2007, 2
  %v2009 = vadd.f32 %v2007, %v2008
  %v2010 = vrot.slane %v2009, 1
  %v2011 = vadd.f32 %v2009, %v2010
  %v2012 = vsel %vm1859, %v1963, 0.0
  %v2013 = vadd.f32 %v1961, %v2012
  %v2014 = vrot.slane %v2013, 4
  %v2015 = vadd.f32 %v2013, %v2014
  %v2016 = vrot.slane %v2015, 2
  %v2017 = vadd.f32 %v2015, %v2016
  %v2018 = vrot.slane %v2017, 1
  %v2019 = vadd.f32 %v2017, %v2018
  %v2020 = vsel %vm1859, %v1967, 0.0
  %v2021 = vadd.f32 %v1965, %v2020
  %v2022 = vrot.slane %v2021, 4
  %v2023 = vadd.f32 %v2021, %v2022
  %v2024 = vrot.slane %v2023, 2
  %v2025 = vadd.f32 %v2023, %v2024
  %v2026 = vrot.slane %v2025, 1
  %v2027 = vadd.f32 %v2025, %v2026
  %v2028 = vsel %vm1859, %v1971, 0.0
  %v2029 = vadd.f32 %v1969, %v2028
  %v2030 = vrot.slane %v2029, 4
  %v2031 = vadd.f32 %v2029, %v2030
  %v2032 = vrot.slane %v2031, 2
  %v2033 = vadd.f32 %v2031, %v2032
  %v2034 = vrot.slane %v2033, 1
  %v2035 = vadd.f32 %v2033, %v2034
  %v2036 = vrcp.pop %v1979
  %v2037 = vmul.f32 %v1941, %v2036
  %v2038 = vmul.f32 %v1943, %v2036
  %v2039 = vrcp.pop %v1987
  %v2040 = vmul.f32 %v1945, %v2039
  %v2041 = vmul.f32 %v1947, %v2039
  %v2042 = vrcp.pop %v1995
  %v2043 = vmul.f32 %v1949, %v2042
  %v2044 = vmul.f32 %v1951, %v2042
  %v2045 = vrcp.pop %v2003
  %v2046 = vmul.f32 %v1953, %v2045
  %v2047 = vmul.f32 %v1955, %v2045
  %v2048 = vrcp.pop %v2011
  %v2049 = vmul.f32 %v1957, %v2048
  %v2050 = vmul.f32 %v1959, %v2048
  %v2051 = vrcp.pop %v2019
  %v2052 = vmul.f32 %v1961, %v2051
  %v2053 = vmul.f32 %v1963, %v2051
  %v2054 = vrcp.pop %v2027
  %v2055 = vmul.f32 %v1965, %v2054
  %v2056 = vmul.f32 %v1967, %v2054
  %v2057 = vrcp.pop %v2035
  %v2058 = vmul.f32 %v1969, %v2057
  %v2059 = vmul.f32 %v1971, %v2057
  %v2076 = vlaneseq
  %v2077 = vshrl.u32 %v2076, 7
  %v2078 = vsub.s32 0, %v2077
  %v2079 = vrot.slane %v2037, %v2078
  %v2080 = vlaneseq
  %v2081 = vshrl.u32 %v2080, 7
  %v2082 = vsub.s32 1, %v2081
  %v2083 = vrot.slane %v2037, %v2082
  %v2084 = vlaneseq
  %v2085 = vshrl.u32 %v2084, 7
  %v2086 = vsub.s32 2, %v2085
  %v2087 = vrot.slane %v2037, %v2086
  %v2088 = vlaneseq
  %v2089 = vshrl.u32 %v2088, 7
  %v2090 = vsub.s32 3, %v2089
  %v2091 = vrot.slane %v2037, %v2090
  %v2092 = vlaneseq
  %v2093 = vshrl.u32 %v2092, 7
  %v2094 = vsub.s32 4, %v2093
  %v2095 = vrot.slane %v2037, %v2094
  %v2096 = vlaneseq
  %v2097 = vshrl.u32 %v2096, 7
  %v2098 = vsub.s32 5, %v2097
  %v2099 = vrot.slane %v2037, %v2098
  %v2100 = vlaneseq
  %v2101 = vshrl.u32 %v2100, 7
  %v2102 = vsub.s32 6, %v2101
  %v2103 = vrot.slane %v2037, %v2102
  %v2104 = vlaneseq
  %v2105 = vshrl.u32 %v2104, 7
  %v2106 = vsub.s32 7, %v2105
  %v2107 = vrot.slane %v2037, %v2106
  %v2108 = vlaneseq
  %v2109 = vshrl.u32 %v2108, 7
  %v2110 = vsub.s32 0, %v2109
  %v2111 = vrot.slane %v2038, %v2110
  %v2112 = vlaneseq
  %v2113 = vshrl.u32 %v2112, 7
  %v2114 = vsub.s32 1, %v2113
  %v2115 = vrot.slane %v2038, %v2114
  %v2116 = vlaneseq
  %v2117 = vshrl.u32 %v2116, 7
  %v2118 = vsub.s32 0, %v2117
  %v2119 = vrot.slane %v2040, %v2118
  %v2120 = vlaneseq
  %v2121 = vshrl.u32 %v2120, 7
  %v2122 = vsub.s32 1, %v2121
  %v2123 = vrot.slane %v2040, %v2122
  %v2124 = vlaneseq
  %v2125 = vshrl.u32 %v2124, 7
  %v2126 = vsub.s32 2, %v2125
  %v2127 = vrot.slane %v2040, %v2126
  %v2128 = vlaneseq
  %v2129 = vshrl.u32 %v2128, 7
  %v2130 = vsub.s32 3, %v2129
  %v2131 = vrot.slane %v2040, %v2130
  %v2132 = vlaneseq
  %v2133 = vshrl.u32 %v2132, 7
  %v2134 = vsub.s32 4, %v2133
  %v2135 = vrot.slane %v2040, %v2134
  %v2136 = vlaneseq
  %v2137 = vshrl.u32 %v2136, 7
  %v2138 = vsub.s32 5, %v2137
  %v2139 = vrot.slane %v2040, %v2138
  %v2140 = vlaneseq
  %v2141 = vshrl.u32 %v2140, 7
  %v2142 = vsub.s32 6, %v2141
  %v2143 = vrot.slane %v2040, %v2142
  %v2144 = vlaneseq
  %v2145 = vshrl.u32 %v2144, 7
  %v2146 = vsub.s32 7, %v2145
  %v2147 = vrot.slane %v2040, %v2146
  %v2148 = vlaneseq
  %v2149 = vshrl.u32 %v2148, 7
  %v2150 = vsub.s32 0, %v2149
  %v2151 = vrot.slane %v2041, %v2150
  %v2152 = vlaneseq
  %v2153 = vshrl.u32 %v2152, 7
  %v2154 = vsub.s32 1, %v2153
  %v2155 = vrot.slane %v2041, %v2154
  %v2156 = vlaneseq
  %v2157 = vshrl.u32 %v2156, 7
  %v2158 = vsub.s32 0, %v2157
  %v2159 = vrot.slane %v2043, %v2158
  %v2160 = vlaneseq
  %v2161 = vshrl.u32 %v2160, 7
  %v2162 = vsub.s32 1, %v2161
  %v2163 = vrot.slane %v2043, %v2162
  %v2164 = vlaneseq
  %v2165 = vshrl.u32 %v2164, 7
  %v2166 = vsub.s32 2, %v2165
  %v2167 = vrot.slane %v2043, %v2166
  %v2168 = vlaneseq
  %v2169 = vshrl.u32 %v2168, 7
  %v2170 = vsub.s32 3, %v2169
  %v2171 = vrot.slane %v2043, %v2170
  %v2172 = vlaneseq
  %v2173 = vshrl.u32 %v2172, 7
  %v2174 = vsub.s32 4, %v2173
  %v2175 = vrot.slane %v2043, %v2174
  %v2176 = vlaneseq
  %v2177 = vshrl.u32 %v2176, 7
  %v2178 = vsub.s32 5, %v2177
  %v2179 = vrot.slane %v2043, %v2178
  %v2180 = vlaneseq
  %v2181 = vshrl.u32 %v2180, 7
  %v2182 = vsub.s32 6, %v2181
  %v2183 = vrot.slane %v2043, %v2182
  %v2184 = vlaneseq
  %v2185 = vshrl.u32 %v2184, 7
  %v2186 = vsub.s32 7, %v2185
  %v2187 = vrot.slane %v2043, %v2186
  %v2188 = vlaneseq
  %v2189 = vshrl.u32 %v2188, 7
  %v2190 = vsub.s32 0, %v2189
  %v2191 = vrot.slane %v2044, %v2190
  %v2192 = vlaneseq
  %v2193 = vshrl.u32 %v2192, 7
  %v2194 = vsub.s32 1, %v2193
  %v2195 = vrot.slane %v2044, %v2194
  %v2196 = vlaneseq
  %v2197 = vshrl.u32 %v2196, 7
  %v2198 = vsub.s32 0, %v2197
  %v2199 = vrot.slane %v2046, %v2198
  %v2200 = vlaneseq
  %v2201 = vshrl.u32 %v2200, 7
  %v2202 = vsub.s32 1, %v2201
  %v2203 = vrot.slane %v2046, %v2202
  %v2204 = vlaneseq
  %v2205 = vshrl.u32 %v2204, 7
  %v2206 = vsub.s32 2, %v2205
  %v2207 = vrot.slane %v2046, %v2206
  %v2208 = vlaneseq
  %v2209 = vshrl.u32 %v2208, 7
  %v2210 = vsub.s32 3, %v2209
  %v2211 = vrot.slane %v2046, %v2210
  %v2212 = vlaneseq
  %v2213 = vshrl.u32 %v2212, 7
  %v2214 = vsub.s32 4, %v2213
  %v2215 = vrot.slane %v2046, %v2214
  %v2216 = vlaneseq
  %v2217 = vshrl.u32 %v2216, 7
  %v2218 = vsub.s32 5, %v2217
  %v2219 = vrot.slane %v2046, %v2218
  %v2220 = vlaneseq
  %v2221 = vshrl.u32 %v2220, 7
  %v2222 = vsub.s32 6, %v2221
  %v2223 = vrot.slane %v2046, %v2222
  %v2224 = vlaneseq
  %v2225 = vshrl.u32 %v2224, 7
  %v2226 = vsub.s32 7, %v2225
  %v2227 = vrot.slane %v2046, %v2226
  %v2228 = vlaneseq
  %v2229 = vshrl.u32 %v2228, 7
  %v2230 = vsub.s32 0, %v2229
  %v2231 = vrot.slane %v2047, %v2230
  %v2232 = vlaneseq
  %v2233 = vshrl.u32 %v2232, 7
  %v2234 = vsub.s32 1, %v2233
  %v2235 = vrot.slane %v2047, %v2234
  %v2236 = vlaneseq
  %v2237 = vshrl.u32 %v2236, 7
  %v2238 = vsub.s32 0, %v2237
  %v2239 = vrot.slane %v2049, %v2238
  %v2240 = vlaneseq
  %v2241 = vshrl.u32 %v2240, 7
  %v2242 = vsub.s32 1, %v2241
  %v2243 = vrot.slane %v2049, %v2242
  %v2244 = vlaneseq
  %v2245 = vshrl.u32 %v2244, 7
  %v2246 = vsub.s32 2, %v2245
  %v2247 = vrot.slane %v2049, %v2246
  %v2248 = vlaneseq
  %v2249 = vshrl.u32 %v2248, 7
  %v2250 = vsub.s32 3, %v2249
  %v2251 = vrot.slane %v2049, %v2250
  %v2252 = vlaneseq
  %v2253 = vshrl.u32 %v2252, 7
  %v2254 = vsub.s32 4, %v2253
  %v2255 = vrot.slane %v2049, %v2254
  %v2256 = vlaneseq
  %v2257 = vshrl.u32 %v2256, 7
  %v2258 = vsub.s32 5, %v2257
  %v2259 = vrot.slane %v2049, %v2258
  %v2260 = vlaneseq
  %v2261 = vshrl.u32 %v2260, 7
  %v2262 = vsub.s32 6, %v2261
  %v2263 = vrot.slane %v2049, %v2262
  %v2264 = vlaneseq
  %v2265 = vshrl.u32 %v2264, 7
  %v2266 = vsub.s32 7, %v2265
  %v2267 = vrot.slane %v2049, %v2266
  %v2268 = vlaneseq
  %v2269 = vshrl.u32 %v2268, 7
  %v2270 = vsub.s32 0, %v2269
  %v2271 = vrot.slane %v2050, %v2270
  %v2272 = vlaneseq
  %v2273 = vshrl.u32 %v2272, 7
  %v2274 = vsub.s32 1, %v2273
  %v2275 = vrot.slane %v2050, %v2274
  %v2276 = vlaneseq
  %v2277 = vshrl.u32 %v2276, 7
  %v2278 = vsub.s32 0, %v2277
  %v2279 = vrot.slane %v2052, %v2278
  %v2280 = vlaneseq
  %v2281 = vshrl.u32 %v2280, 7
  %v2282 = vsub.s32 1, %v2281
  %v2283 = vrot.slane %v2052, %v2282
  %v2284 = vlaneseq
  %v2285 = vshrl.u32 %v2284, 7
  %v2286 = vsub.s32 2, %v2285
  %v2287 = vrot.slane %v2052, %v2286
  %v2288 = vlaneseq
  %v2289 = vshrl.u32 %v2288, 7
  %v2290 = vsub.s32 3, %v2289
  %v2291 = vrot.slane %v2052, %v2290
  %v2292 = vlaneseq
  %v2293 = vshrl.u32 %v2292, 7
  %v2294 = vsub.s32 4, %v2293
  %v2295 = vrot.slane %v2052, %v2294
  %v2296 = vlaneseq
  %v2297 = vshrl.u32 %v2296, 7
  %v2298 = vsub.s32 5, %v2297
  %v2299 = vrot.slane %v2052, %v2298
  %v2300 = vlaneseq
  %v2301 = vshrl.u32 %v2300, 7
  %v2302 = vsub.s32 6, %v2301
  %v2303 = vrot.slane %v2052, %v2302
  %v2304 = vlaneseq
  %v2305 = vshrl.u32 %v2304, 7
  %v2306 = vsub.s32 7, %v2305
  %v2307 = vrot.slane %v2052, %v2306
  %v2308 = vlaneseq
  %v2309 = vshrl.u32 %v2308, 7
  %v2310 = vsub.s32 0, %v2309
  %v2311 = vrot.slane %v2053, %v2310
  %v2312 = vlaneseq
  %v2313 = vshrl.u32 %v2312, 7
  %v2314 = vsub.s32 1, %v2313
  %v2315 = vrot.slane %v2053, %v2314
  %v2316 = vlaneseq
  %v2317 = vshrl.u32 %v2316, 7
  %v2318 = vsub.s32 0, %v2317
  %v2319 = vrot.slane %v2055, %v2318
  %v2320 = vlaneseq
  %v2321 = vshrl.u32 %v2320, 7
  %v2322 = vsub.s32 1, %v2321
  %v2323 = vrot.slane %v2055, %v2322
  %v2324 = vlaneseq
  %v2325 = vshrl.u32 %v2324, 7
  %v2326 = vsub.s32 2, %v2325
  %v2327 = vrot.slane %v2055, %v2326
  %v2328 = vlaneseq
  %v2329 = vshrl.u32 %v2328, 7
  %v2330 = vsub.s32 3, %v2329
  %v2331 = vrot.slane %v2055, %v2330
  %v2332 = vlaneseq
  %v2333 = vshrl.u32 %v2332, 7
  %v2334 = vsub.s32 4, %v2333
  %v2335 = vrot.slane %v2055, %v2334
  %v2336 = vlaneseq
  %v2337 = vshrl.u32 %v2336, 7
  %v2338 = vsub.s32 5, %v2337
  %v2339 = vrot.slane %v2055, %v2338
  %v2340 = vlaneseq
  %v2341 = vshrl.u32 %v2340, 7
  %v2342 = vsub.s32 6, %v2341
  %v2343 = vrot.slane %v2055, %v2342
  %v2344 = vlaneseq
  %v2345 = vshrl.u32 %v2344, 7
  %v2346 = vsub.s32 7, %v2345
  %v2347 = vrot.slane %v2055, %v2346
  %v2348 = vlaneseq
  %v2349 = vshrl.u32 %v2348, 7
  %v2350 = vsub.s32 0, %v2349
  %v2351 = vrot.slane %v2056, %v2350
  %v2352 = vlaneseq
  %v2353 = vshrl.u32 %v2352, 7
  %v2354 = vsub.s32 1, %v2353
  %v2355 = vrot.slane %v2056, %v2354
  %v2356 = vlaneseq
  %v2357 = vshrl.u32 %v2356, 7
  %v2358 = vsub.s32 0, %v2357
  %v2359 = vrot.slane %v2058, %v2358
  %v2360 = vlaneseq
  %v2361 = vshrl.u32 %v2360, 7
  %v2362 = vsub.s32 1, %v2361
  %v2363 = vrot.slane %v2058, %v2362
  %v2364 = vlaneseq
  %v2365 = vshrl.u32 %v2364, 7
  %v2366 = vsub.s32 2, %v2365
  %v2367 = vrot.slane %v2058, %v2366
  %v2368 = vlaneseq
  %v2369 = vshrl.u32 %v2368, 7
  %v2370 = vsub.s32 3, %v2369
  %v2371 = vrot.slane %v2058, %v2370
  %v2372 = vlaneseq
  %v2373 = vshrl.u32 %v2372, 7
  %v2374 = vsub.s32 4, %v2373
  %v2375 = vrot.slane %v2058, %v2374
  %v2376 = vlaneseq
  %v2377 = vshrl.u32 %v2376, 7
  %v2378 = vsub.s32 5, %v2377
  %v2379 = vrot.slane %v2058, %v2378
  %v2380 = vlaneseq
  %v2381 = vshrl.u32 %v2380, 7
  %v2382 = vsub.s32 6, %v2381
  %v2383 = vrot.slane %v2058, %v2382
  %v2384 = vlaneseq
  %v2385 = vshrl.u32 %v2384, 7
  %v2386 = vsub.s32 7, %v2385
  %v2387 = vrot.slane %v2058, %v2386
  %v2388 = vlaneseq
  %v2389 = vshrl.u32 %v2388, 7
  %v2390 = vsub.s32 0, %v2389
  %v2391 = vrot.slane %v2059, %v2390
  %v2392 = vlaneseq
  %v2393 = vshrl.u32 %v2392, 7
  %v2394 = vsub.s32 1, %v2393
  %v2395 = vrot.slane %v2059, %v2394
  %v2476 = vmul.f32 %v2079, %v972
  %v2477 = vmul.f32 %v2079, %v977
  %v2478 = vmul.f32 %v2083, %v982
  %v2479 = vmul.f32 %v2083, %v987
  %v2480 = vmul.f32 %v2087, %v992
  %v2481 = vmul.f32 %v2087, %v997
  %v2482 = vmul.f32 %v2091, %v1002
  %v2483 = vmul.f32 %v2091, %v1007
  %v2484 = vmul.f32 %v2095, %v1012
  %v2485 = vmul.f32 %v2095, %v1017
  %v2486 = vmul.f32 %v2099, %v1022
  %v2487 = vmul.f32 %v2099, %v1027
  %v2488 = vmul.f32 %v2103, %v1032
  %v2489 = vmul.f32 %v2103, %v1037
  %v2490 = vmul.f32 %v2107, %v1042
  %v2491 = vmul.f32 %v2107, %v1047
  %v2492 = vmul.f32 %v2111, %v1052
  %v2493 = vmul.f32 %v2111, %v1057
  %v2494 = vmul.f32 %v2115, %v1062
  %v2495 = vmul.f32 %v2115, %v1067
  %v2496 = vmul.f32 %v2119, %v1072
  %v2497 = vmul.f32 %v2119, %v1077
  %v2498 = vmul.f32 %v2123, %v1082
  %v2499 = vmul.f32 %v2123, %v1087
  %v2500 = vmul.f32 %v2127, %v1092
  %v2501 = vmul.f32 %v2127, %v1097
  %v2502 = vmul.f32 %v2131, %v1102
  %v2503 = vmul.f32 %v2131, %v1107
  %v2504 = vmul.f32 %v2135, %v1112
  %v2505 = vmul.f32 %v2135, %v1117
  %v2506 = vmul.f32 %v2139, %v1122
  %v2507 = vmul.f32 %v2139, %v1127
  %v2508 = vmul.f32 %v2143, %v1132
  %v2509 = vmul.f32 %v2143, %v1137
  %v2510 = vmul.f32 %v2147, %v1142
  %v2511 = vmul.f32 %v2147, %v1147
  %v2512 = vmul.f32 %v2151, %v1152
  %v2513 = vmul.f32 %v2151, %v1157
  %v2514 = vmul.f32 %v2155, %v1162
  %v2515 = vmul.f32 %v2155, %v1167
  %v2516 = vmul.f32 %v2159, %v1172
  %v2517 = vmul.f32 %v2159, %v1177
  %v2518 = vmul.f32 %v2163, %v1182
  %v2519 = vmul.f32 %v2163, %v1187
  %v2520 = vmul.f32 %v2167, %v1192
  %v2521 = vmul.f32 %v2167, %v1197
  %v2522 = vmul.f32 %v2171, %v1202
  %v2523 = vmul.f32 %v2171, %v1207
  %v2524 = vmul.f32 %v2175, %v1212
  %v2525 = vmul.f32 %v2175, %v1217
  %v2526 = vmul.f32 %v2179, %v1222
  %v2527 = vmul.f32 %v2179, %v1227
  %v2528 = vmul.f32 %v2183, %v1232
  %v2529 = vmul.f32 %v2183, %v1237
  %v2530 = vmul.f32 %v2187, %v1242
  %v2531 = vmul.f32 %v2187, %v1247
  %v2532 = vmul.f32 %v2191, %v1252
  %v2533 = vmul.f32 %v2191, %v1257
  %v2534 = vmul.f32 %v2195, %v1262
  %v2535 = vmul.f32 %v2195, %v1267
  %v2536 = vmul.f32 %v2199, %v1272
  %v2537 = vmul.f32 %v2199, %v1277
  %v2538 = vmul.f32 %v2203, %v1282
  %v2539 = vmul.f32 %v2203, %v1287
  %v2540 = vmul.f32 %v2207, %v1292
  %v2541 = vmul.f32 %v2207, %v1297
  %v2542 = vmul.f32 %v2211, %v1302
  %v2543 = vmul.f32 %v2211, %v1307
  %v2544 = vmul.f32 %v2215, %v1312
  %v2545 = vmul.f32 %v2215, %v1317
  %v2546 = vmul.f32 %v2219, %v1322
  %v2547 = vmul.f32 %v2219, %v1327
  %v2548 = vmul.f32 %v2223, %v1332
  %v2549 = vmul.f32 %v2223, %v1337
  %v2550 = vmul.f32 %v2227, %v1342
  %v2551 = vmul.f32 %v2227, %v1347
  %v2552 = vmul.f32 %v2231, %v1352
  %v2553 = vmul.f32 %v2231, %v1357
  %v2554 = vmul.f32 %v2235, %v1362
  %v2555 = vmul.f32 %v2235, %v1367
  %v2556 = vmul.f32 %v2239, %v1372
  %v2557 = vmul.f32 %v2239, %v1377
  %v2558 = vmul.f32 %v2243, %v1382
  %v2559 = vmul.f32 %v2243, %v1387
  %v2560 = vmul.f32 %v2247, %v1392
  %v2561 = vmul.f32 %v2247, %v1397
  %v2562 = vmul.f32 %v2251, %v1402
  %v2563 = vmul.f32 %v2251, %v1407
  %v2564 = vmul.f32 %v2255, %v1412
  %v2565 = vmul.f32 %v2255, %v1417
  %v2566 = vmul.f32 %v2259, %v1422
  %v2567 = vmul.f32 %v2259, %v1427
  %v2568 = vmul.f32 %v2263, %v1432
  %v2569 = vmul.f32 %v2263, %v1437
  %v2570 = vmul.f32 %v2267, %v1442
  %v2571 = vmul.f32 %v2267, %v1447
  %v2572 = vmul.f32 %v2271, %v1452
  %v2573 = vmul.f32 %v2271, %v1457
  %v2574 = vmul.f32 %v2275, %v1462
  %v2575 = vmul.f32 %v2275, %v1467
  %v2576 = vmul.f32 %v2279, %v1472
  %v2577 = vmul.f32 %v2279, %v1477
  %v2578 = vmul.f32 %v2283, %v1482
  %v2579 = vmul.f32 %v2283, %v1487
  %v2580 = vmul.f32 %v2287, %v1492
  %v2581 = vmul.f32 %v2287, %v1497
  %v2582 = vmul.f32 %v2291, %v1502
  %v2583 = vmul.f32 %v2291, %v1507
  %v2584 = vmul.f32 %v2295, %v1512
  %v2585 = vmul.f32 %v2295, %v1517
  %v2586 = vmul.f32 %v2299, %v1522
  %v2587 = vmul.f32 %v2299, %v1527
  %v2588 = vmul.f32 %v2303, %v1532
  %v2589 = vmul.f32 %v2303, %v1537
  %v2590 = vmul.f32 %v2307, %v1542
  %v2591 = vmul.f32 %v2307, %v1547
  %v2592 = vmul.f32 %v2311, %v1552
  %v2593 = vmul.f32 %v2311, %v1557
  %v2594 = vmul.f32 %v2315, %v1562
  %v2595 = vmul.f32 %v2315, %v1567
  %v2596 = vmul.f32 %v2319, %v1572
  %v2597 = vmul.f32 %v2319, %v1577
  %v2598 = vmul.f32 %v2323, %v1582
  %v2599 = vmul.f32 %v2323, %v1587
  %v2600 = vmul.f32 %v2327, %v1592
  %v2601 = vmul.f32 %v2327, %v1597
  %v2602 = vmul.f32 %v2331, %v1602
  %v2603 = vmul.f32 %v2331, %v1607
  %v2604 = vmul.f32 %v2335, %v1612
  %v2605 = vmul.f32 %v2335, %v1617
  %v2606 = vmul.f32 %v2339, %v1622
  %v2607 = vmul.f32 %v2339, %v1627
  %v2608 = vmul.f32 %v2343, %v1632
  %v2609 = vmul.f32 %v2343, %v1637
  %v2610 = vmul.f32 %v2347, %v1642
  %v2611 = vmul.f32 %v2347, %v1647
  %v2612 = vmul.f32 %v2351, %v1652
  %v2613 = vmul.f32 %v2351, %v1657
  %v2614 = vmul.f32 %v2355, %v1662
  %v2615 = vmul.f32 %v2355, %v1667
  %v2616 = vmul.f32 %v2359, %v1672
  %v2617 = vmul.f32 %v2359, %v1677
  %v2618 = vmul.f32 %v2363, %v1682
  %v2619 = vmul.f32 %v2363, %v1687
  %v2620 = vmul.f32 %v2367, %v1692
  %v2621 = vmul.f32 %v2367, %v1697
  %v2622 = vmul.f32 %v2371, %v1702
  %v2623 = vmul.f32 %v2371, %v1707
  %v2624 = vmul.f32 %v2375, %v1712
  %v2625 = vmul.f32 %v2375, %v1717
  %v2626 = vmul.f32 %v2379, %v1722
  %v2627 = vmul.f32 %v2379, %v1727
  %v2628 = vmul.f32 %v2383, %v1732
  %v2629 = vmul.f32 %v2383, %v1737
  %v2630 = vmul.f32 %v2387, %v1742
  %v2631 = vmul.f32 %v2387, %v1747
  %v2632 = vmul.f32 %v2391, %v1752
  %v2633 = vmul.f32 %v2391, %v1757
  %v2634 = vmul.f32 %v2395, %v1762
  %v2635 = vmul.f32 %v2395, %v1767
  %vm2636 = vcmask 15360
  %v2637 = vsel %vm2636, %v2476, 0.0
  %v2638 = vsel %vm2636, %v2496, 0.0
  %v2639 = vadd.f32 %v2637, %v2638
  %v2640 = vsel %vm2636, %v2516, 0.0
  %v2641 = vadd.f32 %v2639, %v2640
  %v2642 = vsel %vm2636, %v2536, 0.0
  %v2643 = vadd.f32 %v2641, %v2642
  %v2644 = vsel %vm2636, %v2556, 0.0
  %v2645 = vadd.f32 %v2643, %v2644
  %v2646 = vsel %vm2636, %v2576, 0.0
  %v2647 = vadd.f32 %v2645, %v2646
  %v2648 = vsel %vm2636, %v2596, 0.0
  %v2649 = vadd.f32 %v2647, %v2648
  %v2650 = vsel %vm2636, %v2616, 0.0
  %v2651 = vadd.f32 %v2649, %v2650
  %v2652 = vsel %vm2636, %v2477, 0.0
  %v2653 = vsel %vm2636, %v2497, 0.0
  %v2654 = vadd.f32 %v2652, %v2653
  %v2655 = vsel %vm2636, %v2517, 0.0
  %v2656 = vadd.f32 %v2654, %v2655
  %v2657 = vsel %vm2636, %v2537, 0.0
  %v2658 = vadd.f32 %v2656, %v2657
  %v2659 = vsel %vm2636, %v2557, 0.0
  %v2660 = vadd.f32 %v2658, %v2659
  %v2661 = vsel %vm2636, %v2577, 0.0
  %v2662 = vadd.f32 %v2660, %v2661
  %v2663 = vsel %vm2636, %v2597, 0.0
  %v2664 = vadd.f32 %v2662, %v2663
  %v2665 = vsel %vm2636, %v2617, 0.0
  %v2666 = vadd.f32 %v2664, %v2665
  %v2667 = vsel %vm2636, %v2478, 0.0
  %v2668 = vsel %vm2636, %v2498, 0.0
  %v2669 = vadd.f32 %v2667, %v2668
  %v2670 = vsel %vm2636, %v2518, 0.0
  %v2671 = vadd.f32 %v2669, %v2670
  %v2672 = vsel %vm2636, %v2538, 0.0
  %v2673 = vadd.f32 %v2671, %v2672
  %v2674 = vsel %vm2636, %v2558, 0.0
  %v2675 = vadd.f32 %v2673, %v2674
  %v2676 = vsel %vm2636, %v2578, 0.0
  %v2677 = vadd.f32 %v2675, %v2676
  %v2678 = vsel %vm2636, %v2598, 0.0
  %v2679 = vadd.f32 %v2677, %v2678
  %v2680 = vsel %vm2636, %v2618, 0.0
  %v2681 = vadd.f32 %v2679, %v2680
  %v2682 = vsel %vm2636, %v2479, 0.0
  %v2683 = vsel %vm2636, %v2499, 0.0
  %v2684 = vadd.f32 %v2682, %v2683
  %v2685 = vsel %vm2636, %v2519, 0.0
  %v2686 = vadd.f32 %v2684, %v2685
  %v2687 = vsel %vm2636, %v2539, 0.0
  %v2688 = vadd.f32 %v2686, %v2687
  %v2689 = vsel %vm2636, %v2559, 0.0
  %v2690 = vadd.f32 %v2688, %v2689
  %v2691 = vsel %vm2636, %v2579, 0.0
  %v2692 = vadd.f32 %v2690, %v2691
  %v2693 = vsel %vm2636, %v2599, 0.0
  %v2694 = vadd.f32 %v2692, %v2693
  %v2695 = vsel %vm2636, %v2619, 0.0
  %v2696 = vadd.f32 %v2694, %v2695
  %v2697 = vsel %vm2636, %v2480, 0.0
  %v2698 = vsel %vm2636, %v2500, 0.0
  %v2699 = vadd.f32 %v2697, %v2698
  %v2700 = vsel %vm2636, %v2520, 0.0
  %v2701 = vadd.f32 %v2699, %v2700
  %v2702 = vsel %vm2636, %v2540, 0.0
  %v2703 = vadd.f32 %v2701, %v2702
  %v2704 = vsel %vm2636, %v2560, 0.0
  %v2705 = vadd.f32 %v2703, %v2704
  %v2706 = vsel %vm2636, %v2580, 0.0
  %v2707 = vadd.f32 %v2705, %v2706
  %v2708 = vsel %vm2636, %v2600, 0.0
  %v2709 = vadd.f32 %v2707, %v2708
  %v2710 = vsel %vm2636, %v2620, 0.0
  %v2711 = vadd.f32 %v2709, %v2710
  %v2712 = vsel %vm2636, %v2481, 0.0
  %v2713 = vsel %vm2636, %v2501, 0.0
  %v2714 = vadd.f32 %v2712, %v2713
  %v2715 = vsel %vm2636, %v2521, 0.0
  %v2716 = vadd.f32 %v2714, %v2715
  %v2717 = vsel %vm2636, %v2541, 0.0
  %v2718 = vadd.f32 %v2716, %v2717
  %v2719 = vsel %vm2636, %v2561, 0.0
  %v2720 = vadd.f32 %v2718, %v2719
  %v2721 = vsel %vm2636, %v2581, 0.0
  %v2722 = vadd.f32 %v2720, %v2721
  %v2723 = vsel %vm2636, %v2601, 0.0
  %v2724 = vadd.f32 %v2722, %v2723
  %v2725 = vsel %vm2636, %v2621, 0.0
  %v2726 = vadd.f32 %v2724, %v2725
  %v2727 = vsel %vm2636, %v2482, 0.0
  %v2728 = vsel %vm2636, %v2502, 0.0
  %v2729 = vadd.f32 %v2727, %v2728
  %v2730 = vsel %vm2636, %v2522, 0.0
  %v2731 = vadd.f32 %v2729, %v2730
  %v2732 = vsel %vm2636, %v2542, 0.0
  %v2733 = vadd.f32 %v2731, %v2732
  %v2734 = vsel %vm2636, %v2562, 0.0
  %v2735 = vadd.f32 %v2733, %v2734
  %v2736 = vsel %vm2636, %v2582, 0.0
  %v2737 = vadd.f32 %v2735, %v2736
  %v2738 = vsel %vm2636, %v2602, 0.0
  %v2739 = vadd.f32 %v2737, %v2738
  %v2740 = vsel %vm2636, %v2622, 0.0
  %v2741 = vadd.f32 %v2739, %v2740
  %v2742 = vsel %vm2636, %v2483, 0.0
  %v2743 = vsel %vm2636, %v2503, 0.0
  %v2744 = vadd.f32 %v2742, %v2743
  %v2745 = vsel %vm2636, %v2523, 0.0
  %v2746 = vadd.f32 %v2744, %v2745
  %v2747 = vsel %vm2636, %v2543, 0.0
  %v2748 = vadd.f32 %v2746, %v2747
  %v2749 = vsel %vm2636, %v2563, 0.0
  %v2750 = vadd.f32 %v2748, %v2749
  %v2751 = vsel %vm2636, %v2583, 0.0
  %v2752 = vadd.f32 %v2750, %v2751
  %v2753 = vsel %vm2636, %v2603, 0.0
  %v2754 = vadd.f32 %v2752, %v2753
  %v2755 = vsel %vm2636, %v2623, 0.0
  %v2756 = vadd.f32 %v2754, %v2755
  %v2757 = vsel %vm2636, %v2484, 0.0
  %v2758 = vsel %vm2636, %v2504, 0.0
  %v2759 = vadd.f32 %v2757, %v2758
  %v2760 = vsel %vm2636, %v2524, 0.0
  %v2761 = vadd.f32 %v2759, %v2760
  %v2762 = vsel %vm2636, %v2544, 0.0
  %v2763 = vadd.f32 %v2761, %v2762
  %v2764 = vsel %vm2636, %v2564, 0.0
  %v2765 = vadd.f32 %v2763, %v2764
  %v2766 = vsel %vm2636, %v2584, 0.0
  %v2767 = vadd.f32 %v2765, %v2766
  %v2768 = vsel %vm2636, %v2604, 0.0
  %v2769 = vadd.f32 %v2767, %v2768
  %v2770 = vsel %vm2636, %v2624, 0.0
  %v2771 = vadd.f32 %v2769, %v2770
  %v2772 = vsel %vm2636, %v2485, 0.0
  %v2773 = vsel %vm2636, %v2505, 0.0
  %v2774 = vadd.f32 %v2772, %v2773
  %v2775 = vsel %vm2636, %v2525, 0.0
  %v2776 = vadd.f32 %v2774, %v2775
  %v2777 = vsel %vm2636, %v2545, 0.0
  %v2778 = vadd.f32 %v2776, %v2777
  %v2779 = vsel %vm2636, %v2565, 0.0
  %v2780 = vadd.f32 %v2778, %v2779
  %v2781 = vsel %vm2636, %v2585, 0.0
  %v2782 = vadd.f32 %v2780, %v2781
  %v2783 = vsel %vm2636, %v2605, 0.0
  %v2784 = vadd.f32 %v2782, %v2783
  %v2785 = vsel %vm2636, %v2625, 0.0
  %v2786 = vadd.f32 %v2784, %v2785
  %v2787 = vsel %vm2636, %v2486, 0.0
  %v2788 = vsel %vm2636, %v2506, 0.0
  %v2789 = vadd.f32 %v2787, %v2788
  %v2790 = vsel %vm2636, %v2526, 0.0
  %v2791 = vadd.f32 %v2789, %v2790
  %v2792 = vsel %vm2636, %v2546, 0.0
  %v2793 = vadd.f32 %v2791, %v2792
  %v2794 = vsel %vm2636, %v2566, 0.0
  %v2795 = vadd.f32 %v2793, %v2794
  %v2796 = vsel %vm2636, %v2586, 0.0
  %v2797 = vadd.f32 %v2795, %v2796
  %v2798 = vsel %vm2636, %v2606, 0.0
  %v2799 = vadd.f32 %v2797, %v2798
  %v2800 = vsel %vm2636, %v2626, 0.0
  %v2801 = vadd.f32 %v2799, %v2800
  %v2802 = vsel %vm2636, %v2487, 0.0
  %v2803 = vsel %vm2636, %v2507, 0.0
  %v2804 = vadd.f32 %v2802, %v2803
  %v2805 = vsel %vm2636, %v2527, 0.0
  %v2806 = vadd.f32 %v2804, %v2805
  %v2807 = vsel %vm2636, %v2547, 0.0
  %v2808 = vadd.f32 %v2806, %v2807
  %v2809 = vsel %vm2636, %v2567, 0.0
  %v2810 = vadd.f32 %v2808, %v2809
  %v2811 = vsel %vm2636, %v2587, 0.0
  %v2812 = vadd.f32 %v2810, %v2811
  %v2813 = vsel %vm2636, %v2607, 0.0
  %v2814 = vadd.f32 %v2812, %v2813
  %v2815 = vsel %vm2636, %v2627, 0.0
  %v2816 = vadd.f32 %v2814, %v2815
  %v2817 = vsel %vm2636, %v2488, 0.0
  %v2818 = vsel %vm2636, %v2508, 0.0
  %v2819 = vadd.f32 %v2817, %v2818
  %v2820 = vsel %vm2636, %v2528, 0.0
  %v2821 = vadd.f32 %v2819, %v2820
  %v2822 = vsel %vm2636, %v2548, 0.0
  %v2823 = vadd.f32 %v2821, %v2822
  %v2824 = vsel %vm2636, %v2568, 0.0
  %v2825 = vadd.f32 %v2823, %v2824
  %v2826 = vsel %vm2636, %v2588, 0.0
  %v2827 = vadd.f32 %v2825, %v2826
  %v2828 = vsel %vm2636, %v2608, 0.0
  %v2829 = vadd.f32 %v2827, %v2828
  %v2830 = vsel %vm2636, %v2628, 0.0
  %v2831 = vadd.f32 %v2829, %v2830
  %v2832 = vsel %vm2636, %v2489, 0.0
  %v2833 = vsel %vm2636, %v2509, 0.0
  %v2834 = vadd.f32 %v2832, %v2833
  %v2835 = vsel %vm2636, %v2529, 0.0
  %v2836 = vadd.f32 %v2834, %v2835
  %v2837 = vsel %vm2636, %v2549, 0.0
  %v2838 = vadd.f32 %v2836, %v2837
  %v2839 = vsel %vm2636, %v2569, 0.0
  %v2840 = vadd.f32 %v2838, %v2839
  %v2841 = vsel %vm2636, %v2589, 0.0
  %v2842 = vadd.f32 %v2840, %v2841
  %v2843 = vsel %vm2636, %v2609, 0.0
  %v2844 = vadd.f32 %v2842, %v2843
  %v2845 = vsel %vm2636, %v2629, 0.0
  %v2846 = vadd.f32 %v2844, %v2845
  %v2847 = vsel %vm2636, %v2490, 0.0
  %v2848 = vsel %vm2636, %v2510, 0.0
  %v2849 = vadd.f32 %v2847, %v2848
  %v2850 = vsel %vm2636, %v2530, 0.0
  %v2851 = vadd.f32 %v2849, %v2850
  %v2852 = vsel %vm2636, %v2550, 0.0
  %v2853 = vadd.f32 %v2851, %v2852
  %v2854 = vsel %vm2636, %v2570, 0.0
  %v2855 = vadd.f32 %v2853, %v2854
  %v2856 = vsel %vm2636, %v2590, 0.0
  %v2857 = vadd.f32 %v2855, %v2856
  %v2858 = vsel %vm2636, %v2610, 0.0
  %v2859 = vadd.f32 %v2857, %v2858
  %v2860 = vsel %vm2636, %v2630, 0.0
  %v2861 = vadd.f32 %v2859, %v2860
  %v2862 = vsel %vm2636, %v2491, 0.0
  %v2863 = vsel %vm2636, %v2511, 0.0
  %v2864 = vadd.f32 %v2862, %v2863
  %v2865 = vsel %vm2636, %v2531, 0.0
  %v2866 = vadd.f32 %v2864, %v2865
  %v2867 = vsel %vm2636, %v2551, 0.0
  %v2868 = vadd.f32 %v2866, %v2867
  %v2869 = vsel %vm2636, %v2571, 0.0
  %v2870 = vadd.f32 %v2868, %v2869
  %v2871 = vsel %vm2636, %v2591, 0.0
  %v2872 = vadd.f32 %v2870, %v2871
  %v2873 = vsel %vm2636, %v2611, 0.0
  %v2874 = vadd.f32 %v2872, %v2873
  %v2875 = vsel %vm2636, %v2631, 0.0
  %v2876 = vadd.f32 %v2874, %v2875
  %v2877 = vsel %vm2636, %v2492, 0.0
  %v2878 = vsel %vm2636, %v2512, 0.0
  %v2879 = vadd.f32 %v2877, %v2878
  %v2880 = vsel %vm2636, %v2532, 0.0
  %v2881 = vadd.f32 %v2879, %v2880
  %v2882 = vsel %vm2636, %v2552, 0.0
  %v2883 = vadd.f32 %v2881, %v2882
  %v2884 = vsel %vm2636, %v2572, 0.0
  %v2885 = vadd.f32 %v2883, %v2884
  %v2886 = vsel %vm2636, %v2592, 0.0
  %v2887 = vadd.f32 %v2885, %v2886
  %v2888 = vsel %vm2636, %v2612, 0.0
  %v2889 = vadd.f32 %v2887, %v2888
  %v2890 = vsel %vm2636, %v2632, 0.0
  %v2891 = vadd.f32 %v2889, %v2890
  %v2892 = vsel %vm2636, %v2493, 0.0
  %v2893 = vsel %vm2636, %v2513, 0.0
  %v2894 = vadd.f32 %v2892, %v2893
  %v2895 = vsel %vm2636, %v2533, 0.0
  %v2896 = vadd.f32 %v2894, %v2895
  %v2897 = vsel %vm2636, %v2553, 0.0
  %v2898 = vadd.f32 %v2896, %v2897
  %v2899 = vsel %vm2636, %v2573, 0.0
  %v2900 = vadd.f32 %v2898, %v2899
  %v2901 = vsel %vm2636, %v2593, 0.0
  %v2902 = vadd.f32 %v2900, %v2901
  %v2903 = vsel %vm2636, %v2613, 0.0
  %v2904 = vadd.f32 %v2902, %v2903
  %v2905 = vsel %vm2636, %v2633, 0.0
  %v2906 = vadd.f32 %v2904, %v2905
  %v2907 = vsel %vm2636, %v2494, 0.0
  %v2908 = vsel %vm2636, %v2514, 0.0
  %v2909 = vadd.f32 %v2907, %v2908
  %v2910 = vsel %vm2636, %v2534, 0.0
  %v2911 = vadd.f32 %v2909, %v2910
  %v2912 = vsel %vm2636, %v2554, 0.0
  %v2913 = vadd.f32 %v2911, %v2912
  %v2914 = vsel %vm2636, %v2574, 0.0
  %v2915 = vadd.f32 %v2913, %v2914
  %v2916 = vsel %vm2636, %v2594, 0.0
  %v2917 = vadd.f32 %v2915, %v2916
  %v2918 = vsel %vm2636, %v2614, 0.0
  %v2919 = vadd.f32 %v2917, %v2918
  %v2920 = vsel %vm2636, %v2634, 0.0
  %v2921 = vadd.f32 %v2919, %v2920
  %v2922 = vsel %vm2636, %v2495, 0.0
  %v2923 = vsel %vm2636, %v2515, 0.0
  %v2924 = vadd.f32 %v2922, %v2923
  %v2925 = vsel %vm2636, %v2535, 0.0
  %v2926 = vadd.f32 %v2924, %v2925
  %v2927 = vsel %vm2636, %v2555, 0.0
  %v2928 = vadd.f32 %v2926, %v2927
  %v2929 = vsel %vm2636, %v2575, 0.0
  %v2930 = vadd.f32 %v2928, %v2929
  %v2931 = vsel %vm2636, %v2595, 0.0
  %v2932 = vadd.f32 %v2930, %v2931
  %v2933 = vsel %vm2636, %v2615, 0.0
  %v2934 = vadd.f32 %v2932, %v2933
  %v2935 = vsel %vm2636, %v2635, 0.0
  %v2936 = vadd.f32 %v2934, %v2935
  %v2937 = vmul.f32 %v2651, %v2651
  %v2938 = vmul.f32 %v2666, %v2666
  %v2939 = vmul.f32 %v2681, %v2681
  %v2940 = vmul.f32 %v2696, %v2696
  %v2941 = vmul.f32 %v2711, %v2711
  %v2942 = vmul.f32 %v2726, %v2726
  %v2943 = vmul.f32 %v2741, %v2741
  %v2944 = vmul.f32 %v2756, %v2756
  %v2945 = vmul.f32 %v2771, %v2771
  %v2946 = vmul.f32 %v2786, %v2786
  %v2947 = vmul.f32 %v2801, %v2801
  %v2948 = vmul.f32 %v2816, %v2816
  %v2949 = vmul.f32 %v2831, %v2831
  %v2950 = vmul.f32 %v2846, %v2846
  %v2951 = vmul.f32 %v2861, %v2861
  %v2952 = vmul.f32 %v2876, %v2876
  %v2953 = vmul.f32 %v2891, %v2891
  %v2954 = vmul.f32 %v2906, %v2906
  %v2955 = vmul.f32 %v2921, %v2921
  %v2956 = vmul.f32 %v2936, %v2936
  %v2957 = vsel %vm2636, %v2937, 0.0
  %v2958 = vsel %vm2636, %v2938, 0.0
  %v2959 = vadd.f32 %v2957, %v2958
  %v2960 = vrot.slane %v2959, 4
  %v2961 = vadd.f32 %v2959, %v2960
  %v2962 = vrot.slane %v2961, 2
  %v2963 = vadd.f32 %v2961, %v2962
  %v2964 = vrot.slane %v2963, 1
  %v2965 = vadd.f32 %v2963, %v2964
  %v2966 = vsel %vm2636, %v2939, 0.0
  %v2967 = vsel %vm2636, %v2940, 0.0
  %v2968 = vadd.f32 %v2966, %v2967
  %v2969 = vrot.slane %v2968, 4
  %v2970 = vadd.f32 %v2968, %v2969
  %v2971 = vrot.slane %v2970, 2
  %v2972 = vadd.f32 %v2970, %v2971
  %v2973 = vrot.slane %v2972, 1
  %v2974 = vadd.f32 %v2972, %v2973
  %v2975 = vsel %vm2636, %v2941, 0.0
  %v2976 = vsel %vm2636, %v2942, 0.0
  %v2977 = vadd.f32 %v2975, %v2976
  %v2978 = vrot.slane %v2977, 4
  %v2979 = vadd.f32 %v2977, %v2978
  %v2980 = vrot.slane %v2979, 2
  %v2981 = vadd.f32 %v2979, %v2980
  %v2982 = vrot.slane %v2981, 1
  %v2983 = vadd.f32 %v2981, %v2982
  %v2984 = vsel %vm2636, %v2943, 0.0
  %v2985 = vsel %vm2636, %v2944, 0.0
  %v2986 = vadd.f32 %v2984, %v2985
  %v2987 = vrot.slane %v2986, 4
  %v2988 = vadd.f32 %v2986, %v2987
  %v2989 = vrot.slane %v2988, 2
  %v2990 = vadd.f32 %v2988, %v2989
  %v2991 = vrot.slane %v2990, 1
  %v2992 = vadd.f32 %v2990, %v2991
  %v2993 = vsel %vm2636, %v2945, 0.0
  %v2994 = vsel %vm2636, %v2946, 0.0
  %v2995 = vadd.f32 %v2993, %v2994
  %v2996 = vrot.slane %v2995, 4
  %v2997 = vadd.f32 %v2995, %v2996
  %v2998 = vrot.slane %v2997, 2
  %v2999 = vadd.f32 %v2997, %v2998
  %v3000 = vrot.slane %v2999, 1
  %v3001 = vadd.f32 %v2999, %v3000
  %v3002 = vsel %vm2636, %v2947, 0.0
  %v3003 = vsel %vm2636, %v2948, 0.0
  %v3004 = vadd.f32 %v3002, %v3003
  %v3005 = vrot.slane %v3004, 4
  %v3006 = vadd.f32 %v3004, %v3005
  %v3007 = vrot.slane %v3006, 2
  %v3008 = vadd.f32 %v3006, %v3007
  %v3009 = vrot.slane %v3008, 1
  %v3010 = vadd.f32 %v3008, %v3009
  %v3011 = vsel %vm2636, %v2949, 0.0
  %v3012 = vsel %vm2636, %v2950, 0.0
  %v3013 = vadd.f32 %v3011, %v3012
  %v3014 = vrot.slane %v3013, 4
  %v3015 = vadd.f32 %v3013, %v3014
  %v3016 = vrot.slane %v3015, 2
  %v3017 = vadd.f32 %v3015, %v3016
  %v3018 = vrot.slane %v3017, 1
  %v3019 = vadd.f32 %v3017, %v3018
  %v3020 = vsel %vm2636, %v2951, 0.0
  %v3021 = vsel %vm2636, %v2952, 0.0
  %v3022 = vadd.f32 %v3020, %v3021
  %v3023 = vrot.slane %v3022, 4
  %v3024 = vadd.f32 %v3022, %v3023
  %v3025 = vrot.slane %v3024, 2
  %v3026 = vadd.f32 %v3024, %v3025
  %v3027 = vrot.slane %v3026, 1
  %v3028 = vadd.f32 %v3026, %v3027
  %v3029 = vsel %vm2636, %v2953, 0.0
  %v3030 = vsel %vm2636, %v2954, 0.0
  %v3031 = vadd.f32 %v3029, %v3030
  %v3032 = vrot.slane %v3031, 4
  %v3033 = vadd.f32 %v3031, %v3032
  %v3034 = vrot.slane %v3033, 2
  %v3035 = vadd.f32 %v3033, %v3034
  %v3036 = vrot.slane %v3035, 1
  %v3037 = vadd.f32 %v3035, %v3036
  %v3038 = vsel %vm2636, %v2955, 0.0
  %v3039 = vsel %vm2636, %v2956, 0.0
  %v3040 = vadd.f32 %v3038, %v3039
  %v3041 = vrot.slane %v3040, 4
  %v3042 = vadd.f32 %v3040, %v3041
  %v3043 = vrot.slane %v3042, 2
  %v3044 = vadd.f32 %v3042, %v3043
  %v3045 = vrot.slane %v3044, 1
  %v3046 = vadd.f32 %v3044, %v3045
  %v3047 = vadd.f32 %v2965, 1.0
  %v3048 = vadd.f32 %v2974, 1.0
  %v3049 = vadd.f32 %v2983, 1.0
  %v3050 = vadd.f32 %v2992, 1.0
  %v3051 = vadd.f32 %v3001, 1.0
  %v3052 = vadd.f32 %v3010, 1.0
  %v3053 = vadd.f32 %v3019, 1.0
  %v3054 = vadd.f32 %v3028, 1.0
  %v3055 = vadd.f32 %v3037, 1.0
  %v3056 = vadd.f32 %v3046, 1.0
  %v3057 = vrcp.pop %v3047
  %v3058 = vmul.f32 %v2965, %v3057
  %v3059 = vrcp.pop %v3048
  %v3060 = vmul.f32 %v2974, %v3059
  %v3061 = vrcp.pop %v3049
  %v3062 = vmul.f32 %v2983, %v3061
  %v3063 = vrcp.pop %v3050
  %v3064 = vmul.f32 %v2992, %v3063
  %v3065 = vrcp.pop %v3051
  %v3066 = vmul.f32 %v3001, %v3065
  %v3067 = vrcp.pop %v3052
  %v3068 = vmul.f32 %v3010, %v3067
  %v3069 = vrcp.pop %v3053
  %v3070 = vmul.f32 %v3019, %v3069
  %v3071 = vrcp.pop %v3054
  %v3072 = vmul.f32 %v3028, %v3071
  %v3073 = vrcp.pop %v3055
  %v3074 = vmul.f32 %v3037, %v3073
  %v3075 = vrcp.pop %v3056
  %v3076 = vmul.f32 %v3046, %v3075
  %v3077 = vadd.f32 %v2965, 1e-12
  %v3078 = vadd.f32 %v2974, 1e-12
  %v3079 = vadd.f32 %v2983, 1e-12
  %v3080 = vadd.f32 %v2992, 1e-12
  %v3081 = vadd.f32 %v3001, 1e-12
  %v3082 = vadd.f32 %v3010, 1e-12
  %v3083 = vadd.f32 %v3019, 1e-12
  %v3084 = vadd.f32 %v3028, 1e-12
  %v3085 = vadd.f32 %v3037, 1e-12
  %v3086 = vadd.f32 %v3046, 1e-12
  %v3087 = vrsqrt.pop %v3077
  %v3088 = vrsqrt.pop %v3078
  %v3089 = vrsqrt.pop %v3079
  %v3090 = vrsqrt.pop %v3080
  %v3091 = vrsqrt.pop %v3081
  %v3092 = vrsqrt.pop %v3082
  %v3093 = vrsqrt.pop %v3083
  %v3094 = vrsqrt.pop %v3084
  %v3095 = vrsqrt.pop %v3085
  %v3096 = vrsqrt.pop %v3086
  %v3097 = vmul.f32 %v3058, %v3087
  %v3098 = vmul.f32 %v3060, %v3088
  %v3099 = vmul.f32 %v3062, %v3089
  %v3100 = vmul.f32 %v3064, %v3090
  %v3101 = vmul.f32 %v3066, %v3091
  %v3102 = vmul.f32 %v3068, %v3092
  %v3103 = vmul.f32 %v3070, %v3093
  %v3104 = vmul.f32 %v3072, %v3094
  %v3105 = vmul.f32 %v3074, %v3095
  %v3106 = vmul.f32 %v3076, %v3096
  %v3107 = vmul.f32 %v2651, %v3097
  %v3108 = vmul.f32 %v2666, %v3097
  %v3109 = vmul.f32 %v2681, %v3098
  %v3110 = vmul.f32 %v2696, %v3098
  %v3111 = vmul.f32 %v2711, %v3099
  %v3112 = vmul.f32 %v2726, %v3099
  %v3113 = vmul.f32 %v2741, %v3100
  %v3114 = vmul.f32 %v2756, %v3100
  %v3115 = vmul.f32 %v2771, %v3101
  %v3116 = vmul.f32 %v2786, %v3101
  %v3117 = vmul.f32 %v2801, %v3102
  %v3118 = vmul.f32 %v2816, %v3102
  %v3119 = vmul.f32 %v2831, %v3103
  %v3120 = vmul.f32 %v2846, %v3103
  %v3121 = vmul.f32 %v2861, %v3104
  %v3122 = vmul.f32 %v2876, %v3104
  %v3123 = vmul.f32 %v2891, %v3105
  %v3124 = vmul.f32 %v2906, %v3105
  %v3125 = vmul.f32 %v2921, %v3106
  %v3126 = vmul.f32 %v2936, %v3106
  %v3127 = vmul.f32 %v972, %v3107
  %v3128 = vmul.f32 %v977, %v3108
  %v3129 = vmul.f32 %v982, %v3109
  %v3130 = vmul.f32 %v987, %v3110
  %v3131 = vmul.f32 %v992, %v3111
  %v3132 = vmul.f32 %v997, %v3112
  %v3133 = vmul.f32 %v1002, %v3113
  %v3134 = vmul.f32 %v1007, %v3114
  %v3135 = vmul.f32 %v1012, %v3115
  %v3136 = vmul.f32 %v1017, %v3116
  %v3137 = vmul.f32 %v1022, %v3117
  %v3138 = vmul.f32 %v1027, %v3118
  %v3139 = vmul.f32 %v1032, %v3119
  %v3140 = vmul.f32 %v1037, %v3120
  %v3141 = vmul.f32 %v1042, %v3121
  %v3142 = vmul.f32 %v1047, %v3122
  %v3143 = vmul.f32 %v1052, %v3123
  %v3144 = vmul.f32 %v1057, %v3124
  %v3145 = vmul.f32 %v1062, %v3125
  %v3146 = vmul.f32 %v1067, %v3126
  %v3147 = vmul.f32 %v1072, %v3107
  %v3148 = vmul.f32 %v1077, %v3108
  %v3149 = vmul.f32 %v1082, %v3109
  %v3150 = vmul.f32 %v1087, %v3110
  %v3151 = vmul.f32 %v1092, %v3111
  %v3152 = vmul.f32 %v1097, %v3112
  %v3153 = vmul.f32 %v1102, %v3113
  %v3154 = vmul.f32 %v1107, %v3114
  %v3155 = vmul.f32 %v1112, %v3115
  %v3156 = vmul.f32 %v1117, %v3116
  %v3157 = vmul.f32 %v1122, %v3117
  %v3158 = vmul.f32 %v1127, %v3118
  %v3159 = vmul.f32 %v1132, %v3119
  %v3160 = vmul.f32 %v1137, %v3120
  %v3161 = vmul.f32 %v1142, %v3121
  %v3162 = vmul.f32 %v1147, %v3122
  %v3163 = vmul.f32 %v1152, %v3123
  %v3164 = vmul.f32 %v1157, %v3124
  %v3165 = vmul.f32 %v1162, %v3125
  %v3166 = vmul.f32 %v1167, %v3126
  %v3167 = vmul.f32 %v1172, %v3107
  %v3168 = vmul.f32 %v1177, %v3108
  %v3169 = vmul.f32 %v1182, %v3109
  %v3170 = vmul.f32 %v1187, %v3110
  %v3171 = vmul.f32 %v1192, %v3111
  %v3172 = vmul.f32 %v1197, %v3112
  %v3173 = vmul.f32 %v1202, %v3113
  %v3174 = vmul.f32 %v1207, %v3114
  %v3175 = vmul.f32 %v1212, %v3115
  %v3176 = vmul.f32 %v1217, %v3116
  %v3177 = vmul.f32 %v1222, %v3117
  %v3178 = vmul.f32 %v1227, %v3118
  %v3179 = vmul.f32 %v1232, %v3119
  %v3180 = vmul.f32 %v1237, %v3120
  %v3181 = vmul.f32 %v1242, %v3121
  %v3182 = vmul.f32 %v1247, %v3122
  %v3183 = vmul.f32 %v1252, %v3123
  %v3184 = vmul.f32 %v1257, %v3124
  %v3185 = vmul.f32 %v1262, %v3125
  %v3186 = vmul.f32 %v1267, %v3126
  %v3187 = vmul.f32 %v1272, %v3107
  %v3188 = vmul.f32 %v1277, %v3108
  %v3189 = vmul.f32 %v1282, %v3109
  %v3190 = vmul.f32 %v1287, %v3110
  %v3191 = vmul.f32 %v1292, %v3111
  %v3192 = vmul.f32 %v1297, %v3112
  %v3193 = vmul.f32 %v1302, %v3113
  %v3194 = vmul.f32 %v1307, %v3114
  %v3195 = vmul.f32 %v1312, %v3115
  %v3196 = vmul.f32 %v1317, %v3116
  %v3197 = vmul.f32 %v1322, %v3117
  %v3198 = vmul.f32 %v1327, %v3118
  %v3199 = vmul.f32 %v1332, %v3119
  %v3200 = vmul.f32 %v1337, %v3120
  %v3201 = vmul.f32 %v1342, %v3121
  %v3202 = vmul.f32 %v1347, %v3122
  %v3203 = vmul.f32 %v1352, %v3123
  %v3204 = vmul.f32 %v1357, %v3124
  %v3205 = vmul.f32 %v1362, %v3125
  %v3206 = vmul.f32 %v1367, %v3126
  %v3207 = vmul.f32 %v1372, %v3107
  %v3208 = vmul.f32 %v1377, %v3108
  %v3209 = vmul.f32 %v1382, %v3109
  %v3210 = vmul.f32 %v1387, %v3110
  %v3211 = vmul.f32 %v1392, %v3111
  %v3212 = vmul.f32 %v1397, %v3112
  %v3213 = vmul.f32 %v1402, %v3113
  %v3214 = vmul.f32 %v1407, %v3114
  %v3215 = vmul.f32 %v1412, %v3115
  %v3216 = vmul.f32 %v1417, %v3116
  %v3217 = vmul.f32 %v1422, %v3117
  %v3218 = vmul.f32 %v1427, %v3118
  %v3219 = vmul.f32 %v1432, %v3119
  %v3220 = vmul.f32 %v1437, %v3120
  %v3221 = vmul.f32 %v1442, %v3121
  %v3222 = vmul.f32 %v1447, %v3122
  %v3223 = vmul.f32 %v1452, %v3123
  %v3224 = vmul.f32 %v1457, %v3124
  %v3225 = vmul.f32 %v1462, %v3125
  %v3226 = vmul.f32 %v1467, %v3126
  %v3227 = vmul.f32 %v1472, %v3107
  %v3228 = vmul.f32 %v1477, %v3108
  %v3229 = vmul.f32 %v1482, %v3109
  %v3230 = vmul.f32 %v1487, %v3110
  %v3231 = vmul.f32 %v1492, %v3111
  %v3232 = vmul.f32 %v1497, %v3112
  %v3233 = vmul.f32 %v1502, %v3113
  %v3234 = vmul.f32 %v1507, %v3114
  %v3235 = vmul.f32 %v1512, %v3115
  %v3236 = vmul.f32 %v1517, %v3116
  %v3237 = vmul.f32 %v1522, %v3117
  %v3238 = vmul.f32 %v1527, %v3118
  %v3239 = vmul.f32 %v1532, %v3119
  %v3240 = vmul.f32 %v1537, %v3120
  %v3241 = vmul.f32 %v1542, %v3121
  %v3242 = vmul.f32 %v1547, %v3122
  %v3243 = vmul.f32 %v1552, %v3123
  %v3244 = vmul.f32 %v1557, %v3124
  %v3245 = vmul.f32 %v1562, %v3125
  %v3246 = vmul.f32 %v1567, %v3126
  %v3247 = vmul.f32 %v1572, %v3107
  %v3248 = vmul.f32 %v1577, %v3108
  %v3249 = vmul.f32 %v1582, %v3109
  %v3250 = vmul.f32 %v1587, %v3110
  %v3251 = vmul.f32 %v1592, %v3111
  %v3252 = vmul.f32 %v1597, %v3112
  %v3253 = vmul.f32 %v1602, %v3113
  %v3254 = vmul.f32 %v1607, %v3114
  %v3255 = vmul.f32 %v1612, %v3115
  %v3256 = vmul.f32 %v1617, %v3116
  %v3257 = vmul.f32 %v1622, %v3117
  %v3258 = vmul.f32 %v1627, %v3118
  %v3259 = vmul.f32 %v1632, %v3119
  %v3260 = vmul.f32 %v1637, %v3120
  %v3261 = vmul.f32 %v1642, %v3121
  %v3262 = vmul.f32 %v1647, %v3122
  %v3263 = vmul.f32 %v1652, %v3123
  %v3264 = vmul.f32 %v1657, %v3124
  %v3265 = vmul.f32 %v1662, %v3125
  %v3266 = vmul.f32 %v1667, %v3126
  %v3267 = vmul.f32 %v1672, %v3107
  %v3268 = vmul.f32 %v1677, %v3108
  %v3269 = vmul.f32 %v1682, %v3109
  %v3270 = vmul.f32 %v1687, %v3110
  %v3271 = vmul.f32 %v1692, %v3111
  %v3272 = vmul.f32 %v1697, %v3112
  %v3273 = vmul.f32 %v1702, %v3113
  %v3274 = vmul.f32 %v1707, %v3114
  %v3275 = vmul.f32 %v1712, %v3115
  %v3276 = vmul.f32 %v1717, %v3116
  %v3277 = vmul.f32 %v1722, %v3117
  %v3278 = vmul.f32 %v1727, %v3118
  %v3279 = vmul.f32 %v1732, %v3119
  %v3280 = vmul.f32 %v1737, %v3120
  %v3281 = vmul.f32 %v1742, %v3121
  %v3282 = vmul.f32 %v1747, %v3122
  %v3283 = vmul.f32 %v1752, %v3123
  %v3284 = vmul.f32 %v1757, %v3124
  %v3285 = vmul.f32 %v1762, %v3125
  %v3286 = vmul.f32 %v1767, %v3126
  %v3287 = vsel %vm2636, %v3127, 0.0
  %v3288 = vsel %vm2636, %v3128, 0.0
  %v3289 = vadd.f32 %v3287, %v3288
  %v3290 = vrot.slane %v3289, 4
  %v3291 = vadd.f32 %v3289, %v3290
  %v3292 = vrot.slane %v3291, 2
  %v3293 = vadd.f32 %v3291, %v3292
  %v3294 = vrot.slane %v3293, 1
  %v3295 = vadd.f32 %v3293, %v3294
  %v3296 = vsel %vm2636, %v3129, 0.0
  %v3297 = vsel %vm2636, %v3130, 0.0
  %v3298 = vadd.f32 %v3296, %v3297
  %v3299 = vrot.slane %v3298, 4
  %v3300 = vadd.f32 %v3298, %v3299
  %v3301 = vrot.slane %v3300, 2
  %v3302 = vadd.f32 %v3300, %v3301
  %v3303 = vrot.slane %v3302, 1
  %v3304 = vadd.f32 %v3302, %v3303
  %v3305 = vsel %vm2636, %v3131, 0.0
  %v3306 = vsel %vm2636, %v3132, 0.0
  %v3307 = vadd.f32 %v3305, %v3306
  %v3308 = vrot.slane %v3307, 4
  %v3309 = vadd.f32 %v3307, %v3308
  %v3310 = vrot.slane %v3309, 2
  %v3311 = vadd.f32 %v3309, %v3310
  %v3312 = vrot.slane %v3311, 1
  %v3313 = vadd.f32 %v3311, %v3312
  %v3314 = vsel %vm2636, %v3133, 0.0
  %v3315 = vsel %vm2636, %v3134, 0.0
  %v3316 = vadd.f32 %v3314, %v3315
  %v3317 = vrot.slane %v3316, 4
  %v3318 = vadd.f32 %v3316, %v3317
  %v3319 = vrot.slane %v3318, 2
  %v3320 = vadd.f32 %v3318, %v3319
  %v3321 = vrot.slane %v3320, 1
  %v3322 = vadd.f32 %v3320, %v3321
  %v3323 = vsel %vm2636, %v3135, 0.0
  %v3324 = vsel %vm2636, %v3136, 0.0
  %v3325 = vadd.f32 %v3323, %v3324
  %v3326 = vrot.slane %v3325, 4
  %v3327 = vadd.f32 %v3325, %v3326
  %v3328 = vrot.slane %v3327, 2
  %v3329 = vadd.f32 %v3327, %v3328
  %v3330 = vrot.slane %v3329, 1
  %v3331 = vadd.f32 %v3329, %v3330
  %v3332 = vsel %vm2636, %v3137, 0.0
  %v3333 = vsel %vm2636, %v3138, 0.0
  %v3334 = vadd.f32 %v3332, %v3333
  %v3335 = vrot.slane %v3334, 4
  %v3336 = vadd.f32 %v3334, %v3335
  %v3337 = vrot.slane %v3336, 2
  %v3338 = vadd.f32 %v3336, %v3337
  %v3339 = vrot.slane %v3338, 1
  %v3340 = vadd.f32 %v3338, %v3339
  %v3341 = vsel %vm2636, %v3139, 0.0
  %v3342 = vsel %vm2636, %v3140, 0.0
  %v3343 = vadd.f32 %v3341, %v3342
  %v3344 = vrot.slane %v3343, 4
  %v3345 = vadd.f32 %v3343, %v3344
  %v3346 = vrot.slane %v3345, 2
  %v3347 = vadd.f32 %v3345, %v3346
  %v3348 = vrot.slane %v3347, 1
  %v3349 = vadd.f32 %v3347, %v3348
  %v3350 = vsel %vm2636, %v3141, 0.0
  %v3351 = vsel %vm2636, %v3142, 0.0
  %v3352 = vadd.f32 %v3350, %v3351
  %v3353 = vrot.slane %v3352, 4
  %v3354 = vadd.f32 %v3352, %v3353
  %v3355 = vrot.slane %v3354, 2
  %v3356 = vadd.f32 %v3354, %v3355
  %v3357 = vrot.slane %v3356, 1
  %v3358 = vadd.f32 %v3356, %v3357
  %v3359 = vsel %vm2636, %v3143, 0.0
  %v3360 = vsel %vm2636, %v3144, 0.0
  %v3361 = vadd.f32 %v3359, %v3360
  %v3362 = vrot.slane %v3361, 4
  %v3363 = vadd.f32 %v3361, %v3362
  %v3364 = vrot.slane %v3363, 2
  %v3365 = vadd.f32 %v3363, %v3364
  %v3366 = vrot.slane %v3365, 1
  %v3367 = vadd.f32 %v3365, %v3366
  %v3368 = vsel %vm2636, %v3145, 0.0
  %v3369 = vsel %vm2636, %v3146, 0.0
  %v3370 = vadd.f32 %v3368, %v3369
  %v3371 = vrot.slane %v3370, 4
  %v3372 = vadd.f32 %v3370, %v3371
  %v3373 = vrot.slane %v3372, 2
  %v3374 = vadd.f32 %v3372, %v3373
  %v3375 = vrot.slane %v3374, 1
  %v3376 = vadd.f32 %v3374, %v3375
  %v3377 = vsel %vm2636, %v3147, 0.0
  %v3378 = vsel %vm2636, %v3148, 0.0
  %v3379 = vadd.f32 %v3377, %v3378
  %v3380 = vrot.slane %v3379, 4
  %v3381 = vadd.f32 %v3379, %v3380
  %v3382 = vrot.slane %v3381, 2
  %v3383 = vadd.f32 %v3381, %v3382
  %v3384 = vrot.slane %v3383, 1
  %v3385 = vadd.f32 %v3383, %v3384
  %v3386 = vsel %vm2636, %v3149, 0.0
  %v3387 = vsel %vm2636, %v3150, 0.0
  %v3388 = vadd.f32 %v3386, %v3387
  %v3389 = vrot.slane %v3388, 4
  %v3390 = vadd.f32 %v3388, %v3389
  %v3391 = vrot.slane %v3390, 2
  %v3392 = vadd.f32 %v3390, %v3391
  %v3393 = vrot.slane %v3392, 1
  %v3394 = vadd.f32 %v3392, %v3393
  %v3395 = vsel %vm2636, %v3151, 0.0
  %v3396 = vsel %vm2636, %v3152, 0.0
  %v3397 = vadd.f32 %v3395, %v3396
  %v3398 = vrot.slane %v3397, 4
  %v3399 = vadd.f32 %v3397, %v3398
  %v3400 = vrot.slane %v3399, 2
  %v3401 = vadd.f32 %v3399, %v3400
  %v3402 = vrot.slane %v3401, 1
  %v3403 = vadd.f32 %v3401, %v3402
  %v3404 = vsel %vm2636, %v3153, 0.0
  %v3405 = vsel %vm2636, %v3154, 0.0
  %v3406 = vadd.f32 %v3404, %v3405
  %v3407 = vrot.slane %v3406, 4
  %v3408 = vadd.f32 %v3406, %v3407
  %v3409 = vrot.slane %v3408, 2
  %v3410 = vadd.f32 %v3408, %v3409
  %v3411 = vrot.slane %v3410, 1
  %v3412 = vadd.f32 %v3410, %v3411
  %v3413 = vsel %vm2636, %v3155, 0.0
  %v3414 = vsel %vm2636, %v3156, 0.0
  %v3415 = vadd.f32 %v3413, %v3414
  %v3416 = vrot.slane %v3415, 4
  %v3417 = vadd.f32 %v3415, %v3416
  %v3418 = vrot.slane %v3417, 2
  %v3419 = vadd.f32 %v3417, %v3418
  %v3420 = vrot.slane %v3419, 1
  %v3421 = vadd.f32 %v3419, %v3420
  %v3422 = vsel %vm2636, %v3157, 0.0
  %v3423 = vsel %vm2636, %v3158, 0.0
  %v3424 = vadd.f32 %v3422, %v3423
  %v3425 = vrot.slane %v3424, 4
  %v3426 = vadd.f32 %v3424, %v3425
  %v3427 = vrot.slane %v3426, 2
  %v3428 = vadd.f32 %v3426, %v3427
  %v3429 = vrot.slane %v3428, 1
  %v3430 = vadd.f32 %v3428, %v3429
  %v3431 = vsel %vm2636, %v3159, 0.0
  %v3432 = vsel %vm2636, %v3160, 0.0
  %v3433 = vadd.f32 %v3431, %v3432
  %v3434 = vrot.slane %v3433, 4
  %v3435 = vadd.f32 %v3433, %v3434
  %v3436 = vrot.slane %v3435, 2
  %v3437 = vadd.f32 %v3435, %v3436
  %v3438 = vrot.slane %v3437, 1
  %v3439 = vadd.f32 %v3437, %v3438
  %v3440 = vsel %vm2636, %v3161, 0.0
  %v3441 = vsel %vm2636, %v3162, 0.0
  %v3442 = vadd.f32 %v3440, %v3441
  %v3443 = vrot.slane %v3442, 4
  %v3444 = vadd.f32 %v3442, %v3443
  %v3445 = vrot.slane %v3444, 2
  %v3446 = vadd.f32 %v3444, %v3445
  %v3447 = vrot.slane %v3446, 1
  %v3448 = vadd.f32 %v3446, %v3447
  %v3449 = vsel %vm2636, %v3163, 0.0
  %v3450 = vsel %vm2636, %v3164, 0.0
  %v3451 = vadd.f32 %v3449, %v3450
  %v3452 = vrot.slane %v3451, 4
  %v3453 = vadd.f32 %v3451, %v3452
  %v3454 = vrot.slane %v3453, 2
  %v3455 = vadd.f32 %v3453, %v3454
  %v3456 = vrot.slane %v3455, 1
  %v3457 = vadd.f32 %v3455, %v3456
  %v3458 = vsel %vm2636, %v3165, 0.0
  %v3459 = vsel %vm2636, %v3166, 0.0
  %v3460 = vadd.f32 %v3458, %v3459
  %v3461 = vrot.slane %v3460, 4
  %v3462 = vadd.f32 %v3460, %v3461
  %v3463 = vrot.slane %v3462, 2
  %v3464 = vadd.f32 %v3462, %v3463
  %v3465 = vrot.slane %v3464, 1
  %v3466 = vadd.f32 %v3464, %v3465
  %v3467 = vsel %vm2636, %v3167, 0.0
  %v3468 = vsel %vm2636, %v3168, 0.0
  %v3469 = vadd.f32 %v3467, %v3468
  %v3470 = vrot.slane %v3469, 4
  %v3471 = vadd.f32 %v3469, %v3470
  %v3472 = vrot.slane %v3471, 2
  %v3473 = vadd.f32 %v3471, %v3472
  %v3474 = vrot.slane %v3473, 1
  %v3475 = vadd.f32 %v3473, %v3474
  %v3476 = vsel %vm2636, %v3169, 0.0
  %v3477 = vsel %vm2636, %v3170, 0.0
  %v3478 = vadd.f32 %v3476, %v3477
  %v3479 = vrot.slane %v3478, 4
  %v3480 = vadd.f32 %v3478, %v3479
  %v3481 = vrot.slane %v3480, 2
  %v3482 = vadd.f32 %v3480, %v3481
  %v3483 = vrot.slane %v3482, 1
  %v3484 = vadd.f32 %v3482, %v3483
  %v3485 = vsel %vm2636, %v3171, 0.0
  %v3486 = vsel %vm2636, %v3172, 0.0
  %v3487 = vadd.f32 %v3485, %v3486
  %v3488 = vrot.slane %v3487, 4
  %v3489 = vadd.f32 %v3487, %v3488
  %v3490 = vrot.slane %v3489, 2
  %v3491 = vadd.f32 %v3489, %v3490
  %v3492 = vrot.slane %v3491, 1
  %v3493 = vadd.f32 %v3491, %v3492
  %v3494 = vsel %vm2636, %v3173, 0.0
  %v3495 = vsel %vm2636, %v3174, 0.0
  %v3496 = vadd.f32 %v3494, %v3495
  %v3497 = vrot.slane %v3496, 4
  %v3498 = vadd.f32 %v3496, %v3497
  %v3499 = vrot.slane %v3498, 2
  %v3500 = vadd.f32 %v3498, %v3499
  %v3501 = vrot.slane %v3500, 1
  %v3502 = vadd.f32 %v3500, %v3501
  %v3503 = vsel %vm2636, %v3175, 0.0
  %v3504 = vsel %vm2636, %v3176, 0.0
  %v3505 = vadd.f32 %v3503, %v3504
  %v3506 = vrot.slane %v3505, 4
  %v3507 = vadd.f32 %v3505, %v3506
  %v3508 = vrot.slane %v3507, 2
  %v3509 = vadd.f32 %v3507, %v3508
  %v3510 = vrot.slane %v3509, 1
  %v3511 = vadd.f32 %v3509, %v3510
  %v3512 = vsel %vm2636, %v3177, 0.0
  %v3513 = vsel %vm2636, %v3178, 0.0
  %v3514 = vadd.f32 %v3512, %v3513
  %v3515 = vrot.slane %v3514, 4
  %v3516 = vadd.f32 %v3514, %v3515
  %v3517 = vrot.slane %v3516, 2
  %v3518 = vadd.f32 %v3516, %v3517
  %v3519 = vrot.slane %v3518, 1
  %v3520 = vadd.f32 %v3518, %v3519
  %v3521 = vsel %vm2636, %v3179, 0.0
  %v3522 = vsel %vm2636, %v3180, 0.0
  %v3523 = vadd.f32 %v3521, %v3522
  %v3524 = vrot.slane %v3523, 4
  %v3525 = vadd.f32 %v3523, %v3524
  %v3526 = vrot.slane %v3525, 2
  %v3527 = vadd.f32 %v3525, %v3526
  %v3528 = vrot.slane %v3527, 1
  %v3529 = vadd.f32 %v3527, %v3528
  %v3530 = vsel %vm2636, %v3181, 0.0
  %v3531 = vsel %vm2636, %v3182, 0.0
  %v3532 = vadd.f32 %v3530, %v3531
  %v3533 = vrot.slane %v3532, 4
  %v3534 = vadd.f32 %v3532, %v3533
  %v3535 = vrot.slane %v3534, 2
  %v3536 = vadd.f32 %v3534, %v3535
  %v3537 = vrot.slane %v3536, 1
  %v3538 = vadd.f32 %v3536, %v3537
  %v3539 = vsel %vm2636, %v3183, 0.0
  %v3540 = vsel %vm2636, %v3184, 0.0
  %v3541 = vadd.f32 %v3539, %v3540
  %v3542 = vrot.slane %v3541, 4
  %v3543 = vadd.f32 %v3541, %v3542
  %v3544 = vrot.slane %v3543, 2
  %v3545 = vadd.f32 %v3543, %v3544
  %v3546 = vrot.slane %v3545, 1
  %v3547 = vadd.f32 %v3545, %v3546
  %v3548 = vsel %vm2636, %v3185, 0.0
  %v3549 = vsel %vm2636, %v3186, 0.0
  %v3550 = vadd.f32 %v3548, %v3549
  %v3551 = vrot.slane %v3550, 4
  %v3552 = vadd.f32 %v3550, %v3551
  %v3553 = vrot.slane %v3552, 2
  %v3554 = vadd.f32 %v3552, %v3553
  %v3555 = vrot.slane %v3554, 1
  %v3556 = vadd.f32 %v3554, %v3555
  %v3557 = vsel %vm2636, %v3187, 0.0
  %v3558 = vsel %vm2636, %v3188, 0.0
  %v3559 = vadd.f32 %v3557, %v3558
  %v3560 = vrot.slane %v3559, 4
  %v3561 = vadd.f32 %v3559, %v3560
  %v3562 = vrot.slane %v3561, 2
  %v3563 = vadd.f32 %v3561, %v3562
  %v3564 = vrot.slane %v3563, 1
  %v3565 = vadd.f32 %v3563, %v3564
  %v3566 = vsel %vm2636, %v3189, 0.0
  %v3567 = vsel %vm2636, %v3190, 0.0
  %v3568 = vadd.f32 %v3566, %v3567
  %v3569 = vrot.slane %v3568, 4
  %v3570 = vadd.f32 %v3568, %v3569
  %v3571 = vrot.slane %v3570, 2
  %v3572 = vadd.f32 %v3570, %v3571
  %v3573 = vrot.slane %v3572, 1
  %v3574 = vadd.f32 %v3572, %v3573
  %v3575 = vsel %vm2636, %v3191, 0.0
  %v3576 = vsel %vm2636, %v3192, 0.0
  %v3577 = vadd.f32 %v3575, %v3576
  %v3578 = vrot.slane %v3577, 4
  %v3579 = vadd.f32 %v3577, %v3578
  %v3580 = vrot.slane %v3579, 2
  %v3581 = vadd.f32 %v3579, %v3580
  %v3582 = vrot.slane %v3581, 1
  %v3583 = vadd.f32 %v3581, %v3582
  %v3584 = vsel %vm2636, %v3193, 0.0
  %v3585 = vsel %vm2636, %v3194, 0.0
  %v3586 = vadd.f32 %v3584, %v3585
  %v3587 = vrot.slane %v3586, 4
  %v3588 = vadd.f32 %v3586, %v3587
  %v3589 = vrot.slane %v3588, 2
  %v3590 = vadd.f32 %v3588, %v3589
  %v3591 = vrot.slane %v3590, 1
  %v3592 = vadd.f32 %v3590, %v3591
  %v3593 = vsel %vm2636, %v3195, 0.0
  %v3594 = vsel %vm2636, %v3196, 0.0
  %v3595 = vadd.f32 %v3593, %v3594
  %v3596 = vrot.slane %v3595, 4
  %v3597 = vadd.f32 %v3595, %v3596
  %v3598 = vrot.slane %v3597, 2
  %v3599 = vadd.f32 %v3597, %v3598
  %v3600 = vrot.slane %v3599, 1
  %v3601 = vadd.f32 %v3599, %v3600
  %v3602 = vsel %vm2636, %v3197, 0.0
  %v3603 = vsel %vm2636, %v3198, 0.0
  %v3604 = vadd.f32 %v3602, %v3603
  %v3605 = vrot.slane %v3604, 4
  %v3606 = vadd.f32 %v3604, %v3605
  %v3607 = vrot.slane %v3606, 2
  %v3608 = vadd.f32 %v3606, %v3607
  %v3609 = vrot.slane %v3608, 1
  %v3610 = vadd.f32 %v3608, %v3609
  %v3611 = vsel %vm2636, %v3199, 0.0
  %v3612 = vsel %vm2636, %v3200, 0.0
  %v3613 = vadd.f32 %v3611, %v3612
  %v3614 = vrot.slane %v3613, 4
  %v3615 = vadd.f32 %v3613, %v3614
  %v3616 = vrot.slane %v3615, 2
  %v3617 = vadd.f32 %v3615, %v3616
  %v3618 = vrot.slane %v3617, 1
  %v3619 = vadd.f32 %v3617, %v3618
  %v3620 = vsel %vm2636, %v3201, 0.0
  %v3621 = vsel %vm2636, %v3202, 0.0
  %v3622 = vadd.f32 %v3620, %v3621
  %v3623 = vrot.slane %v3622, 4
  %v3624 = vadd.f32 %v3622, %v3623
  %v3625 = vrot.slane %v3624, 2
  %v3626 = vadd.f32 %v3624, %v3625
  %v3627 = vrot.slane %v3626, 1
  %v3628 = vadd.f32 %v3626, %v3627
  %v3629 = vsel %vm2636, %v3203, 0.0
  %v3630 = vsel %vm2636, %v3204, 0.0
  %v3631 = vadd.f32 %v3629, %v3630
  %v3632 = vrot.slane %v3631, 4
  %v3633 = vadd.f32 %v3631, %v3632
  %v3634 = vrot.slane %v3633, 2
  %v3635 = vadd.f32 %v3633, %v3634
  %v3636 = vrot.slane %v3635, 1
  %v3637 = vadd.f32 %v3635, %v3636
  %v3638 = vsel %vm2636, %v3205, 0.0
  %v3639 = vsel %vm2636, %v3206, 0.0
  %v3640 = vadd.f32 %v3638, %v3639
  %v3641 = vrot.slane %v3640, 4
  %v3642 = vadd.f32 %v3640, %v3641
  %v3643 = vrot.slane %v3642, 2
  %v3644 = vadd.f32 %v3642, %v3643
  %v3645 = vrot.slane %v3644, 1
  %v3646 = vadd.f32 %v3644, %v3645
  %v3647 = vsel %vm2636, %v3207, 0.0
  %v3648 = vsel %vm2636, %v3208, 0.0
  %v3649 = vadd.f32 %v3647, %v3648
  %v3650 = vrot.slane %v3649, 4
  %v3651 = vadd.f32 %v3649, %v3650
  %v3652 = vrot.slane %v3651, 2
  %v3653 = vadd.f32 %v3651, %v3652
  %v3654 = vrot.slane %v3653, 1
  %v3655 = vadd.f32 %v3653, %v3654
  %v3656 = vsel %vm2636, %v3209, 0.0
  %v3657 = vsel %vm2636, %v3210, 0.0
  %v3658 = vadd.f32 %v3656, %v3657
  %v3659 = vrot.slane %v3658, 4
  %v3660 = vadd.f32 %v3658, %v3659
  %v3661 = vrot.slane %v3660, 2
  %v3662 = vadd.f32 %v3660, %v3661
  %v3663 = vrot.slane %v3662, 1
  %v3664 = vadd.f32 %v3662, %v3663
  %v3665 = vsel %vm2636, %v3211, 0.0
  %v3666 = vsel %vm2636, %v3212, 0.0
  %v3667 = vadd.f32 %v3665, %v3666
  %v3668 = vrot.slane %v3667, 4
  %v3669 = vadd.f32 %v3667, %v3668
  %v3670 = vrot.slane %v3669, 2
  %v3671 = vadd.f32 %v3669, %v3670
  %v3672 = vrot.slane %v3671, 1
  %v3673 = vadd.f32 %v3671, %v3672
  %v3674 = vsel %vm2636, %v3213, 0.0
  %v3675 = vsel %vm2636, %v3214, 0.0
  %v3676 = vadd.f32 %v3674, %v3675
  %v3677 = vrot.slane %v3676, 4
  %v3678 = vadd.f32 %v3676, %v3677
  %v3679 = vrot.slane %v3678, 2
  %v3680 = vadd.f32 %v3678, %v3679
  %v3681 = vrot.slane %v3680, 1
  %v3682 = vadd.f32 %v3680, %v3681
  %v3683 = vsel %vm2636, %v3215, 0.0
  %v3684 = vsel %vm2636, %v3216, 0.0
  %v3685 = vadd.f32 %v3683, %v3684
  %v3686 = vrot.slane %v3685, 4
  %v3687 = vadd.f32 %v3685, %v3686
  %v3688 = vrot.slane %v3687, 2
  %v3689 = vadd.f32 %v3687, %v3688
  %v3690 = vrot.slane %v3689, 1
  %v3691 = vadd.f32 %v3689, %v3690
  %v3692 = vsel %vm2636, %v3217, 0.0
  %v3693 = vsel %vm2636, %v3218, 0.0
  %v3694 = vadd.f32 %v3692, %v3693
  %v3695 = vrot.slane %v3694, 4
  %v3696 = vadd.f32 %v3694, %v3695
  %v3697 = vrot.slane %v3696, 2
  %v3698 = vadd.f32 %v3696, %v3697
  %v3699 = vrot.slane %v3698, 1
  %v3700 = vadd.f32 %v3698, %v3699
  %v3701 = vsel %vm2636, %v3219, 0.0
  %v3702 = vsel %vm2636, %v3220, 0.0
  %v3703 = vadd.f32 %v3701, %v3702
  %v3704 = vrot.slane %v3703, 4
  %v3705 = vadd.f32 %v3703, %v3704
  %v3706 = vrot.slane %v3705, 2
  %v3707 = vadd.f32 %v3705, %v3706
  %v3708 = vrot.slane %v3707, 1
  %v3709 = vadd.f32 %v3707, %v3708
  %v3710 = vsel %vm2636, %v3221, 0.0
  %v3711 = vsel %vm2636, %v3222, 0.0
  %v3712 = vadd.f32 %v3710, %v3711
  %v3713 = vrot.slane %v3712, 4
  %v3714 = vadd.f32 %v3712, %v3713
  %v3715 = vrot.slane %v3714, 2
  %v3716 = vadd.f32 %v3714, %v3715
  %v3717 = vrot.slane %v3716, 1
  %v3718 = vadd.f32 %v3716, %v3717
  %v3719 = vsel %vm2636, %v3223, 0.0
  %v3720 = vsel %vm2636, %v3224, 0.0
  %v3721 = vadd.f32 %v3719, %v3720
  %v3722 = vrot.slane %v3721, 4
  %v3723 = vadd.f32 %v3721, %v3722
  %v3724 = vrot.slane %v3723, 2
  %v3725 = vadd.f32 %v3723, %v3724
  %v3726 = vrot.slane %v3725, 1
  %v3727 = vadd.f32 %v3725, %v3726
  %v3728 = vsel %vm2636, %v3225, 0.0
  %v3729 = vsel %vm2636, %v3226, 0.0
  %v3730 = vadd.f32 %v3728, %v3729
  %v3731 = vrot.slane %v3730, 4
  %v3732 = vadd.f32 %v3730, %v3731
  %v3733 = vrot.slane %v3732, 2
  %v3734 = vadd.f32 %v3732, %v3733
  %v3735 = vrot.slane %v3734, 1
  %v3736 = vadd.f32 %v3734, %v3735
  %v3737 = vsel %vm2636, %v3227, 0.0
  %v3738 = vsel %vm2636, %v3228, 0.0
  %v3739 = vadd.f32 %v3737, %v3738
  %v3740 = vrot.slane %v3739, 4
  %v3741 = vadd.f32 %v3739, %v3740
  %v3742 = vrot.slane %v3741, 2
  %v3743 = vadd.f32 %v3741, %v3742
  %v3744 = vrot.slane %v3743, 1
  %v3745 = vadd.f32 %v3743, %v3744
  %v3746 = vsel %vm2636, %v3229, 0.0
  %v3747 = vsel %vm2636, %v3230, 0.0
  %v3748 = vadd.f32 %v3746, %v3747
  %v3749 = vrot.slane %v3748, 4
  %v3750 = vadd.f32 %v3748, %v3749
  %v3751 = vrot.slane %v3750, 2
  %v3752 = vadd.f32 %v3750, %v3751
  %v3753 = vrot.slane %v3752, 1
  %v3754 = vadd.f32 %v3752, %v3753
  %v3755 = vsel %vm2636, %v3231, 0.0
  %v3756 = vsel %vm2636, %v3232, 0.0
  %v3757 = vadd.f32 %v3755, %v3756
  %v3758 = vrot.slane %v3757, 4
  %v3759 = vadd.f32 %v3757, %v3758
  %v3760 = vrot.slane %v3759, 2
  %v3761 = vadd.f32 %v3759, %v3760
  %v3762 = vrot.slane %v3761, 1
  %v3763 = vadd.f32 %v3761, %v3762
  %v3764 = vsel %vm2636, %v3233, 0.0
  %v3765 = vsel %vm2636, %v3234, 0.0
  %v3766 = vadd.f32 %v3764, %v3765
  %v3767 = vrot.slane %v3766, 4
  %v3768 = vadd.f32 %v3766, %v3767
  %v3769 = vrot.slane %v3768, 2
  %v3770 = vadd.f32 %v3768, %v3769
  %v3771 = vrot.slane %v3770, 1
  %v3772 = vadd.f32 %v3770, %v3771
  %v3773 = vsel %vm2636, %v3235, 0.0
  %v3774 = vsel %vm2636, %v3236, 0.0
  %v3775 = vadd.f32 %v3773, %v3774
  %v3776 = vrot.slane %v3775, 4
  %v3777 = vadd.f32 %v3775, %v3776
  %v3778 = vrot.slane %v3777, 2
  %v3779 = vadd.f32 %v3777, %v3778
  %v3780 = vrot.slane %v3779, 1
  %v3781 = vadd.f32 %v3779, %v3780
  %v3782 = vsel %vm2636, %v3237, 0.0
  %v3783 = vsel %vm2636, %v3238, 0.0
  %v3784 = vadd.f32 %v3782, %v3783
  %v3785 = vrot.slane %v3784, 4
  %v3786 = vadd.f32 %v3784, %v3785
  %v3787 = vrot.slane %v3786, 2
  %v3788 = vadd.f32 %v3786, %v3787
  %v3789 = vrot.slane %v3788, 1
  %v3790 = vadd.f32 %v3788, %v3789
  %v3791 = vsel %vm2636, %v3239, 0.0
  %v3792 = vsel %vm2636, %v3240, 0.0
  %v3793 = vadd.f32 %v3791, %v3792
  %v3794 = vrot.slane %v3793, 4
  %v3795 = vadd.f32 %v3793, %v3794
  %v3796 = vrot.slane %v3795, 2
  %v3797 = vadd.f32 %v3795, %v3796
  %v3798 = vrot.slane %v3797, 1
  %v3799 = vadd.f32 %v3797, %v3798
  %v3800 = vsel %vm2636, %v3241, 0.0
  %v3801 = vsel %vm2636, %v3242, 0.0
  %v3802 = vadd.f32 %v3800, %v3801
  %v3803 = vrot.slane %v3802, 4
  %v3804 = vadd.f32 %v3802, %v3803
  %v3805 = vrot.slane %v3804, 2
  %v3806 = vadd.f32 %v3804, %v3805
  %v3807 = vrot.slane %v3806, 1
  %v3808 = vadd.f32 %v3806, %v3807
  %v3809 = vsel %vm2636, %v3243, 0.0
  %v3810 = vsel %vm2636, %v3244, 0.0
  %v3811 = vadd.f32 %v3809, %v3810
  %v3812 = vrot.slane %v3811, 4
  %v3813 = vadd.f32 %v3811, %v3812
  %v3814 = vrot.slane %v3813, 2
  %v3815 = vadd.f32 %v3813, %v3814
  %v3816 = vrot.slane %v3815, 1
  %v3817 = vadd.f32 %v3815, %v3816
  %v3818 = vsel %vm2636, %v3245, 0.0
  %v3819 = vsel %vm2636, %v3246, 0.0
  %v3820 = vadd.f32 %v3818, %v3819
  %v3821 = vrot.slane %v3820, 4
  %v3822 = vadd.f32 %v3820, %v3821
  %v3823 = vrot.slane %v3822, 2
  %v3824 = vadd.f32 %v3822, %v3823
  %v3825 = vrot.slane %v3824, 1
  %v3826 = vadd.f32 %v3824, %v3825
  %v3827 = vsel %vm2636, %v3247, 0.0
  %v3828 = vsel %vm2636, %v3248, 0.0
  %v3829 = vadd.f32 %v3827, %v3828
  %v3830 = vrot.slane %v3829, 4
  %v3831 = vadd.f32 %v3829, %v3830
  %v3832 = vrot.slane %v3831, 2
  %v3833 = vadd.f32 %v3831, %v3832
  %v3834 = vrot.slane %v3833, 1
  %v3835 = vadd.f32 %v3833, %v3834
  %v3836 = vsel %vm2636, %v3249, 0.0
  %v3837 = vsel %vm2636, %v3250, 0.0
  %v3838 = vadd.f32 %v3836, %v3837
  %v3839 = vrot.slane %v3838, 4
  %v3840 = vadd.f32 %v3838, %v3839
  %v3841 = vrot.slane %v3840, 2
  %v3842 = vadd.f32 %v3840, %v3841
  %v3843 = vrot.slane %v3842, 1
  %v3844 = vadd.f32 %v3842, %v3843
  %v3845 = vsel %vm2636, %v3251, 0.0
  %v3846 = vsel %vm2636, %v3252, 0.0
  %v3847 = vadd.f32 %v3845, %v3846
  %v3848 = vrot.slane %v3847, 4
  %v3849 = vadd.f32 %v3847, %v3848
  %v3850 = vrot.slane %v3849, 2
  %v3851 = vadd.f32 %v3849, %v3850
  %v3852 = vrot.slane %v3851, 1
  %v3853 = vadd.f32 %v3851, %v3852
  %v3854 = vsel %vm2636, %v3253, 0.0
  %v3855 = vsel %vm2636, %v3254, 0.0
  %v3856 = vadd.f32 %v3854, %v3855
  %v3857 = vrot.slane %v3856, 4
  %v3858 = vadd.f32 %v3856, %v3857
  %v3859 = vrot.slane %v3858, 2
  %v3860 = vadd.f32 %v3858, %v3859
  %v3861 = vrot.slane %v3860, 1
  %v3862 = vadd.f32 %v3860, %v3861
  %v3863 = vsel %vm2636, %v3255, 0.0
  %v3864 = vsel %vm2636, %v3256, 0.0
  %v3865 = vadd.f32 %v3863, %v3864
  %v3866 = vrot.slane %v3865, 4
  %v3867 = vadd.f32 %v3865, %v3866
  %v3868 = vrot.slane %v3867, 2
  %v3869 = vadd.f32 %v3867, %v3868
  %v3870 = vrot.slane %v3869, 1
  %v3871 = vadd.f32 %v3869, %v3870
  %v3872 = vsel %vm2636, %v3257, 0.0
  %v3873 = vsel %vm2636, %v3258, 0.0
  %v3874 = vadd.f32 %v3872, %v3873
  %v3875 = vrot.slane %v3874, 4
  %v3876 = vadd.f32 %v3874, %v3875
  %v3877 = vrot.slane %v3876, 2
  %v3878 = vadd.f32 %v3876, %v3877
  %v3879 = vrot.slane %v3878, 1
  %v3880 = vadd.f32 %v3878, %v3879
  %v3881 = vsel %vm2636, %v3259, 0.0
  %v3882 = vsel %vm2636, %v3260, 0.0
  %v3883 = vadd.f32 %v3881, %v3882
  %v3884 = vrot.slane %v3883, 4
  %v3885 = vadd.f32 %v3883, %v3884
  %v3886 = vrot.slane %v3885, 2
  %v3887 = vadd.f32 %v3885, %v3886
  %v3888 = vrot.slane %v3887, 1
  %v3889 = vadd.f32 %v3887, %v3888
  %v3890 = vsel %vm2636, %v3261, 0.0
  %v3891 = vsel %vm2636, %v3262, 0.0
  %v3892 = vadd.f32 %v3890, %v3891
  %v3893 = vrot.slane %v3892, 4
  %v3894 = vadd.f32 %v3892, %v3893
  %v3895 = vrot.slane %v3894, 2
  %v3896 = vadd.f32 %v3894, %v3895
  %v3897 = vrot.slane %v3896, 1
  %v3898 = vadd.f32 %v3896, %v3897
  %v3899 = vsel %vm2636, %v3263, 0.0
  %v3900 = vsel %vm2636, %v3264, 0.0
  %v3901 = vadd.f32 %v3899, %v3900
  %v3902 = vrot.slane %v3901, 4
  %v3903 = vadd.f32 %v3901, %v3902
  %v3904 = vrot.slane %v3903, 2
  %v3905 = vadd.f32 %v3903, %v3904
  %v3906 = vrot.slane %v3905, 1
  %v3907 = vadd.f32 %v3905, %v3906
  %v3908 = vsel %vm2636, %v3265, 0.0
  %v3909 = vsel %vm2636, %v3266, 0.0
  %v3910 = vadd.f32 %v3908, %v3909
  %v3911 = vrot.slane %v3910, 4
  %v3912 = vadd.f32 %v3910, %v3911
  %v3913 = vrot.slane %v3912, 2
  %v3914 = vadd.f32 %v3912, %v3913
  %v3915 = vrot.slane %v3914, 1
  %v3916 = vadd.f32 %v3914, %v3915
  %v3917 = vsel %vm2636, %v3267, 0.0
  %v3918 = vsel %vm2636, %v3268, 0.0
  %v3919 = vadd.f32 %v3917, %v3918
  %v3920 = vrot.slane %v3919, 4
  %v3921 = vadd.f32 %v3919, %v3920
  %v3922 = vrot.slane %v3921, 2
  %v3923 = vadd.f32 %v3921, %v3922
  %v3924 = vrot.slane %v3923, 1
  %v3925 = vadd.f32 %v3923, %v3924
  %v3926 = vsel %vm2636, %v3269, 0.0
  %v3927 = vsel %vm2636, %v3270, 0.0
  %v3928 = vadd.f32 %v3926, %v3927
  %v3929 = vrot.slane %v3928, 4
  %v3930 = vadd.f32 %v3928, %v3929
  %v3931 = vrot.slane %v3930, 2
  %v3932 = vadd.f32 %v3930, %v3931
  %v3933 = vrot.slane %v3932, 1
  %v3934 = vadd.f32 %v3932, %v3933
  %v3935 = vsel %vm2636, %v3271, 0.0
  %v3936 = vsel %vm2636, %v3272, 0.0
  %v3937 = vadd.f32 %v3935, %v3936
  %v3938 = vrot.slane %v3937, 4
  %v3939 = vadd.f32 %v3937, %v3938
  %v3940 = vrot.slane %v3939, 2
  %v3941 = vadd.f32 %v3939, %v3940
  %v3942 = vrot.slane %v3941, 1
  %v3943 = vadd.f32 %v3941, %v3942
  %v3944 = vsel %vm2636, %v3273, 0.0
  %v3945 = vsel %vm2636, %v3274, 0.0
  %v3946 = vadd.f32 %v3944, %v3945
  %v3947 = vrot.slane %v3946, 4
  %v3948 = vadd.f32 %v3946, %v3947
  %v3949 = vrot.slane %v3948, 2
  %v3950 = vadd.f32 %v3948, %v3949
  %v3951 = vrot.slane %v3950, 1
  %v3952 = vadd.f32 %v3950, %v3951
  %v3953 = vsel %vm2636, %v3275, 0.0
  %v3954 = vsel %vm2636, %v3276, 0.0
  %v3955 = vadd.f32 %v3953, %v3954
  %v3956 = vrot.slane %v3955, 4
  %v3957 = vadd.f32 %v3955, %v3956
  %v3958 = vrot.slane %v3957, 2
  %v3959 = vadd.f32 %v3957, %v3958
  %v3960 = vrot.slane %v3959, 1
  %v3961 = vadd.f32 %v3959, %v3960
  %v3962 = vsel %vm2636, %v3277, 0.0
  %v3963 = vsel %vm2636, %v3278, 0.0
  %v3964 = vadd.f32 %v3962, %v3963
  %v3965 = vrot.slane %v3964, 4
  %v3966 = vadd.f32 %v3964, %v3965
  %v3967 = vrot.slane %v3966, 2
  %v3968 = vadd.f32 %v3966, %v3967
  %v3969 = vrot.slane %v3968, 1
  %v3970 = vadd.f32 %v3968, %v3969
  %v3971 = vsel %vm2636, %v3279, 0.0
  %v3972 = vsel %vm2636, %v3280, 0.0
  %v3973 = vadd.f32 %v3971, %v3972
  %v3974 = vrot.slane %v3973, 4
  %v3975 = vadd.f32 %v3973, %v3974
  %v3976 = vrot.slane %v3975, 2
  %v3977 = vadd.f32 %v3975, %v3976
  %v3978 = vrot.slane %v3977, 1
  %v3979 = vadd.f32 %v3977, %v3978
  %v3980 = vsel %vm2636, %v3281, 0.0
  %v3981 = vsel %vm2636, %v3282, 0.0
  %v3982 = vadd.f32 %v3980, %v3981
  %v3983 = vrot.slane %v3982, 4
  %v3984 = vadd.f32 %v3982, %v3983
  %v3985 = vrot.slane %v3984, 2
  %v3986 = vadd.f32 %v3984, %v3985
  %v3987 = vrot.slane %v3986, 1
  %v3988 = vadd.f32 %v3986, %v3987
  %v3989 = vsel %vm2636, %v3283, 0.0
  %v3990 = vsel %vm2636, %v3284, 0.0
  %v3991 = vadd.f32 %v3989, %v3990
  %v3992 = vrot.slane %v3991, 4
  %v3993 = vadd.f32 %v3991, %v3992
  %v3994 = vrot.slane %v3993, 2
  %v3995 = vadd.f32 %v3993, %v3994
  %v3996 = vrot.slane %v3995, 1
  %v3997 = vadd.f32 %v3995, %v3996
  %v3998 = vsel %vm2636, %v3285, 0.0
  %v3999 = vsel %vm2636, %v3286, 0.0
  %v4000 = vadd.f32 %v3998, %v3999
  %v4001 = vrot.slane %v4000, 4
  %v4002 = vadd.f32 %v4000, %v4001
  %v4003 = vrot.slane %v4002, 2
  %v4004 = vadd.f32 %v4002, %v4003
  %v4005 = vrot.slane %v4004, 1
  %v4006 = vadd.f32 %v4004, %v4005
  %vm4087 = vcmask 1041409
  %v4088 = vsel %vm4087, %v3304, %v3295
  %vm4089 = vcmask 1042434
  %v4090 = vsel %vm4089, %v3313, %v4088
  %vm4091 = vcmask 1043459
  %v4092 = vsel %vm4091, %v3322, %v4090
  %vm4093 = vcmask 1044484
  %v4094 = vsel %vm4093, %v3331, %v4092
  %vm4095 = vcmask 1045509
  %v4096 = vsel %vm4095, %v3340, %v4094
  %vm4097 = vcmask 1046534
  %v4098 = vsel %vm4097, %v3349, %v4096
  %vm4099 = vcmask 1047559
  %v4100 = vsel %vm4099, %v3358, %v4098
  %v4101 = vsel %vm4087, %v3376, %v3367
  %v4102 = vsel %vm4087, %v3394, %v3385
  %v4103 = vsel %vm4089, %v3403, %v4102
  %v4104 = vsel %vm4091, %v3412, %v4103
  %v4105 = vsel %vm4093, %v3421, %v4104
  %v4106 = vsel %vm4095, %v3430, %v4105
  %v4107 = vsel %vm4097, %v3439, %v4106
  %v4108 = vsel %vm4099, %v3448, %v4107
  %v4109 = vsel %vm4087, %v3466, %v3457
  %v4110 = vsel %vm4087, %v3484, %v3475
  %v4111 = vsel %vm4089, %v3493, %v4110
  %v4112 = vsel %vm4091, %v3502, %v4111
  %v4113 = vsel %vm4093, %v3511, %v4112
  %v4114 = vsel %vm4095, %v3520, %v4113
  %v4115 = vsel %vm4097, %v3529, %v4114
  %v4116 = vsel %vm4099, %v3538, %v4115
  %v4117 = vsel %vm4087, %v3556, %v3547
  %v4118 = vsel %vm4087, %v3574, %v3565
  %v4119 = vsel %vm4089, %v3583, %v4118
  %v4120 = vsel %vm4091, %v3592, %v4119
  %v4121 = vsel %vm4093, %v3601, %v4120
  %v4122 = vsel %vm4095, %v3610, %v4121
  %v4123 = vsel %vm4097, %v3619, %v4122
  %v4124 = vsel %vm4099, %v3628, %v4123
  %v4125 = vsel %vm4087, %v3646, %v3637
  %v4126 = vsel %vm4087, %v3664, %v3655
  %v4127 = vsel %vm4089, %v3673, %v4126
  %v4128 = vsel %vm4091, %v3682, %v4127
  %v4129 = vsel %vm4093, %v3691, %v4128
  %v4130 = vsel %vm4095, %v3700, %v4129
  %v4131 = vsel %vm4097, %v3709, %v4130
  %v4132 = vsel %vm4099, %v3718, %v4131
  %v4133 = vsel %vm4087, %v3736, %v3727
  %v4134 = vsel %vm4087, %v3754, %v3745
  %v4135 = vsel %vm4089, %v3763, %v4134
  %v4136 = vsel %vm4091, %v3772, %v4135
  %v4137 = vsel %vm4093, %v3781, %v4136
  %v4138 = vsel %vm4095, %v3790, %v4137
  %v4139 = vsel %vm4097, %v3799, %v4138
  %v4140 = vsel %vm4099, %v3808, %v4139
  %v4141 = vsel %vm4087, %v3826, %v3817
  %v4142 = vsel %vm4087, %v3844, %v3835
  %v4143 = vsel %vm4089, %v3853, %v4142
  %v4144 = vsel %vm4091, %v3862, %v4143
  %v4145 = vsel %vm4093, %v3871, %v4144
  %v4146 = vsel %vm4095, %v3880, %v4145
  %v4147 = vsel %vm4097, %v3889, %v4146
  %v4148 = vsel %vm4099, %v3898, %v4147
  %v4149 = vsel %vm4087, %v3916, %v3907
  %v4150 = vsel %vm4087, %v3934, %v3925
  %v4151 = vsel %vm4089, %v3943, %v4150
  %v4152 = vsel %vm4091, %v3952, %v4151
  %v4153 = vsel %vm4093, %v3961, %v4152
  %v4154 = vsel %vm4095, %v3970, %v4153
  %v4155 = vsel %vm4097, %v3979, %v4154
  %v4156 = vsel %vm4099, %v3988, %v4155
  %v4157 = vsel %vm4087, %v4006, %v3997
  %v4174 = vadd.f32 %v1777, %v4100
  %v4175 = vadd.f32 %v1781, %v4101
  %v4176 = vadd.f32 %v1788, %v4108
  %v4177 = vadd.f32 %v1792, %v4109
  %v4178 = vadd.f32 %v1799, %v4116
  %v4179 = vadd.f32 %v1803, %v4117
  %v4180 = vadd.f32 %v1810, %v4124
  %v4181 = vadd.f32 %v1814, %v4125
  %v4182 = vadd.f32 %v1821, %v4132
  %v4183 = vadd.f32 %v1825, %v4133
  %v4184 = vadd.f32 %v1832, %v4140
  %v4185 = vadd.f32 %v1836, %v4141
  %v4186 = vadd.f32 %v1843, %v4148
  %v4187 = vadd.f32 %v1847, %v4149
  %v4188 = vadd.f32 %v1854, %v4156
  %v4189 = vadd.f32 %v1858, %v4157
  %v4190 = vsel %vm2636, %v4174, -inf
  %vm4191 = vcmask 9216
  %v4192 = vsel %vm4191, %v4175, -inf
  %v4193 = vmax.f32 %v4190, %v4192
  %v4194 = vrot.slane %v4193, 4
  %v4195 = vmax.f32 %v4193, %v4194
  %v4196 = vrot.slane %v4195, 2
  %v4197 = vmax.f32 %v4195, %v4196
  %v4198 = vrot.slane %v4197, 1
  %v4199 = vmax.f32 %v4197, %v4198
  %v4200 = vsel %vm2636, %v4176, -inf
  %v4201 = vsel %vm4191, %v4177, -inf
  %v4202 = vmax.f32 %v4200, %v4201
  %v4203 = vrot.slane %v4202, 4
  %v4204 = vmax.f32 %v4202, %v4203
  %v4205 = vrot.slane %v4204, 2
  %v4206 = vmax.f32 %v4204, %v4205
  %v4207 = vrot.slane %v4206, 1
  %v4208 = vmax.f32 %v4206, %v4207
  %v4209 = vsel %vm2636, %v4178, -inf
  %v4210 = vsel %vm4191, %v4179, -inf
  %v4211 = vmax.f32 %v4209, %v4210
  %v4212 = vrot.slane %v4211, 4
  %v4213 = vmax.f32 %v4211, %v4212
  %v4214 = vrot.slane %v4213, 2
  %v4215 = vmax.f32 %v4213, %v4214
  %v4216 = vrot.slane %v4215, 1
  %v4217 = vmax.f32 %v4215, %v4216
  %v4218 = vsel %vm2636, %v4180, -inf
  %v4219 = vsel %vm4191, %v4181, -inf
  %v4220 = vmax.f32 %v4218, %v4219
  %v4221 = vrot.slane %v4220, 4
  %v4222 = vmax.f32 %v4220, %v4221
  %v4223 = vrot.slane %v4222, 2
  %v4224 = vmax.f32 %v4222, %v4223
  %v4225 = vrot.slane %v4224, 1
  %v4226 = vmax.f32 %v4224, %v4225
  %v4227 = vsel %vm2636, %v4182, -inf
  %v4228 = vsel %vm4191, %v4183, -inf
  %v4229 = vmax.f32 %v4227, %v4228
  %v4230 = vrot.slane %v4229, 4
  %v4231 = vmax.f32 %v4229, %v4230
  %v4232 = vrot.slane %v4231, 2
  %v4233 = vmax.f32 %v4231, %v4232
  %v4234 = vrot.slane %v4233, 1
  %v4235 = vmax.f32 %v4233, %v4234
  %v4236 = vsel %vm2636, %v4184, -inf
  %v4237 = vsel %vm4191, %v4185, -inf
  %v4238 = vmax.f32 %v4236, %v4237
  %v4239 = vrot.slane %v4238, 4
  %v4240 = vmax.f32 %v4238, %v4239
  %v4241 = vrot.slane %v4240, 2
  %v4242 = vmax.f32 %v4240, %v4241
  %v4243 = vrot.slane %v4242, 1
  %v4244 = vmax.f32 %v4242, %v4243
  %v4245 = vsel %vm2636, %v4186, -inf
  %v4246 = vsel %vm4191, %v4187, -inf
  %v4247 = vmax.f32 %v4245, %v4246
  %v4248 = vrot.slane %v4247, 4
  %v4249 = vmax.f32 %v4247, %v4248
  %v4250 = vrot.slane %v4249, 2
  %v4251 = vmax.f32 %v4249, %v4250
  %v4252 = vrot.slane %v4251, 1
  %v4253 = vmax.f32 %v4251, %v4252
  %v4254 = vsel %vm2636, %v4188, -inf
  %v4255 = vsel %vm4191, %v4189, -inf
  %v4256 = vmax.f32 %v4254, %v4255
  %v4257 = vrot.slane %v4256, 4
  %v4258 = vmax.f32 %v4256, %v4257
  %v4259 = vrot.slane %v4258, 2
  %v4260 = vmax.f32 %v4258, %v4259
  %v4261 = vrot.slane %v4260, 1
  %v4262 = vmax.f32 %v4260, %v4261
  %v4263 = vsub.f32 %v4174, %v4199
  %v4264 = vsub.f32 %v4175, %v4199
  %v4265 = vsub.f32 %v4176, %v4208
  %v4266 = vsub.f32 %v4177, %v4208
  %v4267 = vsub.f32 %v4178, %v4217
  %v4268 = vsub.f32 %v4179, %v4217
  %v4269 = vsub.f32 %v4180, %v4226
  %v4270 = vsub.f32 %v4181, %v4226
  %v4271 = vsub.f32 %v4182, %v4235
  %v4272 = vsub.f32 %v4183, %v4235
  %v4273 = vsub.f32 %v4184, %v4244
  %v4274 = vsub.f32 %v4185, %v4244
  %v4275 = vsub.f32 %v4186, %v4253
  %v4276 = vsub.f32 %v4187, %v4253
  %v4277 = vsub.f32 %v4188, %v4262
  %v4278 = vsub.f32 %v4189, %v4262
  %v4279 = vmul.f32 %v4263, 1.442695
  %v4280 = vpow.pop %v4279
  %v4281 = vmul.f32 %v4264, 1.442695
  %v4282 = vpow.pop %v4281
  %v4283 = vmul.f32 %v4265, 1.442695
  %v4284 = vpow.pop %v4283
  %v4285 = vmul.f32 %v4266, 1.442695
  %v4286 = vpow.pop %v4285
  %v4287 = vmul.f32 %v4267, 1.442695
  %v4288 = vpow.pop %v4287
  %v4289 = vmul.f32 %v4268, 1.442695
  %v4290 = vpow.pop %v4289
  %v4291 = vmul.f32 %v4269, 1.442695
  %v4292 = vpow.pop %v4291
  %v4293 = vmul.f32 %v4270, 1.442695
  %v4294 = vpow.pop %v4293
  %v4295 = vmul.f32 %v4271, 1.442695
  %v4296 = vpow.pop %v4295
  %v4297 = vmul.f32 %v4272, 1.442695
  %v4298 = vpow.pop %v4297
  %v4299 = vmul.f32 %v4273, 1.442695
  %v4300 = vpow.pop %v4299
  %v4301 = vmul.f32 %v4274, 1.442695
  %v4302 = vpow.pop %v4301
  %v4303 = vmul.f32 %v4275, 1.442695
  %v4304 = vpow.pop %v4303
  %v4305 = vmul.f32 %v4276, 1.442695
  %v4306 = vpow.pop %v4305
  %v4307 = vmul.f32 %v4277, 1.442695
  %v4308 = vpow.pop %v4307
  %v4309 = vmul.f32 %v4278, 1.442695
  %v4310 = vpow.pop %v4309
  %v4311 = vsel %vm2636, %v4280, 0.0
  %v4312 = vsel %vm4191, %v4282, 0.0
  %v4313 = vadd.f32 %v4311, %v4312
  %v4314 = vrot.slane %v4313, 4
  %v4315 = vadd.f32 %v4313, %v4314
  %v4316 = vrot.slane %v4315, 2
  %v4317 = vadd.f32 %v4315, %v4316
  %v4318 = vrot.slane %v4317, 1
  %v4319 = vadd.f32 %v4317, %v4318
  %v4320 = vsel %vm2636, %v4284, 0.0
  %v4321 = vsel %vm4191, %v4286, 0.0
  %v4322 = vadd.f32 %v4320, %v4321
  %v4323 = vrot.slane %v4322, 4
  %v4324 = vadd.f32 %v4322, %v4323
  %v4325 = vrot.slane %v4324, 2
  %v4326 = vadd.f32 %v4324, %v4325
  %v4327 = vrot.slane %v4326, 1
  %v4328 = vadd.f32 %v4326, %v4327
  %v4329 = vsel %vm2636, %v4288, 0.0
  %v4330 = vsel %vm4191, %v4290, 0.0
  %v4331 = vadd.f32 %v4329, %v4330
  %v4332 = vrot.slane %v4331, 4
  %v4333 = vadd.f32 %v4331, %v4332
  %v4334 = vrot.slane %v4333, 2
  %v4335 = vadd.f32 %v4333, %v4334
  %v4336 = vrot.slane %v4335, 1
  %v4337 = vadd.f32 %v4335, %v4336
  %v4338 = vsel %vm2636, %v4292, 0.0
  %v4339 = vsel %vm4191, %v4294, 0.0
  %v4340 = vadd.f32 %v4338, %v4339
  %v4341 = vrot.slane %v4340, 4
  %v4342 = vadd.f32 %v4340, %v4341
  %v4343 = vrot.slane %v4342, 2
  %v4344 = vadd.f32 %v4342, %v4343
  %v4345 = vrot.slane %v4344, 1
  %v4346 = vadd.f32 %v4344, %v4345
  %v4347 = vsel %vm2636, %v4296, 0.0
  %v4348 = vsel %vm4191, %v4298, 0.0
  %v4349 = vadd.f32 %v4347, %v4348
  %v4350 = vrot.slane %v4349, 4
  %v4351 = vadd.f32 %v4349, %v4350
  %v4352 = vrot.slane %v4351, 2
  %v4353 = vadd.f32 %v4351, %v4352
  %v4354 = vrot.slane %v4353, 1
  %v4355 = vadd.f32 %v4353, %v4354
  %v4356 = vsel %vm2636, %v4300, 0.0
  %v4357 = vsel %vm4191, %v4302, 0.0
  %v4358 = vadd.f32 %v4356, %v4357
  %v4359 = vrot.slane %v4358, 4
  %v4360 = vadd.f32 %v4358, %v4359
  %v4361 = vrot.slane %v4360, 2
  %v4362 = vadd.f32 %v4360, %v4361
  %v4363 = vrot.slane %v4362, 1
  %v4364 = vadd.f32 %v4362, %v4363
  %v4365 = vsel %vm2636, %v4304, 0.0
  %v4366 = vsel %vm4191, %v4306, 0.0
  %v4367 = vadd.f32 %v4365, %v4366
  %v4368 = vrot.slane %v4367, 4
  %v4369 = vadd.f32 %v4367, %v4368
  %v4370 = vrot.slane %v4369, 2
  %v4371 = vadd.f32 %v4369, %v4370
  %v4372 = vrot.slane %v4371, 1
  %v4373 = vadd.f32 %v4371, %v4372
  %v4374 = vsel %vm2636, %v4308, 0.0
  %v4375 = vsel %vm4191, %v4310, 0.0
  %v4376 = vadd.f32 %v4374, %v4375
  %v4377 = vrot.slane %v4376, 4
  %v4378 = vadd.f32 %v4376, %v4377
  %v4379 = vrot.slane %v4378, 2
  %v4380 = vadd.f32 %v4378, %v4379
  %v4381 = vrot.slane %v4380, 1
  %v4382 = vadd.f32 %v4380, %v4381
  %v4383 = vrcp.pop %v4319
  %v4384 = vmul.f32 %v4280, %v4383
  %v4385 = vmul.f32 %v4282, %v4383
  %v4386 = vrcp.pop %v4328
  %v4387 = vmul.f32 %v4284, %v4386
  %v4388 = vmul.f32 %v4286, %v4386
  %v4389 = vrcp.pop %v4337
  %v4390 = vmul.f32 %v4288, %v4389
  %v4391 = vmul.f32 %v4290, %v4389
  %v4392 = vrcp.pop %v4346
  %v4393 = vmul.f32 %v4292, %v4392
  %v4394 = vmul.f32 %v4294, %v4392
  %v4395 = vrcp.pop %v4355
  %v4396 = vmul.f32 %v4296, %v4395
  %v4397 = vmul.f32 %v4298, %v4395
  %v4398 = vrcp.pop %v4364
  %v4399 = vmul.f32 %v4300, %v4398
  %v4400 = vmul.f32 %v4302, %v4398
  %v4401 = vrcp.pop %v4373
  %v4402 = vmul.f32 %v4304, %v4401
  %v4403 = vmul.f32 %v4306, %v4401
  %v4404 = vrcp.pop %v4382
  %v4405 = vmul.f32 %v4308, %v4404
  %v4406 = vmul.f32 %v4310, %v4404
  %v4423 = vcombine.high %v4384, %v4384
  %v4425 = vunpack.c.l.s4 1966171168
  %v4426 = vunpack.c.0.s8 %v4425
  %v4427 = vlaneseq
  %v4428 = vshrl.u32 %v4427, 7
  %v4429 = vsub.s32 %v4426, %v4428
  %v4430 = vrot.slane %v4384, %v4429
  %v4432 = vunpack.c.l.s4 1966171168
  %v4433 = vunpack.c.0.s8 %v4432
  %v4434 = vlaneseq
  %v4435 = vshrl.u32 %v4434, 7
  %v4436 = vsub.s32 %v4433, %v4435
  %v4437 = vrot.slane %v4423, %v4436
  %v4438 = vcombine.high %v4430, %v4430
  %v4439 = vcombine.high %v4437, %v4437
  %v4441 = vunpack.c.l.s4 1966171168
  %v4442 = vunpack.c.0.s8 %v4441
  %v4443 = vlaneseq
  %v4444 = vshrl.u32 %v4443, 7
  %v4445 = vsub.s32 %v4442, %v4444
  %v4446 = vrot.slane %v4430, %v4445
  %v4448 = vunpack.c.l.s4 1966171168
  %v4449 = vunpack.c.0.s8 %v4448
  %v4450 = vlaneseq
  %v4451 = vshrl.u32 %v4450, 7
  %v4452 = vsub.s32 %v4449, %v4451
  %v4453 = vrot.slane %v4437, %v4452
  %v4455 = vunpack.c.l.s4 1966171168
  %v4456 = vunpack.c.0.s8 %v4455
  %v4457 = vlaneseq
  %v4458 = vshrl.u32 %v4457, 7
  %v4459 = vsub.s32 %v4456, %v4458
  %v4460 = vrot.slane %v4438, %v4459
  %v4462 = vunpack.c.l.s4 1966171168
  %v4463 = vunpack.c.0.s8 %v4462
  %v4464 = vlaneseq
  %v4465 = vshrl.u32 %v4464, 7
  %v4466 = vsub.s32 %v4463, %v4465
  %v4467 = vrot.slane %v4439, %v4466
  %v4468 = vcombine.high %v4446, %v4446
  %v4469 = vcombine.high %v4453, %v4453
  %v4470 = vcombine.high %v4460, %v4460
  %v4471 = vcombine.high %v4467, %v4467
  %v4473 = vunpack.c.l.s4 1966171168
  %v4474 = vunpack.c.0.s8 %v4473
  %v4475 = vlaneseq
  %v4476 = vshrl.u32 %v4475, 7
  %v4477 = vsub.s32 %v4474, %v4476
  %v4478 = vrot.slane %v4385, %v4477
  %v4479 = vcombine.high %v4478, %v4478
  %v4481 = vunpack.c.l.s4 1966171168
  %v4482 = vunpack.c.0.s8 %v4481
  %v4483 = vlaneseq
  %v4484 = vshrl.u32 %v4483, 7
  %v4485 = vsub.s32 %v4482, %v4484
  %v4486 = vrot.slane %v4478, %v4485
  %v4488 = vunpack.c.l.s4 1966171168
  %v4489 = vunpack.c.0.s8 %v4488
  %v4490 = vlaneseq
  %v4491 = vshrl.u32 %v4490, 7
  %v4492 = vsub.s32 %v4489, %v4491
  %v4493 = vrot.slane %v4479, %v4492
  %v4494 = vcombine.high %v4387, %v4387
  %v4496 = vunpack.c.l.s4 1966171168
  %v4497 = vunpack.c.0.s8 %v4496
  %v4498 = vlaneseq
  %v4499 = vshrl.u32 %v4498, 7
  %v4500 = vsub.s32 %v4497, %v4499
  %v4501 = vrot.slane %v4387, %v4500
  %v4503 = vunpack.c.l.s4 1966171168
  %v4504 = vunpack.c.0.s8 %v4503
  %v4505 = vlaneseq
  %v4506 = vshrl.u32 %v4505, 7
  %v4507 = vsub.s32 %v4504, %v4506
  %v4508 = vrot.slane %v4494, %v4507
  %v4509 = vcombine.high %v4501, %v4501
  %v4510 = vcombine.high %v4508, %v4508
  %v4512 = vunpack.c.l.s4 1966171168
  %v4513 = vunpack.c.0.s8 %v4512
  %v4514 = vlaneseq
  %v4515 = vshrl.u32 %v4514, 7
  %v4516 = vsub.s32 %v4513, %v4515
  %v4517 = vrot.slane %v4501, %v4516
  %v4519 = vunpack.c.l.s4 1966171168
  %v4520 = vunpack.c.0.s8 %v4519
  %v4521 = vlaneseq
  %v4522 = vshrl.u32 %v4521, 7
  %v4523 = vsub.s32 %v4520, %v4522
  %v4524 = vrot.slane %v4508, %v4523
  %v4526 = vunpack.c.l.s4 1966171168
  %v4527 = vunpack.c.0.s8 %v4526
  %v4528 = vlaneseq
  %v4529 = vshrl.u32 %v4528, 7
  %v4530 = vsub.s32 %v4527, %v4529
  %v4531 = vrot.slane %v4509, %v4530
  %v4533 = vunpack.c.l.s4 1966171168
  %v4534 = vunpack.c.0.s8 %v4533
  %v4535 = vlaneseq
  %v4536 = vshrl.u32 %v4535, 7
  %v4537 = vsub.s32 %v4534, %v4536
  %v4538 = vrot.slane %v4510, %v4537
  %v4539 = vcombine.high %v4517, %v4517
  %v4540 = vcombine.high %v4524, %v4524
  %v4541 = vcombine.high %v4531, %v4531
  %v4542 = vcombine.high %v4538, %v4538
  %v4544 = vunpack.c.l.s4 1966171168
  %v4545 = vunpack.c.0.s8 %v4544
  %v4546 = vlaneseq
  %v4547 = vshrl.u32 %v4546, 7
  %v4548 = vsub.s32 %v4545, %v4547
  %v4549 = vrot.slane %v4388, %v4548
  %v4550 = vcombine.high %v4549, %v4549
  %v4552 = vunpack.c.l.s4 1966171168
  %v4553 = vunpack.c.0.s8 %v4552
  %v4554 = vlaneseq
  %v4555 = vshrl.u32 %v4554, 7
  %v4556 = vsub.s32 %v4553, %v4555
  %v4557 = vrot.slane %v4549, %v4556
  %v4559 = vunpack.c.l.s4 1966171168
  %v4560 = vunpack.c.0.s8 %v4559
  %v4561 = vlaneseq
  %v4562 = vshrl.u32 %v4561, 7
  %v4563 = vsub.s32 %v4560, %v4562
  %v4564 = vrot.slane %v4550, %v4563
  %v4565 = vcombine.high %v4390, %v4390
  %v4567 = vunpack.c.l.s4 1966171168
  %v4568 = vunpack.c.0.s8 %v4567
  %v4569 = vlaneseq
  %v4570 = vshrl.u32 %v4569, 7
  %v4571 = vsub.s32 %v4568, %v4570
  %v4572 = vrot.slane %v4390, %v4571
  %v4574 = vunpack.c.l.s4 1966171168
  %v4575 = vunpack.c.0.s8 %v4574
  %v4576 = vlaneseq
  %v4577 = vshrl.u32 %v4576, 7
  %v4578 = vsub.s32 %v4575, %v4577
  %v4579 = vrot.slane %v4565, %v4578
  %v4580 = vcombine.high %v4572, %v4572
  %v4581 = vcombine.high %v4579, %v4579
  %v4583 = vunpack.c.l.s4 1966171168
  %v4584 = vunpack.c.0.s8 %v4583
  %v4585 = vlaneseq
  %v4586 = vshrl.u32 %v4585, 7
  %v4587 = vsub.s32 %v4584, %v4586
  %v4588 = vrot.slane %v4572, %v4587
  %v4590 = vunpack.c.l.s4 1966171168
  %v4591 = vunpack.c.0.s8 %v4590
  %v4592 = vlaneseq
  %v4593 = vshrl.u32 %v4592, 7
  %v4594 = vsub.s32 %v4591, %v4593
  %v4595 = vrot.slane %v4579, %v4594
  %v4597 = vunpack.c.l.s4 1966171168
  %v4598 = vunpack.c.0.s8 %v4597
  %v4599 = vlaneseq
  %v4600 = vshrl.u32 %v4599, 7
  %v4601 = vsub.s32 %v4598, %v4600
  %v4602 = vrot.slane %v4580, %v4601
  %v4604 = vunpack.c.l.s4 1966171168
  %v4605 = vunpack.c.0.s8 %v4604
  %v4606 = vlaneseq
  %v4607 = vshrl.u32 %v4606, 7
  %v4608 = vsub.s32 %v4605, %v4607
  %v4609 = vrot.slane %v4581, %v4608
  %v4610 = vcombine.high %v4588, %v4588
  %v4611 = vcombine.high %v4595, %v4595
  %v4612 = vcombine.high %v4602, %v4602
  %v4613 = vcombine.high %v4609, %v4609
  %v4615 = vunpack.c.l.s4 1966171168
  %v4616 = vunpack.c.0.s8 %v4615
  %v4617 = vlaneseq
  %v4618 = vshrl.u32 %v4617, 7
  %v4619 = vsub.s32 %v4616, %v4618
  %v4620 = vrot.slane %v4391, %v4619
  %v4621 = vcombine.high %v4620, %v4620
  %v4623 = vunpack.c.l.s4 1966171168
  %v4624 = vunpack.c.0.s8 %v4623
  %v4625 = vlaneseq
  %v4626 = vshrl.u32 %v4625, 7
  %v4627 = vsub.s32 %v4624, %v4626
  %v4628 = vrot.slane %v4620, %v4627
  %v4630 = vunpack.c.l.s4 1966171168
  %v4631 = vunpack.c.0.s8 %v4630
  %v4632 = vlaneseq
  %v4633 = vshrl.u32 %v4632, 7
  %v4634 = vsub.s32 %v4631, %v4633
  %v4635 = vrot.slane %v4621, %v4634
  %v4636 = vcombine.high %v4393, %v4393
  %v4638 = vunpack.c.l.s4 1966171168
  %v4639 = vunpack.c.0.s8 %v4638
  %v4640 = vlaneseq
  %v4641 = vshrl.u32 %v4640, 7
  %v4642 = vsub.s32 %v4639, %v4641
  %v4643 = vrot.slane %v4393, %v4642
  %v4645 = vunpack.c.l.s4 1966171168
  %v4646 = vunpack.c.0.s8 %v4645
  %v4647 = vlaneseq
  %v4648 = vshrl.u32 %v4647, 7
  %v4649 = vsub.s32 %v4646, %v4648
  %v4650 = vrot.slane %v4636, %v4649
  %v4651 = vcombine.high %v4643, %v4643
  %v4652 = vcombine.high %v4650, %v4650
  %v4654 = vunpack.c.l.s4 1966171168
  %v4655 = vunpack.c.0.s8 %v4654
  %v4656 = vlaneseq
  %v4657 = vshrl.u32 %v4656, 7
  %v4658 = vsub.s32 %v4655, %v4657
  %v4659 = vrot.slane %v4643, %v4658
  %v4661 = vunpack.c.l.s4 1966171168
  %v4662 = vunpack.c.0.s8 %v4661
  %v4663 = vlaneseq
  %v4664 = vshrl.u32 %v4663, 7
  %v4665 = vsub.s32 %v4662, %v4664
  %v4666 = vrot.slane %v4650, %v4665
  %v4668 = vunpack.c.l.s4 1966171168
  %v4669 = vunpack.c.0.s8 %v4668
  %v4670 = vlaneseq
  %v4671 = vshrl.u32 %v4670, 7
  %v4672 = vsub.s32 %v4669, %v4671
  %v4673 = vrot.slane %v4651, %v4672
  %v4675 = vunpack.c.l.s4 1966171168
  %v4676 = vunpack.c.0.s8 %v4675
  %v4677 = vlaneseq
  %v4678 = vshrl.u32 %v4677, 7
  %v4679 = vsub.s32 %v4676, %v4678
  %v4680 = vrot.slane %v4652, %v4679
  %v4681 = vcombine.high %v4659, %v4659
  %v4682 = vcombine.high %v4666, %v4666
  %v4683 = vcombine.high %v4673, %v4673
  %v4684 = vcombine.high %v4680, %v4680
  %v4686 = vunpack.c.l.s4 1966171168
  %v4687 = vunpack.c.0.s8 %v4686
  %v4688 = vlaneseq
  %v4689 = vshrl.u32 %v4688, 7
  %v4690 = vsub.s32 %v4687, %v4689
  %v4691 = vrot.slane %v4394, %v4690
  %v4692 = vcombine.high %v4691, %v4691
  %v4694 = vunpack.c.l.s4 1966171168
  %v4695 = vunpack.c.0.s8 %v4694
  %v4696 = vlaneseq
  %v4697 = vshrl.u32 %v4696, 7
  %v4698 = vsub.s32 %v4695, %v4697
  %v4699 = vrot.slane %v4691, %v4698
  %v4701 = vunpack.c.l.s4 1966171168
  %v4702 = vunpack.c.0.s8 %v4701
  %v4703 = vlaneseq
  %v4704 = vshrl.u32 %v4703, 7
  %v4705 = vsub.s32 %v4702, %v4704
  %v4706 = vrot.slane %v4692, %v4705
  %v4707 = vcombine.high %v4396, %v4396
  %v4709 = vunpack.c.l.s4 1966171168
  %v4710 = vunpack.c.0.s8 %v4709
  %v4711 = vlaneseq
  %v4712 = vshrl.u32 %v4711, 7
  %v4713 = vsub.s32 %v4710, %v4712
  %v4714 = vrot.slane %v4396, %v4713
  %v4716 = vunpack.c.l.s4 1966171168
  %v4717 = vunpack.c.0.s8 %v4716
  %v4718 = vlaneseq
  %v4719 = vshrl.u32 %v4718, 7
  %v4720 = vsub.s32 %v4717, %v4719
  %v4721 = vrot.slane %v4707, %v4720
  %v4722 = vcombine.high %v4714, %v4714
  %v4723 = vcombine.high %v4721, %v4721
  %v4725 = vunpack.c.l.s4 1966171168
  %v4726 = vunpack.c.0.s8 %v4725
  %v4727 = vlaneseq
  %v4728 = vshrl.u32 %v4727, 7
  %v4729 = vsub.s32 %v4726, %v4728
  %v4730 = vrot.slane %v4714, %v4729
  %v4732 = vunpack.c.l.s4 1966171168
  %v4733 = vunpack.c.0.s8 %v4732
  %v4734 = vlaneseq
  %v4735 = vshrl.u32 %v4734, 7
  %v4736 = vsub.s32 %v4733, %v4735
  %v4737 = vrot.slane %v4721, %v4736
  %v4739 = vunpack.c.l.s4 1966171168
  %v4740 = vunpack.c.0.s8 %v4739
  %v4741 = vlaneseq
  %v4742 = vshrl.u32 %v4741, 7
  %v4743 = vsub.s32 %v4740, %v4742
  %v4744 = vrot.slane %v4722, %v4743
  %v4746 = vunpack.c.l.s4 1966171168
  %v4747 = vunpack.c.0.s8 %v4746
  %v4748 = vlaneseq
  %v4749 = vshrl.u32 %v4748, 7
  %v4750 = vsub.s32 %v4747, %v4749
  %v4751 = vrot.slane %v4723, %v4750
  %v4752 = vcombine.high %v4730, %v4730
  %v4753 = vcombine.high %v4737, %v4737
  %v4754 = vcombine.high %v4744, %v4744
  %v4755 = vcombine.high %v4751, %v4751
  %v4757 = vunpack.c.l.s4 1966171168
  %v4758 = vunpack.c.0.s8 %v4757
  %v4759 = vlaneseq
  %v4760 = vshrl.u32 %v4759, 7
  %v4761 = vsub.s32 %v4758, %v4760
  %v4762 = vrot.slane %v4397, %v4761
  %v4763 = vcombine.high %v4762, %v4762
  %v4765 = vunpack.c.l.s4 1966171168
  %v4766 = vunpack.c.0.s8 %v4765
  %v4767 = vlaneseq
  %v4768 = vshrl.u32 %v4767, 7
  %v4769 = vsub.s32 %v4766, %v4768
  %v4770 = vrot.slane %v4762, %v4769
  %v4772 = vunpack.c.l.s4 1966171168
  %v4773 = vunpack.c.0.s8 %v4772
  %v4774 = vlaneseq
  %v4775 = vshrl.u32 %v4774, 7
  %v4776 = vsub.s32 %v4773, %v4775
  %v4777 = vrot.slane %v4763, %v4776
  %v4778 = vcombine.high %v4399, %v4399
  %v4780 = vunpack.c.l.s4 1966171168
  %v4781 = vunpack.c.0.s8 %v4780
  %v4782 = vlaneseq
  %v4783 = vshrl.u32 %v4782, 7
  %v4784 = vsub.s32 %v4781, %v4783
  %v4785 = vrot.slane %v4399, %v4784
  %v4787 = vunpack.c.l.s4 1966171168
  %v4788 = vunpack.c.0.s8 %v4787
  %v4789 = vlaneseq
  %v4790 = vshrl.u32 %v4789, 7
  %v4791 = vsub.s32 %v4788, %v4790
  %v4792 = vrot.slane %v4778, %v4791
  %v4793 = vcombine.high %v4785, %v4785
  %v4794 = vcombine.high %v4792, %v4792
  %v4796 = vunpack.c.l.s4 1966171168
  %v4797 = vunpack.c.0.s8 %v4796
  %v4798 = vlaneseq
  %v4799 = vshrl.u32 %v4798, 7
  %v4800 = vsub.s32 %v4797, %v4799
  %v4801 = vrot.slane %v4785, %v4800
  %v4803 = vunpack.c.l.s4 1966171168
  %v4804 = vunpack.c.0.s8 %v4803
  %v4805 = vlaneseq
  %v4806 = vshrl.u32 %v4805, 7
  %v4807 = vsub.s32 %v4804, %v4806
  %v4808 = vrot.slane %v4792, %v4807
  %v4810 = vunpack.c.l.s4 1966171168
  %v4811 = vunpack.c.0.s8 %v4810
  %v4812 = vlaneseq
  %v4813 = vshrl.u32 %v4812, 7
  %v4814 = vsub.s32 %v4811, %v4813
  %v4815 = vrot.slane %v4793, %v4814
  %v4817 = vunpack.c.l.s4 1966171168
  %v4818 = vunpack.c.0.s8 %v4817
  %v4819 = vlaneseq
  %v4820 = vshrl.u32 %v4819, 7
  %v4821 = vsub.s32 %v4818, %v4820
  %v4822 = vrot.slane %v4794, %v4821
  %v4823 = vcombine.high %v4801, %v4801
  %v4824 = vcombine.high %v4808, %v4808
  %v4825 = vcombine.high %v4815, %v4815
  %v4826 = vcombine.high %v4822, %v4822
  %v4828 = vunpack.c.l.s4 1966171168
  %v4829 = vunpack.c.0.s8 %v4828
  %v4830 = vlaneseq
  %v4831 = vshrl.u32 %v4830, 7
  %v4832 = vsub.s32 %v4829, %v4831
  %v4833 = vrot.slane %v4400, %v4832
  %v4834 = vcombine.high %v4833, %v4833
  %v4836 = vunpack.c.l.s4 1966171168
  %v4837 = vunpack.c.0.s8 %v4836
  %v4838 = vlaneseq
  %v4839 = vshrl.u32 %v4838, 7
  %v4840 = vsub.s32 %v4837, %v4839
  %v4841 = vrot.slane %v4833, %v4840
  %v4843 = vunpack.c.l.s4 1966171168
  %v4844 = vunpack.c.0.s8 %v4843
  %v4845 = vlaneseq
  %v4846 = vshrl.u32 %v4845, 7
  %v4847 = vsub.s32 %v4844, %v4846
  %v4848 = vrot.slane %v4834, %v4847
  %v4849 = vcombine.high %v4402, %v4402
  %v4851 = vunpack.c.l.s4 1966171168
  %v4852 = vunpack.c.0.s8 %v4851
  %v4853 = vlaneseq
  %v4854 = vshrl.u32 %v4853, 7
  %v4855 = vsub.s32 %v4852, %v4854
  %v4856 = vrot.slane %v4402, %v4855
  %v4858 = vunpack.c.l.s4 1966171168
  %v4859 = vunpack.c.0.s8 %v4858
  %v4860 = vlaneseq
  %v4861 = vshrl.u32 %v4860, 7
  %v4862 = vsub.s32 %v4859, %v4861
  %v4863 = vrot.slane %v4849, %v4862
  %v4864 = vcombine.high %v4856, %v4856
  %v4865 = vcombine.high %v4863, %v4863
  %v4867 = vunpack.c.l.s4 1966171168
  %v4868 = vunpack.c.0.s8 %v4867
  %v4869 = vlaneseq
  %v4870 = vshrl.u32 %v4869, 7
  %v4871 = vsub.s32 %v4868, %v4870
  %v4872 = vrot.slane %v4856, %v4871
  %v4874 = vunpack.c.l.s4 1966171168
  %v4875 = vunpack.c.0.s8 %v4874
  %v4876 = vlaneseq
  %v4877 = vshrl.u32 %v4876, 7
  %v4878 = vsub.s32 %v4875, %v4877
  %v4879 = vrot.slane %v4863, %v4878
  %v4881 = vunpack.c.l.s4 1966171168
  %v4882 = vunpack.c.0.s8 %v4881
  %v4883 = vlaneseq
  %v4884 = vshrl.u32 %v4883, 7
  %v4885 = vsub.s32 %v4882, %v4884
  %v4886 = vrot.slane %v4864, %v4885
  %v4888 = vunpack.c.l.s4 1966171168
  %v4889 = vunpack.c.0.s8 %v4888
  %v4890 = vlaneseq
  %v4891 = vshrl.u32 %v4890, 7
  %v4892 = vsub.s32 %v4889, %v4891
  %v4893 = vrot.slane %v4865, %v4892
  %v4894 = vcombine.high %v4872, %v4872
  %v4895 = vcombine.high %v4879, %v4879
  %v4896 = vcombine.high %v4886, %v4886
  %v4897 = vcombine.high %v4893, %v4893
  %v4899 = vunpack.c.l.s4 1966171168
  %v4900 = vunpack.c.0.s8 %v4899
  %v4901 = vlaneseq
  %v4902 = vshrl.u32 %v4901, 7
  %v4903 = vsub.s32 %v4900, %v4902
  %v4904 = vrot.slane %v4403, %v4903
  %v4905 = vcombine.high %v4904, %v4904
  %v4907 = vunpack.c.l.s4 1966171168
  %v4908 = vunpack.c.0.s8 %v4907
  %v4909 = vlaneseq
  %v4910 = vshrl.u32 %v4909, 7
  %v4911 = vsub.s32 %v4908, %v4910
  %v4912 = vrot.slane %v4904, %v4911
  %v4914 = vunpack.c.l.s4 1966171168
  %v4915 = vunpack.c.0.s8 %v4914
  %v4916 = vlaneseq
  %v4917 = vshrl.u32 %v4916, 7
  %v4918 = vsub.s32 %v4915, %v4917
  %v4919 = vrot.slane %v4905, %v4918
  %v4920 = vcombine.high %v4405, %v4405
  %v4922 = vunpack.c.l.s4 1966171168
  %v4923 = vunpack.c.0.s8 %v4922
  %v4924 = vlaneseq
  %v4925 = vshrl.u32 %v4924, 7
  %v4926 = vsub.s32 %v4923, %v4925
  %v4927 = vrot.slane %v4405, %v4926
  %v4929 = vunpack.c.l.s4 1966171168
  %v4930 = vunpack.c.0.s8 %v4929
  %v4931 = vlaneseq
  %v4932 = vshrl.u32 %v4931, 7
  %v4933 = vsub.s32 %v4930, %v4932
  %v4934 = vrot.slane %v4920, %v4933
  %v4935 = vcombine.high %v4927, %v4927
  %v4936 = vcombine.high %v4934, %v4934
  %v4938 = vunpack.c.l.s4 1966171168
  %v4939 = vunpack.c.0.s8 %v4938
  %v4940 = vlaneseq
  %v4941 = vshrl.u32 %v4940, 7
  %v4942 = vsub.s32 %v4939, %v4941
  %v4943 = vrot.slane %v4927, %v4942
  %v4945 = vunpack.c.l.s4 1966171168
  %v4946 = vunpack.c.0.s8 %v4945
  %v4947 = vlaneseq
  %v4948 = vshrl.u32 %v4947, 7
  %v4949 = vsub.s32 %v4946, %v4948
  %v4950 = vrot.slane %v4934, %v4949
  %v4952 = vunpack.c.l.s4 1966171168
  %v4953 = vunpack.c.0.s8 %v4952
  %v4954 = vlaneseq
  %v4955 = vshrl.u32 %v4954, 7
  %v4956 = vsub.s32 %v4953, %v4955
  %v4957 = vrot.slane %v4935, %v4956
  %v4959 = vunpack.c.l.s4 1966171168
  %v4960 = vunpack.c.0.s8 %v4959
  %v4961 = vlaneseq
  %v4962 = vshrl.u32 %v4961, 7
  %v4963 = vsub.s32 %v4960, %v4962
  %v4964 = vrot.slane %v4936, %v4963
  %v4965 = vcombine.high %v4943, %v4943
  %v4966 = vcombine.high %v4950, %v4950
  %v4967 = vcombine.high %v4957, %v4957
  %v4968 = vcombine.high %v4964, %v4964
  %v4970 = vunpack.c.l.s4 1966171168
  %v4971 = vunpack.c.0.s8 %v4970
  %v4972 = vlaneseq
  %v4973 = vshrl.u32 %v4972, 7
  %v4974 = vsub.s32 %v4971, %v4973
  %v4975 = vrot.slane %v4406, %v4974
  %v4976 = vcombine.high %v4975, %v4975
  %v4978 = vunpack.c.l.s4 1966171168
  %v4979 = vunpack.c.0.s8 %v4978
  %v4980 = vlaneseq
  %v4981 = vshrl.u32 %v4980, 7
  %v4982 = vsub.s32 %v4979, %v4981
  %v4983 = vrot.slane %v4975, %v4982
  %v4985 = vunpack.c.l.s4 1966171168
  %v4986 = vunpack.c.0.s8 %v4985
  %v4987 = vlaneseq
  %v4988 = vshrl.u32 %v4987, 7
  %v4989 = vsub.s32 %v4986, %v4988
  %v4990 = vrot.slane %v4976, %v4989
  %v4991 = vlaneseq
  %v4992 = vshrl.u32 %v4991, 7
  %v4993 = vsub.s32 0, %v4992
  %v4994 = vrot.slane %v4446, %v4993
  %v4995 = vlaneseq
  %v4996 = vshrl.u32 %v4995, 7
  %v4997 = vsub.s32 0, %v4996
  %v4998 = vrot.slane %v4460, %v4997
  %v4999 = vlaneseq
  %v5000 = vshrl.u32 %v4999, 7
  %v5001 = vsub.s32 0, %v5000
  %v5002 = vrot.slane %v4468, %v5001
  %v5003 = vlaneseq
  %v5004 = vshrl.u32 %v5003, 7
  %v5005 = vsub.s32 0, %v5004
  %v5006 = vrot.slane %v4470, %v5005
  %v5007 = vlaneseq
  %v5008 = vshrl.u32 %v5007, 7
  %v5009 = vsub.s32 0, %v5008
  %v5010 = vrot.slane %v4453, %v5009
  %v5011 = vlaneseq
  %v5012 = vshrl.u32 %v5011, 7
  %v5013 = vsub.s32 0, %v5012
  %v5014 = vrot.slane %v4467, %v5013
  %v5015 = vlaneseq
  %v5016 = vshrl.u32 %v5015, 7
  %v5017 = vsub.s32 0, %v5016
  %v5018 = vrot.slane %v4469, %v5017
  %v5019 = vlaneseq
  %v5020 = vshrl.u32 %v5019, 7
  %v5021 = vsub.s32 0, %v5020
  %v5022 = vrot.slane %v4471, %v5021
  %v5023 = vlaneseq
  %v5024 = vshrl.u32 %v5023, 7
  %v5025 = vsub.s32 0, %v5024
  %v5026 = vrot.slane %v4486, %v5025
  %v5027 = vlaneseq
  %v5028 = vshrl.u32 %v5027, 7
  %v5029 = vsub.s32 0, %v5028
  %v5030 = vrot.slane %v4493, %v5029
  %v5031 = vlaneseq
  %v5032 = vshrl.u32 %v5031, 7
  %v5033 = vsub.s32 0, %v5032
  %v5034 = vrot.slane %v4517, %v5033
  %v5035 = vlaneseq
  %v5036 = vshrl.u32 %v5035, 7
  %v5037 = vsub.s32 0, %v5036
  %v5038 = vrot.slane %v4531, %v5037
  %v5039 = vlaneseq
  %v5040 = vshrl.u32 %v5039, 7
  %v5041 = vsub.s32 0, %v5040
  %v5042 = vrot.slane %v4539, %v5041
  %v5043 = vlaneseq
  %v5044 = vshrl.u32 %v5043, 7
  %v5045 = vsub.s32 0, %v5044
  %v5046 = vrot.slane %v4541, %v5045
  %v5047 = vlaneseq
  %v5048 = vshrl.u32 %v5047, 7
  %v5049 = vsub.s32 0, %v5048
  %v5050 = vrot.slane %v4524, %v5049
  %v5051 = vlaneseq
  %v5052 = vshrl.u32 %v5051, 7
  %v5053 = vsub.s32 0, %v5052
  %v5054 = vrot.slane %v4538, %v5053
  %v5055 = vlaneseq
  %v5056 = vshrl.u32 %v5055, 7
  %v5057 = vsub.s32 0, %v5056
  %v5058 = vrot.slane %v4540, %v5057
  %v5059 = vlaneseq
  %v5060 = vshrl.u32 %v5059, 7
  %v5061 = vsub.s32 0, %v5060
  %v5062 = vrot.slane %v4542, %v5061
  %v5063 = vlaneseq
  %v5064 = vshrl.u32 %v5063, 7
  %v5065 = vsub.s32 0, %v5064
  %v5066 = vrot.slane %v4557, %v5065
  %v5067 = vlaneseq
  %v5068 = vshrl.u32 %v5067, 7
  %v5069 = vsub.s32 0, %v5068
  %v5070 = vrot.slane %v4564, %v5069
  %v5071 = vlaneseq
  %v5072 = vshrl.u32 %v5071, 7
  %v5073 = vsub.s32 0, %v5072
  %v5074 = vrot.slane %v4588, %v5073
  %v5075 = vlaneseq
  %v5076 = vshrl.u32 %v5075, 7
  %v5077 = vsub.s32 0, %v5076
  %v5078 = vrot.slane %v4602, %v5077
  %v5079 = vlaneseq
  %v5080 = vshrl.u32 %v5079, 7
  %v5081 = vsub.s32 0, %v5080
  %v5082 = vrot.slane %v4610, %v5081
  %v5083 = vlaneseq
  %v5084 = vshrl.u32 %v5083, 7
  %v5085 = vsub.s32 0, %v5084
  %v5086 = vrot.slane %v4612, %v5085
  %v5087 = vlaneseq
  %v5088 = vshrl.u32 %v5087, 7
  %v5089 = vsub.s32 0, %v5088
  %v5090 = vrot.slane %v4595, %v5089
  %v5091 = vlaneseq
  %v5092 = vshrl.u32 %v5091, 7
  %v5093 = vsub.s32 0, %v5092
  %v5094 = vrot.slane %v4609, %v5093
  %v5095 = vlaneseq
  %v5096 = vshrl.u32 %v5095, 7
  %v5097 = vsub.s32 0, %v5096
  %v5098 = vrot.slane %v4611, %v5097
  %v5099 = vlaneseq
  %v5100 = vshrl.u32 %v5099, 7
  %v5101 = vsub.s32 0, %v5100
  %v5102 = vrot.slane %v4613, %v5101
  %v5103 = vlaneseq
  %v5104 = vshrl.u32 %v5103, 7
  %v5105 = vsub.s32 0, %v5104
  %v5106 = vrot.slane %v4628, %v5105
  %v5107 = vlaneseq
  %v5108 = vshrl.u32 %v5107, 7
  %v5109 = vsub.s32 0, %v5108
  %v5110 = vrot.slane %v4635, %v5109
  %v5111 = vlaneseq
  %v5112 = vshrl.u32 %v5111, 7
  %v5113 = vsub.s32 0, %v5112
  %v5114 = vrot.slane %v4659, %v5113
  %v5115 = vlaneseq
  %v5116 = vshrl.u32 %v5115, 7
  %v5117 = vsub.s32 0, %v5116
  %v5118 = vrot.slane %v4673, %v5117
  %v5119 = vlaneseq
  %v5120 = vshrl.u32 %v5119, 7
  %v5121 = vsub.s32 0, %v5120
  %v5122 = vrot.slane %v4681, %v5121
  %v5123 = vlaneseq
  %v5124 = vshrl.u32 %v5123, 7
  %v5125 = vsub.s32 0, %v5124
  %v5126 = vrot.slane %v4683, %v5125
  %v5127 = vlaneseq
  %v5128 = vshrl.u32 %v5127, 7
  %v5129 = vsub.s32 0, %v5128
  %v5130 = vrot.slane %v4666, %v5129
  %v5131 = vlaneseq
  %v5132 = vshrl.u32 %v5131, 7
  %v5133 = vsub.s32 0, %v5132
  %v5134 = vrot.slane %v4680, %v5133
  %v5135 = vlaneseq
  %v5136 = vshrl.u32 %v5135, 7
  %v5137 = vsub.s32 0, %v5136
  %v5138 = vrot.slane %v4682, %v5137
  %v5139 = vlaneseq
  %v5140 = vshrl.u32 %v5139, 7
  %v5141 = vsub.s32 0, %v5140
  %v5142 = vrot.slane %v4684, %v5141
  %v5143 = vlaneseq
  %v5144 = vshrl.u32 %v5143, 7
  %v5145 = vsub.s32 0, %v5144
  %v5146 = vrot.slane %v4699, %v5145
  %v5147 = vlaneseq
  %v5148 = vshrl.u32 %v5147, 7
  %v5149 = vsub.s32 0, %v5148
  %v5150 = vrot.slane %v4706, %v5149
  %v5151 = vlaneseq
  %v5152 = vshrl.u32 %v5151, 7
  %v5153 = vsub.s32 0, %v5152
  %v5154 = vrot.slane %v4730, %v5153
  %v5155 = vlaneseq
  %v5156 = vshrl.u32 %v5155, 7
  %v5157 = vsub.s32 0, %v5156
  %v5158 = vrot.slane %v4744, %v5157
  %v5159 = vlaneseq
  %v5160 = vshrl.u32 %v5159, 7
  %v5161 = vsub.s32 0, %v5160
  %v5162 = vrot.slane %v4752, %v5161
  %v5163 = vlaneseq
  %v5164 = vshrl.u32 %v5163, 7
  %v5165 = vsub.s32 0, %v5164
  %v5166 = vrot.slane %v4754, %v5165
  %v5167 = vlaneseq
  %v5168 = vshrl.u32 %v5167, 7
  %v5169 = vsub.s32 0, %v5168
  %v5170 = vrot.slane %v4737, %v5169
  %v5171 = vlaneseq
  %v5172 = vshrl.u32 %v5171, 7
  %v5173 = vsub.s32 0, %v5172
  %v5174 = vrot.slane %v4751, %v5173
  %v5175 = vlaneseq
  %v5176 = vshrl.u32 %v5175, 7
  %v5177 = vsub.s32 0, %v5176
  %v5178 = vrot.slane %v4753, %v5177
  %v5179 = vlaneseq
  %v5180 = vshrl.u32 %v5179, 7
  %v5181 = vsub.s32 0, %v5180
  %v5182 = vrot.slane %v4755, %v5181
  %v5183 = vlaneseq
  %v5184 = vshrl.u32 %v5183, 7
  %v5185 = vsub.s32 0, %v5184
  %v5186 = vrot.slane %v4770, %v5185
  %v5187 = vlaneseq
  %v5188 = vshrl.u32 %v5187, 7
  %v5189 = vsub.s32 0, %v5188
  %v5190 = vrot.slane %v4777, %v5189
  %v5191 = vlaneseq
  %v5192 = vshrl.u32 %v5191, 7
  %v5193 = vsub.s32 0, %v5192
  %v5194 = vrot.slane %v4801, %v5193
  %v5195 = vlaneseq
  %v5196 = vshrl.u32 %v5195, 7
  %v5197 = vsub.s32 0, %v5196
  %v5198 = vrot.slane %v4815, %v5197
  %v5199 = vlaneseq
  %v5200 = vshrl.u32 %v5199, 7
  %v5201 = vsub.s32 0, %v5200
  %v5202 = vrot.slane %v4823, %v5201
  %v5203 = vlaneseq
  %v5204 = vshrl.u32 %v5203, 7
  %v5205 = vsub.s32 0, %v5204
  %v5206 = vrot.slane %v4825, %v5205
  %v5207 = vlaneseq
  %v5208 = vshrl.u32 %v5207, 7
  %v5209 = vsub.s32 0, %v5208
  %v5210 = vrot.slane %v4808, %v5209
  %v5211 = vlaneseq
  %v5212 = vshrl.u32 %v5211, 7
  %v5213 = vsub.s32 0, %v5212
  %v5214 = vrot.slane %v4822, %v5213
  %v5215 = vlaneseq
  %v5216 = vshrl.u32 %v5215, 7
  %v5217 = vsub.s32 0, %v5216
  %v5218 = vrot.slane %v4824, %v5217
  %v5219 = vlaneseq
  %v5220 = vshrl.u32 %v5219, 7
  %v5221 = vsub.s32 0, %v5220
  %v5222 = vrot.slane %v4826, %v5221
  %v5223 = vlaneseq
  %v5224 = vshrl.u32 %v5223, 7
  %v5225 = vsub.s32 0, %v5224
  %v5226 = vrot.slane %v4841, %v5225
  %v5227 = vlaneseq
  %v5228 = vshrl.u32 %v5227, 7
  %v5229 = vsub.s32 0, %v5228
  %v5230 = vrot.slane %v4848, %v5229
  %v5231 = vlaneseq
  %v5232 = vshrl.u32 %v5231, 7
  %v5233 = vsub.s32 0, %v5232
  %v5234 = vrot.slane %v4872, %v5233
  %v5235 = vlaneseq
  %v5236 = vshrl.u32 %v5235, 7
  %v5237 = vsub.s32 0, %v5236
  %v5238 = vrot.slane %v4886, %v5237
  %v5239 = vlaneseq
  %v5240 = vshrl.u32 %v5239, 7
  %v5241 = vsub.s32 0, %v5240
  %v5242 = vrot.slane %v4894, %v5241
  %v5243 = vlaneseq
  %v5244 = vshrl.u32 %v5243, 7
  %v5245 = vsub.s32 0, %v5244
  %v5246 = vrot.slane %v4896, %v5245
  %v5247 = vlaneseq
  %v5248 = vshrl.u32 %v5247, 7
  %v5249 = vsub.s32 0, %v5248
  %v5250 = vrot.slane %v4879, %v5249
  %v5251 = vlaneseq
  %v5252 = vshrl.u32 %v5251, 7
  %v5253 = vsub.s32 0, %v5252
  %v5254 = vrot.slane %v4893, %v5253
  %v5255 = vlaneseq
  %v5256 = vshrl.u32 %v5255, 7
  %v5257 = vsub.s32 0, %v5256
  %v5258 = vrot.slane %v4895, %v5257
  %v5259 = vlaneseq
  %v5260 = vshrl.u32 %v5259, 7
  %v5261 = vsub.s32 0, %v5260
  %v5262 = vrot.slane %v4897, %v5261
  %v5263 = vlaneseq
  %v5264 = vshrl.u32 %v5263, 7
  %v5265 = vsub.s32 0, %v5264
  %v5266 = vrot.slane %v4912, %v5265
  %v5267 = vlaneseq
  %v5268 = vshrl.u32 %v5267, 7
  %v5269 = vsub.s32 0, %v5268
  %v5270 = vrot.slane %v4919, %v5269
  %v5271 = vlaneseq
  %v5272 = vshrl.u32 %v5271, 7
  %v5273 = vsub.s32 0, %v5272
  %v5274 = vrot.slane %v4943, %v5273
  %v5275 = vlaneseq
  %v5276 = vshrl.u32 %v5275, 7
  %v5277 = vsub.s32 0, %v5276
  %v5278 = vrot.slane %v4957, %v5277
  %v5279 = vlaneseq
  %v5280 = vshrl.u32 %v5279, 7
  %v5281 = vsub.s32 0, %v5280
  %v5282 = vrot.slane %v4965, %v5281
  %v5283 = vlaneseq
  %v5284 = vshrl.u32 %v5283, 7
  %v5285 = vsub.s32 0, %v5284
  %v5286 = vrot.slane %v4967, %v5285
  %v5287 = vlaneseq
  %v5288 = vshrl.u32 %v5287, 7
  %v5289 = vsub.s32 0, %v5288
  %v5290 = vrot.slane %v4950, %v5289
  %v5291 = vlaneseq
  %v5292 = vshrl.u32 %v5291, 7
  %v5293 = vsub.s32 0, %v5292
  %v5294 = vrot.slane %v4964, %v5293
  %v5295 = vlaneseq
  %v5296 = vshrl.u32 %v5295, 7
  %v5297 = vsub.s32 0, %v5296
  %v5298 = vrot.slane %v4966, %v5297
  %v5299 = vlaneseq
  %v5300 = vshrl.u32 %v5299, 7
  %v5301 = vsub.s32 0, %v5300
  %v5302 = vrot.slane %v4968, %v5301
  %v5303 = vlaneseq
  %v5304 = vshrl.u32 %v5303, 7
  %v5305 = vsub.s32 0, %v5304
  %v5306 = vrot.slane %v4983, %v5305
  %v5307 = vlaneseq
  %v5308 = vshrl.u32 %v5307, 7
  %v5309 = vsub.s32 0, %v5308
  %v5310 = vrot.slane %v4990, %v5309
  %v5391 = vmul.f32 %v4994, %v972
  %v5392 = vmul.f32 %v4994, %v977
  %v5393 = vmul.f32 %v4998, %v982
  %v5394 = vmul.f32 %v4998, %v987
  %v5395 = vmul.f32 %v5002, %v992
  %v5396 = vmul.f32 %v5002, %v997
  %v5397 = vmul.f32 %v5006, %v1002
  %v5398 = vmul.f32 %v5006, %v1007
  %v5399 = vmul.f32 %v5010, %v1012
  %v5400 = vmul.f32 %v5010, %v1017
  %v5401 = vmul.f32 %v5014, %v1022
  %v5402 = vmul.f32 %v5014, %v1027
  %v5403 = vmul.f32 %v5018, %v1032
  %v5404 = vmul.f32 %v5018, %v1037
  %v5405 = vmul.f32 %v5022, %v1042
  %v5406 = vmul.f32 %v5022, %v1047
  %v5407 = vmul.f32 %v5026, %v1052
  %v5408 = vmul.f32 %v5026, %v1057
  %v5409 = vmul.f32 %v5030, %v1062
  %v5410 = vmul.f32 %v5030, %v1067
  %v5411 = vmul.f32 %v5034, %v1072
  %v5412 = vmul.f32 %v5034, %v1077
  %v5413 = vmul.f32 %v5038, %v1082
  %v5414 = vmul.f32 %v5038, %v1087
  %v5415 = vmul.f32 %v5042, %v1092
  %v5416 = vmul.f32 %v5042, %v1097
  %v5417 = vmul.f32 %v5046, %v1102
  %v5418 = vmul.f32 %v5046, %v1107
  %v5419 = vmul.f32 %v5050, %v1112
  %v5420 = vmul.f32 %v5050, %v1117
  %v5421 = vmul.f32 %v5054, %v1122
  %v5422 = vmul.f32 %v5054, %v1127
  %v5423 = vmul.f32 %v5058, %v1132
  %v5424 = vmul.f32 %v5058, %v1137
  %v5425 = vmul.f32 %v5062, %v1142
  %v5426 = vmul.f32 %v5062, %v1147
  %v5427 = vmul.f32 %v5066, %v1152
  %v5428 = vmul.f32 %v5066, %v1157
  %v5429 = vmul.f32 %v5070, %v1162
  %v5430 = vmul.f32 %v5070, %v1167
  %v5431 = vmul.f32 %v5074, %v1172
  %v5432 = vmul.f32 %v5074, %v1177
  %v5433 = vmul.f32 %v5078, %v1182
  %v5434 = vmul.f32 %v5078, %v1187
  %v5435 = vmul.f32 %v5082, %v1192
  %v5436 = vmul.f32 %v5082, %v1197
  %v5437 = vmul.f32 %v5086, %v1202
  %v5438 = vmul.f32 %v5086, %v1207
  %v5439 = vmul.f32 %v5090, %v1212
  %v5440 = vmul.f32 %v5090, %v1217
  %v5441 = vmul.f32 %v5094, %v1222
  %v5442 = vmul.f32 %v5094, %v1227
  %v5443 = vmul.f32 %v5098, %v1232
  %v5444 = vmul.f32 %v5098, %v1237
  %v5445 = vmul.f32 %v5102, %v1242
  %v5446 = vmul.f32 %v5102, %v1247
  %v5447 = vmul.f32 %v5106, %v1252
  %v5448 = vmul.f32 %v5106, %v1257
  %v5449 = vmul.f32 %v5110, %v1262
  %v5450 = vmul.f32 %v5110, %v1267
  %v5451 = vmul.f32 %v5114, %v1272
  %v5452 = vmul.f32 %v5114, %v1277
  %v5453 = vmul.f32 %v5118, %v1282
  %v5454 = vmul.f32 %v5118, %v1287
  %v5455 = vmul.f32 %v5122, %v1292
  %v5456 = vmul.f32 %v5122, %v1297
  %v5457 = vmul.f32 %v5126, %v1302
  %v5458 = vmul.f32 %v5126, %v1307
  %v5459 = vmul.f32 %v5130, %v1312
  %v5460 = vmul.f32 %v5130, %v1317
  %v5461 = vmul.f32 %v5134, %v1322
  %v5462 = vmul.f32 %v5134, %v1327
  %v5463 = vmul.f32 %v5138, %v1332
  %v5464 = vmul.f32 %v5138, %v1337
  %v5465 = vmul.f32 %v5142, %v1342
  %v5466 = vmul.f32 %v5142, %v1347
  %v5467 = vmul.f32 %v5146, %v1352
  %v5468 = vmul.f32 %v5146, %v1357
  %v5469 = vmul.f32 %v5150, %v1362
  %v5470 = vmul.f32 %v5150, %v1367
  %v5471 = vmul.f32 %v5154, %v1372
  %v5472 = vmul.f32 %v5154, %v1377
  %v5473 = vmul.f32 %v5158, %v1382
  %v5474 = vmul.f32 %v5158, %v1387
  %v5475 = vmul.f32 %v5162, %v1392
  %v5476 = vmul.f32 %v5162, %v1397
  %v5477 = vmul.f32 %v5166, %v1402
  %v5478 = vmul.f32 %v5166, %v1407
  %v5479 = vmul.f32 %v5170, %v1412
  %v5480 = vmul.f32 %v5170, %v1417
  %v5481 = vmul.f32 %v5174, %v1422
  %v5482 = vmul.f32 %v5174, %v1427
  %v5483 = vmul.f32 %v5178, %v1432
  %v5484 = vmul.f32 %v5178, %v1437
  %v5485 = vmul.f32 %v5182, %v1442
  %v5486 = vmul.f32 %v5182, %v1447
  %v5487 = vmul.f32 %v5186, %v1452
  %v5488 = vmul.f32 %v5186, %v1457
  %v5489 = vmul.f32 %v5190, %v1462
  %v5490 = vmul.f32 %v5190, %v1467
  %v5491 = vmul.f32 %v5194, %v1472
  %v5492 = vmul.f32 %v5194, %v1477
  %v5493 = vmul.f32 %v5198, %v1482
  %v5494 = vmul.f32 %v5198, %v1487
  %v5495 = vmul.f32 %v5202, %v1492
  %v5496 = vmul.f32 %v5202, %v1497
  %v5497 = vmul.f32 %v5206, %v1502
  %v5498 = vmul.f32 %v5206, %v1507
  %v5499 = vmul.f32 %v5210, %v1512
  %v5500 = vmul.f32 %v5210, %v1517
  %v5501 = vmul.f32 %v5214, %v1522
  %v5502 = vmul.f32 %v5214, %v1527
  %v5503 = vmul.f32 %v5218, %v1532
  %v5504 = vmul.f32 %v5218, %v1537
  %v5505 = vmul.f32 %v5222, %v1542
  %v5506 = vmul.f32 %v5222, %v1547
  %v5507 = vmul.f32 %v5226, %v1552
  %v5508 = vmul.f32 %v5226, %v1557
  %v5509 = vmul.f32 %v5230, %v1562
  %v5510 = vmul.f32 %v5230, %v1567
  %v5511 = vmul.f32 %v5234, %v1572
  %v5512 = vmul.f32 %v5234, %v1577
  %v5513 = vmul.f32 %v5238, %v1582
  %v5514 = vmul.f32 %v5238, %v1587
  %v5515 = vmul.f32 %v5242, %v1592
  %v5516 = vmul.f32 %v5242, %v1597
  %v5517 = vmul.f32 %v5246, %v1602
  %v5518 = vmul.f32 %v5246, %v1607
  %v5519 = vmul.f32 %v5250, %v1612
  %v5520 = vmul.f32 %v5250, %v1617
  %v5521 = vmul.f32 %v5254, %v1622
  %v5522 = vmul.f32 %v5254, %v1627
  %v5523 = vmul.f32 %v5258, %v1632
  %v5524 = vmul.f32 %v5258, %v1637
  %v5525 = vmul.f32 %v5262, %v1642
  %v5526 = vmul.f32 %v5262, %v1647
  %v5527 = vmul.f32 %v5266, %v1652
  %v5528 = vmul.f32 %v5266, %v1657
  %v5529 = vmul.f32 %v5270, %v1662
  %v5530 = vmul.f32 %v5270, %v1667
  %v5531 = vmul.f32 %v5274, %v1672
  %v5532 = vmul.f32 %v5274, %v1677
  %v5533 = vmul.f32 %v5278, %v1682
  %v5534 = vmul.f32 %v5278, %v1687
  %v5535 = vmul.f32 %v5282, %v1692
  %v5536 = vmul.f32 %v5282, %v1697
  %v5537 = vmul.f32 %v5286, %v1702
  %v5538 = vmul.f32 %v5286, %v1707
  %v5539 = vmul.f32 %v5290, %v1712
  %v5540 = vmul.f32 %v5290, %v1717
  %v5541 = vmul.f32 %v5294, %v1722
  %v5542 = vmul.f32 %v5294, %v1727
  %v5543 = vmul.f32 %v5298, %v1732
  %v5544 = vmul.f32 %v5298, %v1737
  %v5545 = vmul.f32 %v5302, %v1742
  %v5546 = vmul.f32 %v5302, %v1747
  %v5547 = vmul.f32 %v5306, %v1752
  %v5548 = vmul.f32 %v5306, %v1757
  %v5549 = vmul.f32 %v5310, %v1762
  %v5550 = vmul.f32 %v5310, %v1767
  %v5551 = vsel %vm2636, %v5391, 0.0
  %v5552 = vsel %vm2636, %v5411, 0.0
  %v5553 = vadd.f32 %v5551, %v5552
  %v5554 = vsel %vm2636, %v5431, 0.0
  %v5555 = vadd.f32 %v5553, %v5554
  %v5556 = vsel %vm2636, %v5451, 0.0
  %v5557 = vadd.f32 %v5555, %v5556
  %v5558 = vsel %vm2636, %v5471, 0.0
  %v5559 = vadd.f32 %v5557, %v5558
  %v5560 = vsel %vm2636, %v5491, 0.0
  %v5561 = vadd.f32 %v5559, %v5560
  %v5562 = vsel %vm2636, %v5511, 0.0
  %v5563 = vadd.f32 %v5561, %v5562
  %v5564 = vsel %vm2636, %v5531, 0.0
  %v5565 = vadd.f32 %v5563, %v5564
  %v5566 = vsel %vm2636, %v5392, 0.0
  %v5567 = vsel %vm2636, %v5412, 0.0
  %v5568 = vadd.f32 %v5566, %v5567
  %v5569 = vsel %vm2636, %v5432, 0.0
  %v5570 = vadd.f32 %v5568, %v5569
  %v5571 = vsel %vm2636, %v5452, 0.0
  %v5572 = vadd.f32 %v5570, %v5571
  %v5573 = vsel %vm2636, %v5472, 0.0
  %v5574 = vadd.f32 %v5572, %v5573
  %v5575 = vsel %vm2636, %v5492, 0.0
  %v5576 = vadd.f32 %v5574, %v5575
  %v5577 = vsel %vm2636, %v5512, 0.0
  %v5578 = vadd.f32 %v5576, %v5577
  %v5579 = vsel %vm2636, %v5532, 0.0
  %v5580 = vadd.f32 %v5578, %v5579
  %v5581 = vsel %vm2636, %v5393, 0.0
  %v5582 = vsel %vm2636, %v5413, 0.0
  %v5583 = vadd.f32 %v5581, %v5582
  %v5584 = vsel %vm2636, %v5433, 0.0
  %v5585 = vadd.f32 %v5583, %v5584
  %v5586 = vsel %vm2636, %v5453, 0.0
  %v5587 = vadd.f32 %v5585, %v5586
  %v5588 = vsel %vm2636, %v5473, 0.0
  %v5589 = vadd.f32 %v5587, %v5588
  %v5590 = vsel %vm2636, %v5493, 0.0
  %v5591 = vadd.f32 %v5589, %v5590
  %v5592 = vsel %vm2636, %v5513, 0.0
  %v5593 = vadd.f32 %v5591, %v5592
  %v5594 = vsel %vm2636, %v5533, 0.0
  %v5595 = vadd.f32 %v5593, %v5594
  %v5596 = vsel %vm2636, %v5394, 0.0
  %v5597 = vsel %vm2636, %v5414, 0.0
  %v5598 = vadd.f32 %v5596, %v5597
  %v5599 = vsel %vm2636, %v5434, 0.0
  %v5600 = vadd.f32 %v5598, %v5599
  %v5601 = vsel %vm2636, %v5454, 0.0
  %v5602 = vadd.f32 %v5600, %v5601
  %v5603 = vsel %vm2636, %v5474, 0.0
  %v5604 = vadd.f32 %v5602, %v5603
  %v5605 = vsel %vm2636, %v5494, 0.0
  %v5606 = vadd.f32 %v5604, %v5605
  %v5607 = vsel %vm2636, %v5514, 0.0
  %v5608 = vadd.f32 %v5606, %v5607
  %v5609 = vsel %vm2636, %v5534, 0.0
  %v5610 = vadd.f32 %v5608, %v5609
  %v5611 = vsel %vm2636, %v5395, 0.0
  %v5612 = vsel %vm2636, %v5415, 0.0
  %v5613 = vadd.f32 %v5611, %v5612
  %v5614 = vsel %vm2636, %v5435, 0.0
  %v5615 = vadd.f32 %v5613, %v5614
  %v5616 = vsel %vm2636, %v5455, 0.0
  %v5617 = vadd.f32 %v5615, %v5616
  %v5618 = vsel %vm2636, %v5475, 0.0
  %v5619 = vadd.f32 %v5617, %v5618
  %v5620 = vsel %vm2636, %v5495, 0.0
  %v5621 = vadd.f32 %v5619, %v5620
  %v5622 = vsel %vm2636, %v5515, 0.0
  %v5623 = vadd.f32 %v5621, %v5622
  %v5624 = vsel %vm2636, %v5535, 0.0
  %v5625 = vadd.f32 %v5623, %v5624
  %v5626 = vsel %vm2636, %v5396, 0.0
  %v5627 = vsel %vm2636, %v5416, 0.0
  %v5628 = vadd.f32 %v5626, %v5627
  %v5629 = vsel %vm2636, %v5436, 0.0
  %v5630 = vadd.f32 %v5628, %v5629
  %v5631 = vsel %vm2636, %v5456, 0.0
  %v5632 = vadd.f32 %v5630, %v5631
  %v5633 = vsel %vm2636, %v5476, 0.0
  %v5634 = vadd.f32 %v5632, %v5633
  %v5635 = vsel %vm2636, %v5496, 0.0
  %v5636 = vadd.f32 %v5634, %v5635
  %v5637 = vsel %vm2636, %v5516, 0.0
  %v5638 = vadd.f32 %v5636, %v5637
  %v5639 = vsel %vm2636, %v5536, 0.0
  %v5640 = vadd.f32 %v5638, %v5639
  %v5641 = vsel %vm2636, %v5397, 0.0
  %v5642 = vsel %vm2636, %v5417, 0.0
  %v5643 = vadd.f32 %v5641, %v5642
  %v5644 = vsel %vm2636, %v5437, 0.0
  %v5645 = vadd.f32 %v5643, %v5644
  %v5646 = vsel %vm2636, %v5457, 0.0
  %v5647 = vadd.f32 %v5645, %v5646
  %v5648 = vsel %vm2636, %v5477, 0.0
  %v5649 = vadd.f32 %v5647, %v5648
  %v5650 = vsel %vm2636, %v5497, 0.0
  %v5651 = vadd.f32 %v5649, %v5650
  %v5652 = vsel %vm2636, %v5517, 0.0
  %v5653 = vadd.f32 %v5651, %v5652
  %v5654 = vsel %vm2636, %v5537, 0.0
  %v5655 = vadd.f32 %v5653, %v5654
  %v5656 = vsel %vm2636, %v5398, 0.0
  %v5657 = vsel %vm2636, %v5418, 0.0
  %v5658 = vadd.f32 %v5656, %v5657
  %v5659 = vsel %vm2636, %v5438, 0.0
  %v5660 = vadd.f32 %v5658, %v5659
  %v5661 = vsel %vm2636, %v5458, 0.0
  %v5662 = vadd.f32 %v5660, %v5661
  %v5663 = vsel %vm2636, %v5478, 0.0
  %v5664 = vadd.f32 %v5662, %v5663
  %v5665 = vsel %vm2636, %v5498, 0.0
  %v5666 = vadd.f32 %v5664, %v5665
  %v5667 = vsel %vm2636, %v5518, 0.0
  %v5668 = vadd.f32 %v5666, %v5667
  %v5669 = vsel %vm2636, %v5538, 0.0
  %v5670 = vadd.f32 %v5668, %v5669
  %v5671 = vsel %vm2636, %v5399, 0.0
  %v5672 = vsel %vm2636, %v5419, 0.0
  %v5673 = vadd.f32 %v5671, %v5672
  %v5674 = vsel %vm2636, %v5439, 0.0
  %v5675 = vadd.f32 %v5673, %v5674
  %v5676 = vsel %vm2636, %v5459, 0.0
  %v5677 = vadd.f32 %v5675, %v5676
  %v5678 = vsel %vm2636, %v5479, 0.0
  %v5679 = vadd.f32 %v5677, %v5678
  %v5680 = vsel %vm2636, %v5499, 0.0
  %v5681 = vadd.f32 %v5679, %v5680
  %v5682 = vsel %vm2636, %v5519, 0.0
  %v5683 = vadd.f32 %v5681, %v5682
  %v5684 = vsel %vm2636, %v5539, 0.0
  %v5685 = vadd.f32 %v5683, %v5684
  %v5686 = vsel %vm2636, %v5400, 0.0
  %v5687 = vsel %vm2636, %v5420, 0.0
  %v5688 = vadd.f32 %v5686, %v5687
  %v5689 = vsel %vm2636, %v5440, 0.0
  %v5690 = vadd.f32 %v5688, %v5689
  %v5691 = vsel %vm2636, %v5460, 0.0
  %v5692 = vadd.f32 %v5690, %v5691
  %v5693 = vsel %vm2636, %v5480, 0.0
  %v5694 = vadd.f32 %v5692, %v5693
  %v5695 = vsel %vm2636, %v5500, 0.0
  %v5696 = vadd.f32 %v5694, %v5695
  %v5697 = vsel %vm2636, %v5520, 0.0
  %v5698 = vadd.f32 %v5696, %v5697
  %v5699 = vsel %vm2636, %v5540, 0.0
  %v5700 = vadd.f32 %v5698, %v5699
  %v5701 = vsel %vm2636, %v5401, 0.0
  %v5702 = vsel %vm2636, %v5421, 0.0
  %v5703 = vadd.f32 %v5701, %v5702
  %v5704 = vsel %vm2636, %v5441, 0.0
  %v5705 = vadd.f32 %v5703, %v5704
  %v5706 = vsel %vm2636, %v5461, 0.0
  %v5707 = vadd.f32 %v5705, %v5706
  %v5708 = vsel %vm2636, %v5481, 0.0
  %v5709 = vadd.f32 %v5707, %v5708
  %v5710 = vsel %vm2636, %v5501, 0.0
  %v5711 = vadd.f32 %v5709, %v5710
  %v5712 = vsel %vm2636, %v5521, 0.0
  %v5713 = vadd.f32 %v5711, %v5712
  %v5714 = vsel %vm2636, %v5541, 0.0
  %v5715 = vadd.f32 %v5713, %v5714
  %v5716 = vsel %vm2636, %v5402, 0.0
  %v5717 = vsel %vm2636, %v5422, 0.0
  %v5718 = vadd.f32 %v5716, %v5717
  %v5719 = vsel %vm2636, %v5442, 0.0
  %v5720 = vadd.f32 %v5718, %v5719
  %v5721 = vsel %vm2636, %v5462, 0.0
  %v5722 = vadd.f32 %v5720, %v5721
  %v5723 = vsel %vm2636, %v5482, 0.0
  %v5724 = vadd.f32 %v5722, %v5723
  %v5725 = vsel %vm2636, %v5502, 0.0
  %v5726 = vadd.f32 %v5724, %v5725
  %v5727 = vsel %vm2636, %v5522, 0.0
  %v5728 = vadd.f32 %v5726, %v5727
  %v5729 = vsel %vm2636, %v5542, 0.0
  %v5730 = vadd.f32 %v5728, %v5729
  %v5731 = vsel %vm2636, %v5403, 0.0
  %v5732 = vsel %vm2636, %v5423, 0.0
  %v5733 = vadd.f32 %v5731, %v5732
  %v5734 = vsel %vm2636, %v5443, 0.0
  %v5735 = vadd.f32 %v5733, %v5734
  %v5736 = vsel %vm2636, %v5463, 0.0
  %v5737 = vadd.f32 %v5735, %v5736
  %v5738 = vsel %vm2636, %v5483, 0.0
  %v5739 = vadd.f32 %v5737, %v5738
  %v5740 = vsel %vm2636, %v5503, 0.0
  %v5741 = vadd.f32 %v5739, %v5740
  %v5742 = vsel %vm2636, %v5523, 0.0
  %v5743 = vadd.f32 %v5741, %v5742
  %v5744 = vsel %vm2636, %v5543, 0.0
  %v5745 = vadd.f32 %v5743, %v5744
  %v5746 = vsel %vm2636, %v5404, 0.0
  %v5747 = vsel %vm2636, %v5424, 0.0
  %v5748 = vadd.f32 %v5746, %v5747
  %v5749 = vsel %vm2636, %v5444, 0.0
  %v5750 = vadd.f32 %v5748, %v5749
  %v5751 = vsel %vm2636, %v5464, 0.0
  %v5752 = vadd.f32 %v5750, %v5751
  %v5753 = vsel %vm2636, %v5484, 0.0
  %v5754 = vadd.f32 %v5752, %v5753
  %v5755 = vsel %vm2636, %v5504, 0.0
  %v5756 = vadd.f32 %v5754, %v5755
  %v5757 = vsel %vm2636, %v5524, 0.0
  %v5758 = vadd.f32 %v5756, %v5757
  %v5759 = vsel %vm2636, %v5544, 0.0
  %v5760 = vadd.f32 %v5758, %v5759
  %v5761 = vsel %vm2636, %v5405, 0.0
  %v5762 = vsel %vm2636, %v5425, 0.0
  %v5763 = vadd.f32 %v5761, %v5762
  %v5764 = vsel %vm2636, %v5445, 0.0
  %v5765 = vadd.f32 %v5763, %v5764
  %v5766 = vsel %vm2636, %v5465, 0.0
  %v5767 = vadd.f32 %v5765, %v5766
  %v5768 = vsel %vm2636, %v5485, 0.0
  %v5769 = vadd.f32 %v5767, %v5768
  %v5770 = vsel %vm2636, %v5505, 0.0
  %v5771 = vadd.f32 %v5769, %v5770
  %v5772 = vsel %vm2636, %v5525, 0.0
  %v5773 = vadd.f32 %v5771, %v5772
  %v5774 = vsel %vm2636, %v5545, 0.0
  %v5775 = vadd.f32 %v5773, %v5774
  %v5776 = vsel %vm2636, %v5406, 0.0
  %v5777 = vsel %vm2636, %v5426, 0.0
  %v5778 = vadd.f32 %v5776, %v5777
  %v5779 = vsel %vm2636, %v5446, 0.0
  %v5780 = vadd.f32 %v5778, %v5779
  %v5781 = vsel %vm2636, %v5466, 0.0
  %v5782 = vadd.f32 %v5780, %v5781
  %v5783 = vsel %vm2636, %v5486, 0.0
  %v5784 = vadd.f32 %v5782, %v5783
  %v5785 = vsel %vm2636, %v5506, 0.0
  %v5786 = vadd.f32 %v5784, %v5785
  %v5787 = vsel %vm2636, %v5526, 0.0
  %v5788 = vadd.f32 %v5786, %v5787
  %v5789 = vsel %vm2636, %v5546, 0.0
  %v5790 = vadd.f32 %v5788, %v5789
  %v5791 = vsel %vm2636, %v5407, 0.0
  %v5792 = vsel %vm2636, %v5427, 0.0
  %v5793 = vadd.f32 %v5791, %v5792
  %v5794 = vsel %vm2636, %v5447, 0.0
  %v5795 = vadd.f32 %v5793, %v5794
  %v5796 = vsel %vm2636, %v5467, 0.0
  %v5797 = vadd.f32 %v5795, %v5796
  %v5798 = vsel %vm2636, %v5487, 0.0
  %v5799 = vadd.f32 %v5797, %v5798
  %v5800 = vsel %vm2636, %v5507, 0.0
  %v5801 = vadd.f32 %v5799, %v5800
  %v5802 = vsel %vm2636, %v5527, 0.0
  %v5803 = vadd.f32 %v5801, %v5802
  %v5804 = vsel %vm2636, %v5547, 0.0
  %v5805 = vadd.f32 %v5803, %v5804
  %v5806 = vsel %vm2636, %v5408, 0.0
  %v5807 = vsel %vm2636, %v5428, 0.0
  %v5808 = vadd.f32 %v5806, %v5807
  %v5809 = vsel %vm2636, %v5448, 0.0
  %v5810 = vadd.f32 %v5808, %v5809
  %v5811 = vsel %vm2636, %v5468, 0.0
  %v5812 = vadd.f32 %v5810, %v5811
  %v5813 = vsel %vm2636, %v5488, 0.0
  %v5814 = vadd.f32 %v5812, %v5813
  %v5815 = vsel %vm2636, %v5508, 0.0
  %v5816 = vadd.f32 %v5814, %v5815
  %v5817 = vsel %vm2636, %v5528, 0.0
  %v5818 = vadd.f32 %v5816, %v5817
  %v5819 = vsel %vm2636, %v5548, 0.0
  %v5820 = vadd.f32 %v5818, %v5819
  %v5821 = vsel %vm2636, %v5409, 0.0
  %v5822 = vsel %vm2636, %v5429, 0.0
  %v5823 = vadd.f32 %v5821, %v5822
  %v5824 = vsel %vm2636, %v5449, 0.0
  %v5825 = vadd.f32 %v5823, %v5824
  %v5826 = vsel %vm2636, %v5469, 0.0
  %v5827 = vadd.f32 %v5825, %v5826
  %v5828 = vsel %vm2636, %v5489, 0.0
  %v5829 = vadd.f32 %v5827, %v5828
  %v5830 = vsel %vm2636, %v5509, 0.0
  %v5831 = vadd.f32 %v5829, %v5830
  %v5832 = vsel %vm2636, %v5529, 0.0
  %v5833 = vadd.f32 %v5831, %v5832
  %v5834 = vsel %vm2636, %v5549, 0.0
  %v5835 = vadd.f32 %v5833, %v5834
  %v5836 = vsel %vm2636, %v5410, 0.0
  %v5837 = vsel %vm2636, %v5430, 0.0
  %v5838 = vadd.f32 %v5836, %v5837
  %v5839 = vsel %vm2636, %v5450, 0.0
  %v5840 = vadd.f32 %v5838, %v5839
  %v5841 = vsel %vm2636, %v5470, 0.0
  %v5842 = vadd.f32 %v5840, %v5841
  %v5843 = vsel %vm2636, %v5490, 0.0
  %v5844 = vadd.f32 %v5842, %v5843
  %v5845 = vsel %vm2636, %v5510, 0.0
  %v5846 = vadd.f32 %v5844, %v5845
  %v5847 = vsel %vm2636, %v5530, 0.0
  %v5848 = vadd.f32 %v5846, %v5847
  %v5849 = vsel %vm2636, %v5550, 0.0
  %v5850 = vadd.f32 %v5848, %v5849
  %v5851 = vmul.f32 %v5565, %v5565
  %v5852 = vmul.f32 %v5580, %v5580
  %v5853 = vmul.f32 %v5595, %v5595
  %v5854 = vmul.f32 %v5610, %v5610
  %v5855 = vmul.f32 %v5625, %v5625
  %v5856 = vmul.f32 %v5640, %v5640
  %v5857 = vmul.f32 %v5655, %v5655
  %v5858 = vmul.f32 %v5670, %v5670
  %v5859 = vmul.f32 %v5685, %v5685
  %v5860 = vmul.f32 %v5700, %v5700
  %v5861 = vmul.f32 %v5715, %v5715
  %v5862 = vmul.f32 %v5730, %v5730
  %v5863 = vmul.f32 %v5745, %v5745
  %v5864 = vmul.f32 %v5760, %v5760
  %v5865 = vmul.f32 %v5775, %v5775
  %v5866 = vmul.f32 %v5790, %v5790
  %v5867 = vmul.f32 %v5805, %v5805
  %v5868 = vmul.f32 %v5820, %v5820
  %v5869 = vmul.f32 %v5835, %v5835
  %v5870 = vmul.f32 %v5850, %v5850
  %v5871 = vsel %vm2636, %v5851, 0.0
  %v5872 = vsel %vm2636, %v5852, 0.0
  %v5873 = vadd.f32 %v5871, %v5872
  %v5874 = vrot.slane %v5873, 4
  %v5875 = vadd.f32 %v5873, %v5874
  %v5876 = vrot.slane %v5875, 2
  %v5877 = vadd.f32 %v5875, %v5876
  %v5878 = vrot.slane %v5877, 1
  %v5879 = vadd.f32 %v5877, %v5878
  %v5880 = vsel %vm2636, %v5853, 0.0
  %v5881 = vsel %vm2636, %v5854, 0.0
  %v5882 = vadd.f32 %v5880, %v5881
  %v5883 = vrot.slane %v5882, 4
  %v5884 = vadd.f32 %v5882, %v5883
  %v5885 = vrot.slane %v5884, 2
  %v5886 = vadd.f32 %v5884, %v5885
  %v5887 = vrot.slane %v5886, 1
  %v5888 = vadd.f32 %v5886, %v5887
  %v5889 = vsel %vm2636, %v5855, 0.0
  %v5890 = vsel %vm2636, %v5856, 0.0
  %v5891 = vadd.f32 %v5889, %v5890
  %v5892 = vrot.slane %v5891, 4
  %v5893 = vadd.f32 %v5891, %v5892
  %v5894 = vrot.slane %v5893, 2
  %v5895 = vadd.f32 %v5893, %v5894
  %v5896 = vrot.slane %v5895, 1
  %v5897 = vadd.f32 %v5895, %v5896
  %v5898 = vsel %vm2636, %v5857, 0.0
  %v5899 = vsel %vm2636, %v5858, 0.0
  %v5900 = vadd.f32 %v5898, %v5899
  %v5901 = vrot.slane %v5900, 4
  %v5902 = vadd.f32 %v5900, %v5901
  %v5903 = vrot.slane %v5902, 2
  %v5904 = vadd.f32 %v5902, %v5903
  %v5905 = vrot.slane %v5904, 1
  %v5906 = vadd.f32 %v5904, %v5905
  %v5907 = vsel %vm2636, %v5859, 0.0
  %v5908 = vsel %vm2636, %v5860, 0.0
  %v5909 = vadd.f32 %v5907, %v5908
  %v5910 = vrot.slane %v5909, 4
  %v5911 = vadd.f32 %v5909, %v5910
  %v5912 = vrot.slane %v5911, 2
  %v5913 = vadd.f32 %v5911, %v5912
  %v5914 = vrot.slane %v5913, 1
  %v5915 = vadd.f32 %v5913, %v5914
  %v5916 = vsel %vm2636, %v5861, 0.0
  %v5917 = vsel %vm2636, %v5862, 0.0
  %v5918 = vadd.f32 %v5916, %v5917
  %v5919 = vrot.slane %v5918, 4
  %v5920 = vadd.f32 %v5918, %v5919
  %v5921 = vrot.slane %v5920, 2
  %v5922 = vadd.f32 %v5920, %v5921
  %v5923 = vrot.slane %v5922, 1
  %v5924 = vadd.f32 %v5922, %v5923
  %v5925 = vsel %vm2636, %v5863, 0.0
  %v5926 = vsel %vm2636, %v5864, 0.0
  %v5927 = vadd.f32 %v5925, %v5926
  %v5928 = vrot.slane %v5927, 4
  %v5929 = vadd.f32 %v5927, %v5928
  %v5930 = vrot.slane %v5929, 2
  %v5931 = vadd.f32 %v5929, %v5930
  %v5932 = vrot.slane %v5931, 1
  %v5933 = vadd.f32 %v5931, %v5932
  %v5934 = vsel %vm2636, %v5865, 0.0
  %v5935 = vsel %vm2636, %v5866, 0.0
  %v5936 = vadd.f32 %v5934, %v5935
  %v5937 = vrot.slane %v5936, 4
  %v5938 = vadd.f32 %v5936, %v5937
  %v5939 = vrot.slane %v5938, 2
  %v5940 = vadd.f32 %v5938, %v5939
  %v5941 = vrot.slane %v5940, 1
  %v5942 = vadd.f32 %v5940, %v5941
  %v5943 = vsel %vm2636, %v5867, 0.0
  %v5944 = vsel %vm2636, %v5868, 0.0
  %v5945 = vadd.f32 %v5943, %v5944
  %v5946 = vrot.slane %v5945, 4
  %v5947 = vadd.f32 %v5945, %v5946
  %v5948 = vrot.slane %v5947, 2
  %v5949 = vadd.f32 %v5947, %v5948
  %v5950 = vrot.slane %v5949, 1
  %v5951 = vadd.f32 %v5949, %v5950
  %v5952 = vsel %vm2636, %v5869, 0.0
  %v5953 = vsel %vm2636, %v5870, 0.0
  %v5954 = vadd.f32 %v5952, %v5953
  %v5955 = vrot.slane %v5954, 4
  %v5956 = vadd.f32 %v5954, %v5955
  %v5957 = vrot.slane %v5956, 2
  %v5958 = vadd.f32 %v5956, %v5957
  %v5959 = vrot.slane %v5958, 1
  %v5960 = vadd.f32 %v5958, %v5959
  %v5961 = vadd.f32 %v5879, 1.0
  %v5962 = vadd.f32 %v5888, 1.0
  %v5963 = vadd.f32 %v5897, 1.0
  %v5964 = vadd.f32 %v5906, 1.0
  %v5965 = vadd.f32 %v5915, 1.0
  %v5966 = vadd.f32 %v5924, 1.0
  %v5967 = vadd.f32 %v5933, 1.0
  %v5968 = vadd.f32 %v5942, 1.0
  %v5969 = vadd.f32 %v5951, 1.0
  %v5970 = vadd.f32 %v5960, 1.0
  %v5971 = vrcp.pop %v5961
  %v5972 = vmul.f32 %v5879, %v5971
  %v5973 = vrcp.pop %v5962
  %v5974 = vmul.f32 %v5888, %v5973
  %v5975 = vrcp.pop %v5963
  %v5976 = vmul.f32 %v5897, %v5975
  %v5977 = vrcp.pop %v5964
  %v5978 = vmul.f32 %v5906, %v5977
  %v5979 = vrcp.pop %v5965
  %v5980 = vmul.f32 %v5915, %v5979
  %v5981 = vrcp.pop %v5966
  %v5982 = vmul.f32 %v5924, %v5981
  %v5983 = vrcp.pop %v5967
  %v5984 = vmul.f32 %v5933, %v5983
  %v5985 = vrcp.pop %v5968
  %v5986 = vmul.f32 %v5942, %v5985
  %v5987 = vrcp.pop %v5969
  %v5988 = vmul.f32 %v5951, %v5987
  %v5989 = vrcp.pop %v5970
  %v5990 = vmul.f32 %v5960, %v5989
  %v5991 = vadd.f32 %v5879, 1e-12
  %v5992 = vadd.f32 %v5888, 1e-12
  %v5993 = vadd.f32 %v5897, 1e-12
  %v5994 = vadd.f32 %v5906, 1e-12
  %v5995 = vadd.f32 %v5915, 1e-12
  %v5996 = vadd.f32 %v5924, 1e-12
  %v5997 = vadd.f32 %v5933, 1e-12
  %v5998 = vadd.f32 %v5942, 1e-12
  %v5999 = vadd.f32 %v5951, 1e-12
  %v6000 = vadd.f32 %v5960, 1e-12
  %v6001 = vrsqrt.pop %v5991
  %v6002 = vrsqrt.pop %v5992
  %v6003 = vrsqrt.pop %v5993
  %v6004 = vrsqrt.pop %v5994
  %v6005 = vrsqrt.pop %v5995
  %v6006 = vrsqrt.pop %v5996
  %v6007 = vrsqrt.pop %v5997
  %v6008 = vrsqrt.pop %v5998
  %v6009 = vrsqrt.pop %v5999
  %v6010 = vrsqrt.pop %v6000
  %v6011 = vmul.f32 %v5972, %v6001
  %v6012 = vmul.f32 %v5974, %v6002
  %v6013 = vmul.f32 %v5976, %v6003
  %v6014 = vmul.f32 %v5978, %v6004
  %v6015 = vmul.f32 %v5980, %v6005
  %v6016 = vmul.f32 %v5982, %v6006
  %v6017 = vmul.f32 %v5984, %v6007
  %v6018 = vmul.f32 %v5986, %v6008
  %v6019 = vmul.f32 %v5988, %v6009
  %v6020 = vmul.f32 %v5990, %v6010
  %v6021 = vmul.f32 %v5565, %v6011
  %v6022 = vmul.f32 %v5580, %v6011
  %v6023 = vmul.f32 %v5595, %v6012
  %v6024 = vmul.f32 %v5610, %v6012
  %v6025 = vmul.f32 %v5625, %v6013
  %v6026 = vmul.f32 %v5640, %v6013
  %v6027 = vmul.f32 %v5655, %v6014
  %v6028 = vmul.f32 %v5670, %v6014
  %v6029 = vmul.f32 %v5685, %v6015
  %v6030 = vmul.f32 %v5700, %v6015
  %v6031 = vmul.f32 %v5715, %v6016
  %v6032 = vmul.f32 %v5730, %v6016
  %v6033 = vmul.f32 %v5745, %v6017
  %v6034 = vmul.f32 %v5760, %v6017
  %v6035 = vmul.f32 %v5775, %v6018
  %v6036 = vmul.f32 %v5790, %v6018
  %v6037 = vmul.f32 %v5805, %v6019
  %v6038 = vmul.f32 %v5820, %v6019
  %v6039 = vmul.f32 %v5835, %v6020
  %v6040 = vmul.f32 %v5850, %v6020
  %v6041 = vmul.f32 %v972, %v6021
  %v6042 = vmul.f32 %v977, %v6022
  %v6043 = vmul.f32 %v982, %v6023
  %v6044 = vmul.f32 %v987, %v6024
  %v6045 = vmul.f32 %v992, %v6025
  %v6046 = vmul.f32 %v997, %v6026
  %v6047 = vmul.f32 %v1002, %v6027
  %v6048 = vmul.f32 %v1007, %v6028
  %v6049 = vmul.f32 %v1012, %v6029
  %v6050 = vmul.f32 %v1017, %v6030
  %v6051 = vmul.f32 %v1022, %v6031
  %v6052 = vmul.f32 %v1027, %v6032
  %v6053 = vmul.f32 %v1032, %v6033
  %v6054 = vmul.f32 %v1037, %v6034
  %v6055 = vmul.f32 %v1042, %v6035
  %v6056 = vmul.f32 %v1047, %v6036
  %v6057 = vmul.f32 %v1052, %v6037
  %v6058 = vmul.f32 %v1057, %v6038
  %v6059 = vmul.f32 %v1062, %v6039
  %v6060 = vmul.f32 %v1067, %v6040
  %v6061 = vmul.f32 %v1072, %v6021
  %v6062 = vmul.f32 %v1077, %v6022
  %v6063 = vmul.f32 %v1082, %v6023
  %v6064 = vmul.f32 %v1087, %v6024
  %v6065 = vmul.f32 %v1092, %v6025
  %v6066 = vmul.f32 %v1097, %v6026
  %v6067 = vmul.f32 %v1102, %v6027
  %v6068 = vmul.f32 %v1107, %v6028
  %v6069 = vmul.f32 %v1112, %v6029
  %v6070 = vmul.f32 %v1117, %v6030
  %v6071 = vmul.f32 %v1122, %v6031
  %v6072 = vmul.f32 %v1127, %v6032
  %v6073 = vmul.f32 %v1132, %v6033
  %v6074 = vmul.f32 %v1137, %v6034
  %v6075 = vmul.f32 %v1142, %v6035
  %v6076 = vmul.f32 %v1147, %v6036
  %v6077 = vmul.f32 %v1152, %v6037
  %v6078 = vmul.f32 %v1157, %v6038
  %v6079 = vmul.f32 %v1162, %v6039
  %v6080 = vmul.f32 %v1167, %v6040
  %v6081 = vmul.f32 %v1172, %v6021
  %v6082 = vmul.f32 %v1177, %v6022
  %v6083 = vmul.f32 %v1182, %v6023
  %v6084 = vmul.f32 %v1187, %v6024
  %v6085 = vmul.f32 %v1192, %v6025
  %v6086 = vmul.f32 %v1197, %v6026
  %v6087 = vmul.f32 %v1202, %v6027
  %v6088 = vmul.f32 %v1207, %v6028
  %v6089 = vmul.f32 %v1212, %v6029
  %v6090 = vmul.f32 %v1217, %v6030
  %v6091 = vmul.f32 %v1222, %v6031
  %v6092 = vmul.f32 %v1227, %v6032
  %v6093 = vmul.f32 %v1232, %v6033
  %v6094 = vmul.f32 %v1237, %v6034
  %v6095 = vmul.f32 %v1242, %v6035
  %v6096 = vmul.f32 %v1247, %v6036
  %v6097 = vmul.f32 %v1252, %v6037
  %v6098 = vmul.f32 %v1257, %v6038
  %v6099 = vmul.f32 %v1262, %v6039
  %v6100 = vmul.f32 %v1267, %v6040
  %v6101 = vmul.f32 %v1272, %v6021
  %v6102 = vmul.f32 %v1277, %v6022
  %v6103 = vmul.f32 %v1282, %v6023
  %v6104 = vmul.f32 %v1287, %v6024
  %v6105 = vmul.f32 %v1292, %v6025
  %v6106 = vmul.f32 %v1297, %v6026
  %v6107 = vmul.f32 %v1302, %v6027
  %v6108 = vmul.f32 %v1307, %v6028
  %v6109 = vmul.f32 %v1312, %v6029
  %v6110 = vmul.f32 %v1317, %v6030
  %v6111 = vmul.f32 %v1322, %v6031
  %v6112 = vmul.f32 %v1327, %v6032
  %v6113 = vmul.f32 %v1332, %v6033
  %v6114 = vmul.f32 %v1337, %v6034
  %v6115 = vmul.f32 %v1342, %v6035
  %v6116 = vmul.f32 %v1347, %v6036
  %v6117 = vmul.f32 %v1352, %v6037
  %v6118 = vmul.f32 %v1357, %v6038
  %v6119 = vmul.f32 %v1362, %v6039
  %v6120 = vmul.f32 %v1367, %v6040
  %v6121 = vmul.f32 %v1372, %v6021
  %v6122 = vmul.f32 %v1377, %v6022
  %v6123 = vmul.f32 %v1382, %v6023
  %v6124 = vmul.f32 %v1387, %v6024
  %v6125 = vmul.f32 %v1392, %v6025
  %v6126 = vmul.f32 %v1397, %v6026
  %v6127 = vmul.f32 %v1402, %v6027
  %v6128 = vmul.f32 %v1407, %v6028
  %v6129 = vmul.f32 %v1412, %v6029
  %v6130 = vmul.f32 %v1417, %v6030
  %v6131 = vmul.f32 %v1422, %v6031
  %v6132 = vmul.f32 %v1427, %v6032
  %v6133 = vmul.f32 %v1432, %v6033
  %v6134 = vmul.f32 %v1437, %v6034
  %v6135 = vmul.f32 %v1442, %v6035
  %v6136 = vmul.f32 %v1447, %v6036
  %v6137 = vmul.f32 %v1452, %v6037
  %v6138 = vmul.f32 %v1457, %v6038
  %v6139 = vmul.f32 %v1462, %v6039
  %v6140 = vmul.f32 %v1467, %v6040
  %v6141 = vmul.f32 %v1472, %v6021
  %v6142 = vmul.f32 %v1477, %v6022
  %v6143 = vmul.f32 %v1482, %v6023
  %v6144 = vmul.f32 %v1487, %v6024
  %v6145 = vmul.f32 %v1492, %v6025
  %v6146 = vmul.f32 %v1497, %v6026
  %v6147 = vmul.f32 %v1502, %v6027
  %v6148 = vmul.f32 %v1507, %v6028
  %v6149 = vmul.f32 %v1512, %v6029
  %v6150 = vmul.f32 %v1517, %v6030
  %v6151 = vmul.f32 %v1522, %v6031
  %v6152 = vmul.f32 %v1527, %v6032
  %v6153 = vmul.f32 %v1532, %v6033
  %v6154 = vmul.f32 %v1537, %v6034
  %v6155 = vmul.f32 %v1542, %v6035
  %v6156 = vmul.f32 %v1547, %v6036
  %v6157 = vmul.f32 %v1552, %v6037
  %v6158 = vmul.f32 %v1557, %v6038
  %v6159 = vmul.f32 %v1562, %v6039
  %v6160 = vmul.f32 %v1567, %v6040
  %v6161 = vmul.f32 %v1572, %v6021
  %v6162 = vmul.f32 %v1577, %v6022
  %v6163 = vmul.f32 %v1582, %v6023
  %v6164 = vmul.f32 %v1587, %v6024
  %v6165 = vmul.f32 %v1592, %v6025
  %v6166 = vmul.f32 %v1597, %v6026
  %v6167 = vmul.f32 %v1602, %v6027
  %v6168 = vmul.f32 %v1607, %v6028
  %v6169 = vmul.f32 %v1612, %v6029
  %v6170 = vmul.f32 %v1617, %v6030
  %v6171 = vmul.f32 %v1622, %v6031
  %v6172 = vmul.f32 %v1627, %v6032
  %v6173 = vmul.f32 %v1632, %v6033
  %v6174 = vmul.f32 %v1637, %v6034
  %v6175 = vmul.f32 %v1642, %v6035
  %v6176 = vmul.f32 %v1647, %v6036
  %v6177 = vmul.f32 %v1652, %v6037
  %v6178 = vmul.f32 %v1657, %v6038
  %v6179 = vmul.f32 %v1662, %v6039
  %v6180 = vmul.f32 %v1667, %v6040
  %v6181 = vmul.f32 %v1672, %v6021
  %v6182 = vmul.f32 %v1677, %v6022
  %v6183 = vmul.f32 %v1682, %v6023
  %v6184 = vmul.f32 %v1687, %v6024
  %v6185 = vmul.f32 %v1692, %v6025
  %v6186 = vmul.f32 %v1697, %v6026
  %v6187 = vmul.f32 %v1702, %v6027
  %v6188 = vmul.f32 %v1707, %v6028
  %v6189 = vmul.f32 %v1712, %v6029
  %v6190 = vmul.f32 %v1717, %v6030
  %v6191 = vmul.f32 %v1722, %v6031
  %v6192 = vmul.f32 %v1727, %v6032
  %v6193 = vmul.f32 %v1732, %v6033
  %v6194 = vmul.f32 %v1737, %v6034
  %v6195 = vmul.f32 %v1742, %v6035
  %v6196 = vmul.f32 %v1747, %v6036
  %v6197 = vmul.f32 %v1752, %v6037
  %v6198 = vmul.f32 %v1757, %v6038
  %v6199 = vmul.f32 %v1762, %v6039
  %v6200 = vmul.f32 %v1767, %v6040
  %v6201 = vsel %vm2636, %v6041, 0.0
  %v6202 = vsel %vm2636, %v6042, 0.0
  %v6203 = vadd.f32 %v6201, %v6202
  %v6204 = vrot.slane %v6203, 4
  %v6205 = vadd.f32 %v6203, %v6204
  %v6206 = vrot.slane %v6205, 2
  %v6207 = vadd.f32 %v6205, %v6206
  %v6208 = vrot.slane %v6207, 1
  %v6209 = vadd.f32 %v6207, %v6208
  %v6210 = vsel %vm2636, %v6043, 0.0
  %v6211 = vsel %vm2636, %v6044, 0.0
  %v6212 = vadd.f32 %v6210, %v6211
  %v6213 = vrot.slane %v6212, 4
  %v6214 = vadd.f32 %v6212, %v6213
  %v6215 = vrot.slane %v6214, 2
  %v6216 = vadd.f32 %v6214, %v6215
  %v6217 = vrot.slane %v6216, 1
  %v6218 = vadd.f32 %v6216, %v6217
  %v6219 = vsel %vm2636, %v6045, 0.0
  %v6220 = vsel %vm2636, %v6046, 0.0
  %v6221 = vadd.f32 %v6219, %v6220
  %v6222 = vrot.slane %v6221, 4
  %v6223 = vadd.f32 %v6221, %v6222
  %v6224 = vrot.slane %v6223, 2
  %v6225 = vadd.f32 %v6223, %v6224
  %v6226 = vrot.slane %v6225, 1
  %v6227 = vadd.f32 %v6225, %v6226
  %v6228 = vsel %vm2636, %v6047, 0.0
  %v6229 = vsel %vm2636, %v6048, 0.0
  %v6230 = vadd.f32 %v6228, %v6229
  %v6231 = vrot.slane %v6230, 4
  %v6232 = vadd.f32 %v6230, %v6231
  %v6233 = vrot.slane %v6232, 2
  %v6234 = vadd.f32 %v6232, %v6233
  %v6235 = vrot.slane %v6234, 1
  %v6236 = vadd.f32 %v6234, %v6235
  %v6237 = vsel %vm2636, %v6049, 0.0
  %v6238 = vsel %vm2636, %v6050, 0.0
  %v6239 = vadd.f32 %v6237, %v6238
  %v6240 = vrot.slane %v6239, 4
  %v6241 = vadd.f32 %v6239, %v6240
  %v6242 = vrot.slane %v6241, 2
  %v6243 = vadd.f32 %v6241, %v6242
  %v6244 = vrot.slane %v6243, 1
  %v6245 = vadd.f32 %v6243, %v6244
  %v6246 = vsel %vm2636, %v6051, 0.0
  %v6247 = vsel %vm2636, %v6052, 0.0
  %v6248 = vadd.f32 %v6246, %v6247
  %v6249 = vrot.slane %v6248, 4
  %v6250 = vadd.f32 %v6248, %v6249
  %v6251 = vrot.slane %v6250, 2
  %v6252 = vadd.f32 %v6250, %v6251
  %v6253 = vrot.slane %v6252, 1
  %v6254 = vadd.f32 %v6252, %v6253
  %v6255 = vsel %vm2636, %v6053, 0.0
  %v6256 = vsel %vm2636, %v6054, 0.0
  %v6257 = vadd.f32 %v6255, %v6256
  %v6258 = vrot.slane %v6257, 4
  %v6259 = vadd.f32 %v6257, %v6258
  %v6260 = vrot.slane %v6259, 2
  %v6261 = vadd.f32 %v6259, %v6260
  %v6262 = vrot.slane %v6261, 1
  %v6263 = vadd.f32 %v6261, %v6262
  %v6264 = vsel %vm2636, %v6055, 0.0
  %v6265 = vsel %vm2636, %v6056, 0.0
  %v6266 = vadd.f32 %v6264, %v6265
  %v6267 = vrot.slane %v6266, 4
  %v6268 = vadd.f32 %v6266, %v6267
  %v6269 = vrot.slane %v6268, 2
  %v6270 = vadd.f32 %v6268, %v6269
  %v6271 = vrot.slane %v6270, 1
  %v6272 = vadd.f32 %v6270, %v6271
  %v6273 = vsel %vm2636, %v6057, 0.0
  %v6274 = vsel %vm2636, %v6058, 0.0
  %v6275 = vadd.f32 %v6273, %v6274
  %v6276 = vrot.slane %v6275, 4
  %v6277 = vadd.f32 %v6275, %v6276
  %v6278 = vrot.slane %v6277, 2
  %v6279 = vadd.f32 %v6277, %v6278
  %v6280 = vrot.slane %v6279, 1
  %v6281 = vadd.f32 %v6279, %v6280
  %v6282 = vsel %vm2636, %v6059, 0.0
  %v6283 = vsel %vm2636, %v6060, 0.0
  %v6284 = vadd.f32 %v6282, %v6283
  %v6285 = vrot.slane %v6284, 4
  %v6286 = vadd.f32 %v6284, %v6285
  %v6287 = vrot.slane %v6286, 2
  %v6288 = vadd.f32 %v6286, %v6287
  %v6289 = vrot.slane %v6288, 1
  %v6290 = vadd.f32 %v6288, %v6289
  %v6291 = vsel %vm2636, %v6061, 0.0
  %v6292 = vsel %vm2636, %v6062, 0.0
  %v6293 = vadd.f32 %v6291, %v6292
  %v6294 = vrot.slane %v6293, 4
  %v6295 = vadd.f32 %v6293, %v6294
  %v6296 = vrot.slane %v6295, 2
  %v6297 = vadd.f32 %v6295, %v6296
  %v6298 = vrot.slane %v6297, 1
  %v6299 = vadd.f32 %v6297, %v6298
  %v6300 = vsel %vm2636, %v6063, 0.0
  %v6301 = vsel %vm2636, %v6064, 0.0
  %v6302 = vadd.f32 %v6300, %v6301
  %v6303 = vrot.slane %v6302, 4
  %v6304 = vadd.f32 %v6302, %v6303
  %v6305 = vrot.slane %v6304, 2
  %v6306 = vadd.f32 %v6304, %v6305
  %v6307 = vrot.slane %v6306, 1
  %v6308 = vadd.f32 %v6306, %v6307
  %v6309 = vsel %vm2636, %v6065, 0.0
  %v6310 = vsel %vm2636, %v6066, 0.0
  %v6311 = vadd.f32 %v6309, %v6310
  %v6312 = vrot.slane %v6311, 4
  %v6313 = vadd.f32 %v6311, %v6312
  %v6314 = vrot.slane %v6313, 2
  %v6315 = vadd.f32 %v6313, %v6314
  %v6316 = vrot.slane %v6315, 1
  %v6317 = vadd.f32 %v6315, %v6316
  %v6318 = vsel %vm2636, %v6067, 0.0
  %v6319 = vsel %vm2636, %v6068, 0.0
  %v6320 = vadd.f32 %v6318, %v6319
  %v6321 = vrot.slane %v6320, 4
  %v6322 = vadd.f32 %v6320, %v6321
  %v6323 = vrot.slane %v6322, 2
  %v6324 = vadd.f32 %v6322, %v6323
  %v6325 = vrot.slane %v6324, 1
  %v6326 = vadd.f32 %v6324, %v6325
  %v6327 = vsel %vm2636, %v6069, 0.0
  %v6328 = vsel %vm2636, %v6070, 0.0
  %v6329 = vadd.f32 %v6327, %v6328
  %v6330 = vrot.slane %v6329, 4
  %v6331 = vadd.f32 %v6329, %v6330
  %v6332 = vrot.slane %v6331, 2
  %v6333 = vadd.f32 %v6331, %v6332
  %v6334 = vrot.slane %v6333, 1
  %v6335 = vadd.f32 %v6333, %v6334
  %v6336 = vsel %vm2636, %v6071, 0.0
  %v6337 = vsel %vm2636, %v6072, 0.0
  %v6338 = vadd.f32 %v6336, %v6337
  %v6339 = vrot.slane %v6338, 4
  %v6340 = vadd.f32 %v6338, %v6339
  %v6341 = vrot.slane %v6340, 2
  %v6342 = vadd.f32 %v6340, %v6341
  %v6343 = vrot.slane %v6342, 1
  %v6344 = vadd.f32 %v6342, %v6343
  %v6345 = vsel %vm2636, %v6073, 0.0
  %v6346 = vsel %vm2636, %v6074, 0.0
  %v6347 = vadd.f32 %v6345, %v6346
  %v6348 = vrot.slane %v6347, 4
  %v6349 = vadd.f32 %v6347, %v6348
  %v6350 = vrot.slane %v6349, 2
  %v6351 = vadd.f32 %v6349, %v6350
  %v6352 = vrot.slane %v6351, 1
  %v6353 = vadd.f32 %v6351, %v6352
  %v6354 = vsel %vm2636, %v6075, 0.0
  %v6355 = vsel %vm2636, %v6076, 0.0
  %v6356 = vadd.f32 %v6354, %v6355
  %v6357 = vrot.slane %v6356, 4
  %v6358 = vadd.f32 %v6356, %v6357
  %v6359 = vrot.slane %v6358, 2
  %v6360 = vadd.f32 %v6358, %v6359
  %v6361 = vrot.slane %v6360, 1
  %v6362 = vadd.f32 %v6360, %v6361
  %v6363 = vsel %vm2636, %v6077, 0.0
  %v6364 = vsel %vm2636, %v6078, 0.0
  %v6365 = vadd.f32 %v6363, %v6364
  %v6366 = vrot.slane %v6365, 4
  %v6367 = vadd.f32 %v6365, %v6366
  %v6368 = vrot.slane %v6367, 2
  %v6369 = vadd.f32 %v6367, %v6368
  %v6370 = vrot.slane %v6369, 1
  %v6371 = vadd.f32 %v6369, %v6370
  %v6372 = vsel %vm2636, %v6079, 0.0
  %v6373 = vsel %vm2636, %v6080, 0.0
  %v6374 = vadd.f32 %v6372, %v6373
  %v6375 = vrot.slane %v6374, 4
  %v6376 = vadd.f32 %v6374, %v6375
  %v6377 = vrot.slane %v6376, 2
  %v6378 = vadd.f32 %v6376, %v6377
  %v6379 = vrot.slane %v6378, 1
  %v6380 = vadd.f32 %v6378, %v6379
  %v6381 = vsel %vm2636, %v6081, 0.0
  %v6382 = vsel %vm2636, %v6082, 0.0
  %v6383 = vadd.f32 %v6381, %v6382
  %v6384 = vrot.slane %v6383, 4
  %v6385 = vadd.f32 %v6383, %v6384
  %v6386 = vrot.slane %v6385, 2
  %v6387 = vadd.f32 %v6385, %v6386
  %v6388 = vrot.slane %v6387, 1
  %v6389 = vadd.f32 %v6387, %v6388
  %v6390 = vsel %vm2636, %v6083, 0.0
  %v6391 = vsel %vm2636, %v6084, 0.0
  %v6392 = vadd.f32 %v6390, %v6391
  %v6393 = vrot.slane %v6392, 4
  %v6394 = vadd.f32 %v6392, %v6393
  %v6395 = vrot.slane %v6394, 2
  %v6396 = vadd.f32 %v6394, %v6395
  %v6397 = vrot.slane %v6396, 1
  %v6398 = vadd.f32 %v6396, %v6397
  %v6399 = vsel %vm2636, %v6085, 0.0
  %v6400 = vsel %vm2636, %v6086, 0.0
  %v6401 = vadd.f32 %v6399, %v6400
  %v6402 = vrot.slane %v6401, 4
  %v6403 = vadd.f32 %v6401, %v6402
  %v6404 = vrot.slane %v6403, 2
  %v6405 = vadd.f32 %v6403, %v6404
  %v6406 = vrot.slane %v6405, 1
  %v6407 = vadd.f32 %v6405, %v6406
  %v6408 = vsel %vm2636, %v6087, 0.0
  %v6409 = vsel %vm2636, %v6088, 0.0
  %v6410 = vadd.f32 %v6408, %v6409
  %v6411 = vrot.slane %v6410, 4
  %v6412 = vadd.f32 %v6410, %v6411
  %v6413 = vrot.slane %v6412, 2
  %v6414 = vadd.f32 %v6412, %v6413
  %v6415 = vrot.slane %v6414, 1
  %v6416 = vadd.f32 %v6414, %v6415
  %v6417 = vsel %vm2636, %v6089, 0.0
  %v6418 = vsel %vm2636, %v6090, 0.0
  %v6419 = vadd.f32 %v6417, %v6418
  %v6420 = vrot.slane %v6419, 4
  %v6421 = vadd.f32 %v6419, %v6420
  %v6422 = vrot.slane %v6421, 2
  %v6423 = vadd.f32 %v6421, %v6422
  %v6424 = vrot.slane %v6423, 1
  %v6425 = vadd.f32 %v6423, %v6424
  %v6426 = vsel %vm2636, %v6091, 0.0
  %v6427 = vsel %vm2636, %v6092, 0.0
  %v6428 = vadd.f32 %v6426, %v6427
  %v6429 = vrot.slane %v6428, 4
  %v6430 = vadd.f32 %v6428, %v6429
  %v6431 = vrot.slane %v6430, 2
  %v6432 = vadd.f32 %v6430, %v6431
  %v6433 = vrot.slane %v6432, 1
  %v6434 = vadd.f32 %v6432, %v6433
  %v6435 = vsel %vm2636, %v6093, 0.0
  %v6436 = vsel %vm2636, %v6094, 0.0
  %v6437 = vadd.f32 %v6435, %v6436
  %v6438 = vrot.slane %v6437, 4
  %v6439 = vadd.f32 %v6437, %v6438
  %v6440 = vrot.slane %v6439, 2
  %v6441 = vadd.f32 %v6439, %v6440
  %v6442 = vrot.slane %v6441, 1
  %v6443 = vadd.f32 %v6441, %v6442
  %v6444 = vsel %vm2636, %v6095, 0.0
  %v6445 = vsel %vm2636, %v6096, 0.0
  %v6446 = vadd.f32 %v6444, %v6445
  %v6447 = vrot.slane %v6446, 4
  %v6448 = vadd.f32 %v6446, %v6447
  %v6449 = vrot.slane %v6448, 2
  %v6450 = vadd.f32 %v6448, %v6449
  %v6451 = vrot.slane %v6450, 1
  %v6452 = vadd.f32 %v6450, %v6451
  %v6453 = vsel %vm2636, %v6097, 0.0
  %v6454 = vsel %vm2636, %v6098, 0.0
  %v6455 = vadd.f32 %v6453, %v6454
  %v6456 = vrot.slane %v6455, 4
  %v6457 = vadd.f32 %v6455, %v6456
  %v6458 = vrot.slane %v6457, 2
  %v6459 = vadd.f32 %v6457, %v6458
  %v6460 = vrot.slane %v6459, 1
  %v6461 = vadd.f32 %v6459, %v6460
  %v6462 = vsel %vm2636, %v6099, 0.0
  %v6463 = vsel %vm2636, %v6100, 0.0
  %v6464 = vadd.f32 %v6462, %v6463
  %v6465 = vrot.slane %v6464, 4
  %v6466 = vadd.f32 %v6464, %v6465
  %v6467 = vrot.slane %v6466, 2
  %v6468 = vadd.f32 %v6466, %v6467
  %v6469 = vrot.slane %v6468, 1
  %v6470 = vadd.f32 %v6468, %v6469
  %v6471 = vsel %vm2636, %v6101, 0.0
  %v6472 = vsel %vm2636, %v6102, 0.0
  %v6473 = vadd.f32 %v6471, %v6472
  %v6474 = vrot.slane %v6473, 4
  %v6475 = vadd.f32 %v6473, %v6474
  %v6476 = vrot.slane %v6475, 2
  %v6477 = vadd.f32 %v6475, %v6476
  %v6478 = vrot.slane %v6477, 1
  %v6479 = vadd.f32 %v6477, %v6478
  %v6480 = vsel %vm2636, %v6103, 0.0
  %v6481 = vsel %vm2636, %v6104, 0.0
  %v6482 = vadd.f32 %v6480, %v6481
  %v6483 = vrot.slane %v6482, 4
  %v6484 = vadd.f32 %v6482, %v6483
  %v6485 = vrot.slane %v6484, 2
  %v6486 = vadd.f32 %v6484, %v6485
  %v6487 = vrot.slane %v6486, 1
  %v6488 = vadd.f32 %v6486, %v6487
  %v6489 = vsel %vm2636, %v6105, 0.0
  %v6490 = vsel %vm2636, %v6106, 0.0
  %v6491 = vadd.f32 %v6489, %v6490
  %v6492 = vrot.slane %v6491, 4
  %v6493 = vadd.f32 %v6491, %v6492
  %v6494 = vrot.slane %v6493, 2
  %v6495 = vadd.f32 %v6493, %v6494
  %v6496 = vrot.slane %v6495, 1
  %v6497 = vadd.f32 %v6495, %v6496
  %v6498 = vsel %vm2636, %v6107, 0.0
  %v6499 = vsel %vm2636, %v6108, 0.0
  %v6500 = vadd.f32 %v6498, %v6499
  %v6501 = vrot.slane %v6500, 4
  %v6502 = vadd.f32 %v6500, %v6501
  %v6503 = vrot.slane %v6502, 2
  %v6504 = vadd.f32 %v6502, %v6503
  %v6505 = vrot.slane %v6504, 1
  %v6506 = vadd.f32 %v6504, %v6505
  %v6507 = vsel %vm2636, %v6109, 0.0
  %v6508 = vsel %vm2636, %v6110, 0.0
  %v6509 = vadd.f32 %v6507, %v6508
  %v6510 = vrot.slane %v6509, 4
  %v6511 = vadd.f32 %v6509, %v6510
  %v6512 = vrot.slane %v6511, 2
  %v6513 = vadd.f32 %v6511, %v6512
  %v6514 = vrot.slane %v6513, 1
  %v6515 = vadd.f32 %v6513, %v6514
  %v6516 = vsel %vm2636, %v6111, 0.0
  %v6517 = vsel %vm2636, %v6112, 0.0
  %v6518 = vadd.f32 %v6516, %v6517
  %v6519 = vrot.slane %v6518, 4
  %v6520 = vadd.f32 %v6518, %v6519
  %v6521 = vrot.slane %v6520, 2
  %v6522 = vadd.f32 %v6520, %v6521
  %v6523 = vrot.slane %v6522, 1
  %v6524 = vadd.f32 %v6522, %v6523
  %v6525 = vsel %vm2636, %v6113, 0.0
  %v6526 = vsel %vm2636, %v6114, 0.0
  %v6527 = vadd.f32 %v6525, %v6526
  %v6528 = vrot.slane %v6527, 4
  %v6529 = vadd.f32 %v6527, %v6528
  %v6530 = vrot.slane %v6529, 2
  %v6531 = vadd.f32 %v6529, %v6530
  %v6532 = vrot.slane %v6531, 1
  %v6533 = vadd.f32 %v6531, %v6532
  %v6534 = vsel %vm2636, %v6115, 0.0
  %v6535 = vsel %vm2636, %v6116, 0.0
  %v6536 = vadd.f32 %v6534, %v6535
  %v6537 = vrot.slane %v6536, 4
  %v6538 = vadd.f32 %v6536, %v6537
  %v6539 = vrot.slane %v6538, 2
  %v6540 = vadd.f32 %v6538, %v6539
  %v6541 = vrot.slane %v6540, 1
  %v6542 = vadd.f32 %v6540, %v6541
  %v6543 = vsel %vm2636, %v6117, 0.0
  %v6544 = vsel %vm2636, %v6118, 0.0
  %v6545 = vadd.f32 %v6543, %v6544
  %v6546 = vrot.slane %v6545, 4
  %v6547 = vadd.f32 %v6545, %v6546
  %v6548 = vrot.slane %v6547, 2
  %v6549 = vadd.f32 %v6547, %v6548
  %v6550 = vrot.slane %v6549, 1
  %v6551 = vadd.f32 %v6549, %v6550
  %v6552 = vsel %vm2636, %v6119, 0.0
  %v6553 = vsel %vm2636, %v6120, 0.0
  %v6554 = vadd.f32 %v6552, %v6553
  %v6555 = vrot.slane %v6554, 4
  %v6556 = vadd.f32 %v6554, %v6555
  %v6557 = vrot.slane %v6556, 2
  %v6558 = vadd.f32 %v6556, %v6557
  %v6559 = vrot.slane %v6558, 1
  %v6560 = vadd.f32 %v6558, %v6559
  %v6561 = vsel %vm2636, %v6121, 0.0
  %v6562 = vsel %vm2636, %v6122, 0.0
  %v6563 = vadd.f32 %v6561, %v6562
  %v6564 = vrot.slane %v6563, 4
  %v6565 = vadd.f32 %v6563, %v6564
  %v6566 = vrot.slane %v6565, 2
  %v6567 = vadd.f32 %v6565, %v6566
  %v6568 = vrot.slane %v6567, 1
  %v6569 = vadd.f32 %v6567, %v6568
  %v6570 = vsel %vm2636, %v6123, 0.0
  %v6571 = vsel %vm2636, %v6124, 0.0
  %v6572 = vadd.f32 %v6570, %v6571
  %v6573 = vrot.slane %v6572, 4
  %v6574 = vadd.f32 %v6572, %v6573
  %v6575 = vrot.slane %v6574, 2
  %v6576 = vadd.f32 %v6574, %v6575
  %v6577 = vrot.slane %v6576, 1
  %v6578 = vadd.f32 %v6576, %v6577
  %v6579 = vsel %vm2636, %v6125, 0.0
  %v6580 = vsel %vm2636, %v6126, 0.0
  %v6581 = vadd.f32 %v6579, %v6580
  %v6582 = vrot.slane %v6581, 4
  %v6583 = vadd.f32 %v6581, %v6582
  %v6584 = vrot.slane %v6583, 2
  %v6585 = vadd.f32 %v6583, %v6584
  %v6586 = vrot.slane %v6585, 1
  %v6587 = vadd.f32 %v6585, %v6586
  %v6588 = vsel %vm2636, %v6127, 0.0
  %v6589 = vsel %vm2636, %v6128, 0.0
  %v6590 = vadd.f32 %v6588, %v6589
  %v6591 = vrot.slane %v6590, 4
  %v6592 = vadd.f32 %v6590, %v6591
  %v6593 = vrot.slane %v6592, 2
  %v6594 = vadd.f32 %v6592, %v6593
  %v6595 = vrot.slane %v6594, 1
  %v6596 = vadd.f32 %v6594, %v6595
  %v6597 = vsel %vm2636, %v6129, 0.0
  %v6598 = vsel %vm2636, %v6130, 0.0
  %v6599 = vadd.f32 %v6597, %v6598
  %v6600 = vrot.slane %v6599, 4
  %v6601 = vadd.f32 %v6599, %v6600
  %v6602 = vrot.slane %v6601, 2
  %v6603 = vadd.f32 %v6601, %v6602
  %v6604 = vrot.slane %v6603, 1
  %v6605 = vadd.f32 %v6603, %v6604
  %v6606 = vsel %vm2636, %v6131, 0.0
  %v6607 = vsel %vm2636, %v6132, 0.0
  %v6608 = vadd.f32 %v6606, %v6607
  %v6609 = vrot.slane %v6608, 4
  %v6610 = vadd.f32 %v6608, %v6609
  %v6611 = vrot.slane %v6610, 2
  %v6612 = vadd.f32 %v6610, %v6611
  %v6613 = vrot.slane %v6612, 1
  %v6614 = vadd.f32 %v6612, %v6613
  %v6615 = vsel %vm2636, %v6133, 0.0
  %v6616 = vsel %vm2636, %v6134, 0.0
  %v6617 = vadd.f32 %v6615, %v6616
  %v6618 = vrot.slane %v6617, 4
  %v6619 = vadd.f32 %v6617, %v6618
  %v6620 = vrot.slane %v6619, 2
  %v6621 = vadd.f32 %v6619, %v6620
  %v6622 = vrot.slane %v6621, 1
  %v6623 = vadd.f32 %v6621, %v6622
  %v6624 = vsel %vm2636, %v6135, 0.0
  %v6625 = vsel %vm2636, %v6136, 0.0
  %v6626 = vadd.f32 %v6624, %v6625
  %v6627 = vrot.slane %v6626, 4
  %v6628 = vadd.f32 %v6626, %v6627
  %v6629 = vrot.slane %v6628, 2
  %v6630 = vadd.f32 %v6628, %v6629
  %v6631 = vrot.slane %v6630, 1
  %v6632 = vadd.f32 %v6630, %v6631
  %v6633 = vsel %vm2636, %v6137, 0.0
  %v6634 = vsel %vm2636, %v6138, 0.0
  %v6635 = vadd.f32 %v6633, %v6634
  %v6636 = vrot.slane %v6635, 4
  %v6637 = vadd.f32 %v6635, %v6636
  %v6638 = vrot.slane %v6637, 2
  %v6639 = vadd.f32 %v6637, %v6638
  %v6640 = vrot.slane %v6639, 1
  %v6641 = vadd.f32 %v6639, %v6640
  %v6642 = vsel %vm2636, %v6139, 0.0
  %v6643 = vsel %vm2636, %v6140, 0.0
  %v6644 = vadd.f32 %v6642, %v6643
  %v6645 = vrot.slane %v6644, 4
  %v6646 = vadd.f32 %v6644, %v6645
  %v6647 = vrot.slane %v6646, 2
  %v6648 = vadd.f32 %v6646, %v6647
  %v6649 = vrot.slane %v6648, 1
  %v6650 = vadd.f32 %v6648, %v6649
  %v6651 = vsel %vm2636, %v6141, 0.0
  %v6652 = vsel %vm2636, %v6142, 0.0
  %v6653 = vadd.f32 %v6651, %v6652
  %v6654 = vrot.slane %v6653, 4
  %v6655 = vadd.f32 %v6653, %v6654
  %v6656 = vrot.slane %v6655, 2
  %v6657 = vadd.f32 %v6655, %v6656
  %v6658 = vrot.slane %v6657, 1
  %v6659 = vadd.f32 %v6657, %v6658
  %v6660 = vsel %vm2636, %v6143, 0.0
  %v6661 = vsel %vm2636, %v6144, 0.0
  %v6662 = vadd.f32 %v6660, %v6661
  %v6663 = vrot.slane %v6662, 4
  %v6664 = vadd.f32 %v6662, %v6663
  %v6665 = vrot.slane %v6664, 2
  %v6666 = vadd.f32 %v6664, %v6665
  %v6667 = vrot.slane %v6666, 1
  %v6668 = vadd.f32 %v6666, %v6667
  %v6669 = vsel %vm2636, %v6145, 0.0
  %v6670 = vsel %vm2636, %v6146, 0.0
  %v6671 = vadd.f32 %v6669, %v6670
  %v6672 = vrot.slane %v6671, 4
  %v6673 = vadd.f32 %v6671, %v6672
  %v6674 = vrot.slane %v6673, 2
  %v6675 = vadd.f32 %v6673, %v6674
  %v6676 = vrot.slane %v6675, 1
  %v6677 = vadd.f32 %v6675, %v6676
  %v6678 = vsel %vm2636, %v6147, 0.0
  %v6679 = vsel %vm2636, %v6148, 0.0
  %v6680 = vadd.f32 %v6678, %v6679
  %v6681 = vrot.slane %v6680, 4
  %v6682 = vadd.f32 %v6680, %v6681
  %v6683 = vrot.slane %v6682, 2
  %v6684 = vadd.f32 %v6682, %v6683
  %v6685 = vrot.slane %v6684, 1
  %v6686 = vadd.f32 %v6684, %v6685
  %v6687 = vsel %vm2636, %v6149, 0.0
  %v6688 = vsel %vm2636, %v6150, 0.0
  %v6689 = vadd.f32 %v6687, %v6688
  %v6690 = vrot.slane %v6689, 4
  %v6691 = vadd.f32 %v6689, %v6690
  %v6692 = vrot.slane %v6691, 2
  %v6693 = vadd.f32 %v6691, %v6692
  %v6694 = vrot.slane %v6693, 1
  %v6695 = vadd.f32 %v6693, %v6694
  %v6696 = vsel %vm2636, %v6151, 0.0
  %v6697 = vsel %vm2636, %v6152, 0.0
  %v6698 = vadd.f32 %v6696, %v6697
  %v6699 = vrot.slane %v6698, 4
  %v6700 = vadd.f32 %v6698, %v6699
  %v6701 = vrot.slane %v6700, 2
  %v6702 = vadd.f32 %v6700, %v6701
  %v6703 = vrot.slane %v6702, 1
  %v6704 = vadd.f32 %v6702, %v6703
  %v6705 = vsel %vm2636, %v6153, 0.0
  %v6706 = vsel %vm2636, %v6154, 0.0
  %v6707 = vadd.f32 %v6705, %v6706
  %v6708 = vrot.slane %v6707, 4
  %v6709 = vadd.f32 %v6707, %v6708
  %v6710 = vrot.slane %v6709, 2
  %v6711 = vadd.f32 %v6709, %v6710
  %v6712 = vrot.slane %v6711, 1
  %v6713 = vadd.f32 %v6711, %v6712
  %v6714 = vsel %vm2636, %v6155, 0.0
  %v6715 = vsel %vm2636, %v6156, 0.0
  %v6716 = vadd.f32 %v6714, %v6715
  %v6717 = vrot.slane %v6716, 4
  %v6718 = vadd.f32 %v6716, %v6717
  %v6719 = vrot.slane %v6718, 2
  %v6720 = vadd.f32 %v6718, %v6719
  %v6721 = vrot.slane %v6720, 1
  %v6722 = vadd.f32 %v6720, %v6721
  %v6723 = vsel %vm2636, %v6157, 0.0
  %v6724 = vsel %vm2636, %v6158, 0.0
  %v6725 = vadd.f32 %v6723, %v6724
  %v6726 = vrot.slane %v6725, 4
  %v6727 = vadd.f32 %v6725, %v6726
  %v6728 = vrot.slane %v6727, 2
  %v6729 = vadd.f32 %v6727, %v6728
  %v6730 = vrot.slane %v6729, 1
  %v6731 = vadd.f32 %v6729, %v6730
  %v6732 = vsel %vm2636, %v6159, 0.0
  %v6733 = vsel %vm2636, %v6160, 0.0
  %v6734 = vadd.f32 %v6732, %v6733
  %v6735 = vrot.slane %v6734, 4
  %v6736 = vadd.f32 %v6734, %v6735
  %v6737 = vrot.slane %v6736, 2
  %v6738 = vadd.f32 %v6736, %v6737
  %v6739 = vrot.slane %v6738, 1
  %v6740 = vadd.f32 %v6738, %v6739
  %v6741 = vsel %vm2636, %v6161, 0.0
  %v6742 = vsel %vm2636, %v6162, 0.0
  %v6743 = vadd.f32 %v6741, %v6742
  %v6744 = vrot.slane %v6743, 4
  %v6745 = vadd.f32 %v6743, %v6744
  %v6746 = vrot.slane %v6745, 2
  %v6747 = vadd.f32 %v6745, %v6746
  %v6748 = vrot.slane %v6747, 1
  %v6749 = vadd.f32 %v6747, %v6748
  %v6750 = vsel %vm2636, %v6163, 0.0
  %v6751 = vsel %vm2636, %v6164, 0.0
  %v6752 = vadd.f32 %v6750, %v6751
  %v6753 = vrot.slane %v6752, 4
  %v6754 = vadd.f32 %v6752, %v6753
  %v6755 = vrot.slane %v6754, 2
  %v6756 = vadd.f32 %v6754, %v6755
  %v6757 = vrot.slane %v6756, 1
  %v6758 = vadd.f32 %v6756, %v6757
  %v6759 = vsel %vm2636, %v6165, 0.0
  %v6760 = vsel %vm2636, %v6166, 0.0
  %v6761 = vadd.f32 %v6759, %v6760
  %v6762 = vrot.slane %v6761, 4
  %v6763 = vadd.f32 %v6761, %v6762
  %v6764 = vrot.slane %v6763, 2
  %v6765 = vadd.f32 %v6763, %v6764
  %v6766 = vrot.slane %v6765, 1
  %v6767 = vadd.f32 %v6765, %v6766
  %v6768 = vsel %vm2636, %v6167, 0.0
  %v6769 = vsel %vm2636, %v6168, 0.0
  %v6770 = vadd.f32 %v6768, %v6769
  %v6771 = vrot.slane %v6770, 4
  %v6772 = vadd.f32 %v6770, %v6771
  %v6773 = vrot.slane %v6772, 2
  %v6774 = vadd.f32 %v6772, %v6773
  %v6775 = vrot.slane %v6774, 1
  %v6776 = vadd.f32 %v6774, %v6775
  %v6777 = vsel %vm2636, %v6169, 0.0
  %v6778 = vsel %vm2636, %v6170, 0.0
  %v6779 = vadd.f32 %v6777, %v6778
  %v6780 = vrot.slane %v6779, 4
  %v6781 = vadd.f32 %v6779, %v6780
  %v6782 = vrot.slane %v6781, 2
  %v6783 = vadd.f32 %v6781, %v6782
  %v6784 = vrot.slane %v6783, 1
  %v6785 = vadd.f32 %v6783, %v6784
  %v6786 = vsel %vm2636, %v6171, 0.0
  %v6787 = vsel %vm2636, %v6172, 0.0
  %v6788 = vadd.f32 %v6786, %v6787
  %v6789 = vrot.slane %v6788, 4
  %v6790 = vadd.f32 %v6788, %v6789
  %v6791 = vrot.slane %v6790, 2
  %v6792 = vadd.f32 %v6790, %v6791
  %v6793 = vrot.slane %v6792, 1
  %v6794 = vadd.f32 %v6792, %v6793
  %v6795 = vsel %vm2636, %v6173, 0.0
  %v6796 = vsel %vm2636, %v6174, 0.0
  %v6797 = vadd.f32 %v6795, %v6796
  %v6798 = vrot.slane %v6797, 4
  %v6799 = vadd.f32 %v6797, %v6798
  %v6800 = vrot.slane %v6799, 2
  %v6801 = vadd.f32 %v6799, %v6800
  %v6802 = vrot.slane %v6801, 1
  %v6803 = vadd.f32 %v6801, %v6802
  %v6804 = vsel %vm2636, %v6175, 0.0
  %v6805 = vsel %vm2636, %v6176, 0.0
  %v6806 = vadd.f32 %v6804, %v6805
  %v6807 = vrot.slane %v6806, 4
  %v6808 = vadd.f32 %v6806, %v6807
  %v6809 = vrot.slane %v6808, 2
  %v6810 = vadd.f32 %v6808, %v6809
  %v6811 = vrot.slane %v6810, 1
  %v6812 = vadd.f32 %v6810, %v6811
  %v6813 = vsel %vm2636, %v6177, 0.0
  %v6814 = vsel %vm2636, %v6178, 0.0
  %v6815 = vadd.f32 %v6813, %v6814
  %v6816 = vrot.slane %v6815, 4
  %v6817 = vadd.f32 %v6815, %v6816
  %v6818 = vrot.slane %v6817, 2
  %v6819 = vadd.f32 %v6817, %v6818
  %v6820 = vrot.slane %v6819, 1
  %v6821 = vadd.f32 %v6819, %v6820
  %v6822 = vsel %vm2636, %v6179, 0.0
  %v6823 = vsel %vm2636, %v6180, 0.0
  %v6824 = vadd.f32 %v6822, %v6823
  %v6825 = vrot.slane %v6824, 4
  %v6826 = vadd.f32 %v6824, %v6825
  %v6827 = vrot.slane %v6826, 2
  %v6828 = vadd.f32 %v6826, %v6827
  %v6829 = vrot.slane %v6828, 1
  %v6830 = vadd.f32 %v6828, %v6829
  %v6831 = vsel %vm2636, %v6181, 0.0
  %v6832 = vsel %vm2636, %v6182, 0.0
  %v6833 = vadd.f32 %v6831, %v6832
  %v6834 = vrot.slane %v6833, 4
  %v6835 = vadd.f32 %v6833, %v6834
  %v6836 = vrot.slane %v6835, 2
  %v6837 = vadd.f32 %v6835, %v6836
  %v6838 = vrot.slane %v6837, 1
  %v6839 = vadd.f32 %v6837, %v6838
  %v6840 = vsel %vm2636, %v6183, 0.0
  %v6841 = vsel %vm2636, %v6184, 0.0
  %v6842 = vadd.f32 %v6840, %v6841
  %v6843 = vrot.slane %v6842, 4
  %v6844 = vadd.f32 %v6842, %v6843
  %v6845 = vrot.slane %v6844, 2
  %v6846 = vadd.f32 %v6844, %v6845
  %v6847 = vrot.slane %v6846, 1
  %v6848 = vadd.f32 %v6846, %v6847
  %v6849 = vsel %vm2636, %v6185, 0.0
  %v6850 = vsel %vm2636, %v6186, 0.0
  %v6851 = vadd.f32 %v6849, %v6850
  %v6852 = vrot.slane %v6851, 4
  %v6853 = vadd.f32 %v6851, %v6852
  %v6854 = vrot.slane %v6853, 2
  %v6855 = vadd.f32 %v6853, %v6854
  %v6856 = vrot.slane %v6855, 1
  %v6857 = vadd.f32 %v6855, %v6856
  %v6858 = vsel %vm2636, %v6187, 0.0
  %v6859 = vsel %vm2636, %v6188, 0.0
  %v6860 = vadd.f32 %v6858, %v6859
  %v6861 = vrot.slane %v6860, 4
  %v6862 = vadd.f32 %v6860, %v6861
  %v6863 = vrot.slane %v6862, 2
  %v6864 = vadd.f32 %v6862, %v6863
  %v6865 = vrot.slane %v6864, 1
  %v6866 = vadd.f32 %v6864, %v6865
  %v6867 = vsel %vm2636, %v6189, 0.0
  %v6868 = vsel %vm2636, %v6190, 0.0
  %v6869 = vadd.f32 %v6867, %v6868
  %v6870 = vrot.slane %v6869, 4
  %v6871 = vadd.f32 %v6869, %v6870
  %v6872 = vrot.slane %v6871, 2
  %v6873 = vadd.f32 %v6871, %v6872
  %v6874 = vrot.slane %v6873, 1
  %v6875 = vadd.f32 %v6873, %v6874
  %v6876 = vsel %vm2636, %v6191, 0.0
  %v6877 = vsel %vm2636, %v6192, 0.0
  %v6878 = vadd.f32 %v6876, %v6877
  %v6879 = vrot.slane %v6878, 4
  %v6880 = vadd.f32 %v6878, %v6879
  %v6881 = vrot.slane %v6880, 2
  %v6882 = vadd.f32 %v6880, %v6881
  %v6883 = vrot.slane %v6882, 1
  %v6884 = vadd.f32 %v6882, %v6883
  %v6885 = vsel %vm2636, %v6193, 0.0
  %v6886 = vsel %vm2636, %v6194, 0.0
  %v6887 = vadd.f32 %v6885, %v6886
  %v6888 = vrot.slane %v6887, 4
  %v6889 = vadd.f32 %v6887, %v6888
  %v6890 = vrot.slane %v6889, 2
  %v6891 = vadd.f32 %v6889, %v6890
  %v6892 = vrot.slane %v6891, 1
  %v6893 = vadd.f32 %v6891, %v6892
  %v6894 = vsel %vm2636, %v6195, 0.0
  %v6895 = vsel %vm2636, %v6196, 0.0
  %v6896 = vadd.f32 %v6894, %v6895
  %v6897 = vrot.slane %v6896, 4
  %v6898 = vadd.f32 %v6896, %v6897
  %v6899 = vrot.slane %v6898, 2
  %v6900 = vadd.f32 %v6898, %v6899
  %v6901 = vrot.slane %v6900, 1
  %v6902 = vadd.f32 %v6900, %v6901
  %v6903 = vsel %vm2636, %v6197, 0.0
  %v6904 = vsel %vm2636, %v6198, 0.0
  %v6905 = vadd.f32 %v6903, %v6904
  %v6906 = vrot.slane %v6905, 4
  %v6907 = vadd.f32 %v6905, %v6906
  %v6908 = vrot.slane %v6907, 2
  %v6909 = vadd.f32 %v6907, %v6908
  %v6910 = vrot.slane %v6909, 1
  %v6911 = vadd.f32 %v6909, %v6910
  %v6912 = vsel %vm2636, %v6199, 0.0
  %v6913 = vsel %vm2636, %v6200, 0.0
  %v6914 = vadd.f32 %v6912, %v6913
  %v6915 = vrot.slane %v6914, 4
  %v6916 = vadd.f32 %v6914, %v6915
  %v6917 = vrot.slane %v6916, 2
  %v6918 = vadd.f32 %v6916, %v6917
  %v6919 = vrot.slane %v6918, 1
  %v6920 = vadd.f32 %v6918, %v6919
  %v7001 = vsel %vm4087, %v6218, %v6209
  %v7002 = vsel %vm4089, %v6227, %v7001
  %v7003 = vsel %vm4091, %v6236, %v7002
  %v7004 = vsel %vm4093, %v6245, %v7003
  %v7005 = vsel %vm4095, %v6254, %v7004
  %v7006 = vsel %vm4097, %v6263, %v7005
  %v7007 = vsel %vm4099, %v6272, %v7006
  %v7008 = vsel %vm4087, %v6290, %v6281
  %v7009 = vsel %vm4087, %v6308, %v6299
  %v7010 = vsel %vm4089, %v6317, %v7009
  %v7011 = vsel %vm4091, %v6326, %v7010
  %v7012 = vsel %vm4093, %v6335, %v7011
  %v7013 = vsel %vm4095, %v6344, %v7012
  %v7014 = vsel %vm4097, %v6353, %v7013
  %v7015 = vsel %vm4099, %v6362, %v7014
  %v7016 = vsel %vm4087, %v6380, %v6371
  %v7017 = vsel %vm4087, %v6398, %v6389
  %v7018 = vsel %vm4089, %v6407, %v7017
  %v7019 = vsel %vm4091, %v6416, %v7018
  %v7020 = vsel %vm4093, %v6425, %v7019
  %v7021 = vsel %vm4095, %v6434, %v7020
  %v7022 = vsel %vm4097, %v6443, %v7021
  %v7023 = vsel %vm4099, %v6452, %v7022
  %v7024 = vsel %vm4087, %v6470, %v6461
  %v7025 = vsel %vm4087, %v6488, %v6479
  %v7026 = vsel %vm4089, %v6497, %v7025
  %v7027 = vsel %vm4091, %v6506, %v7026
  %v7028 = vsel %vm4093, %v6515, %v7027
  %v7029 = vsel %vm4095, %v6524, %v7028
  %v7030 = vsel %vm4097, %v6533, %v7029
  %v7031 = vsel %vm4099, %v6542, %v7030
  %v7032 = vsel %vm4087, %v6560, %v6551
  %v7033 = vsel %vm4087, %v6578, %v6569
  %v7034 = vsel %vm4089, %v6587, %v7033
  %v7035 = vsel %vm4091, %v6596, %v7034
  %v7036 = vsel %vm4093, %v6605, %v7035
  %v7037 = vsel %vm4095, %v6614, %v7036
  %v7038 = vsel %vm4097, %v6623, %v7037
  %v7039 = vsel %vm4099, %v6632, %v7038
  %v7040 = vsel %vm4087, %v6650, %v6641
  %v7041 = vsel %vm4087, %v6668, %v6659
  %v7042 = vsel %vm4089, %v6677, %v7041
  %v7043 = vsel %vm4091, %v6686, %v7042
  %v7044 = vsel %vm4093, %v6695, %v7043
  %v7045 = vsel %vm4095, %v6704, %v7044
  %v7046 = vsel %vm4097, %v6713, %v7045
  %v7047 = vsel %vm4099, %v6722, %v7046
  %v7048 = vsel %vm4087, %v6740, %v6731
  %v7049 = vsel %vm4087, %v6758, %v6749
  %v7050 = vsel %vm4089, %v6767, %v7049
  %v7051 = vsel %vm4091, %v6776, %v7050
  %v7052 = vsel %vm4093, %v6785, %v7051
  %v7053 = vsel %vm4095, %v6794, %v7052
  %v7054 = vsel %vm4097, %v6803, %v7053
  %v7055 = vsel %vm4099, %v6812, %v7054
  %v7056 = vsel %vm4087, %v6830, %v6821
  %v7057 = vsel %vm4087, %v6848, %v6839
  %v7058 = vsel %vm4089, %v6857, %v7057
  %v7059 = vsel %vm4091, %v6866, %v7058
  %v7060 = vsel %vm4093, %v6875, %v7059
  %v7061 = vsel %vm4095, %v6884, %v7060
  %v7062 = vsel %vm4097, %v6893, %v7061
  %v7063 = vsel %vm4099, %v6902, %v7062
  %v7064 = vsel %vm4087, %v6920, %v6911
  %v7081 = vadd.f32 %v4174, %v7007
  %v7082 = vadd.f32 %v4175, %v7008
  %v7083 = vadd.f32 %v4176, %v7015
  %v7084 = vadd.f32 %v4177, %v7016
  %v7085 = vadd.f32 %v4178, %v7023
  %v7086 = vadd.f32 %v4179, %v7024
  %v7087 = vadd.f32 %v4180, %v7031
  %v7088 = vadd.f32 %v4181, %v7032
  %v7089 = vadd.f32 %v4182, %v7039
  %v7090 = vadd.f32 %v4183, %v7040
  %v7091 = vadd.f32 %v4184, %v7047
  %v7092 = vadd.f32 %v4185, %v7048
  %v7093 = vadd.f32 %v4186, %v7055
  %v7094 = vadd.f32 %v4187, %v7056
  %v7095 = vadd.f32 %v4188, %v7063
  %v7096 = vadd.f32 %v4189, %v7064
  %v7097 = vsel %vm2636, %v7081, -inf
  %v7098 = vsel %vm4191, %v7082, -inf
  %v7099 = vmax.f32 %v7097, %v7098
  %v7100 = vrot.slane %v7099, 4
  %v7101 = vmax.f32 %v7099, %v7100
  %v7102 = vrot.slane %v7101, 2
  %v7103 = vmax.f32 %v7101, %v7102
  %v7104 = vrot.slane %v7103, 1
  %v7105 = vmax.f32 %v7103, %v7104
  %v7106 = vsel %vm2636, %v7083, -inf
  %v7107 = vsel %vm4191, %v7084, -inf
  %v7108 = vmax.f32 %v7106, %v7107
  %v7109 = vrot.slane %v7108, 4
  %v7110 = vmax.f32 %v7108, %v7109
  %v7111 = vrot.slane %v7110, 2
  %v7112 = vmax.f32 %v7110, %v7111
  %v7113 = vrot.slane %v7112, 1
  %v7114 = vmax.f32 %v7112, %v7113
  %v7115 = vsel %vm2636, %v7085, -inf
  %v7116 = vsel %vm4191, %v7086, -inf
  %v7117 = vmax.f32 %v7115, %v7116
  %v7118 = vrot.slane %v7117, 4
  %v7119 = vmax.f32 %v7117, %v7118
  %v7120 = vrot.slane %v7119, 2
  %v7121 = vmax.f32 %v7119, %v7120
  %v7122 = vrot.slane %v7121, 1
  %v7123 = vmax.f32 %v7121, %v7122
  %v7124 = vsel %vm2636, %v7087, -inf
  %v7125 = vsel %vm4191, %v7088, -inf
  %v7126 = vmax.f32 %v7124, %v7125
  %v7127 = vrot.slane %v7126, 4
  %v7128 = vmax.f32 %v7126, %v7127
  %v7129 = vrot.slane %v7128, 2
  %v7130 = vmax.f32 %v7128, %v7129
  %v7131 = vrot.slane %v7130, 1
  %v7132 = vmax.f32 %v7130, %v7131
  %v7133 = vsel %vm2636, %v7089, -inf
  %v7134 = vsel %vm4191, %v7090, -inf
  %v7135 = vmax.f32 %v7133, %v7134
  %v7136 = vrot.slane %v7135, 4
  %v7137 = vmax.f32 %v7135, %v7136
  %v7138 = vrot.slane %v7137, 2
  %v7139 = vmax.f32 %v7137, %v7138
  %v7140 = vrot.slane %v7139, 1
  %v7141 = vmax.f32 %v7139, %v7140
  %v7142 = vsel %vm2636, %v7091, -inf
  %v7143 = vsel %vm4191, %v7092, -inf
  %v7144 = vmax.f32 %v7142, %v7143
  %v7145 = vrot.slane %v7144, 4
  %v7146 = vmax.f32 %v7144, %v7145
  %v7147 = vrot.slane %v7146, 2
  %v7148 = vmax.f32 %v7146, %v7147
  %v7149 = vrot.slane %v7148, 1
  %v7150 = vmax.f32 %v7148, %v7149
  %v7151 = vsel %vm2636, %v7093, -inf
  %v7152 = vsel %vm4191, %v7094, -inf
  %v7153 = vmax.f32 %v7151, %v7152
  %v7154 = vrot.slane %v7153, 4
  %v7155 = vmax.f32 %v7153, %v7154
  %v7156 = vrot.slane %v7155, 2
  %v7157 = vmax.f32 %v7155, %v7156
  %v7158 = vrot.slane %v7157, 1
  %v7159 = vmax.f32 %v7157, %v7158
  %v7160 = vsel %vm2636, %v7095, -inf
  %v7161 = vsel %vm4191, %v7096, -inf
  %v7162 = vmax.f32 %v7160, %v7161
  %v7163 = vrot.slane %v7162, 4
  %v7164 = vmax.f32 %v7162, %v7163
  %v7165 = vrot.slane %v7164, 2
  %v7166 = vmax.f32 %v7164, %v7165
  %v7167 = vrot.slane %v7166, 1
  %v7168 = vmax.f32 %v7166, %v7167
  %v7169 = vsub.f32 %v7081, %v7105
  %v7170 = vsub.f32 %v7082, %v7105
  %v7171 = vsub.f32 %v7083, %v7114
  %v7172 = vsub.f32 %v7084, %v7114
  %v7173 = vsub.f32 %v7085, %v7123
  %v7174 = vsub.f32 %v7086, %v7123
  %v7175 = vsub.f32 %v7087, %v7132
  %v7176 = vsub.f32 %v7088, %v7132
  %v7177 = vsub.f32 %v7089, %v7141
  %v7178 = vsub.f32 %v7090, %v7141
  %v7179 = vsub.f32 %v7091, %v7150
  %v7180 = vsub.f32 %v7092, %v7150
  %v7181 = vsub.f32 %v7093, %v7159
  %v7182 = vsub.f32 %v7094, %v7159
  %v7183 = vsub.f32 %v7095, %v7168
  %v7184 = vsub.f32 %v7096, %v7168
  %v7185 = vmul.f32 %v7169, 1.442695
  %v7186 = vpow.pop %v7185
  %v7187 = vmul.f32 %v7170, 1.442695
  %v7188 = vpow.pop %v7187
  %v7189 = vmul.f32 %v7171, 1.442695
  %v7190 = vpow.pop %v7189
  %v7191 = vmul.f32 %v7172, 1.442695
  %v7192 = vpow.pop %v7191
  %v7193 = vmul.f32 %v7173, 1.442695
  %v7194 = vpow.pop %v7193
  %v7195 = vmul.f32 %v7174, 1.442695
  %v7196 = vpow.pop %v7195
  %v7197 = vmul.f32 %v7175, 1.442695
  %v7198 = vpow.pop %v7197
  %v7199 = vmul.f32 %v7176, 1.442695
  %v7200 = vpow.pop %v7199
  %v7201 = vmul.f32 %v7177, 1.442695
  %v7202 = vpow.pop %v7201
  %v7203 = vmul.f32 %v7178, 1.442695
  %v7204 = vpow.pop %v7203
  %v7205 = vmul.f32 %v7179, 1.442695
  %v7206 = vpow.pop %v7205
  %v7207 = vmul.f32 %v7180, 1.442695
  %v7208 = vpow.pop %v7207
  %v7209 = vmul.f32 %v7181, 1.442695
  %v7210 = vpow.pop %v7209
  %v7211 = vmul.f32 %v7182, 1.442695
  %v7212 = vpow.pop %v7211
  %v7213 = vmul.f32 %v7183, 1.442695
  %v7214 = vpow.pop %v7213
  %v7215 = vmul.f32 %v7184, 1.442695
  %v7216 = vpow.pop %v7215
  %v7217 = vsel %vm2636, %v7186, 0.0
  %v7218 = vsel %vm4191, %v7188, 0.0
  %v7219 = vadd.f32 %v7217, %v7218
  %v7220 = vrot.slane %v7219, 4
  %v7221 = vadd.f32 %v7219, %v7220
  %v7222 = vrot.slane %v7221, 2
  %v7223 = vadd.f32 %v7221, %v7222
  %v7224 = vrot.slane %v7223, 1
  %v7225 = vadd.f32 %v7223, %v7224
  %v7226 = vsel %vm2636, %v7190, 0.0
  %v7227 = vsel %vm4191, %v7192, 0.0
  %v7228 = vadd.f32 %v7226, %v7227
  %v7229 = vrot.slane %v7228, 4
  %v7230 = vadd.f32 %v7228, %v7229
  %v7231 = vrot.slane %v7230, 2
  %v7232 = vadd.f32 %v7230, %v7231
  %v7233 = vrot.slane %v7232, 1
  %v7234 = vadd.f32 %v7232, %v7233
  %v7235 = vsel %vm2636, %v7194, 0.0
  %v7236 = vsel %vm4191, %v7196, 0.0
  %v7237 = vadd.f32 %v7235, %v7236
  %v7238 = vrot.slane %v7237, 4
  %v7239 = vadd.f32 %v7237, %v7238
  %v7240 = vrot.slane %v7239, 2
  %v7241 = vadd.f32 %v7239, %v7240
  %v7242 = vrot.slane %v7241, 1
  %v7243 = vadd.f32 %v7241, %v7242
  %v7244 = vsel %vm2636, %v7198, 0.0
  %v7245 = vsel %vm4191, %v7200, 0.0
  %v7246 = vadd.f32 %v7244, %v7245
  %v7247 = vrot.slane %v7246, 4
  %v7248 = vadd.f32 %v7246, %v7247
  %v7249 = vrot.slane %v7248, 2
  %v7250 = vadd.f32 %v7248, %v7249
  %v7251 = vrot.slane %v7250, 1
  %v7252 = vadd.f32 %v7250, %v7251
  %v7253 = vsel %vm2636, %v7202, 0.0
  %v7254 = vsel %vm4191, %v7204, 0.0
  %v7255 = vadd.f32 %v7253, %v7254
  %v7256 = vrot.slane %v7255, 4
  %v7257 = vadd.f32 %v7255, %v7256
  %v7258 = vrot.slane %v7257, 2
  %v7259 = vadd.f32 %v7257, %v7258
  %v7260 = vrot.slane %v7259, 1
  %v7261 = vadd.f32 %v7259, %v7260
  %v7262 = vsel %vm2636, %v7206, 0.0
  %v7263 = vsel %vm4191, %v7208, 0.0
  %v7264 = vadd.f32 %v7262, %v7263
  %v7265 = vrot.slane %v7264, 4
  %v7266 = vadd.f32 %v7264, %v7265
  %v7267 = vrot.slane %v7266, 2
  %v7268 = vadd.f32 %v7266, %v7267
  %v7269 = vrot.slane %v7268, 1
  %v7270 = vadd.f32 %v7268, %v7269
  %v7271 = vsel %vm2636, %v7210, 0.0
  %v7272 = vsel %vm4191, %v7212, 0.0
  %v7273 = vadd.f32 %v7271, %v7272
  %v7274 = vrot.slane %v7273, 4
  %v7275 = vadd.f32 %v7273, %v7274
  %v7276 = vrot.slane %v7275, 2
  %v7277 = vadd.f32 %v7275, %v7276
  %v7278 = vrot.slane %v7277, 1
  %v7279 = vadd.f32 %v7277, %v7278
  %v7280 = vsel %vm2636, %v7214, 0.0
  %v7281 = vsel %vm4191, %v7216, 0.0
  %v7282 = vadd.f32 %v7280, %v7281
  %v7283 = vrot.slane %v7282, 4
  %v7284 = vadd.f32 %v7282, %v7283
  %v7285 = vrot.slane %v7284, 2
  %v7286 = vadd.f32 %v7284, %v7285
  %v7287 = vrot.slane %v7286, 1
  %v7288 = vadd.f32 %v7286, %v7287
  %v7289 = vrcp.pop %v7225
  %v7290 = vmul.f32 %v7186, %v7289
  %v7291 = vmul.f32 %v7188, %v7289
  %v7292 = vrcp.pop %v7234
  %v7293 = vmul.f32 %v7190, %v7292
  %v7294 = vmul.f32 %v7192, %v7292
  %v7295 = vrcp.pop %v7243
  %v7296 = vmul.f32 %v7194, %v7295
  %v7297 = vmul.f32 %v7196, %v7295
  %v7298 = vrcp.pop %v7252
  %v7299 = vmul.f32 %v7198, %v7298
  %v7300 = vmul.f32 %v7200, %v7298
  %v7301 = vrcp.pop %v7261
  %v7302 = vmul.f32 %v7202, %v7301
  %v7303 = vmul.f32 %v7204, %v7301
  %v7304 = vrcp.pop %v7270
  %v7305 = vmul.f32 %v7206, %v7304
  %v7306 = vmul.f32 %v7208, %v7304
  %v7307 = vrcp.pop %v7279
  %v7308 = vmul.f32 %v7210, %v7307
  %v7309 = vmul.f32 %v7212, %v7307
  %v7310 = vrcp.pop %v7288
  %v7311 = vmul.f32 %v7214, %v7310
  %v7312 = vmul.f32 %v7216, %v7310
  %v7329 = vcombine.high %v7290, %v7290
  %v7331 = vunpack.c.l.s4 1966171168
  %v7332 = vunpack.c.0.s8 %v7331
  %v7333 = vlaneseq
  %v7334 = vshrl.u32 %v7333, 7
  %v7335 = vsub.s32 %v7332, %v7334
  %v7336 = vrot.slane %v7290, %v7335
  %v7338 = vunpack.c.l.s4 1966171168
  %v7339 = vunpack.c.0.s8 %v7338
  %v7340 = vlaneseq
  %v7341 = vshrl.u32 %v7340, 7
  %v7342 = vsub.s32 %v7339, %v7341
  %v7343 = vrot.slane %v7329, %v7342
  %v7344 = vcombine.high %v7336, %v7336
  %v7345 = vcombine.high %v7343, %v7343
  %v7347 = vunpack.c.l.s4 1966171168
  %v7348 = vunpack.c.0.s8 %v7347
  %v7349 = vlaneseq
  %v7350 = vshrl.u32 %v7349, 7
  %v7351 = vsub.s32 %v7348, %v7350
  %v7352 = vrot.slane %v7336, %v7351
  %v7354 = vunpack.c.l.s4 1966171168
  %v7355 = vunpack.c.0.s8 %v7354
  %v7356 = vlaneseq
  %v7357 = vshrl.u32 %v7356, 7
  %v7358 = vsub.s32 %v7355, %v7357
  %v7359 = vrot.slane %v7343, %v7358
  %v7361 = vunpack.c.l.s4 1966171168
  %v7362 = vunpack.c.0.s8 %v7361
  %v7363 = vlaneseq
  %v7364 = vshrl.u32 %v7363, 7
  %v7365 = vsub.s32 %v7362, %v7364
  %v7366 = vrot.slane %v7344, %v7365
  %v7368 = vunpack.c.l.s4 1966171168
  %v7369 = vunpack.c.0.s8 %v7368
  %v7370 = vlaneseq
  %v7371 = vshrl.u32 %v7370, 7
  %v7372 = vsub.s32 %v7369, %v7371
  %v7373 = vrot.slane %v7345, %v7372
  %v7374 = vcombine.high %v7352, %v7352
  %v7375 = vcombine.high %v7359, %v7359
  %v7376 = vcombine.high %v7366, %v7366
  %v7377 = vcombine.high %v7373, %v7373
  %v7379 = vunpack.c.l.s4 1966171168
  %v7380 = vunpack.c.0.s8 %v7379
  %v7381 = vlaneseq
  %v7382 = vshrl.u32 %v7381, 7
  %v7383 = vsub.s32 %v7380, %v7382
  %v7384 = vrot.slane %v7291, %v7383
  %v7385 = vcombine.high %v7384, %v7384
  %v7387 = vunpack.c.l.s4 1966171168
  %v7388 = vunpack.c.0.s8 %v7387
  %v7389 = vlaneseq
  %v7390 = vshrl.u32 %v7389, 7
  %v7391 = vsub.s32 %v7388, %v7390
  %v7392 = vrot.slane %v7384, %v7391
  %v7394 = vunpack.c.l.s4 1966171168
  %v7395 = vunpack.c.0.s8 %v7394
  %v7396 = vlaneseq
  %v7397 = vshrl.u32 %v7396, 7
  %v7398 = vsub.s32 %v7395, %v7397
  %v7399 = vrot.slane %v7385, %v7398
  %v7400 = vcombine.high %v7293, %v7293
  %v7402 = vunpack.c.l.s4 1966171168
  %v7403 = vunpack.c.0.s8 %v7402
  %v7404 = vlaneseq
  %v7405 = vshrl.u32 %v7404, 7
  %v7406 = vsub.s32 %v7403, %v7405
  %v7407 = vrot.slane %v7293, %v7406
  %v7409 = vunpack.c.l.s4 1966171168
  %v7410 = vunpack.c.0.s8 %v7409
  %v7411 = vlaneseq
  %v7412 = vshrl.u32 %v7411, 7
  %v7413 = vsub.s32 %v7410, %v7412
  %v7414 = vrot.slane %v7400, %v7413
  %v7415 = vcombine.high %v7407, %v7407
  %v7416 = vcombine.high %v7414, %v7414
  %v7418 = vunpack.c.l.s4 1966171168
  %v7419 = vunpack.c.0.s8 %v7418
  %v7420 = vlaneseq
  %v7421 = vshrl.u32 %v7420, 7
  %v7422 = vsub.s32 %v7419, %v7421
  %v7423 = vrot.slane %v7407, %v7422
  %v7425 = vunpack.c.l.s4 1966171168
  %v7426 = vunpack.c.0.s8 %v7425
  %v7427 = vlaneseq
  %v7428 = vshrl.u32 %v7427, 7
  %v7429 = vsub.s32 %v7426, %v7428
  %v7430 = vrot.slane %v7414, %v7429
  %v7432 = vunpack.c.l.s4 1966171168
  %v7433 = vunpack.c.0.s8 %v7432
  %v7434 = vlaneseq
  %v7435 = vshrl.u32 %v7434, 7
  %v7436 = vsub.s32 %v7433, %v7435
  %v7437 = vrot.slane %v7415, %v7436
  %v7439 = vunpack.c.l.s4 1966171168
  %v7440 = vunpack.c.0.s8 %v7439
  %v7441 = vlaneseq
  %v7442 = vshrl.u32 %v7441, 7
  %v7443 = vsub.s32 %v7440, %v7442
  %v7444 = vrot.slane %v7416, %v7443
  %v7445 = vcombine.high %v7423, %v7423
  %v7446 = vcombine.high %v7430, %v7430
  %v7447 = vcombine.high %v7437, %v7437
  %v7448 = vcombine.high %v7444, %v7444
  %v7450 = vunpack.c.l.s4 1966171168
  %v7451 = vunpack.c.0.s8 %v7450
  %v7452 = vlaneseq
  %v7453 = vshrl.u32 %v7452, 7
  %v7454 = vsub.s32 %v7451, %v7453
  %v7455 = vrot.slane %v7294, %v7454
  %v7456 = vcombine.high %v7455, %v7455
  %v7458 = vunpack.c.l.s4 1966171168
  %v7459 = vunpack.c.0.s8 %v7458
  %v7460 = vlaneseq
  %v7461 = vshrl.u32 %v7460, 7
  %v7462 = vsub.s32 %v7459, %v7461
  %v7463 = vrot.slane %v7455, %v7462
  %v7465 = vunpack.c.l.s4 1966171168
  %v7466 = vunpack.c.0.s8 %v7465
  %v7467 = vlaneseq
  %v7468 = vshrl.u32 %v7467, 7
  %v7469 = vsub.s32 %v7466, %v7468
  %v7470 = vrot.slane %v7456, %v7469
  %v7471 = vcombine.high %v7296, %v7296
  %v7473 = vunpack.c.l.s4 1966171168
  %v7474 = vunpack.c.0.s8 %v7473
  %v7475 = vlaneseq
  %v7476 = vshrl.u32 %v7475, 7
  %v7477 = vsub.s32 %v7474, %v7476
  %v7478 = vrot.slane %v7296, %v7477
  %v7480 = vunpack.c.l.s4 1966171168
  %v7481 = vunpack.c.0.s8 %v7480
  %v7482 = vlaneseq
  %v7483 = vshrl.u32 %v7482, 7
  %v7484 = vsub.s32 %v7481, %v7483
  %v7485 = vrot.slane %v7471, %v7484
  %v7486 = vcombine.high %v7478, %v7478
  %v7487 = vcombine.high %v7485, %v7485
  %v7489 = vunpack.c.l.s4 1966171168
  %v7490 = vunpack.c.0.s8 %v7489
  %v7491 = vlaneseq
  %v7492 = vshrl.u32 %v7491, 7
  %v7493 = vsub.s32 %v7490, %v7492
  %v7494 = vrot.slane %v7478, %v7493
  %v7496 = vunpack.c.l.s4 1966171168
  %v7497 = vunpack.c.0.s8 %v7496
  %v7498 = vlaneseq
  %v7499 = vshrl.u32 %v7498, 7
  %v7500 = vsub.s32 %v7497, %v7499
  %v7501 = vrot.slane %v7485, %v7500
  %v7503 = vunpack.c.l.s4 1966171168
  %v7504 = vunpack.c.0.s8 %v7503
  %v7505 = vlaneseq
  %v7506 = vshrl.u32 %v7505, 7
  %v7507 = vsub.s32 %v7504, %v7506
  %v7508 = vrot.slane %v7486, %v7507
  %v7510 = vunpack.c.l.s4 1966171168
  %v7511 = vunpack.c.0.s8 %v7510
  %v7512 = vlaneseq
  %v7513 = vshrl.u32 %v7512, 7
  %v7514 = vsub.s32 %v7511, %v7513
  %v7515 = vrot.slane %v7487, %v7514
  %v7516 = vcombine.high %v7494, %v7494
  %v7517 = vcombine.high %v7501, %v7501
  %v7518 = vcombine.high %v7508, %v7508
  %v7519 = vcombine.high %v7515, %v7515
  %v7521 = vunpack.c.l.s4 1966171168
  %v7522 = vunpack.c.0.s8 %v7521
  %v7523 = vlaneseq
  %v7524 = vshrl.u32 %v7523, 7
  %v7525 = vsub.s32 %v7522, %v7524
  %v7526 = vrot.slane %v7297, %v7525
  %v7527 = vcombine.high %v7526, %v7526
  %v7529 = vunpack.c.l.s4 1966171168
  %v7530 = vunpack.c.0.s8 %v7529
  %v7531 = vlaneseq
  %v7532 = vshrl.u32 %v7531, 7
  %v7533 = vsub.s32 %v7530, %v7532
  %v7534 = vrot.slane %v7526, %v7533
  %v7536 = vunpack.c.l.s4 1966171168
  %v7537 = vunpack.c.0.s8 %v7536
  %v7538 = vlaneseq
  %v7539 = vshrl.u32 %v7538, 7
  %v7540 = vsub.s32 %v7537, %v7539
  %v7541 = vrot.slane %v7527, %v7540
  %v7542 = vcombine.high %v7299, %v7299
  %v7544 = vunpack.c.l.s4 1966171168
  %v7545 = vunpack.c.0.s8 %v7544
  %v7546 = vlaneseq
  %v7547 = vshrl.u32 %v7546, 7
  %v7548 = vsub.s32 %v7545, %v7547
  %v7549 = vrot.slane %v7299, %v7548
  %v7551 = vunpack.c.l.s4 1966171168
  %v7552 = vunpack.c.0.s8 %v7551
  %v7553 = vlaneseq
  %v7554 = vshrl.u32 %v7553, 7
  %v7555 = vsub.s32 %v7552, %v7554
  %v7556 = vrot.slane %v7542, %v7555
  %v7557 = vcombine.high %v7549, %v7549
  %v7558 = vcombine.high %v7556, %v7556
  %v7560 = vunpack.c.l.s4 1966171168
  %v7561 = vunpack.c.0.s8 %v7560
  %v7562 = vlaneseq
  %v7563 = vshrl.u32 %v7562, 7
  %v7564 = vsub.s32 %v7561, %v7563
  %v7565 = vrot.slane %v7549, %v7564
  %v7567 = vunpack.c.l.s4 1966171168
  %v7568 = vunpack.c.0.s8 %v7567
  %v7569 = vlaneseq
  %v7570 = vshrl.u32 %v7569, 7
  %v7571 = vsub.s32 %v7568, %v7570
  %v7572 = vrot.slane %v7556, %v7571
  %v7574 = vunpack.c.l.s4 1966171168
  %v7575 = vunpack.c.0.s8 %v7574
  %v7576 = vlaneseq
  %v7577 = vshrl.u32 %v7576, 7
  %v7578 = vsub.s32 %v7575, %v7577
  %v7579 = vrot.slane %v7557, %v7578
  %v7581 = vunpack.c.l.s4 1966171168
  %v7582 = vunpack.c.0.s8 %v7581
  %v7583 = vlaneseq
  %v7584 = vshrl.u32 %v7583, 7
  %v7585 = vsub.s32 %v7582, %v7584
  %v7586 = vrot.slane %v7558, %v7585
  %v7587 = vcombine.high %v7565, %v7565
  %v7588 = vcombine.high %v7572, %v7572
  %v7589 = vcombine.high %v7579, %v7579
  %v7590 = vcombine.high %v7586, %v7586
  %v7592 = vunpack.c.l.s4 1966171168
  %v7593 = vunpack.c.0.s8 %v7592
  %v7594 = vlaneseq
  %v7595 = vshrl.u32 %v7594, 7
  %v7596 = vsub.s32 %v7593, %v7595
  %v7597 = vrot.slane %v7300, %v7596
  %v7598 = vcombine.high %v7597, %v7597
  %v7600 = vunpack.c.l.s4 1966171168
  %v7601 = vunpack.c.0.s8 %v7600
  %v7602 = vlaneseq
  %v7603 = vshrl.u32 %v7602, 7
  %v7604 = vsub.s32 %v7601, %v7603
  %v7605 = vrot.slane %v7597, %v7604
  %v7607 = vunpack.c.l.s4 1966171168
  %v7608 = vunpack.c.0.s8 %v7607
  %v7609 = vlaneseq
  %v7610 = vshrl.u32 %v7609, 7
  %v7611 = vsub.s32 %v7608, %v7610
  %v7612 = vrot.slane %v7598, %v7611
  %v7613 = vcombine.high %v7302, %v7302
  %v7615 = vunpack.c.l.s4 1966171168
  %v7616 = vunpack.c.0.s8 %v7615
  %v7617 = vlaneseq
  %v7618 = vshrl.u32 %v7617, 7
  %v7619 = vsub.s32 %v7616, %v7618
  %v7620 = vrot.slane %v7302, %v7619
  %v7622 = vunpack.c.l.s4 1966171168
  %v7623 = vunpack.c.0.s8 %v7622
  %v7624 = vlaneseq
  %v7625 = vshrl.u32 %v7624, 7
  %v7626 = vsub.s32 %v7623, %v7625
  %v7627 = vrot.slane %v7613, %v7626
  %v7628 = vcombine.high %v7620, %v7620
  %v7629 = vcombine.high %v7627, %v7627
  %v7631 = vunpack.c.l.s4 1966171168
  %v7632 = vunpack.c.0.s8 %v7631
  %v7633 = vlaneseq
  %v7634 = vshrl.u32 %v7633, 7
  %v7635 = vsub.s32 %v7632, %v7634
  %v7636 = vrot.slane %v7620, %v7635
  %v7638 = vunpack.c.l.s4 1966171168
  %v7639 = vunpack.c.0.s8 %v7638
  %v7640 = vlaneseq
  %v7641 = vshrl.u32 %v7640, 7
  %v7642 = vsub.s32 %v7639, %v7641
  %v7643 = vrot.slane %v7627, %v7642
  %v7645 = vunpack.c.l.s4 1966171168
  %v7646 = vunpack.c.0.s8 %v7645
  %v7647 = vlaneseq
  %v7648 = vshrl.u32 %v7647, 7
  %v7649 = vsub.s32 %v7646, %v7648
  %v7650 = vrot.slane %v7628, %v7649
  %v7652 = vunpack.c.l.s4 1966171168
  %v7653 = vunpack.c.0.s8 %v7652
  %v7654 = vlaneseq
  %v7655 = vshrl.u32 %v7654, 7
  %v7656 = vsub.s32 %v7653, %v7655
  %v7657 = vrot.slane %v7629, %v7656
  %v7658 = vcombine.high %v7636, %v7636
  %v7659 = vcombine.high %v7643, %v7643
  %v7660 = vcombine.high %v7650, %v7650
  %v7661 = vcombine.high %v7657, %v7657
  %v7663 = vunpack.c.l.s4 1966171168
  %v7664 = vunpack.c.0.s8 %v7663
  %v7665 = vlaneseq
  %v7666 = vshrl.u32 %v7665, 7
  %v7667 = vsub.s32 %v7664, %v7666
  %v7668 = vrot.slane %v7303, %v7667
  %v7669 = vcombine.high %v7668, %v7668
  %v7671 = vunpack.c.l.s4 1966171168
  %v7672 = vunpack.c.0.s8 %v7671
  %v7673 = vlaneseq
  %v7674 = vshrl.u32 %v7673, 7
  %v7675 = vsub.s32 %v7672, %v7674
  %v7676 = vrot.slane %v7668, %v7675
  %v7678 = vunpack.c.l.s4 1966171168
  %v7679 = vunpack.c.0.s8 %v7678
  %v7680 = vlaneseq
  %v7681 = vshrl.u32 %v7680, 7
  %v7682 = vsub.s32 %v7679, %v7681
  %v7683 = vrot.slane %v7669, %v7682
  %v7684 = vcombine.high %v7305, %v7305
  %v7686 = vunpack.c.l.s4 1966171168
  %v7687 = vunpack.c.0.s8 %v7686
  %v7688 = vlaneseq
  %v7689 = vshrl.u32 %v7688, 7
  %v7690 = vsub.s32 %v7687, %v7689
  %v7691 = vrot.slane %v7305, %v7690
  %v7693 = vunpack.c.l.s4 1966171168
  %v7694 = vunpack.c.0.s8 %v7693
  %v7695 = vlaneseq
  %v7696 = vshrl.u32 %v7695, 7
  %v7697 = vsub.s32 %v7694, %v7696
  %v7698 = vrot.slane %v7684, %v7697
  %v7699 = vcombine.high %v7691, %v7691
  %v7700 = vcombine.high %v7698, %v7698
  %v7702 = vunpack.c.l.s4 1966171168
  %v7703 = vunpack.c.0.s8 %v7702
  %v7704 = vlaneseq
  %v7705 = vshrl.u32 %v7704, 7
  %v7706 = vsub.s32 %v7703, %v7705
  %v7707 = vrot.slane %v7691, %v7706
  %v7709 = vunpack.c.l.s4 1966171168
  %v7710 = vunpack.c.0.s8 %v7709
  %v7711 = vlaneseq
  %v7712 = vshrl.u32 %v7711, 7
  %v7713 = vsub.s32 %v7710, %v7712
  %v7714 = vrot.slane %v7698, %v7713
  %v7716 = vunpack.c.l.s4 1966171168
  %v7717 = vunpack.c.0.s8 %v7716
  %v7718 = vlaneseq
  %v7719 = vshrl.u32 %v7718, 7
  %v7720 = vsub.s32 %v7717, %v7719
  %v7721 = vrot.slane %v7699, %v7720
  %v7723 = vunpack.c.l.s4 1966171168
  %v7724 = vunpack.c.0.s8 %v7723
  %v7725 = vlaneseq
  %v7726 = vshrl.u32 %v7725, 7
  %v7727 = vsub.s32 %v7724, %v7726
  %v7728 = vrot.slane %v7700, %v7727
  %v7729 = vcombine.high %v7707, %v7707
  %v7730 = vcombine.high %v7714, %v7714
  %v7731 = vcombine.high %v7721, %v7721
  %v7732 = vcombine.high %v7728, %v7728
  %v7734 = vunpack.c.l.s4 1966171168
  %v7735 = vunpack.c.0.s8 %v7734
  %v7736 = vlaneseq
  %v7737 = vshrl.u32 %v7736, 7
  %v7738 = vsub.s32 %v7735, %v7737
  %v7739 = vrot.slane %v7306, %v7738
  %v7740 = vcombine.high %v7739, %v7739
  %v7742 = vunpack.c.l.s4 1966171168
  %v7743 = vunpack.c.0.s8 %v7742
  %v7744 = vlaneseq
  %v7745 = vshrl.u32 %v7744, 7
  %v7746 = vsub.s32 %v7743, %v7745
  %v7747 = vrot.slane %v7739, %v7746
  %v7749 = vunpack.c.l.s4 1966171168
  %v7750 = vunpack.c.0.s8 %v7749
  %v7751 = vlaneseq
  %v7752 = vshrl.u32 %v7751, 7
  %v7753 = vsub.s32 %v7750, %v7752
  %v7754 = vrot.slane %v7740, %v7753
  %v7755 = vcombine.high %v7308, %v7308
  %v7757 = vunpack.c.l.s4 1966171168
  %v7758 = vunpack.c.0.s8 %v7757
  %v7759 = vlaneseq
  %v7760 = vshrl.u32 %v7759, 7
  %v7761 = vsub.s32 %v7758, %v7760
  %v7762 = vrot.slane %v7308, %v7761
  %v7764 = vunpack.c.l.s4 1966171168
  %v7765 = vunpack.c.0.s8 %v7764
  %v7766 = vlaneseq
  %v7767 = vshrl.u32 %v7766, 7
  %v7768 = vsub.s32 %v7765, %v7767
  %v7769 = vrot.slane %v7755, %v7768
  %v7770 = vcombine.high %v7762, %v7762
  %v7771 = vcombine.high %v7769, %v7769
  %v7773 = vunpack.c.l.s4 1966171168
  %v7774 = vunpack.c.0.s8 %v7773
  %v7775 = vlaneseq
  %v7776 = vshrl.u32 %v7775, 7
  %v7777 = vsub.s32 %v7774, %v7776
  %v7778 = vrot.slane %v7762, %v7777
  %v7780 = vunpack.c.l.s4 1966171168
  %v7781 = vunpack.c.0.s8 %v7780
  %v7782 = vlaneseq
  %v7783 = vshrl.u32 %v7782, 7
  %v7784 = vsub.s32 %v7781, %v7783
  %v7785 = vrot.slane %v7769, %v7784
  %v7787 = vunpack.c.l.s4 1966171168
  %v7788 = vunpack.c.0.s8 %v7787
  %v7789 = vlaneseq
  %v7790 = vshrl.u32 %v7789, 7
  %v7791 = vsub.s32 %v7788, %v7790
  %v7792 = vrot.slane %v7770, %v7791
  %v7794 = vunpack.c.l.s4 1966171168
  %v7795 = vunpack.c.0.s8 %v7794
  %v7796 = vlaneseq
  %v7797 = vshrl.u32 %v7796, 7
  %v7798 = vsub.s32 %v7795, %v7797
  %v7799 = vrot.slane %v7771, %v7798
  %v7800 = vcombine.high %v7778, %v7778
  %v7801 = vcombine.high %v7785, %v7785
  %v7802 = vcombine.high %v7792, %v7792
  %v7803 = vcombine.high %v7799, %v7799
  %v7805 = vunpack.c.l.s4 1966171168
  %v7806 = vunpack.c.0.s8 %v7805
  %v7807 = vlaneseq
  %v7808 = vshrl.u32 %v7807, 7
  %v7809 = vsub.s32 %v7806, %v7808
  %v7810 = vrot.slane %v7309, %v7809
  %v7811 = vcombine.high %v7810, %v7810
  %v7813 = vunpack.c.l.s4 1966171168
  %v7814 = vunpack.c.0.s8 %v7813
  %v7815 = vlaneseq
  %v7816 = vshrl.u32 %v7815, 7
  %v7817 = vsub.s32 %v7814, %v7816
  %v7818 = vrot.slane %v7810, %v7817
  %v7820 = vunpack.c.l.s4 1966171168
  %v7821 = vunpack.c.0.s8 %v7820
  %v7822 = vlaneseq
  %v7823 = vshrl.u32 %v7822, 7
  %v7824 = vsub.s32 %v7821, %v7823
  %v7825 = vrot.slane %v7811, %v7824
  %v7826 = vcombine.high %v7311, %v7311
  %v7828 = vunpack.c.l.s4 1966171168
  %v7829 = vunpack.c.0.s8 %v7828
  %v7830 = vlaneseq
  %v7831 = vshrl.u32 %v7830, 7
  %v7832 = vsub.s32 %v7829, %v7831
  %v7833 = vrot.slane %v7311, %v7832
  %v7835 = vunpack.c.l.s4 1966171168
  %v7836 = vunpack.c.0.s8 %v7835
  %v7837 = vlaneseq
  %v7838 = vshrl.u32 %v7837, 7
  %v7839 = vsub.s32 %v7836, %v7838
  %v7840 = vrot.slane %v7826, %v7839
  %v7841 = vcombine.high %v7833, %v7833
  %v7842 = vcombine.high %v7840, %v7840
  %v7844 = vunpack.c.l.s4 1966171168
  %v7845 = vunpack.c.0.s8 %v7844
  %v7846 = vlaneseq
  %v7847 = vshrl.u32 %v7846, 7
  %v7848 = vsub.s32 %v7845, %v7847
  %v7849 = vrot.slane %v7833, %v7848
  %v7851 = vunpack.c.l.s4 1966171168
  %v7852 = vunpack.c.0.s8 %v7851
  %v7853 = vlaneseq
  %v7854 = vshrl.u32 %v7853, 7
  %v7855 = vsub.s32 %v7852, %v7854
  %v7856 = vrot.slane %v7840, %v7855
  %v7858 = vunpack.c.l.s4 1966171168
  %v7859 = vunpack.c.0.s8 %v7858
  %v7860 = vlaneseq
  %v7861 = vshrl.u32 %v7860, 7
  %v7862 = vsub.s32 %v7859, %v7861
  %v7863 = vrot.slane %v7841, %v7862
  %v7865 = vunpack.c.l.s4 1966171168
  %v7866 = vunpack.c.0.s8 %v7865
  %v7867 = vlaneseq
  %v7868 = vshrl.u32 %v7867, 7
  %v7869 = vsub.s32 %v7866, %v7868
  %v7870 = vrot.slane %v7842, %v7869
  %v7871 = vcombine.high %v7849, %v7849
  %v7872 = vcombine.high %v7856, %v7856
  %v7873 = vcombine.high %v7863, %v7863
  %v7874 = vcombine.high %v7870, %v7870
  %v7876 = vunpack.c.l.s4 1966171168
  %v7877 = vunpack.c.0.s8 %v7876
  %v7878 = vlaneseq
  %v7879 = vshrl.u32 %v7878, 7
  %v7880 = vsub.s32 %v7877, %v7879
  %v7881 = vrot.slane %v7312, %v7880
  %v7882 = vcombine.high %v7881, %v7881
  %v7884 = vunpack.c.l.s4 1966171168
  %v7885 = vunpack.c.0.s8 %v7884
  %v7886 = vlaneseq
  %v7887 = vshrl.u32 %v7886, 7
  %v7888 = vsub.s32 %v7885, %v7887
  %v7889 = vrot.slane %v7881, %v7888
  %v7891 = vunpack.c.l.s4 1966171168
  %v7892 = vunpack.c.0.s8 %v7891
  %v7893 = vlaneseq
  %v7894 = vshrl.u32 %v7893, 7
  %v7895 = vsub.s32 %v7892, %v7894
  %v7896 = vrot.slane %v7882, %v7895
  %v7897 = vlaneseq
  %v7898 = vshrl.u32 %v7897, 7
  %v7899 = vsub.s32 0, %v7898
  %v7900 = vrot.slane %v7352, %v7899
  %v7901 = vlaneseq
  %v7902 = vshrl.u32 %v7901, 7
  %v7903 = vsub.s32 0, %v7902
  %v7904 = vrot.slane %v7366, %v7903
  %v7905 = vlaneseq
  %v7906 = vshrl.u32 %v7905, 7
  %v7907 = vsub.s32 0, %v7906
  %v7908 = vrot.slane %v7374, %v7907
  %v7909 = vlaneseq
  %v7910 = vshrl.u32 %v7909, 7
  %v7911 = vsub.s32 0, %v7910
  %v7912 = vrot.slane %v7376, %v7911
  %v7913 = vlaneseq
  %v7914 = vshrl.u32 %v7913, 7
  %v7915 = vsub.s32 0, %v7914
  %v7916 = vrot.slane %v7359, %v7915
  %v7917 = vlaneseq
  %v7918 = vshrl.u32 %v7917, 7
  %v7919 = vsub.s32 0, %v7918
  %v7920 = vrot.slane %v7373, %v7919
  %v7921 = vlaneseq
  %v7922 = vshrl.u32 %v7921, 7
  %v7923 = vsub.s32 0, %v7922
  %v7924 = vrot.slane %v7375, %v7923
  %v7925 = vlaneseq
  %v7926 = vshrl.u32 %v7925, 7
  %v7927 = vsub.s32 0, %v7926
  %v7928 = vrot.slane %v7377, %v7927
  %v7929 = vlaneseq
  %v7930 = vshrl.u32 %v7929, 7
  %v7931 = vsub.s32 0, %v7930
  %v7932 = vrot.slane %v7392, %v7931
  %v7933 = vlaneseq
  %v7934 = vshrl.u32 %v7933, 7
  %v7935 = vsub.s32 0, %v7934
  %v7936 = vrot.slane %v7399, %v7935
  %v7937 = vlaneseq
  %v7938 = vshrl.u32 %v7937, 7
  %v7939 = vsub.s32 0, %v7938
  %v7940 = vrot.slane %v7423, %v7939
  %v7941 = vlaneseq
  %v7942 = vshrl.u32 %v7941, 7
  %v7943 = vsub.s32 0, %v7942
  %v7944 = vrot.slane %v7437, %v7943
  %v7945 = vlaneseq
  %v7946 = vshrl.u32 %v7945, 7
  %v7947 = vsub.s32 0, %v7946
  %v7948 = vrot.slane %v7445, %v7947
  %v7949 = vlaneseq
  %v7950 = vshrl.u32 %v7949, 7
  %v7951 = vsub.s32 0, %v7950
  %v7952 = vrot.slane %v7447, %v7951
  %v7953 = vlaneseq
  %v7954 = vshrl.u32 %v7953, 7
  %v7955 = vsub.s32 0, %v7954
  %v7956 = vrot.slane %v7430, %v7955
  %v7957 = vlaneseq
  %v7958 = vshrl.u32 %v7957, 7
  %v7959 = vsub.s32 0, %v7958
  %v7960 = vrot.slane %v7444, %v7959
  %v7961 = vlaneseq
  %v7962 = vshrl.u32 %v7961, 7
  %v7963 = vsub.s32 0, %v7962
  %v7964 = vrot.slane %v7446, %v7963
  %v7965 = vlaneseq
  %v7966 = vshrl.u32 %v7965, 7
  %v7967 = vsub.s32 0, %v7966
  %v7968 = vrot.slane %v7448, %v7967
  %v7969 = vlaneseq
  %v7970 = vshrl.u32 %v7969, 7
  %v7971 = vsub.s32 0, %v7970
  %v7972 = vrot.slane %v7463, %v7971
  %v7973 = vlaneseq
  %v7974 = vshrl.u32 %v7973, 7
  %v7975 = vsub.s32 0, %v7974
  %v7976 = vrot.slane %v7470, %v7975
  %v7977 = vlaneseq
  %v7978 = vshrl.u32 %v7977, 7
  %v7979 = vsub.s32 0, %v7978
  %v7980 = vrot.slane %v7494, %v7979
  %v7981 = vlaneseq
  %v7982 = vshrl.u32 %v7981, 7
  %v7983 = vsub.s32 0, %v7982
  %v7984 = vrot.slane %v7508, %v7983
  %v7985 = vlaneseq
  %v7986 = vshrl.u32 %v7985, 7
  %v7987 = vsub.s32 0, %v7986
  %v7988 = vrot.slane %v7516, %v7987
  %v7989 = vlaneseq
  %v7990 = vshrl.u32 %v7989, 7
  %v7991 = vsub.s32 0, %v7990
  %v7992 = vrot.slane %v7518, %v7991
  %v7993 = vlaneseq
  %v7994 = vshrl.u32 %v7993, 7
  %v7995 = vsub.s32 0, %v7994
  %v7996 = vrot.slane %v7501, %v7995
  %v7997 = vlaneseq
  %v7998 = vshrl.u32 %v7997, 7
  %v7999 = vsub.s32 0, %v7998
  %v8000 = vrot.slane %v7515, %v7999
  %v8001 = vlaneseq
  %v8002 = vshrl.u32 %v8001, 7
  %v8003 = vsub.s32 0, %v8002
  %v8004 = vrot.slane %v7517, %v8003
  %v8005 = vlaneseq
  %v8006 = vshrl.u32 %v8005, 7
  %v8007 = vsub.s32 0, %v8006
  %v8008 = vrot.slane %v7519, %v8007
  %v8009 = vlaneseq
  %v8010 = vshrl.u32 %v8009, 7
  %v8011 = vsub.s32 0, %v8010
  %v8012 = vrot.slane %v7534, %v8011
  %v8013 = vlaneseq
  %v8014 = vshrl.u32 %v8013, 7
  %v8015 = vsub.s32 0, %v8014
  %v8016 = vrot.slane %v7541, %v8015
  %v8017 = vlaneseq
  %v8018 = vshrl.u32 %v8017, 7
  %v8019 = vsub.s32 0, %v8018
  %v8020 = vrot.slane %v7565, %v8019
  %v8021 = vlaneseq
  %v8022 = vshrl.u32 %v8021, 7
  %v8023 = vsub.s32 0, %v8022
  %v8024 = vrot.slane %v7579, %v8023
  %v8025 = vlaneseq
  %v8026 = vshrl.u32 %v8025, 7
  %v8027 = vsub.s32 0, %v8026
  %v8028 = vrot.slane %v7587, %v8027
  %v8029 = vlaneseq
  %v8030 = vshrl.u32 %v8029, 7
  %v8031 = vsub.s32 0, %v8030
  %v8032 = vrot.slane %v7589, %v8031
  %v8033 = vlaneseq
  %v8034 = vshrl.u32 %v8033, 7
  %v8035 = vsub.s32 0, %v8034
  %v8036 = vrot.slane %v7572, %v8035
  %v8037 = vlaneseq
  %v8038 = vshrl.u32 %v8037, 7
  %v8039 = vsub.s32 0, %v8038
  %v8040 = vrot.slane %v7586, %v8039
  %v8041 = vlaneseq
  %v8042 = vshrl.u32 %v8041, 7
  %v8043 = vsub.s32 0, %v8042
  %v8044 = vrot.slane %v7588, %v8043
  %v8045 = vlaneseq
  %v8046 = vshrl.u32 %v8045, 7
  %v8047 = vsub.s32 0, %v8046
  %v8048 = vrot.slane %v7590, %v8047
  %v8049 = vlaneseq
  %v8050 = vshrl.u32 %v8049, 7
  %v8051 = vsub.s32 0, %v8050
  %v8052 = vrot.slane %v7605, %v8051
  %v8053 = vlaneseq
  %v8054 = vshrl.u32 %v8053, 7
  %v8055 = vsub.s32 0, %v8054
  %v8056 = vrot.slane %v7612, %v8055
  %v8057 = vlaneseq
  %v8058 = vshrl.u32 %v8057, 7
  %v8059 = vsub.s32 0, %v8058
  %v8060 = vrot.slane %v7636, %v8059
  %v8061 = vlaneseq
  %v8062 = vshrl.u32 %v8061, 7
  %v8063 = vsub.s32 0, %v8062
  %v8064 = vrot.slane %v7650, %v8063
  %v8065 = vlaneseq
  %v8066 = vshrl.u32 %v8065, 7
  %v8067 = vsub.s32 0, %v8066
  %v8068 = vrot.slane %v7658, %v8067
  %v8069 = vlaneseq
  %v8070 = vshrl.u32 %v8069, 7
  %v8071 = vsub.s32 0, %v8070
  %v8072 = vrot.slane %v7660, %v8071
  %v8073 = vlaneseq
  %v8074 = vshrl.u32 %v8073, 7
  %v8075 = vsub.s32 0, %v8074
  %v8076 = vrot.slane %v7643, %v8075
  %v8077 = vlaneseq
  %v8078 = vshrl.u32 %v8077, 7
  %v8079 = vsub.s32 0, %v8078
  %v8080 = vrot.slane %v7657, %v8079
  %v8081 = vlaneseq
  %v8082 = vshrl.u32 %v8081, 7
  %v8083 = vsub.s32 0, %v8082
  %v8084 = vrot.slane %v7659, %v8083
  %v8085 = vlaneseq
  %v8086 = vshrl.u32 %v8085, 7
  %v8087 = vsub.s32 0, %v8086
  %v8088 = vrot.slane %v7661, %v8087
  %v8089 = vlaneseq
  %v8090 = vshrl.u32 %v8089, 7
  %v8091 = vsub.s32 0, %v8090
  %v8092 = vrot.slane %v7676, %v8091
  %v8093 = vlaneseq
  %v8094 = vshrl.u32 %v8093, 7
  %v8095 = vsub.s32 0, %v8094
  %v8096 = vrot.slane %v7683, %v8095
  %v8097 = vlaneseq
  %v8098 = vshrl.u32 %v8097, 7
  %v8099 = vsub.s32 0, %v8098
  %v8100 = vrot.slane %v7707, %v8099
  %v8101 = vlaneseq
  %v8102 = vshrl.u32 %v8101, 7
  %v8103 = vsub.s32 0, %v8102
  %v8104 = vrot.slane %v7721, %v8103
  %v8105 = vlaneseq
  %v8106 = vshrl.u32 %v8105, 7
  %v8107 = vsub.s32 0, %v8106
  %v8108 = vrot.slane %v7729, %v8107
  %v8109 = vlaneseq
  %v8110 = vshrl.u32 %v8109, 7
  %v8111 = vsub.s32 0, %v8110
  %v8112 = vrot.slane %v7731, %v8111
  %v8113 = vlaneseq
  %v8114 = vshrl.u32 %v8113, 7
  %v8115 = vsub.s32 0, %v8114
  %v8116 = vrot.slane %v7714, %v8115
  %v8117 = vlaneseq
  %v8118 = vshrl.u32 %v8117, 7
  %v8119 = vsub.s32 0, %v8118
  %v8120 = vrot.slane %v7728, %v8119
  %v8121 = vlaneseq
  %v8122 = vshrl.u32 %v8121, 7
  %v8123 = vsub.s32 0, %v8122
  %v8124 = vrot.slane %v7730, %v8123
  %v8125 = vlaneseq
  %v8126 = vshrl.u32 %v8125, 7
  %v8127 = vsub.s32 0, %v8126
  %v8128 = vrot.slane %v7732, %v8127
  %v8129 = vlaneseq
  %v8130 = vshrl.u32 %v8129, 7
  %v8131 = vsub.s32 0, %v8130
  %v8132 = vrot.slane %v7747, %v8131
  %v8133 = vlaneseq
  %v8134 = vshrl.u32 %v8133, 7
  %v8135 = vsub.s32 0, %v8134
  %v8136 = vrot.slane %v7754, %v8135
  %v8137 = vlaneseq
  %v8138 = vshrl.u32 %v8137, 7
  %v8139 = vsub.s32 0, %v8138
  %v8140 = vrot.slane %v7778, %v8139
  %v8141 = vlaneseq
  %v8142 = vshrl.u32 %v8141, 7
  %v8143 = vsub.s32 0, %v8142
  %v8144 = vrot.slane %v7792, %v8143
  %v8145 = vlaneseq
  %v8146 = vshrl.u32 %v8145, 7
  %v8147 = vsub.s32 0, %v8146
  %v8148 = vrot.slane %v7800, %v8147
  %v8149 = vlaneseq
  %v8150 = vshrl.u32 %v8149, 7
  %v8151 = vsub.s32 0, %v8150
  %v8152 = vrot.slane %v7802, %v8151
  %v8153 = vlaneseq
  %v8154 = vshrl.u32 %v8153, 7
  %v8155 = vsub.s32 0, %v8154
  %v8156 = vrot.slane %v7785, %v8155
  %v8157 = vlaneseq
  %v8158 = vshrl.u32 %v8157, 7
  %v8159 = vsub.s32 0, %v8158
  %v8160 = vrot.slane %v7799, %v8159
  %v8161 = vlaneseq
  %v8162 = vshrl.u32 %v8161, 7
  %v8163 = vsub.s32 0, %v8162
  %v8164 = vrot.slane %v7801, %v8163
  %v8165 = vlaneseq
  %v8166 = vshrl.u32 %v8165, 7
  %v8167 = vsub.s32 0, %v8166
  %v8168 = vrot.slane %v7803, %v8167
  %v8169 = vlaneseq
  %v8170 = vshrl.u32 %v8169, 7
  %v8171 = vsub.s32 0, %v8170
  %v8172 = vrot.slane %v7818, %v8171
  %v8173 = vlaneseq
  %v8174 = vshrl.u32 %v8173, 7
  %v8175 = vsub.s32 0, %v8174
  %v8176 = vrot.slane %v7825, %v8175
  %v8177 = vlaneseq
  %v8178 = vshrl.u32 %v8177, 7
  %v8179 = vsub.s32 0, %v8178
  %v8180 = vrot.slane %v7849, %v8179
  %v8181 = vlaneseq
  %v8182 = vshrl.u32 %v8181, 7
  %v8183 = vsub.s32 0, %v8182
  %v8184 = vrot.slane %v7863, %v8183
  %v8185 = vlaneseq
  %v8186 = vshrl.u32 %v8185, 7
  %v8187 = vsub.s32 0, %v8186
  %v8188 = vrot.slane %v7871, %v8187
  %v8189 = vlaneseq
  %v8190 = vshrl.u32 %v8189, 7
  %v8191 = vsub.s32 0, %v8190
  %v8192 = vrot.slane %v7873, %v8191
  %v8193 = vlaneseq
  %v8194 = vshrl.u32 %v8193, 7
  %v8195 = vsub.s32 0, %v8194
  %v8196 = vrot.slane %v7856, %v8195
  %v8197 = vlaneseq
  %v8198 = vshrl.u32 %v8197, 7
  %v8199 = vsub.s32 0, %v8198
  %v8200 = vrot.slane %v7870, %v8199
  %v8201 = vlaneseq
  %v8202 = vshrl.u32 %v8201, 7
  %v8203 = vsub.s32 0, %v8202
  %v8204 = vrot.slane %v7872, %v8203
  %v8205 = vlaneseq
  %v8206 = vshrl.u32 %v8205, 7
  %v8207 = vsub.s32 0, %v8206
  %v8208 = vrot.slane %v7874, %v8207
  %v8209 = vlaneseq
  %v8210 = vshrl.u32 %v8209, 7
  %v8211 = vsub.s32 0, %v8210
  %v8212 = vrot.slane %v7889, %v8211
  %v8213 = vlaneseq
  %v8214 = vshrl.u32 %v8213, 7
  %v8215 = vsub.s32 0, %v8214
  %v8216 = vrot.slane %v7896, %v8215
  %v8297 = vmul.f32 %v7900, %v972
  %v8298 = vmul.f32 %v7900, %v977
  %v8299 = vmul.f32 %v7904, %v982
  %v8300 = vmul.f32 %v7904, %v987
  %v8301 = vmul.f32 %v7908, %v992
  %v8302 = vmul.f32 %v7908, %v997
  %v8303 = vmul.f32 %v7912, %v1002
  %v8304 = vmul.f32 %v7912, %v1007
  %v8305 = vmul.f32 %v7916, %v1012
  %v8306 = vmul.f32 %v7916, %v1017
  %v8307 = vmul.f32 %v7920, %v1022
  %v8308 = vmul.f32 %v7920, %v1027
  %v8309 = vmul.f32 %v7924, %v1032
  %v8310 = vmul.f32 %v7924, %v1037
  %v8311 = vmul.f32 %v7928, %v1042
  %v8312 = vmul.f32 %v7928, %v1047
  %v8313 = vmul.f32 %v7932, %v1052
  %v8314 = vmul.f32 %v7932, %v1057
  %v8315 = vmul.f32 %v7936, %v1062
  %v8316 = vmul.f32 %v7936, %v1067
  %v8317 = vmul.f32 %v7940, %v1072
  %v8318 = vmul.f32 %v7940, %v1077
  %v8319 = vmul.f32 %v7944, %v1082
  %v8320 = vmul.f32 %v7944, %v1087
  %v8321 = vmul.f32 %v7948, %v1092
  %v8322 = vmul.f32 %v7948, %v1097
  %v8323 = vmul.f32 %v7952, %v1102
  %v8324 = vmul.f32 %v7952, %v1107
  %v8325 = vmul.f32 %v7956, %v1112
  %v8326 = vmul.f32 %v7956, %v1117
  %v8327 = vmul.f32 %v7960, %v1122
  %v8328 = vmul.f32 %v7960, %v1127
  %v8329 = vmul.f32 %v7964, %v1132
  %v8330 = vmul.f32 %v7964, %v1137
  %v8331 = vmul.f32 %v7968, %v1142
  %v8332 = vmul.f32 %v7968, %v1147
  %v8333 = vmul.f32 %v7972, %v1152
  %v8334 = vmul.f32 %v7972, %v1157
  %v8335 = vmul.f32 %v7976, %v1162
  %v8336 = vmul.f32 %v7976, %v1167
  %v8337 = vmul.f32 %v7980, %v1172
  %v8338 = vmul.f32 %v7980, %v1177
  %v8339 = vmul.f32 %v7984, %v1182
  %v8340 = vmul.f32 %v7984, %v1187
  %v8341 = vmul.f32 %v7988, %v1192
  %v8342 = vmul.f32 %v7988, %v1197
  %v8343 = vmul.f32 %v7992, %v1202
  %v8344 = vmul.f32 %v7992, %v1207
  %v8345 = vmul.f32 %v7996, %v1212
  %v8346 = vmul.f32 %v7996, %v1217
  %v8347 = vmul.f32 %v8000, %v1222
  %v8348 = vmul.f32 %v8000, %v1227
  %v8349 = vmul.f32 %v8004, %v1232
  %v8350 = vmul.f32 %v8004, %v1237
  %v8351 = vmul.f32 %v8008, %v1242
  %v8352 = vmul.f32 %v8008, %v1247
  %v8353 = vmul.f32 %v8012, %v1252
  %v8354 = vmul.f32 %v8012, %v1257
  %v8355 = vmul.f32 %v8016, %v1262
  %v8356 = vmul.f32 %v8016, %v1267
  %v8357 = vmul.f32 %v8020, %v1272
  %v8358 = vmul.f32 %v8020, %v1277
  %v8359 = vmul.f32 %v8024, %v1282
  %v8360 = vmul.f32 %v8024, %v1287
  %v8361 = vmul.f32 %v8028, %v1292
  %v8362 = vmul.f32 %v8028, %v1297
  %v8363 = vmul.f32 %v8032, %v1302
  %v8364 = vmul.f32 %v8032, %v1307
  %v8365 = vmul.f32 %v8036, %v1312
  %v8366 = vmul.f32 %v8036, %v1317
  %v8367 = vmul.f32 %v8040, %v1322
  %v8368 = vmul.f32 %v8040, %v1327
  %v8369 = vmul.f32 %v8044, %v1332
  %v8370 = vmul.f32 %v8044, %v1337
  %v8371 = vmul.f32 %v8048, %v1342
  %v8372 = vmul.f32 %v8048, %v1347
  %v8373 = vmul.f32 %v8052, %v1352
  %v8374 = vmul.f32 %v8052, %v1357
  %v8375 = vmul.f32 %v8056, %v1362
  %v8376 = vmul.f32 %v8056, %v1367
  %v8377 = vmul.f32 %v8060, %v1372
  %v8378 = vmul.f32 %v8060, %v1377
  %v8379 = vmul.f32 %v8064, %v1382
  %v8380 = vmul.f32 %v8064, %v1387
  %v8381 = vmul.f32 %v8068, %v1392
  %v8382 = vmul.f32 %v8068, %v1397
  %v8383 = vmul.f32 %v8072, %v1402
  %v8384 = vmul.f32 %v8072, %v1407
  %v8385 = vmul.f32 %v8076, %v1412
  %v8386 = vmul.f32 %v8076, %v1417
  %v8387 = vmul.f32 %v8080, %v1422
  %v8388 = vmul.f32 %v8080, %v1427
  %v8389 = vmul.f32 %v8084, %v1432
  %v8390 = vmul.f32 %v8084, %v1437
  %v8391 = vmul.f32 %v8088, %v1442
  %v8392 = vmul.f32 %v8088, %v1447
  %v8393 = vmul.f32 %v8092, %v1452
  %v8394 = vmul.f32 %v8092, %v1457
  %v8395 = vmul.f32 %v8096, %v1462
  %v8396 = vmul.f32 %v8096, %v1467
  %v8397 = vmul.f32 %v8100, %v1472
  %v8398 = vmul.f32 %v8100, %v1477
  %v8399 = vmul.f32 %v8104, %v1482
  %v8400 = vmul.f32 %v8104, %v1487
  %v8401 = vmul.f32 %v8108, %v1492
  %v8402 = vmul.f32 %v8108, %v1497
  %v8403 = vmul.f32 %v8112, %v1502
  %v8404 = vmul.f32 %v8112, %v1507
  %v8405 = vmul.f32 %v8116, %v1512
  %v8406 = vmul.f32 %v8116, %v1517
  %v8407 = vmul.f32 %v8120, %v1522
  %v8408 = vmul.f32 %v8120, %v1527
  %v8409 = vmul.f32 %v8124, %v1532
  %v8410 = vmul.f32 %v8124, %v1537
  %v8411 = vmul.f32 %v8128, %v1542
  %v8412 = vmul.f32 %v8128, %v1547
  %v8413 = vmul.f32 %v8132, %v1552
  %v8414 = vmul.f32 %v8132, %v1557
  %v8415 = vmul.f32 %v8136, %v1562
  %v8416 = vmul.f32 %v8136, %v1567
  %v8417 = vmul.f32 %v8140, %v1572
  %v8418 = vmul.f32 %v8140, %v1577
  %v8419 = vmul.f32 %v8144, %v1582
  %v8420 = vmul.f32 %v8144, %v1587
  %v8421 = vmul.f32 %v8148, %v1592
  %v8422 = vmul.f32 %v8148, %v1597
  %v8423 = vmul.f32 %v8152, %v1602
  %v8424 = vmul.f32 %v8152, %v1607
  %v8425 = vmul.f32 %v8156, %v1612
  %v8426 = vmul.f32 %v8156, %v1617
  %v8427 = vmul.f32 %v8160, %v1622
  %v8428 = vmul.f32 %v8160, %v1627
  %v8429 = vmul.f32 %v8164, %v1632
  %v8430 = vmul.f32 %v8164, %v1637
  %v8431 = vmul.f32 %v8168, %v1642
  %v8432 = vmul.f32 %v8168, %v1647
  %v8433 = vmul.f32 %v8172, %v1652
  %v8434 = vmul.f32 %v8172, %v1657
  %v8435 = vmul.f32 %v8176, %v1662
  %v8436 = vmul.f32 %v8176, %v1667
  %v8437 = vmul.f32 %v8180, %v1672
  %v8438 = vmul.f32 %v8180, %v1677
  %v8439 = vmul.f32 %v8184, %v1682
  %v8440 = vmul.f32 %v8184, %v1687
  %v8441 = vmul.f32 %v8188, %v1692
  %v8442 = vmul.f32 %v8188, %v1697
  %v8443 = vmul.f32 %v8192, %v1702
  %v8444 = vmul.f32 %v8192, %v1707
  %v8445 = vmul.f32 %v8196, %v1712
  %v8446 = vmul.f32 %v8196, %v1717
  %v8447 = vmul.f32 %v8200, %v1722
  %v8448 = vmul.f32 %v8200, %v1727
  %v8449 = vmul.f32 %v8204, %v1732
  %v8450 = vmul.f32 %v8204, %v1737
  %v8451 = vmul.f32 %v8208, %v1742
  %v8452 = vmul.f32 %v8208, %v1747
  %v8453 = vmul.f32 %v8212, %v1752
  %v8454 = vmul.f32 %v8212, %v1757
  %v8455 = vmul.f32 %v8216, %v1762
  %v8456 = vmul.f32 %v8216, %v1767
  %v8457 = vsel %vm2636, %v8297, 0.0
  %v8458 = vsel %vm2636, %v8317, 0.0
  %v8459 = vadd.f32 %v8457, %v8458
  %v8460 = vsel %vm2636, %v8337, 0.0
  %v8461 = vadd.f32 %v8459, %v8460
  %v8462 = vsel %vm2636, %v8357, 0.0
  %v8463 = vadd.f32 %v8461, %v8462
  %v8464 = vsel %vm2636, %v8377, 0.0
  %v8465 = vadd.f32 %v8463, %v8464
  %v8466 = vsel %vm2636, %v8397, 0.0
  %v8467 = vadd.f32 %v8465, %v8466
  %v8468 = vsel %vm2636, %v8417, 0.0
  %v8469 = vadd.f32 %v8467, %v8468
  %v8470 = vsel %vm2636, %v8437, 0.0
  %v8471 = vadd.f32 %v8469, %v8470
  %v8472 = vsel %vm2636, %v8298, 0.0
  %v8473 = vsel %vm2636, %v8318, 0.0
  %v8474 = vadd.f32 %v8472, %v8473
  %v8475 = vsel %vm2636, %v8338, 0.0
  %v8476 = vadd.f32 %v8474, %v8475
  %v8477 = vsel %vm2636, %v8358, 0.0
  %v8478 = vadd.f32 %v8476, %v8477
  %v8479 = vsel %vm2636, %v8378, 0.0
  %v8480 = vadd.f32 %v8478, %v8479
  %v8481 = vsel %vm2636, %v8398, 0.0
  %v8482 = vadd.f32 %v8480, %v8481
  %v8483 = vsel %vm2636, %v8418, 0.0
  %v8484 = vadd.f32 %v8482, %v8483
  %v8485 = vsel %vm2636, %v8438, 0.0
  %v8486 = vadd.f32 %v8484, %v8485
  %v8487 = vsel %vm2636, %v8299, 0.0
  %v8488 = vsel %vm2636, %v8319, 0.0
  %v8489 = vadd.f32 %v8487, %v8488
  %v8490 = vsel %vm2636, %v8339, 0.0
  %v8491 = vadd.f32 %v8489, %v8490
  %v8492 = vsel %vm2636, %v8359, 0.0
  %v8493 = vadd.f32 %v8491, %v8492
  %v8494 = vsel %vm2636, %v8379, 0.0
  %v8495 = vadd.f32 %v8493, %v8494
  %v8496 = vsel %vm2636, %v8399, 0.0
  %v8497 = vadd.f32 %v8495, %v8496
  %v8498 = vsel %vm2636, %v8419, 0.0
  %v8499 = vadd.f32 %v8497, %v8498
  %v8500 = vsel %vm2636, %v8439, 0.0
  %v8501 = vadd.f32 %v8499, %v8500
  %v8502 = vsel %vm2636, %v8300, 0.0
  %v8503 = vsel %vm2636, %v8320, 0.0
  %v8504 = vadd.f32 %v8502, %v8503
  %v8505 = vsel %vm2636, %v8340, 0.0
  %v8506 = vadd.f32 %v8504, %v8505
  %v8507 = vsel %vm2636, %v8360, 0.0
  %v8508 = vadd.f32 %v8506, %v8507
  %v8509 = vsel %vm2636, %v8380, 0.0
  %v8510 = vadd.f32 %v8508, %v8509
  %v8511 = vsel %vm2636, %v8400, 0.0
  %v8512 = vadd.f32 %v8510, %v8511
  %v8513 = vsel %vm2636, %v8420, 0.0
  %v8514 = vadd.f32 %v8512, %v8513
  %v8515 = vsel %vm2636, %v8440, 0.0
  %v8516 = vadd.f32 %v8514, %v8515
  %v8517 = vsel %vm2636, %v8301, 0.0
  %v8518 = vsel %vm2636, %v8321, 0.0
  %v8519 = vadd.f32 %v8517, %v8518
  %v8520 = vsel %vm2636, %v8341, 0.0
  %v8521 = vadd.f32 %v8519, %v8520
  %v8522 = vsel %vm2636, %v8361, 0.0
  %v8523 = vadd.f32 %v8521, %v8522
  %v8524 = vsel %vm2636, %v8381, 0.0
  %v8525 = vadd.f32 %v8523, %v8524
  %v8526 = vsel %vm2636, %v8401, 0.0
  %v8527 = vadd.f32 %v8525, %v8526
  %v8528 = vsel %vm2636, %v8421, 0.0
  %v8529 = vadd.f32 %v8527, %v8528
  %v8530 = vsel %vm2636, %v8441, 0.0
  %v8531 = vadd.f32 %v8529, %v8530
  %v8532 = vsel %vm2636, %v8302, 0.0
  %v8533 = vsel %vm2636, %v8322, 0.0
  %v8534 = vadd.f32 %v8532, %v8533
  %v8535 = vsel %vm2636, %v8342, 0.0
  %v8536 = vadd.f32 %v8534, %v8535
  %v8537 = vsel %vm2636, %v8362, 0.0
  %v8538 = vadd.f32 %v8536, %v8537
  %v8539 = vsel %vm2636, %v8382, 0.0
  %v8540 = vadd.f32 %v8538, %v8539
  %v8541 = vsel %vm2636, %v8402, 0.0
  %v8542 = vadd.f32 %v8540, %v8541
  %v8543 = vsel %vm2636, %v8422, 0.0
  %v8544 = vadd.f32 %v8542, %v8543
  %v8545 = vsel %vm2636, %v8442, 0.0
  %v8546 = vadd.f32 %v8544, %v8545
  %v8547 = vsel %vm2636, %v8303, 0.0
  %v8548 = vsel %vm2636, %v8323, 0.0
  %v8549 = vadd.f32 %v8547, %v8548
  %v8550 = vsel %vm2636, %v8343, 0.0
  %v8551 = vadd.f32 %v8549, %v8550
  %v8552 = vsel %vm2636, %v8363, 0.0
  %v8553 = vadd.f32 %v8551, %v8552
  %v8554 = vsel %vm2636, %v8383, 0.0
  %v8555 = vadd.f32 %v8553, %v8554
  %v8556 = vsel %vm2636, %v8403, 0.0
  %v8557 = vadd.f32 %v8555, %v8556
  %v8558 = vsel %vm2636, %v8423, 0.0
  %v8559 = vadd.f32 %v8557, %v8558
  %v8560 = vsel %vm2636, %v8443, 0.0
  %v8561 = vadd.f32 %v8559, %v8560
  %v8562 = vsel %vm2636, %v8304, 0.0
  %v8563 = vsel %vm2636, %v8324, 0.0
  %v8564 = vadd.f32 %v8562, %v8563
  %v8565 = vsel %vm2636, %v8344, 0.0
  %v8566 = vadd.f32 %v8564, %v8565
  %v8567 = vsel %vm2636, %v8364, 0.0
  %v8568 = vadd.f32 %v8566, %v8567
  %v8569 = vsel %vm2636, %v8384, 0.0
  %v8570 = vadd.f32 %v8568, %v8569
  %v8571 = vsel %vm2636, %v8404, 0.0
  %v8572 = vadd.f32 %v8570, %v8571
  %v8573 = vsel %vm2636, %v8424, 0.0
  %v8574 = vadd.f32 %v8572, %v8573
  %v8575 = vsel %vm2636, %v8444, 0.0
  %v8576 = vadd.f32 %v8574, %v8575
  %v8577 = vsel %vm2636, %v8305, 0.0
  %v8578 = vsel %vm2636, %v8325, 0.0
  %v8579 = vadd.f32 %v8577, %v8578
  %v8580 = vsel %vm2636, %v8345, 0.0
  %v8581 = vadd.f32 %v8579, %v8580
  %v8582 = vsel %vm2636, %v8365, 0.0
  %v8583 = vadd.f32 %v8581, %v8582
  %v8584 = vsel %vm2636, %v8385, 0.0
  %v8585 = vadd.f32 %v8583, %v8584
  %v8586 = vsel %vm2636, %v8405, 0.0
  %v8587 = vadd.f32 %v8585, %v8586
  %v8588 = vsel %vm2636, %v8425, 0.0
  %v8589 = vadd.f32 %v8587, %v8588
  %v8590 = vsel %vm2636, %v8445, 0.0
  %v8591 = vadd.f32 %v8589, %v8590
  %v8592 = vsel %vm2636, %v8306, 0.0
  %v8593 = vsel %vm2636, %v8326, 0.0
  %v8594 = vadd.f32 %v8592, %v8593
  %v8595 = vsel %vm2636, %v8346, 0.0
  %v8596 = vadd.f32 %v8594, %v8595
  %v8597 = vsel %vm2636, %v8366, 0.0
  %v8598 = vadd.f32 %v8596, %v8597
  %v8599 = vsel %vm2636, %v8386, 0.0
  %v8600 = vadd.f32 %v8598, %v8599
  %v8601 = vsel %vm2636, %v8406, 0.0
  %v8602 = vadd.f32 %v8600, %v8601
  %v8603 = vsel %vm2636, %v8426, 0.0
  %v8604 = vadd.f32 %v8602, %v8603
  %v8605 = vsel %vm2636, %v8446, 0.0
  %v8606 = vadd.f32 %v8604, %v8605
  %v8607 = vsel %vm2636, %v8307, 0.0
  %v8608 = vsel %vm2636, %v8327, 0.0
  %v8609 = vadd.f32 %v8607, %v8608
  %v8610 = vsel %vm2636, %v8347, 0.0
  %v8611 = vadd.f32 %v8609, %v8610
  %v8612 = vsel %vm2636, %v8367, 0.0
  %v8613 = vadd.f32 %v8611, %v8612
  %v8614 = vsel %vm2636, %v8387, 0.0
  %v8615 = vadd.f32 %v8613, %v8614
  %v8616 = vsel %vm2636, %v8407, 0.0
  %v8617 = vadd.f32 %v8615, %v8616
  %v8618 = vsel %vm2636, %v8427, 0.0
  %v8619 = vadd.f32 %v8617, %v8618
  %v8620 = vsel %vm2636, %v8447, 0.0
  %v8621 = vadd.f32 %v8619, %v8620
  %v8622 = vsel %vm2636, %v8308, 0.0
  %v8623 = vsel %vm2636, %v8328, 0.0
  %v8624 = vadd.f32 %v8622, %v8623
  %v8625 = vsel %vm2636, %v8348, 0.0
  %v8626 = vadd.f32 %v8624, %v8625
  %v8627 = vsel %vm2636, %v8368, 0.0
  %v8628 = vadd.f32 %v8626, %v8627
  %v8629 = vsel %vm2636, %v8388, 0.0
  %v8630 = vadd.f32 %v8628, %v8629
  %v8631 = vsel %vm2636, %v8408, 0.0
  %v8632 = vadd.f32 %v8630, %v8631
  %v8633 = vsel %vm2636, %v8428, 0.0
  %v8634 = vadd.f32 %v8632, %v8633
  %v8635 = vsel %vm2636, %v8448, 0.0
  %v8636 = vadd.f32 %v8634, %v8635
  %v8637 = vsel %vm2636, %v8309, 0.0
  %v8638 = vsel %vm2636, %v8329, 0.0
  %v8639 = vadd.f32 %v8637, %v8638
  %v8640 = vsel %vm2636, %v8349, 0.0
  %v8641 = vadd.f32 %v8639, %v8640
  %v8642 = vsel %vm2636, %v8369, 0.0
  %v8643 = vadd.f32 %v8641, %v8642
  %v8644 = vsel %vm2636, %v8389, 0.0
  %v8645 = vadd.f32 %v8643, %v8644
  %v8646 = vsel %vm2636, %v8409, 0.0
  %v8647 = vadd.f32 %v8645, %v8646
  %v8648 = vsel %vm2636, %v8429, 0.0
  %v8649 = vadd.f32 %v8647, %v8648
  %v8650 = vsel %vm2636, %v8449, 0.0
  %v8651 = vadd.f32 %v8649, %v8650
  %v8652 = vsel %vm2636, %v8310, 0.0
  %v8653 = vsel %vm2636, %v8330, 0.0
  %v8654 = vadd.f32 %v8652, %v8653
  %v8655 = vsel %vm2636, %v8350, 0.0
  %v8656 = vadd.f32 %v8654, %v8655
  %v8657 = vsel %vm2636, %v8370, 0.0
  %v8658 = vadd.f32 %v8656, %v8657
  %v8659 = vsel %vm2636, %v8390, 0.0
  %v8660 = vadd.f32 %v8658, %v8659
  %v8661 = vsel %vm2636, %v8410, 0.0
  %v8662 = vadd.f32 %v8660, %v8661
  %v8663 = vsel %vm2636, %v8430, 0.0
  %v8664 = vadd.f32 %v8662, %v8663
  %v8665 = vsel %vm2636, %v8450, 0.0
  %v8666 = vadd.f32 %v8664, %v8665
  %v8667 = vsel %vm2636, %v8311, 0.0
  %v8668 = vsel %vm2636, %v8331, 0.0
  %v8669 = vadd.f32 %v8667, %v8668
  %v8670 = vsel %vm2636, %v8351, 0.0
  %v8671 = vadd.f32 %v8669, %v8670
  %v8672 = vsel %vm2636, %v8371, 0.0
  %v8673 = vadd.f32 %v8671, %v8672
  %v8674 = vsel %vm2636, %v8391, 0.0
  %v8675 = vadd.f32 %v8673, %v8674
  %v8676 = vsel %vm2636, %v8411, 0.0
  %v8677 = vadd.f32 %v8675, %v8676
  %v8678 = vsel %vm2636, %v8431, 0.0
  %v8679 = vadd.f32 %v8677, %v8678
  %v8680 = vsel %vm2636, %v8451, 0.0
  %v8681 = vadd.f32 %v8679, %v8680
  %v8682 = vsel %vm2636, %v8312, 0.0
  %v8683 = vsel %vm2636, %v8332, 0.0
  %v8684 = vadd.f32 %v8682, %v8683
  %v8685 = vsel %vm2636, %v8352, 0.0
  %v8686 = vadd.f32 %v8684, %v8685
  %v8687 = vsel %vm2636, %v8372, 0.0
  %v8688 = vadd.f32 %v8686, %v8687
  %v8689 = vsel %vm2636, %v8392, 0.0
  %v8690 = vadd.f32 %v8688, %v8689
  %v8691 = vsel %vm2636, %v8412, 0.0
  %v8692 = vadd.f32 %v8690, %v8691
  %v8693 = vsel %vm2636, %v8432, 0.0
  %v8694 = vadd.f32 %v8692, %v8693
  %v8695 = vsel %vm2636, %v8452, 0.0
  %v8696 = vadd.f32 %v8694, %v8695
  %v8697 = vsel %vm2636, %v8313, 0.0
  %v8698 = vsel %vm2636, %v8333, 0.0
  %v8699 = vadd.f32 %v8697, %v8698
  %v8700 = vsel %vm2636, %v8353, 0.0
  %v8701 = vadd.f32 %v8699, %v8700
  %v8702 = vsel %vm2636, %v8373, 0.0
  %v8703 = vadd.f32 %v8701, %v8702
  %v8704 = vsel %vm2636, %v8393, 0.0
  %v8705 = vadd.f32 %v8703, %v8704
  %v8706 = vsel %vm2636, %v8413, 0.0
  %v8707 = vadd.f32 %v8705, %v8706
  %v8708 = vsel %vm2636, %v8433, 0.0
  %v8709 = vadd.f32 %v8707, %v8708
  %v8710 = vsel %vm2636, %v8453, 0.0
  %v8711 = vadd.f32 %v8709, %v8710
  %v8712 = vsel %vm2636, %v8314, 0.0
  %v8713 = vsel %vm2636, %v8334, 0.0
  %v8714 = vadd.f32 %v8712, %v8713
  %v8715 = vsel %vm2636, %v8354, 0.0
  %v8716 = vadd.f32 %v8714, %v8715
  %v8717 = vsel %vm2636, %v8374, 0.0
  %v8718 = vadd.f32 %v8716, %v8717
  %v8719 = vsel %vm2636, %v8394, 0.0
  %v8720 = vadd.f32 %v8718, %v8719
  %v8721 = vsel %vm2636, %v8414, 0.0
  %v8722 = vadd.f32 %v8720, %v8721
  %v8723 = vsel %vm2636, %v8434, 0.0
  %v8724 = vadd.f32 %v8722, %v8723
  %v8725 = vsel %vm2636, %v8454, 0.0
  %v8726 = vadd.f32 %v8724, %v8725
  %v8727 = vsel %vm2636, %v8315, 0.0
  %v8728 = vsel %vm2636, %v8335, 0.0
  %v8729 = vadd.f32 %v8727, %v8728
  %v8730 = vsel %vm2636, %v8355, 0.0
  %v8731 = vadd.f32 %v8729, %v8730
  %v8732 = vsel %vm2636, %v8375, 0.0
  %v8733 = vadd.f32 %v8731, %v8732
  %v8734 = vsel %vm2636, %v8395, 0.0
  %v8735 = vadd.f32 %v8733, %v8734
  %v8736 = vsel %vm2636, %v8415, 0.0
  %v8737 = vadd.f32 %v8735, %v8736
  %v8738 = vsel %vm2636, %v8435, 0.0
  %v8739 = vadd.f32 %v8737, %v8738
  %v8740 = vsel %vm2636, %v8455, 0.0
  %v8741 = vadd.f32 %v8739, %v8740
  %v8742 = vsel %vm2636, %v8316, 0.0
  %v8743 = vsel %vm2636, %v8336, 0.0
  %v8744 = vadd.f32 %v8742, %v8743
  %v8745 = vsel %vm2636, %v8356, 0.0
  %v8746 = vadd.f32 %v8744, %v8745
  %v8747 = vsel %vm2636, %v8376, 0.0
  %v8748 = vadd.f32 %v8746, %v8747
  %v8749 = vsel %vm2636, %v8396, 0.0
  %v8750 = vadd.f32 %v8748, %v8749
  %v8751 = vsel %vm2636, %v8416, 0.0
  %v8752 = vadd.f32 %v8750, %v8751
  %v8753 = vsel %vm2636, %v8436, 0.0
  %v8754 = vadd.f32 %v8752, %v8753
  %v8755 = vsel %vm2636, %v8456, 0.0
  %v8756 = vadd.f32 %v8754, %v8755
  %v8757 = vmul.f32 %v8471, %v8471
  %v8758 = vmul.f32 %v8486, %v8486
  %v8759 = vmul.f32 %v8501, %v8501
  %v8760 = vmul.f32 %v8516, %v8516
  %v8761 = vmul.f32 %v8531, %v8531
  %v8762 = vmul.f32 %v8546, %v8546
  %v8763 = vmul.f32 %v8561, %v8561
  %v8764 = vmul.f32 %v8576, %v8576
  %v8765 = vmul.f32 %v8591, %v8591
  %v8766 = vmul.f32 %v8606, %v8606
  %v8767 = vmul.f32 %v8621, %v8621
  %v8768 = vmul.f32 %v8636, %v8636
  %v8769 = vmul.f32 %v8651, %v8651
  %v8770 = vmul.f32 %v8666, %v8666
  %v8771 = vmul.f32 %v8681, %v8681
  %v8772 = vmul.f32 %v8696, %v8696
  %v8773 = vmul.f32 %v8711, %v8711
  %v8774 = vmul.f32 %v8726, %v8726
  %v8775 = vmul.f32 %v8741, %v8741
  %v8776 = vmul.f32 %v8756, %v8756
  %v8777 = vsel %vm2636, %v8757, 0.0
  %v8778 = vsel %vm2636, %v8758, 0.0
  %v8779 = vadd.f32 %v8777, %v8778
  %v8780 = vrot.slane %v8779, 4
  %v8781 = vadd.f32 %v8779, %v8780
  %v8782 = vrot.slane %v8781, 2
  %v8783 = vadd.f32 %v8781, %v8782
  %v8784 = vrot.slane %v8783, 1
  %v8785 = vadd.f32 %v8783, %v8784
  %v8786 = vsel %vm2636, %v8759, 0.0
  %v8787 = vsel %vm2636, %v8760, 0.0
  %v8788 = vadd.f32 %v8786, %v8787
  %v8789 = vrot.slane %v8788, 4
  %v8790 = vadd.f32 %v8788, %v8789
  %v8791 = vrot.slane %v8790, 2
  %v8792 = vadd.f32 %v8790, %v8791
  %v8793 = vrot.slane %v8792, 1
  %v8794 = vadd.f32 %v8792, %v8793
  %v8795 = vsel %vm2636, %v8761, 0.0
  %v8796 = vsel %vm2636, %v8762, 0.0
  %v8797 = vadd.f32 %v8795, %v8796
  %v8798 = vrot.slane %v8797, 4
  %v8799 = vadd.f32 %v8797, %v8798
  %v8800 = vrot.slane %v8799, 2
  %v8801 = vadd.f32 %v8799, %v8800
  %v8802 = vrot.slane %v8801, 1
  %v8803 = vadd.f32 %v8801, %v8802
  %v8804 = vsel %vm2636, %v8763, 0.0
  %v8805 = vsel %vm2636, %v8764, 0.0
  %v8806 = vadd.f32 %v8804, %v8805
  %v8807 = vrot.slane %v8806, 4
  %v8808 = vadd.f32 %v8806, %v8807
  %v8809 = vrot.slane %v8808, 2
  %v8810 = vadd.f32 %v8808, %v8809
  %v8811 = vrot.slane %v8810, 1
  %v8812 = vadd.f32 %v8810, %v8811
  %v8813 = vsel %vm2636, %v8765, 0.0
  %v8814 = vsel %vm2636, %v8766, 0.0
  %v8815 = vadd.f32 %v8813, %v8814
  %v8816 = vrot.slane %v8815, 4
  %v8817 = vadd.f32 %v8815, %v8816
  %v8818 = vrot.slane %v8817, 2
  %v8819 = vadd.f32 %v8817, %v8818
  %v8820 = vrot.slane %v8819, 1
  %v8821 = vadd.f32 %v8819, %v8820
  %v8822 = vsel %vm2636, %v8767, 0.0
  %v8823 = vsel %vm2636, %v8768, 0.0
  %v8824 = vadd.f32 %v8822, %v8823
  %v8825 = vrot.slane %v8824, 4
  %v8826 = vadd.f32 %v8824, %v8825
  %v8827 = vrot.slane %v8826, 2
  %v8828 = vadd.f32 %v8826, %v8827
  %v8829 = vrot.slane %v8828, 1
  %v8830 = vadd.f32 %v8828, %v8829
  %v8831 = vsel %vm2636, %v8769, 0.0
  %v8832 = vsel %vm2636, %v8770, 0.0
  %v8833 = vadd.f32 %v8831, %v8832
  %v8834 = vrot.slane %v8833, 4
  %v8835 = vadd.f32 %v8833, %v8834
  %v8836 = vrot.slane %v8835, 2
  %v8837 = vadd.f32 %v8835, %v8836
  %v8838 = vrot.slane %v8837, 1
  %v8839 = vadd.f32 %v8837, %v8838
  %v8840 = vsel %vm2636, %v8771, 0.0
  %v8841 = vsel %vm2636, %v8772, 0.0
  %v8842 = vadd.f32 %v8840, %v8841
  %v8843 = vrot.slane %v8842, 4
  %v8844 = vadd.f32 %v8842, %v8843
  %v8845 = vrot.slane %v8844, 2
  %v8846 = vadd.f32 %v8844, %v8845
  %v8847 = vrot.slane %v8846, 1
  %v8848 = vadd.f32 %v8846, %v8847
  %v8849 = vsel %vm2636, %v8773, 0.0
  %v8850 = vsel %vm2636, %v8774, 0.0
  %v8851 = vadd.f32 %v8849, %v8850
  %v8852 = vrot.slane %v8851, 4
  %v8853 = vadd.f32 %v8851, %v8852
  %v8854 = vrot.slane %v8853, 2
  %v8855 = vadd.f32 %v8853, %v8854
  %v8856 = vrot.slane %v8855, 1
  %v8857 = vadd.f32 %v8855, %v8856
  %v8858 = vsel %vm2636, %v8775, 0.0
  %v8859 = vsel %vm2636, %v8776, 0.0
  %v8860 = vadd.f32 %v8858, %v8859
  %v8861 = vrot.slane %v8860, 4
  %v8862 = vadd.f32 %v8860, %v8861
  %v8863 = vrot.slane %v8862, 2
  %v8864 = vadd.f32 %v8862, %v8863
  %v8865 = vrot.slane %v8864, 1
  %v8866 = vadd.f32 %v8864, %v8865
  %v8867 = vadd.f32 %v8785, 1.0
  %v8868 = vadd.f32 %v8794, 1.0
  %v8869 = vadd.f32 %v8803, 1.0
  %v8870 = vadd.f32 %v8812, 1.0
  %v8871 = vadd.f32 %v8821, 1.0
  %v8872 = vadd.f32 %v8830, 1.0
  %v8873 = vadd.f32 %v8839, 1.0
  %v8874 = vadd.f32 %v8848, 1.0
  %v8875 = vadd.f32 %v8857, 1.0
  %v8876 = vadd.f32 %v8866, 1.0
  %v8877 = vrcp.pop %v8867
  %v8878 = vmul.f32 %v8785, %v8877
  %v8879 = vrcp.pop %v8868
  %v8880 = vmul.f32 %v8794, %v8879
  %v8881 = vrcp.pop %v8869
  %v8882 = vmul.f32 %v8803, %v8881
  %v8883 = vrcp.pop %v8870
  %v8884 = vmul.f32 %v8812, %v8883
  %v8885 = vrcp.pop %v8871
  %v8886 = vmul.f32 %v8821, %v8885
  %v8887 = vrcp.pop %v8872
  %v8888 = vmul.f32 %v8830, %v8887
  %v8889 = vrcp.pop %v8873
  %v8890 = vmul.f32 %v8839, %v8889
  %v8891 = vrcp.pop %v8874
  %v8892 = vmul.f32 %v8848, %v8891
  %v8893 = vrcp.pop %v8875
  %v8894 = vmul.f32 %v8857, %v8893
  %v8895 = vrcp.pop %v8876
  %v8896 = vmul.f32 %v8866, %v8895
  %v8897 = vadd.f32 %v8785, 1e-12
  %v8898 = vadd.f32 %v8794, 1e-12
  %v8899 = vadd.f32 %v8803, 1e-12
  %v8900 = vadd.f32 %v8812, 1e-12
  %v8901 = vadd.f32 %v8821, 1e-12
  %v8902 = vadd.f32 %v8830, 1e-12
  %v8903 = vadd.f32 %v8839, 1e-12
  %v8904 = vadd.f32 %v8848, 1e-12
  %v8905 = vadd.f32 %v8857, 1e-12
  %v8906 = vadd.f32 %v8866, 1e-12
  %v8907 = vrsqrt.pop %v8897
  %v8908 = vrsqrt.pop %v8898
  %v8909 = vrsqrt.pop %v8899
  %v8910 = vrsqrt.pop %v8900
  %v8911 = vrsqrt.pop %v8901
  %v8912 = vrsqrt.pop %v8902
  %v8913 = vrsqrt.pop %v8903
  %v8914 = vrsqrt.pop %v8904
  %v8915 = vrsqrt.pop %v8905
  %v8916 = vrsqrt.pop %v8906
  %v8917 = vmul.f32 %v8878, %v8907
  %v8918 = vmul.f32 %v8880, %v8908
  %v8919 = vmul.f32 %v8882, %v8909
  %v8920 = vmul.f32 %v8884, %v8910
  %v8921 = vmul.f32 %v8886, %v8911
  %v8922 = vmul.f32 %v8888, %v8912
  %v8923 = vmul.f32 %v8890, %v8913
  %v8924 = vmul.f32 %v8892, %v8914
  %v8925 = vmul.f32 %v8894, %v8915
  %v8926 = vmul.f32 %v8896, %v8916
  %v8927 = vmul.f32 %v8471, %v8917
  %v8928 = vmul.f32 %v8486, %v8917
  %v8929 = vmul.f32 %v8501, %v8918
  %v8930 = vmul.f32 %v8516, %v8918
  %v8931 = vmul.f32 %v8531, %v8919
  %v8932 = vmul.f32 %v8546, %v8919
  %v8933 = vmul.f32 %v8561, %v8920
  %v8934 = vmul.f32 %v8576, %v8920
  %v8935 = vmul.f32 %v8591, %v8921
  %v8936 = vmul.f32 %v8606, %v8921
  %v8937 = vmul.f32 %v8621, %v8922
  %v8938 = vmul.f32 %v8636, %v8922
  %v8939 = vmul.f32 %v8651, %v8923
  %v8940 = vmul.f32 %v8666, %v8923
  %v8941 = vmul.f32 %v8681, %v8924
  %v8942 = vmul.f32 %v8696, %v8924
  %v8943 = vmul.f32 %v8711, %v8925
  %v8944 = vmul.f32 %v8726, %v8925
  %v8945 = vmul.f32 %v8741, %v8926
  %v8946 = vmul.f32 %v8756, %v8926
  %v8947 = vmul.f32 %v972, %v8927
  %v8948 = vmul.f32 %v977, %v8928
  %v8949 = vmul.f32 %v982, %v8929
  %v8950 = vmul.f32 %v987, %v8930
  %v8951 = vmul.f32 %v992, %v8931
  %v8952 = vmul.f32 %v997, %v8932
  %v8953 = vmul.f32 %v1002, %v8933
  %v8954 = vmul.f32 %v1007, %v8934
  %v8955 = vmul.f32 %v1012, %v8935
  %v8956 = vmul.f32 %v1017, %v8936
  %v8957 = vmul.f32 %v1022, %v8937
  %v8958 = vmul.f32 %v1027, %v8938
  %v8959 = vmul.f32 %v1032, %v8939
  %v8960 = vmul.f32 %v1037, %v8940
  %v8961 = vmul.f32 %v1042, %v8941
  %v8962 = vmul.f32 %v1047, %v8942
  %v8963 = vmul.f32 %v1052, %v8943
  %v8964 = vmul.f32 %v1057, %v8944
  %v8965 = vmul.f32 %v1062, %v8945
  %v8966 = vmul.f32 %v1067, %v8946
  %v8967 = vmul.f32 %v1072, %v8927
  %v8968 = vmul.f32 %v1077, %v8928
  %v8969 = vmul.f32 %v1082, %v8929
  %v8970 = vmul.f32 %v1087, %v8930
  %v8971 = vmul.f32 %v1092, %v8931
  %v8972 = vmul.f32 %v1097, %v8932
  %v8973 = vmul.f32 %v1102, %v8933
  %v8974 = vmul.f32 %v1107, %v8934
  %v8975 = vmul.f32 %v1112, %v8935
  %v8976 = vmul.f32 %v1117, %v8936
  %v8977 = vmul.f32 %v1122, %v8937
  %v8978 = vmul.f32 %v1127, %v8938
  %v8979 = vmul.f32 %v1132, %v8939
  %v8980 = vmul.f32 %v1137, %v8940
  %v8981 = vmul.f32 %v1142, %v8941
  %v8982 = vmul.f32 %v1147, %v8942
  %v8983 = vmul.f32 %v1152, %v8943
  %v8984 = vmul.f32 %v1157, %v8944
  %v8985 = vmul.f32 %v1162, %v8945
  %v8986 = vmul.f32 %v1167, %v8946
  %v8987 = vmul.f32 %v1172, %v8927
  %v8988 = vmul.f32 %v1177, %v8928
  %v8989 = vmul.f32 %v1182, %v8929
  %v8990 = vmul.f32 %v1187, %v8930
  %v8991 = vmul.f32 %v1192, %v8931
  %v8992 = vmul.f32 %v1197, %v8932
  %v8993 = vmul.f32 %v1202, %v8933
  %v8994 = vmul.f32 %v1207, %v8934
  %v8995 = vmul.f32 %v1212, %v8935
  %v8996 = vmul.f32 %v1217, %v8936
  %v8997 = vmul.f32 %v1222, %v8937
  %v8998 = vmul.f32 %v1227, %v8938
  %v8999 = vmul.f32 %v1232, %v8939
  %v9000 = vmul.f32 %v1237, %v8940
  %v9001 = vmul.f32 %v1242, %v8941
  %v9002 = vmul.f32 %v1247, %v8942
  %v9003 = vmul.f32 %v1252, %v8943
  %v9004 = vmul.f32 %v1257, %v8944
  %v9005 = vmul.f32 %v1262, %v8945
  %v9006 = vmul.f32 %v1267, %v8946
  %v9007 = vmul.f32 %v1272, %v8927
  %v9008 = vmul.f32 %v1277, %v8928
  %v9009 = vmul.f32 %v1282, %v8929
  %v9010 = vmul.f32 %v1287, %v8930
  %v9011 = vmul.f32 %v1292, %v8931
  %v9012 = vmul.f32 %v1297, %v8932
  %v9013 = vmul.f32 %v1302, %v8933
  %v9014 = vmul.f32 %v1307, %v8934
  %v9015 = vmul.f32 %v1312, %v8935
  %v9016 = vmul.f32 %v1317, %v8936
  %v9017 = vmul.f32 %v1322, %v8937
  %v9018 = vmul.f32 %v1327, %v8938
  %v9019 = vmul.f32 %v1332, %v8939
  %v9020 = vmul.f32 %v1337, %v8940
  %v9021 = vmul.f32 %v1342, %v8941
  %v9022 = vmul.f32 %v1347, %v8942
  %v9023 = vmul.f32 %v1352, %v8943
  %v9024 = vmul.f32 %v1357, %v8944
  %v9025 = vmul.f32 %v1362, %v8945
  %v9026 = vmul.f32 %v1367, %v8946
  %v9027 = vmul.f32 %v1372, %v8927
  %v9028 = vmul.f32 %v1377, %v8928
  %v9029 = vmul.f32 %v1382, %v8929
  %v9030 = vmul.f32 %v1387, %v8930
  %v9031 = vmul.f32 %v1392, %v8931
  %v9032 = vmul.f32 %v1397, %v8932
  %v9033 = vmul.f32 %v1402, %v8933
  %v9034 = vmul.f32 %v1407, %v8934
  %v9035 = vmul.f32 %v1412, %v8935
  %v9036 = vmul.f32 %v1417, %v8936
  %v9037 = vmul.f32 %v1422, %v8937
  %v9038 = vmul.f32 %v1427, %v8938
  %v9039 = vmul.f32 %v1432, %v8939
  %v9040 = vmul.f32 %v1437, %v8940
  %v9041 = vmul.f32 %v1442, %v8941
  %v9042 = vmul.f32 %v1447, %v8942
  %v9043 = vmul.f32 %v1452, %v8943
  %v9044 = vmul.f32 %v1457, %v8944
  %v9045 = vmul.f32 %v1462, %v8945
  %v9046 = vmul.f32 %v1467, %v8946
  %v9047 = vmul.f32 %v1472, %v8927
  %v9048 = vmul.f32 %v1477, %v8928
  %v9049 = vmul.f32 %v1482, %v8929
  %v9050 = vmul.f32 %v1487, %v8930
  %v9051 = vmul.f32 %v1492, %v8931
  %v9052 = vmul.f32 %v1497, %v8932
  %v9053 = vmul.f32 %v1502, %v8933
  %v9054 = vmul.f32 %v1507, %v8934
  %v9055 = vmul.f32 %v1512, %v8935
  %v9056 = vmul.f32 %v1517, %v8936
  %v9057 = vmul.f32 %v1522, %v8937
  %v9058 = vmul.f32 %v1527, %v8938
  %v9059 = vmul.f32 %v1532, %v8939
  %v9060 = vmul.f32 %v1537, %v8940
  %v9061 = vmul.f32 %v1542, %v8941
  %v9062 = vmul.f32 %v1547, %v8942
  %v9063 = vmul.f32 %v1552, %v8943
  %v9064 = vmul.f32 %v1557, %v8944
  %v9065 = vmul.f32 %v1562, %v8945
  %v9066 = vmul.f32 %v1567, %v8946
  %v9067 = vmul.f32 %v1572, %v8927
  %v9068 = vmul.f32 %v1577, %v8928
  %v9069 = vmul.f32 %v1582, %v8929
  %v9070 = vmul.f32 %v1587, %v8930
  %v9071 = vmul.f32 %v1592, %v8931
  %v9072 = vmul.f32 %v1597, %v8932
  %v9073 = vmul.f32 %v1602, %v8933
  %v9074 = vmul.f32 %v1607, %v8934
  %v9075 = vmul.f32 %v1612, %v8935
  %v9076 = vmul.f32 %v1617, %v8936
  %v9077 = vmul.f32 %v1622, %v8937
  %v9078 = vmul.f32 %v1627, %v8938
  %v9079 = vmul.f32 %v1632, %v8939
  %v9080 = vmul.f32 %v1637, %v8940
  %v9081 = vmul.f32 %v1642, %v8941
  %v9082 = vmul.f32 %v1647, %v8942
  %v9083 = vmul.f32 %v1652, %v8943
  %v9084 = vmul.f32 %v1657, %v8944
  %v9085 = vmul.f32 %v1662, %v8945
  %v9086 = vmul.f32 %v1667, %v8946
  %v9087 = vmul.f32 %v1672, %v8927
  %v9088 = vmul.f32 %v1677, %v8928
  %v9089 = vmul.f32 %v1682, %v8929
  %v9090 = vmul.f32 %v1687, %v8930
  %v9091 = vmul.f32 %v1692, %v8931
  %v9092 = vmul.f32 %v1697, %v8932
  %v9093 = vmul.f32 %v1702, %v8933
  %v9094 = vmul.f32 %v1707, %v8934
  %v9095 = vmul.f32 %v1712, %v8935
  %v9096 = vmul.f32 %v1717, %v8936
  %v9097 = vmul.f32 %v1722, %v8937
  %v9098 = vmul.f32 %v1727, %v8938
  %v9099 = vmul.f32 %v1732, %v8939
  %v9100 = vmul.f32 %v1737, %v8940
  %v9101 = vmul.f32 %v1742, %v8941
  %v9102 = vmul.f32 %v1747, %v8942
  %v9103 = vmul.f32 %v1752, %v8943
  %v9104 = vmul.f32 %v1757, %v8944
  %v9105 = vmul.f32 %v1762, %v8945
  %v9106 = vmul.f32 %v1767, %v8946
  %v9107 = vsel %vm2636, %v8947, 0.0
  %v9108 = vsel %vm2636, %v8948, 0.0
  %v9109 = vadd.f32 %v9107, %v9108
  %v9110 = vrot.slane %v9109, 4
  %v9111 = vadd.f32 %v9109, %v9110
  %v9112 = vrot.slane %v9111, 2
  %v9113 = vadd.f32 %v9111, %v9112
  %v9114 = vrot.slane %v9113, 1
  %v9115 = vadd.f32 %v9113, %v9114
  %v9116 = vsel %vm2636, %v8949, 0.0
  %v9117 = vsel %vm2636, %v8950, 0.0
  %v9118 = vadd.f32 %v9116, %v9117
  %v9119 = vrot.slane %v9118, 4
  %v9120 = vadd.f32 %v9118, %v9119
  %v9121 = vrot.slane %v9120, 2
  %v9122 = vadd.f32 %v9120, %v9121
  %v9123 = vrot.slane %v9122, 1
  %v9124 = vadd.f32 %v9122, %v9123
  %v9125 = vsel %vm2636, %v8951, 0.0
  %v9126 = vsel %vm2636, %v8952, 0.0
  %v9127 = vadd.f32 %v9125, %v9126
  %v9128 = vrot.slane %v9127, 4
  %v9129 = vadd.f32 %v9127, %v9128
  %v9130 = vrot.slane %v9129, 2
  %v9131 = vadd.f32 %v9129, %v9130
  %v9132 = vrot.slane %v9131, 1
  %v9133 = vadd.f32 %v9131, %v9132
  %v9134 = vsel %vm2636, %v8953, 0.0
  %v9135 = vsel %vm2636, %v8954, 0.0
  %v9136 = vadd.f32 %v9134, %v9135
  %v9137 = vrot.slane %v9136, 4
  %v9138 = vadd.f32 %v9136, %v9137
  %v9139 = vrot.slane %v9138, 2
  %v9140 = vadd.f32 %v9138, %v9139
  %v9141 = vrot.slane %v9140, 1
  %v9142 = vadd.f32 %v9140, %v9141
  %v9143 = vsel %vm2636, %v8955, 0.0
  %v9144 = vsel %vm2636, %v8956, 0.0
  %v9145 = vadd.f32 %v9143, %v9144
  %v9146 = vrot.slane %v9145, 4
  %v9147 = vadd.f32 %v9145, %v9146
  %v9148 = vrot.slane %v9147, 2
  %v9149 = vadd.f32 %v9147, %v9148
  %v9150 = vrot.slane %v9149, 1
  %v9151 = vadd.f32 %v9149, %v9150
  %v9152 = vsel %vm2636, %v8957, 0.0
  %v9153 = vsel %vm2636, %v8958, 0.0
  %v9154 = vadd.f32 %v9152, %v9153
  %v9155 = vrot.slane %v9154, 4
  %v9156 = vadd.f32 %v9154, %v9155
  %v9157 = vrot.slane %v9156, 2
  %v9158 = vadd.f32 %v9156, %v9157
  %v9159 = vrot.slane %v9158, 1
  %v9160 = vadd.f32 %v9158, %v9159
  %v9161 = vsel %vm2636, %v8959, 0.0
  %v9162 = vsel %vm2636, %v8960, 0.0
  %v9163 = vadd.f32 %v9161, %v9162
  %v9164 = vrot.slane %v9163, 4
  %v9165 = vadd.f32 %v9163, %v9164
  %v9166 = vrot.slane %v9165, 2
  %v9167 = vadd.f32 %v9165, %v9166
  %v9168 = vrot.slane %v9167, 1
  %v9169 = vadd.f32 %v9167, %v9168
  %v9170 = vsel %vm2636, %v8961, 0.0
  %v9171 = vsel %vm2636, %v8962, 0.0
  %v9172 = vadd.f32 %v9170, %v9171
  %v9173 = vrot.slane %v9172, 4
  %v9174 = vadd.f32 %v9172, %v9173
  %v9175 = vrot.slane %v9174, 2
  %v9176 = vadd.f32 %v9174, %v9175
  %v9177 = vrot.slane %v9176, 1
  %v9178 = vadd.f32 %v9176, %v9177
  %v9179 = vsel %vm2636, %v8963, 0.0
  %v9180 = vsel %vm2636, %v8964, 0.0
  %v9181 = vadd.f32 %v9179, %v9180
  %v9182 = vrot.slane %v9181, 4
  %v9183 = vadd.f32 %v9181, %v9182
  %v9184 = vrot.slane %v9183, 2
  %v9185 = vadd.f32 %v9183, %v9184
  %v9186 = vrot.slane %v9185, 1
  %v9187 = vadd.f32 %v9185, %v9186
  %v9188 = vsel %vm2636, %v8965, 0.0
  %v9189 = vsel %vm2636, %v8966, 0.0
  %v9190 = vadd.f32 %v9188, %v9189
  %v9191 = vrot.slane %v9190, 4
  %v9192 = vadd.f32 %v9190, %v9191
  %v9193 = vrot.slane %v9192, 2
  %v9194 = vadd.f32 %v9192, %v9193
  %v9195 = vrot.slane %v9194, 1
  %v9196 = vadd.f32 %v9194, %v9195
  %v9197 = vsel %vm2636, %v8967, 0.0
  %v9198 = vsel %vm2636, %v8968, 0.0
  %v9199 = vadd.f32 %v9197, %v9198
  %v9200 = vrot.slane %v9199, 4
  %v9201 = vadd.f32 %v9199, %v9200
  %v9202 = vrot.slane %v9201, 2
  %v9203 = vadd.f32 %v9201, %v9202
  %v9204 = vrot.slane %v9203, 1
  %v9205 = vadd.f32 %v9203, %v9204
  %v9206 = vsel %vm2636, %v8969, 0.0
  %v9207 = vsel %vm2636, %v8970, 0.0
  %v9208 = vadd.f32 %v9206, %v9207
  %v9209 = vrot.slane %v9208, 4
  %v9210 = vadd.f32 %v9208, %v9209
  %v9211 = vrot.slane %v9210, 2
  %v9212 = vadd.f32 %v9210, %v9211
  %v9213 = vrot.slane %v9212, 1
  %v9214 = vadd.f32 %v9212, %v9213
  %v9215 = vsel %vm2636, %v8971, 0.0
  %v9216 = vsel %vm2636, %v8972, 0.0
  %v9217 = vadd.f32 %v9215, %v9216
  %v9218 = vrot.slane %v9217, 4
  %v9219 = vadd.f32 %v9217, %v9218
  %v9220 = vrot.slane %v9219, 2
  %v9221 = vadd.f32 %v9219, %v9220
  %v9222 = vrot.slane %v9221, 1
  %v9223 = vadd.f32 %v9221, %v9222
  %v9224 = vsel %vm2636, %v8973, 0.0
  %v9225 = vsel %vm2636, %v8974, 0.0
  %v9226 = vadd.f32 %v9224, %v9225
  %v9227 = vrot.slane %v9226, 4
  %v9228 = vadd.f32 %v9226, %v9227
  %v9229 = vrot.slane %v9228, 2
  %v9230 = vadd.f32 %v9228, %v9229
  %v9231 = vrot.slane %v9230, 1
  %v9232 = vadd.f32 %v9230, %v9231
  %v9233 = vsel %vm2636, %v8975, 0.0
  %v9234 = vsel %vm2636, %v8976, 0.0
  %v9235 = vadd.f32 %v9233, %v9234
  %v9236 = vrot.slane %v9235, 4
  %v9237 = vadd.f32 %v9235, %v9236
  %v9238 = vrot.slane %v9237, 2
  %v9239 = vadd.f32 %v9237, %v9238
  %v9240 = vrot.slane %v9239, 1
  %v9241 = vadd.f32 %v9239, %v9240
  %v9242 = vsel %vm2636, %v8977, 0.0
  %v9243 = vsel %vm2636, %v8978, 0.0
  %v9244 = vadd.f32 %v9242, %v9243
  %v9245 = vrot.slane %v9244, 4
  %v9246 = vadd.f32 %v9244, %v9245
  %v9247 = vrot.slane %v9246, 2
  %v9248 = vadd.f32 %v9246, %v9247
  %v9249 = vrot.slane %v9248, 1
  %v9250 = vadd.f32 %v9248, %v9249
  %v9251 = vsel %vm2636, %v8979, 0.0
  %v9252 = vsel %vm2636, %v8980, 0.0
  %v9253 = vadd.f32 %v9251, %v9252
  %v9254 = vrot.slane %v9253, 4
  %v9255 = vadd.f32 %v9253, %v9254
  %v9256 = vrot.slane %v9255, 2
  %v9257 = vadd.f32 %v9255, %v9256
  %v9258 = vrot.slane %v9257, 1
  %v9259 = vadd.f32 %v9257, %v9258
  %v9260 = vsel %vm2636, %v8981, 0.0
  %v9261 = vsel %vm2636, %v8982, 0.0
  %v9262 = vadd.f32 %v9260, %v9261
  %v9263 = vrot.slane %v9262, 4
  %v9264 = vadd.f32 %v9262, %v9263
  %v9265 = vrot.slane %v9264, 2
  %v9266 = vadd.f32 %v9264, %v9265
  %v9267 = vrot.slane %v9266, 1
  %v9268 = vadd.f32 %v9266, %v9267
  %v9269 = vsel %vm2636, %v8983, 0.0
  %v9270 = vsel %vm2636, %v8984, 0.0
  %v9271 = vadd.f32 %v9269, %v9270
  %v9272 = vrot.slane %v9271, 4
  %v9273 = vadd.f32 %v9271, %v9272
  %v9274 = vrot.slane %v9273, 2
  %v9275 = vadd.f32 %v9273, %v9274
  %v9276 = vrot.slane %v9275, 1
  %v9277 = vadd.f32 %v9275, %v9276
  %v9278 = vsel %vm2636, %v8985, 0.0
  %v9279 = vsel %vm2636, %v8986, 0.0
  %v9280 = vadd.f32 %v9278, %v9279
  %v9281 = vrot.slane %v9280, 4
  %v9282 = vadd.f32 %v9280, %v9281
  %v9283 = vrot.slane %v9282, 2
  %v9284 = vadd.f32 %v9282, %v9283
  %v9285 = vrot.slane %v9284, 1
  %v9286 = vadd.f32 %v9284, %v9285
  %v9287 = vsel %vm2636, %v8987, 0.0
  %v9288 = vsel %vm2636, %v8988, 0.0
  %v9289 = vadd.f32 %v9287, %v9288
  %v9290 = vrot.slane %v9289, 4
  %v9291 = vadd.f32 %v9289, %v9290
  %v9292 = vrot.slane %v9291, 2
  %v9293 = vadd.f32 %v9291, %v9292
  %v9294 = vrot.slane %v9293, 1
  %v9295 = vadd.f32 %v9293, %v9294
  %v9296 = vsel %vm2636, %v8989, 0.0
  %v9297 = vsel %vm2636, %v8990, 0.0
  %v9298 = vadd.f32 %v9296, %v9297
  %v9299 = vrot.slane %v9298, 4
  %v9300 = vadd.f32 %v9298, %v9299
  %v9301 = vrot.slane %v9300, 2
  %v9302 = vadd.f32 %v9300, %v9301
  %v9303 = vrot.slane %v9302, 1
  %v9304 = vadd.f32 %v9302, %v9303
  %v9305 = vsel %vm2636, %v8991, 0.0
  %v9306 = vsel %vm2636, %v8992, 0.0
  %v9307 = vadd.f32 %v9305, %v9306
  %v9308 = vrot.slane %v9307, 4
  %v9309 = vadd.f32 %v9307, %v9308
  %v9310 = vrot.slane %v9309, 2
  %v9311 = vadd.f32 %v9309, %v9310
  %v9312 = vrot.slane %v9311, 1
  %v9313 = vadd.f32 %v9311, %v9312
  %v9314 = vsel %vm2636, %v8993, 0.0
  %v9315 = vsel %vm2636, %v8994, 0.0
  %v9316 = vadd.f32 %v9314, %v9315
  %v9317 = vrot.slane %v9316, 4
  %v9318 = vadd.f32 %v9316, %v9317
  %v9319 = vrot.slane %v9318, 2
  %v9320 = vadd.f32 %v9318, %v9319
  %v9321 = vrot.slane %v9320, 1
  %v9322 = vadd.f32 %v9320, %v9321
  %v9323 = vsel %vm2636, %v8995, 0.0
  %v9324 = vsel %vm2636, %v8996, 0.0
  %v9325 = vadd.f32 %v9323, %v9324
  %v9326 = vrot.slane %v9325, 4
  %v9327 = vadd.f32 %v9325, %v9326
  %v9328 = vrot.slane %v9327, 2
  %v9329 = vadd.f32 %v9327, %v9328
  %v9330 = vrot.slane %v9329, 1
  %v9331 = vadd.f32 %v9329, %v9330
  %v9332 = vsel %vm2636, %v8997, 0.0
  %v9333 = vsel %vm2636, %v8998, 0.0
  %v9334 = vadd.f32 %v9332, %v9333
  %v9335 = vrot.slane %v9334, 4
  %v9336 = vadd.f32 %v9334, %v9335
  %v9337 = vrot.slane %v9336, 2
  %v9338 = vadd.f32 %v9336, %v9337
  %v9339 = vrot.slane %v9338, 1
  %v9340 = vadd.f32 %v9338, %v9339
  %v9341 = vsel %vm2636, %v8999, 0.0
  %v9342 = vsel %vm2636, %v9000, 0.0
  %v9343 = vadd.f32 %v9341, %v9342
  %v9344 = vrot.slane %v9343, 4
  %v9345 = vadd.f32 %v9343, %v9344
  %v9346 = vrot.slane %v9345, 2
  %v9347 = vadd.f32 %v9345, %v9346
  %v9348 = vrot.slane %v9347, 1
  %v9349 = vadd.f32 %v9347, %v9348
  %v9350 = vsel %vm2636, %v9001, 0.0
  %v9351 = vsel %vm2636, %v9002, 0.0
  %v9352 = vadd.f32 %v9350, %v9351
  %v9353 = vrot.slane %v9352, 4
  %v9354 = vadd.f32 %v9352, %v9353
  %v9355 = vrot.slane %v9354, 2
  %v9356 = vadd.f32 %v9354, %v9355
  %v9357 = vrot.slane %v9356, 1
  %v9358 = vadd.f32 %v9356, %v9357
  %v9359 = vsel %vm2636, %v9003, 0.0
  %v9360 = vsel %vm2636, %v9004, 0.0
  %v9361 = vadd.f32 %v9359, %v9360
  %v9362 = vrot.slane %v9361, 4
  %v9363 = vadd.f32 %v9361, %v9362
  %v9364 = vrot.slane %v9363, 2
  %v9365 = vadd.f32 %v9363, %v9364
  %v9366 = vrot.slane %v9365, 1
  %v9367 = vadd.f32 %v9365, %v9366
  %v9368 = vsel %vm2636, %v9005, 0.0
  %v9369 = vsel %vm2636, %v9006, 0.0
  %v9370 = vadd.f32 %v9368, %v9369
  %v9371 = vrot.slane %v9370, 4
  %v9372 = vadd.f32 %v9370, %v9371
  %v9373 = vrot.slane %v9372, 2
  %v9374 = vadd.f32 %v9372, %v9373
  %v9375 = vrot.slane %v9374, 1
  %v9376 = vadd.f32 %v9374, %v9375
  %v9377 = vsel %vm2636, %v9007, 0.0
  %v9378 = vsel %vm2636, %v9008, 0.0
  %v9379 = vadd.f32 %v9377, %v9378
  %v9380 = vrot.slane %v9379, 4
  %v9381 = vadd.f32 %v9379, %v9380
  %v9382 = vrot.slane %v9381, 2
  %v9383 = vadd.f32 %v9381, %v9382
  %v9384 = vrot.slane %v9383, 1
  %v9385 = vadd.f32 %v9383, %v9384
  %v9386 = vsel %vm2636, %v9009, 0.0
  %v9387 = vsel %vm2636, %v9010, 0.0
  %v9388 = vadd.f32 %v9386, %v9387
  %v9389 = vrot.slane %v9388, 4
  %v9390 = vadd.f32 %v9388, %v9389
  %v9391 = vrot.slane %v9390, 2
  %v9392 = vadd.f32 %v9390, %v9391
  %v9393 = vrot.slane %v9392, 1
  %v9394 = vadd.f32 %v9392, %v9393
  %v9395 = vsel %vm2636, %v9011, 0.0
  %v9396 = vsel %vm2636, %v9012, 0.0
  %v9397 = vadd.f32 %v9395, %v9396
  %v9398 = vrot.slane %v9397, 4
  %v9399 = vadd.f32 %v9397, %v9398
  %v9400 = vrot.slane %v9399, 2
  %v9401 = vadd.f32 %v9399, %v9400
  %v9402 = vrot.slane %v9401, 1
  %v9403 = vadd.f32 %v9401, %v9402
  %v9404 = vsel %vm2636, %v9013, 0.0
  %v9405 = vsel %vm2636, %v9014, 0.0
  %v9406 = vadd.f32 %v9404, %v9405
  %v9407 = vrot.slane %v9406, 4
  %v9408 = vadd.f32 %v9406, %v9407
  %v9409 = vrot.slane %v9408, 2
  %v9410 = vadd.f32 %v9408, %v9409
  %v9411 = vrot.slane %v9410, 1
  %v9412 = vadd.f32 %v9410, %v9411
  %v9413 = vsel %vm2636, %v9015, 0.0
  %v9414 = vsel %vm2636, %v9016, 0.0
  %v9415 = vadd.f32 %v9413, %v9414
  %v9416 = vrot.slane %v9415, 4
  %v9417 = vadd.f32 %v9415, %v9416
  %v9418 = vrot.slane %v9417, 2
  %v9419 = vadd.f32 %v9417, %v9418
  %v9420 = vrot.slane %v9419, 1
  %v9421 = vadd.f32 %v9419, %v9420
  %v9422 = vsel %vm2636, %v9017, 0.0
  %v9423 = vsel %vm2636, %v9018, 0.0
  %v9424 = vadd.f32 %v9422, %v9423
  %v9425 = vrot.slane %v9424, 4
  %v9426 = vadd.f32 %v9424, %v9425
  %v9427 = vrot.slane %v9426, 2
  %v9428 = vadd.f32 %v9426, %v9427
  %v9429 = vrot.slane %v9428, 1
  %v9430 = vadd.f32 %v9428, %v9429
  %v9431 = vsel %vm2636, %v9019, 0.0
  %v9432 = vsel %vm2636, %v9020, 0.0
  %v9433 = vadd.f32 %v9431, %v9432
  %v9434 = vrot.slane %v9433, 4
  %v9435 = vadd.f32 %v9433, %v9434
  %v9436 = vrot.slane %v9435, 2
  %v9437 = vadd.f32 %v9435, %v9436
  %v9438 = vrot.slane %v9437, 1
  %v9439 = vadd.f32 %v9437, %v9438
  %v9440 = vsel %vm2636, %v9021, 0.0
  %v9441 = vsel %vm2636, %v9022, 0.0
  %v9442 = vadd.f32 %v9440, %v9441
  %v9443 = vrot.slane %v9442, 4
  %v9444 = vadd.f32 %v9442, %v9443
  %v9445 = vrot.slane %v9444, 2
  %v9446 = vadd.f32 %v9444, %v9445
  %v9447 = vrot.slane %v9446, 1
  %v9448 = vadd.f32 %v9446, %v9447
  %v9449 = vsel %vm2636, %v9023, 0.0
  %v9450 = vsel %vm2636, %v9024, 0.0
  %v9451 = vadd.f32 %v9449, %v9450
  %v9452 = vrot.slane %v9451, 4
  %v9453 = vadd.f32 %v9451, %v9452
  %v9454 = vrot.slane %v9453, 2
  %v9455 = vadd.f32 %v9453, %v9454
  %v9456 = vrot.slane %v9455, 1
  %v9457 = vadd.f32 %v9455, %v9456
  %v9458 = vsel %vm2636, %v9025, 0.0
  %v9459 = vsel %vm2636, %v9026, 0.0
  %v9460 = vadd.f32 %v9458, %v9459
  %v9461 = vrot.slane %v9460, 4
  %v9462 = vadd.f32 %v9460, %v9461
  %v9463 = vrot.slane %v9462, 2
  %v9464 = vadd.f32 %v9462, %v9463
  %v9465 = vrot.slane %v9464, 1
  %v9466 = vadd.f32 %v9464, %v9465
  %v9467 = vsel %vm2636, %v9027, 0.0
  %v9468 = vsel %vm2636, %v9028, 0.0
  %v9469 = vadd.f32 %v9467, %v9468
  %v9470 = vrot.slane %v9469, 4
  %v9471 = vadd.f32 %v9469, %v9470
  %v9472 = vrot.slane %v9471, 2
  %v9473 = vadd.f32 %v9471, %v9472
  %v9474 = vrot.slane %v9473, 1
  %v9475 = vadd.f32 %v9473, %v9474
  %v9476 = vsel %vm2636, %v9029, 0.0
  %v9477 = vsel %vm2636, %v9030, 0.0
  %v9478 = vadd.f32 %v9476, %v9477
  %v9479 = vrot.slane %v9478, 4
  %v9480 = vadd.f32 %v9478, %v9479
  %v9481 = vrot.slane %v9480, 2
  %v9482 = vadd.f32 %v9480, %v9481
  %v9483 = vrot.slane %v9482, 1
  %v9484 = vadd.f32 %v9482, %v9483
  %v9485 = vsel %vm2636, %v9031, 0.0
  %v9486 = vsel %vm2636, %v9032, 0.0
  %v9487 = vadd.f32 %v9485, %v9486
  %v9488 = vrot.slane %v9487, 4
  %v9489 = vadd.f32 %v9487, %v9488
  %v9490 = vrot.slane %v9489, 2
  %v9491 = vadd.f32 %v9489, %v9490
  %v9492 = vrot.slane %v9491, 1
  %v9493 = vadd.f32 %v9491, %v9492
  %v9494 = vsel %vm2636, %v9033, 0.0
  %v9495 = vsel %vm2636, %v9034, 0.0
  %v9496 = vadd.f32 %v9494, %v9495
  %v9497 = vrot.slane %v9496, 4
  %v9498 = vadd.f32 %v9496, %v9497
  %v9499 = vrot.slane %v9498, 2
  %v9500 = vadd.f32 %v9498, %v9499
  %v9501 = vrot.slane %v9500, 1
  %v9502 = vadd.f32 %v9500, %v9501
  %v9503 = vsel %vm2636, %v9035, 0.0
  %v9504 = vsel %vm2636, %v9036, 0.0
  %v9505 = vadd.f32 %v9503, %v9504
  %v9506 = vrot.slane %v9505, 4
  %v9507 = vadd.f32 %v9505, %v9506
  %v9508 = vrot.slane %v9507, 2
  %v9509 = vadd.f32 %v9507, %v9508
  %v9510 = vrot.slane %v9509, 1
  %v9511 = vadd.f32 %v9509, %v9510
  %v9512 = vsel %vm2636, %v9037, 0.0
  %v9513 = vsel %vm2636, %v9038, 0.0
  %v9514 = vadd.f32 %v9512, %v9513
  %v9515 = vrot.slane %v9514, 4
  %v9516 = vadd.f32 %v9514, %v9515
  %v9517 = vrot.slane %v9516, 2
  %v9518 = vadd.f32 %v9516, %v9517
  %v9519 = vrot.slane %v9518, 1
  %v9520 = vadd.f32 %v9518, %v9519
  %v9521 = vsel %vm2636, %v9039, 0.0
  %v9522 = vsel %vm2636, %v9040, 0.0
  %v9523 = vadd.f32 %v9521, %v9522
  %v9524 = vrot.slane %v9523, 4
  %v9525 = vadd.f32 %v9523, %v9524
  %v9526 = vrot.slane %v9525, 2
  %v9527 = vadd.f32 %v9525, %v9526
  %v9528 = vrot.slane %v9527, 1
  %v9529 = vadd.f32 %v9527, %v9528
  %v9530 = vsel %vm2636, %v9041, 0.0
  %v9531 = vsel %vm2636, %v9042, 0.0
  %v9532 = vadd.f32 %v9530, %v9531
  %v9533 = vrot.slane %v9532, 4
  %v9534 = vadd.f32 %v9532, %v9533
  %v9535 = vrot.slane %v9534, 2
  %v9536 = vadd.f32 %v9534, %v9535
  %v9537 = vrot.slane %v9536, 1
  %v9538 = vadd.f32 %v9536, %v9537
  %v9539 = vsel %vm2636, %v9043, 0.0
  %v9540 = vsel %vm2636, %v9044, 0.0
  %v9541 = vadd.f32 %v9539, %v9540
  %v9542 = vrot.slane %v9541, 4
  %v9543 = vadd.f32 %v9541, %v9542
  %v9544 = vrot.slane %v9543, 2
  %v9545 = vadd.f32 %v9543, %v9544
  %v9546 = vrot.slane %v9545, 1
  %v9547 = vadd.f32 %v9545, %v9546
  %v9548 = vsel %vm2636, %v9045, 0.0
  %v9549 = vsel %vm2636, %v9046, 0.0
  %v9550 = vadd.f32 %v9548, %v9549
  %v9551 = vrot.slane %v9550, 4
  %v9552 = vadd.f32 %v9550, %v9551
  %v9553 = vrot.slane %v9552, 2
  %v9554 = vadd.f32 %v9552, %v9553
  %v9555 = vrot.slane %v9554, 1
  %v9556 = vadd.f32 %v9554, %v9555
  %v9557 = vsel %vm2636, %v9047, 0.0
  %v9558 = vsel %vm2636, %v9048, 0.0
  %v9559 = vadd.f32 %v9557, %v9558
  %v9560 = vrot.slane %v9559, 4
  %v9561 = vadd.f32 %v9559, %v9560
  %v9562 = vrot.slane %v9561, 2
  %v9563 = vadd.f32 %v9561, %v9562
  %v9564 = vrot.slane %v9563, 1
  %v9565 = vadd.f32 %v9563, %v9564
  %v9566 = vsel %vm2636, %v9049, 0.0
  %v9567 = vsel %vm2636, %v9050, 0.0
  %v9568 = vadd.f32 %v9566, %v9567
  %v9569 = vrot.slane %v9568, 4
  %v9570 = vadd.f32 %v9568, %v9569
  %v9571 = vrot.slane %v9570, 2
  %v9572 = vadd.f32 %v9570, %v9571
  %v9573 = vrot.slane %v9572, 1
  %v9574 = vadd.f32 %v9572, %v9573
  %v9575 = vsel %vm2636, %v9051, 0.0
  %v9576 = vsel %vm2636, %v9052, 0.0
  %v9577 = vadd.f32 %v9575, %v9576
  %v9578 = vrot.slane %v9577, 4
  %v9579 = vadd.f32 %v9577, %v9578
  %v9580 = vrot.slane %v9579, 2
  %v9581 = vadd.f32 %v9579, %v9580
  %v9582 = vrot.slane %v9581, 1
  %v9583 = vadd.f32 %v9581, %v9582
  %v9584 = vsel %vm2636, %v9053, 0.0
  %v9585 = vsel %vm2636, %v9054, 0.0
  %v9586 = vadd.f32 %v9584, %v9585
  %v9587 = vrot.slane %v9586, 4
  %v9588 = vadd.f32 %v9586, %v9587
  %v9589 = vrot.slane %v9588, 2
  %v9590 = vadd.f32 %v9588, %v9589
  %v9591 = vrot.slane %v9590, 1
  %v9592 = vadd.f32 %v9590, %v9591
  %v9593 = vsel %vm2636, %v9055, 0.0
  %v9594 = vsel %vm2636, %v9056, 0.0
  %v9595 = vadd.f32 %v9593, %v9594
  %v9596 = vrot.slane %v9595, 4
  %v9597 = vadd.f32 %v9595, %v9596
  %v9598 = vrot.slane %v9597, 2
  %v9599 = vadd.f32 %v9597, %v9598
  %v9600 = vrot.slane %v9599, 1
  %v9601 = vadd.f32 %v9599, %v9600
  %v9602 = vsel %vm2636, %v9057, 0.0
  %v9603 = vsel %vm2636, %v9058, 0.0
  %v9604 = vadd.f32 %v9602, %v9603
  %v9605 = vrot.slane %v9604, 4
  %v9606 = vadd.f32 %v9604, %v9605
  %v9607 = vrot.slane %v9606, 2
  %v9608 = vadd.f32 %v9606, %v9607
  %v9609 = vrot.slane %v9608, 1
  %v9610 = vadd.f32 %v9608, %v9609
  %v9611 = vsel %vm2636, %v9059, 0.0
  %v9612 = vsel %vm2636, %v9060, 0.0
  %v9613 = vadd.f32 %v9611, %v9612
  %v9614 = vrot.slane %v9613, 4
  %v9615 = vadd.f32 %v9613, %v9614
  %v9616 = vrot.slane %v9615, 2
  %v9617 = vadd.f32 %v9615, %v9616
  %v9618 = vrot.slane %v9617, 1
  %v9619 = vadd.f32 %v9617, %v9618
  %v9620 = vsel %vm2636, %v9061, 0.0
  %v9621 = vsel %vm2636, %v9062, 0.0
  %v9622 = vadd.f32 %v9620, %v9621
  %v9623 = vrot.slane %v9622, 4
  %v9624 = vadd.f32 %v9622, %v9623
  %v9625 = vrot.slane %v9624, 2
  %v9626 = vadd.f32 %v9624, %v9625
  %v9627 = vrot.slane %v9626, 1
  %v9628 = vadd.f32 %v9626, %v9627
  %v9629 = vsel %vm2636, %v9063, 0.0
  %v9630 = vsel %vm2636, %v9064, 0.0
  %v9631 = vadd.f32 %v9629, %v9630
  %v9632 = vrot.slane %v9631, 4
  %v9633 = vadd.f32 %v9631, %v9632
  %v9634 = vrot.slane %v9633, 2
  %v9635 = vadd.f32 %v9633, %v9634
  %v9636 = vrot.slane %v9635, 1
  %v9637 = vadd.f32 %v9635, %v9636
  %v9638 = vsel %vm2636, %v9065, 0.0
  %v9639 = vsel %vm2636, %v9066, 0.0
  %v9640 = vadd.f32 %v9638, %v9639
  %v9641 = vrot.slane %v9640, 4
  %v9642 = vadd.f32 %v9640, %v9641
  %v9643 = vrot.slane %v9642, 2
  %v9644 = vadd.f32 %v9642, %v9643
  %v9645 = vrot.slane %v9644, 1
  %v9646 = vadd.f32 %v9644, %v9645
  %v9647 = vsel %vm2636, %v9067, 0.0
  %v9648 = vsel %vm2636, %v9068, 0.0
  %v9649 = vadd.f32 %v9647, %v9648
  %v9650 = vrot.slane %v9649, 4
  %v9651 = vadd.f32 %v9649, %v9650
  %v9652 = vrot.slane %v9651, 2
  %v9653 = vadd.f32 %v9651, %v9652
  %v9654 = vrot.slane %v9653, 1
  %v9655 = vadd.f32 %v9653, %v9654
  %v9656 = vsel %vm2636, %v9069, 0.0
  %v9657 = vsel %vm2636, %v9070, 0.0
  %v9658 = vadd.f32 %v9656, %v9657
  %v9659 = vrot.slane %v9658, 4
  %v9660 = vadd.f32 %v9658, %v9659
  %v9661 = vrot.slane %v9660, 2
  %v9662 = vadd.f32 %v9660, %v9661
  %v9663 = vrot.slane %v9662, 1
  %v9664 = vadd.f32 %v9662, %v9663
  %v9665 = vsel %vm2636, %v9071, 0.0
  %v9666 = vsel %vm2636, %v9072, 0.0
  %v9667 = vadd.f32 %v9665, %v9666
  %v9668 = vrot.slane %v9667, 4
  %v9669 = vadd.f32 %v9667, %v9668
  %v9670 = vrot.slane %v9669, 2
  %v9671 = vadd.f32 %v9669, %v9670
  %v9672 = vrot.slane %v9671, 1
  %v9673 = vadd.f32 %v9671, %v9672
  %v9674 = vsel %vm2636, %v9073, 0.0
  %v9675 = vsel %vm2636, %v9074, 0.0
  %v9676 = vadd.f32 %v9674, %v9675
  %v9677 = vrot.slane %v9676, 4
  %v9678 = vadd.f32 %v9676, %v9677
  %v9679 = vrot.slane %v9678, 2
  %v9680 = vadd.f32 %v9678, %v9679
  %v9681 = vrot.slane %v9680, 1
  %v9682 = vadd.f32 %v9680, %v9681
  %v9683 = vsel %vm2636, %v9075, 0.0
  %v9684 = vsel %vm2636, %v9076, 0.0
  %v9685 = vadd.f32 %v9683, %v9684
  %v9686 = vrot.slane %v9685, 4
  %v9687 = vadd.f32 %v9685, %v9686
  %v9688 = vrot.slane %v9687, 2
  %v9689 = vadd.f32 %v9687, %v9688
  %v9690 = vrot.slane %v9689, 1
  %v9691 = vadd.f32 %v9689, %v9690
  %v9692 = vsel %vm2636, %v9077, 0.0
  %v9693 = vsel %vm2636, %v9078, 0.0
  %v9694 = vadd.f32 %v9692, %v9693
  %v9695 = vrot.slane %v9694, 4
  %v9696 = vadd.f32 %v9694, %v9695
  %v9697 = vrot.slane %v9696, 2
  %v9698 = vadd.f32 %v9696, %v9697
  %v9699 = vrot.slane %v9698, 1
  %v9700 = vadd.f32 %v9698, %v9699
  %v9701 = vsel %vm2636, %v9079, 0.0
  %v9702 = vsel %vm2636, %v9080, 0.0
  %v9703 = vadd.f32 %v9701, %v9702
  %v9704 = vrot.slane %v9703, 4
  %v9705 = vadd.f32 %v9703, %v9704
  %v9706 = vrot.slane %v9705, 2
  %v9707 = vadd.f32 %v9705, %v9706
  %v9708 = vrot.slane %v9707, 1
  %v9709 = vadd.f32 %v9707, %v9708
  %v9710 = vsel %vm2636, %v9081, 0.0
  %v9711 = vsel %vm2636, %v9082, 0.0
  %v9712 = vadd.f32 %v9710, %v9711
  %v9713 = vrot.slane %v9712, 4
  %v9714 = vadd.f32 %v9712, %v9713
  %v9715 = vrot.slane %v9714, 2
  %v9716 = vadd.f32 %v9714, %v9715
  %v9717 = vrot.slane %v9716, 1
  %v9718 = vadd.f32 %v9716, %v9717
  %v9719 = vsel %vm2636, %v9083, 0.0
  %v9720 = vsel %vm2636, %v9084, 0.0
  %v9721 = vadd.f32 %v9719, %v9720
  %v9722 = vrot.slane %v9721, 4
  %v9723 = vadd.f32 %v9721, %v9722
  %v9724 = vrot.slane %v9723, 2
  %v9725 = vadd.f32 %v9723, %v9724
  %v9726 = vrot.slane %v9725, 1
  %v9727 = vadd.f32 %v9725, %v9726
  %v9728 = vsel %vm2636, %v9085, 0.0
  %v9729 = vsel %vm2636, %v9086, 0.0
  %v9730 = vadd.f32 %v9728, %v9729
  %v9731 = vrot.slane %v9730, 4
  %v9732 = vadd.f32 %v9730, %v9731
  %v9733 = vrot.slane %v9732, 2
  %v9734 = vadd.f32 %v9732, %v9733
  %v9735 = vrot.slane %v9734, 1
  %v9736 = vadd.f32 %v9734, %v9735
  %v9737 = vsel %vm2636, %v9087, 0.0
  %v9738 = vsel %vm2636, %v9088, 0.0
  %v9739 = vadd.f32 %v9737, %v9738
  %v9740 = vrot.slane %v9739, 4
  %v9741 = vadd.f32 %v9739, %v9740
  %v9742 = vrot.slane %v9741, 2
  %v9743 = vadd.f32 %v9741, %v9742
  %v9744 = vrot.slane %v9743, 1
  %v9745 = vadd.f32 %v9743, %v9744
  %v9746 = vsel %vm2636, %v9089, 0.0
  %v9747 = vsel %vm2636, %v9090, 0.0
  %v9748 = vadd.f32 %v9746, %v9747
  %v9749 = vrot.slane %v9748, 4
  %v9750 = vadd.f32 %v9748, %v9749
  %v9751 = vrot.slane %v9750, 2
  %v9752 = vadd.f32 %v9750, %v9751
  %v9753 = vrot.slane %v9752, 1
  %v9754 = vadd.f32 %v9752, %v9753
  %v9755 = vsel %vm2636, %v9091, 0.0
  %v9756 = vsel %vm2636, %v9092, 0.0
  %v9757 = vadd.f32 %v9755, %v9756
  %v9758 = vrot.slane %v9757, 4
  %v9759 = vadd.f32 %v9757, %v9758
  %v9760 = vrot.slane %v9759, 2
  %v9761 = vadd.f32 %v9759, %v9760
  %v9762 = vrot.slane %v9761, 1
  %v9763 = vadd.f32 %v9761, %v9762
  %v9764 = vsel %vm2636, %v9093, 0.0
  %v9765 = vsel %vm2636, %v9094, 0.0
  %v9766 = vadd.f32 %v9764, %v9765
  %v9767 = vrot.slane %v9766, 4
  %v9768 = vadd.f32 %v9766, %v9767
  %v9769 = vrot.slane %v9768, 2
  %v9770 = vadd.f32 %v9768, %v9769
  %v9771 = vrot.slane %v9770, 1
  %v9772 = vadd.f32 %v9770, %v9771
  %v9773 = vsel %vm2636, %v9095, 0.0
  %v9774 = vsel %vm2636, %v9096, 0.0
  %v9775 = vadd.f32 %v9773, %v9774
  %v9776 = vrot.slane %v9775, 4
  %v9777 = vadd.f32 %v9775, %v9776
  %v9778 = vrot.slane %v9777, 2
  %v9779 = vadd.f32 %v9777, %v9778
  %v9780 = vrot.slane %v9779, 1
  %v9781 = vadd.f32 %v9779, %v9780
  %v9782 = vsel %vm2636, %v9097, 0.0
  %v9783 = vsel %vm2636, %v9098, 0.0
  %v9784 = vadd.f32 %v9782, %v9783
  %v9785 = vrot.slane %v9784, 4
  %v9786 = vadd.f32 %v9784, %v9785
  %v9787 = vrot.slane %v9786, 2
  %v9788 = vadd.f32 %v9786, %v9787
  %v9789 = vrot.slane %v9788, 1
  %v9790 = vadd.f32 %v9788, %v9789
  %v9791 = vsel %vm2636, %v9099, 0.0
  %v9792 = vsel %vm2636, %v9100, 0.0
  %v9793 = vadd.f32 %v9791, %v9792
  %v9794 = vrot.slane %v9793, 4
  %v9795 = vadd.f32 %v9793, %v9794
  %v9796 = vrot.slane %v9795, 2
  %v9797 = vadd.f32 %v9795, %v9796
  %v9798 = vrot.slane %v9797, 1
  %v9799 = vadd.f32 %v9797, %v9798
  %v9800 = vsel %vm2636, %v9101, 0.0
  %v9801 = vsel %vm2636, %v9102, 0.0
  %v9802 = vadd.f32 %v9800, %v9801
  %v9803 = vrot.slane %v9802, 4
  %v9804 = vadd.f32 %v9802, %v9803
  %v9805 = vrot.slane %v9804, 2
  %v9806 = vadd.f32 %v9804, %v9805
  %v9807 = vrot.slane %v9806, 1
  %v9808 = vadd.f32 %v9806, %v9807
  %v9809 = vsel %vm2636, %v9103, 0.0
  %v9810 = vsel %vm2636, %v9104, 0.0
  %v9811 = vadd.f32 %v9809, %v9810
  %v9812 = vrot.slane %v9811, 4
  %v9813 = vadd.f32 %v9811, %v9812
  %v9814 = vrot.slane %v9813, 2
  %v9815 = vadd.f32 %v9813, %v9814
  %v9816 = vrot.slane %v9815, 1
  %v9817 = vadd.f32 %v9815, %v9816
  %v9818 = vsel %vm2636, %v9105, 0.0
  %v9819 = vsel %vm2636, %v9106, 0.0
  %v9820 = vadd.f32 %v9818, %v9819
  %v9821 = vrot.slane %v9820, 4
  %v9822 = vadd.f32 %v9820, %v9821
  %v9823 = vrot.slane %v9822, 2
  %v9824 = vadd.f32 %v9822, %v9823
  %v9825 = vrot.slane %v9824, 1
  %v9826 = vadd.f32 %v9824, %v9825
  %v9907 = vsel %vm4087, %v9124, %v9115
  %v9908 = vsel %vm4089, %v9133, %v9907
  %v9909 = vsel %vm4091, %v9142, %v9908
  %v9910 = vsel %vm4093, %v9151, %v9909
  %v9911 = vsel %vm4095, %v9160, %v9910
  %v9912 = vsel %vm4097, %v9169, %v9911
  %v9913 = vsel %vm4099, %v9178, %v9912
  %v9914 = vsel %vm4087, %v9196, %v9187
  %v9915 = vsel %vm4087, %v9214, %v9205
  %v9916 = vsel %vm4089, %v9223, %v9915
  %v9917 = vsel %vm4091, %v9232, %v9916
  %v9918 = vsel %vm4093, %v9241, %v9917
  %v9919 = vsel %vm4095, %v9250, %v9918
  %v9920 = vsel %vm4097, %v9259, %v9919
  %v9921 = vsel %vm4099, %v9268, %v9920
  %v9922 = vsel %vm4087, %v9286, %v9277
  %v9923 = vsel %vm4087, %v9304, %v9295
  %v9924 = vsel %vm4089, %v9313, %v9923
  %v9925 = vsel %vm4091, %v9322, %v9924
  %v9926 = vsel %vm4093, %v9331, %v9925
  %v9927 = vsel %vm4095, %v9340, %v9926
  %v9928 = vsel %vm4097, %v9349, %v9927
  %v9929 = vsel %vm4099, %v9358, %v9928
  %v9930 = vsel %vm4087, %v9376, %v9367
  %v9931 = vsel %vm4087, %v9394, %v9385
  %v9932 = vsel %vm4089, %v9403, %v9931
  %v9933 = vsel %vm4091, %v9412, %v9932
  %v9934 = vsel %vm4093, %v9421, %v9933
  %v9935 = vsel %vm4095, %v9430, %v9934
  %v9936 = vsel %vm4097, %v9439, %v9935
  %v9937 = vsel %vm4099, %v9448, %v9936
  %v9938 = vsel %vm4087, %v9466, %v9457
  %v9939 = vsel %vm4087, %v9484, %v9475
  %v9940 = vsel %vm4089, %v9493, %v9939
  %v9941 = vsel %vm4091, %v9502, %v9940
  %v9942 = vsel %vm4093, %v9511, %v9941
  %v9943 = vsel %vm4095, %v9520, %v9942
  %v9944 = vsel %vm4097, %v9529, %v9943
  %v9945 = vsel %vm4099, %v9538, %v9944
  %v9946 = vsel %vm4087, %v9556, %v9547
  %v9947 = vsel %vm4087, %v9574, %v9565
  %v9948 = vsel %vm4089, %v9583, %v9947
  %v9949 = vsel %vm4091, %v9592, %v9948
  %v9950 = vsel %vm4093, %v9601, %v9949
  %v9951 = vsel %vm4095, %v9610, %v9950
  %v9952 = vsel %vm4097, %v9619, %v9951
  %v9953 = vsel %vm4099, %v9628, %v9952
  %v9954 = vsel %vm4087, %v9646, %v9637
  %v9955 = vsel %vm4087, %v9664, %v9655
  %v9956 = vsel %vm4089, %v9673, %v9955
  %v9957 = vsel %vm4091, %v9682, %v9956
  %v9958 = vsel %vm4093, %v9691, %v9957
  %v9959 = vsel %vm4095, %v9700, %v9958
  %v9960 = vsel %vm4097, %v9709, %v9959
  %v9961 = vsel %vm4099, %v9718, %v9960
  %v9962 = vsel %vm4087, %v9736, %v9727
  %v9963 = vsel %vm4087, %v9754, %v9745
  %v9964 = vsel %vm4089, %v9763, %v9963
  %v9965 = vsel %vm4091, %v9772, %v9964
  %v9966 = vsel %vm4093, %v9781, %v9965
  %v9967 = vsel %vm4095, %v9790, %v9966
  %v9968 = vsel %vm4097, %v9799, %v9967
  %v9969 = vsel %vm4099, %v9808, %v9968
  %v9970 = vsel %vm4087, %v9826, %v9817
  %v9987 = vadd.f32 %v7081, %v9913
  %v9988 = vadd.f32 %v7082, %v9914
  %v9989 = vadd.f32 %v7083, %v9921
  %v9990 = vadd.f32 %v7084, %v9922
  %v9991 = vadd.f32 %v7085, %v9929
  %v9992 = vadd.f32 %v7086, %v9930
  %v9993 = vadd.f32 %v7087, %v9937
  %v9994 = vadd.f32 %v7088, %v9938
  %v9995 = vadd.f32 %v7089, %v9945
  %v9996 = vadd.f32 %v7090, %v9946
  %v9997 = vadd.f32 %v7091, %v9953
  %v9998 = vadd.f32 %v7092, %v9954
  %v9999 = vadd.f32 %v7093, %v9961
  %v10000 = vadd.f32 %v7094, %v9962
  %v10001 = vadd.f32 %v7095, %v9969
  %v10002 = vadd.f32 %v7096, %v9970
  %v10003 = vsel %vm2636, %v9987, -inf
  %v10004 = vsel %vm4191, %v9988, -inf
  %v10005 = vmax.f32 %v10003, %v10004
  %v10006 = vrot.slane %v10005, 4
  %v10007 = vmax.f32 %v10005, %v10006
  %v10008 = vrot.slane %v10007, 2
  %v10009 = vmax.f32 %v10007, %v10008
  %v10010 = vrot.slane %v10009, 1
  %v10011 = vmax.f32 %v10009, %v10010
  %v10012 = vsel %vm2636, %v9989, -inf
  %v10013 = vsel %vm4191, %v9990, -inf
  %v10014 = vmax.f32 %v10012, %v10013
  %v10015 = vrot.slane %v10014, 4
  %v10016 = vmax.f32 %v10014, %v10015
  %v10017 = vrot.slane %v10016, 2
  %v10018 = vmax.f32 %v10016, %v10017
  %v10019 = vrot.slane %v10018, 1
  %v10020 = vmax.f32 %v10018, %v10019
  %v10021 = vsel %vm2636, %v9991, -inf
  %v10022 = vsel %vm4191, %v9992, -inf
  %v10023 = vmax.f32 %v10021, %v10022
  %v10024 = vrot.slane %v10023, 4
  %v10025 = vmax.f32 %v10023, %v10024
  %v10026 = vrot.slane %v10025, 2
  %v10027 = vmax.f32 %v10025, %v10026
  %v10028 = vrot.slane %v10027, 1
  %v10029 = vmax.f32 %v10027, %v10028
  %v10030 = vsel %vm2636, %v9993, -inf
  %v10031 = vsel %vm4191, %v9994, -inf
  %v10032 = vmax.f32 %v10030, %v10031
  %v10033 = vrot.slane %v10032, 4
  %v10034 = vmax.f32 %v10032, %v10033
  %v10035 = vrot.slane %v10034, 2
  %v10036 = vmax.f32 %v10034, %v10035
  %v10037 = vrot.slane %v10036, 1
  %v10038 = vmax.f32 %v10036, %v10037
  %v10039 = vsel %vm2636, %v9995, -inf
  %v10040 = vsel %vm4191, %v9996, -inf
  %v10041 = vmax.f32 %v10039, %v10040
  %v10042 = vrot.slane %v10041, 4
  %v10043 = vmax.f32 %v10041, %v10042
  %v10044 = vrot.slane %v10043, 2
  %v10045 = vmax.f32 %v10043, %v10044
  %v10046 = vrot.slane %v10045, 1
  %v10047 = vmax.f32 %v10045, %v10046
  %v10048 = vsel %vm2636, %v9997, -inf
  %v10049 = vsel %vm4191, %v9998, -inf
  %v10050 = vmax.f32 %v10048, %v10049
  %v10051 = vrot.slane %v10050, 4
  %v10052 = vmax.f32 %v10050, %v10051
  %v10053 = vrot.slane %v10052, 2
  %v10054 = vmax.f32 %v10052, %v10053
  %v10055 = vrot.slane %v10054, 1
  %v10056 = vmax.f32 %v10054, %v10055
  %v10057 = vsel %vm2636, %v9999, -inf
  %v10058 = vsel %vm4191, %v10000, -inf
  %v10059 = vmax.f32 %v10057, %v10058
  %v10060 = vrot.slane %v10059, 4
  %v10061 = vmax.f32 %v10059, %v10060
  %v10062 = vrot.slane %v10061, 2
  %v10063 = vmax.f32 %v10061, %v10062
  %v10064 = vrot.slane %v10063, 1
  %v10065 = vmax.f32 %v10063, %v10064
  %v10066 = vsel %vm2636, %v10001, -inf
  %v10067 = vsel %vm4191, %v10002, -inf
  %v10068 = vmax.f32 %v10066, %v10067
  %v10069 = vrot.slane %v10068, 4
  %v10070 = vmax.f32 %v10068, %v10069
  %v10071 = vrot.slane %v10070, 2
  %v10072 = vmax.f32 %v10070, %v10071
  %v10073 = vrot.slane %v10072, 1
  %v10074 = vmax.f32 %v10072, %v10073
  %v10075 = vsub.f32 %v9987, %v10011
  %v10076 = vsub.f32 %v9988, %v10011
  %v10077 = vsub.f32 %v9989, %v10020
  %v10078 = vsub.f32 %v9990, %v10020
  %v10079 = vsub.f32 %v9991, %v10029
  %v10080 = vsub.f32 %v9992, %v10029
  %v10081 = vsub.f32 %v9993, %v10038
  %v10082 = vsub.f32 %v9994, %v10038
  %v10083 = vsub.f32 %v9995, %v10047
  %v10084 = vsub.f32 %v9996, %v10047
  %v10085 = vsub.f32 %v9997, %v10056
  %v10086 = vsub.f32 %v9998, %v10056
  %v10087 = vsub.f32 %v9999, %v10065
  %v10088 = vsub.f32 %v10000, %v10065
  %v10089 = vsub.f32 %v10001, %v10074
  %v10090 = vsub.f32 %v10002, %v10074
  %v10091 = vmul.f32 %v10075, 1.442695
  %v10092 = vpow.pop %v10091
  %v10093 = vmul.f32 %v10076, 1.442695
  %v10094 = vpow.pop %v10093
  %v10095 = vmul.f32 %v10077, 1.442695
  %v10096 = vpow.pop %v10095
  %v10097 = vmul.f32 %v10078, 1.442695
  %v10098 = vpow.pop %v10097
  %v10099 = vmul.f32 %v10079, 1.442695
  %v10100 = vpow.pop %v10099
  %v10101 = vmul.f32 %v10080, 1.442695
  %v10102 = vpow.pop %v10101
  %v10103 = vmul.f32 %v10081, 1.442695
  %v10104 = vpow.pop %v10103
  %v10105 = vmul.f32 %v10082, 1.442695
  %v10106 = vpow.pop %v10105
  %v10107 = vmul.f32 %v10083, 1.442695
  %v10108 = vpow.pop %v10107
  %v10109 = vmul.f32 %v10084, 1.442695
  %v10110 = vpow.pop %v10109
  %v10111 = vmul.f32 %v10085, 1.442695
  %v10112 = vpow.pop %v10111
  %v10113 = vmul.f32 %v10086, 1.442695
  %v10114 = vpow.pop %v10113
  %v10115 = vmul.f32 %v10087, 1.442695
  %v10116 = vpow.pop %v10115
  %v10117 = vmul.f32 %v10088, 1.442695
  %v10118 = vpow.pop %v10117
  %v10119 = vmul.f32 %v10089, 1.442695
  %v10120 = vpow.pop %v10119
  %v10121 = vmul.f32 %v10090, 1.442695
  %v10122 = vpow.pop %v10121
  %v10123 = vsel %vm2636, %v10092, 0.0
  %v10124 = vsel %vm4191, %v10094, 0.0
  %v10125 = vadd.f32 %v10123, %v10124
  %v10126 = vrot.slane %v10125, 4
  %v10127 = vadd.f32 %v10125, %v10126
  %v10128 = vrot.slane %v10127, 2
  %v10129 = vadd.f32 %v10127, %v10128
  %v10130 = vrot.slane %v10129, 1
  %v10131 = vadd.f32 %v10129, %v10130
  %v10132 = vsel %vm2636, %v10096, 0.0
  %v10133 = vsel %vm4191, %v10098, 0.0
  %v10134 = vadd.f32 %v10132, %v10133
  %v10135 = vrot.slane %v10134, 4
  %v10136 = vadd.f32 %v10134, %v10135
  %v10137 = vrot.slane %v10136, 2
  %v10138 = vadd.f32 %v10136, %v10137
  %v10139 = vrot.slane %v10138, 1
  %v10140 = vadd.f32 %v10138, %v10139
  %v10141 = vsel %vm2636, %v10100, 0.0
  %v10142 = vsel %vm4191, %v10102, 0.0
  %v10143 = vadd.f32 %v10141, %v10142
  %v10144 = vrot.slane %v10143, 4
  %v10145 = vadd.f32 %v10143, %v10144
  %v10146 = vrot.slane %v10145, 2
  %v10147 = vadd.f32 %v10145, %v10146
  %v10148 = vrot.slane %v10147, 1
  %v10149 = vadd.f32 %v10147, %v10148
  %v10150 = vsel %vm2636, %v10104, 0.0
  %v10151 = vsel %vm4191, %v10106, 0.0
  %v10152 = vadd.f32 %v10150, %v10151
  %v10153 = vrot.slane %v10152, 4
  %v10154 = vadd.f32 %v10152, %v10153
  %v10155 = vrot.slane %v10154, 2
  %v10156 = vadd.f32 %v10154, %v10155
  %v10157 = vrot.slane %v10156, 1
  %v10158 = vadd.f32 %v10156, %v10157
  %v10159 = vsel %vm2636, %v10108, 0.0
  %v10160 = vsel %vm4191, %v10110, 0.0
  %v10161 = vadd.f32 %v10159, %v10160
  %v10162 = vrot.slane %v10161, 4
  %v10163 = vadd.f32 %v10161, %v10162
  %v10164 = vrot.slane %v10163, 2
  %v10165 = vadd.f32 %v10163, %v10164
  %v10166 = vrot.slane %v10165, 1
  %v10167 = vadd.f32 %v10165, %v10166
  %v10168 = vsel %vm2636, %v10112, 0.0
  %v10169 = vsel %vm4191, %v10114, 0.0
  %v10170 = vadd.f32 %v10168, %v10169
  %v10171 = vrot.slane %v10170, 4
  %v10172 = vadd.f32 %v10170, %v10171
  %v10173 = vrot.slane %v10172, 2
  %v10174 = vadd.f32 %v10172, %v10173
  %v10175 = vrot.slane %v10174, 1
  %v10176 = vadd.f32 %v10174, %v10175
  %v10177 = vsel %vm2636, %v10116, 0.0
  %v10178 = vsel %vm4191, %v10118, 0.0
  %v10179 = vadd.f32 %v10177, %v10178
  %v10180 = vrot.slane %v10179, 4
  %v10181 = vadd.f32 %v10179, %v10180
  %v10182 = vrot.slane %v10181, 2
  %v10183 = vadd.f32 %v10181, %v10182
  %v10184 = vrot.slane %v10183, 1
  %v10185 = vadd.f32 %v10183, %v10184
  %v10186 = vsel %vm2636, %v10120, 0.0
  %v10187 = vsel %vm4191, %v10122, 0.0
  %v10188 = vadd.f32 %v10186, %v10187
  %v10189 = vrot.slane %v10188, 4
  %v10190 = vadd.f32 %v10188, %v10189
  %v10191 = vrot.slane %v10190, 2
  %v10192 = vadd.f32 %v10190, %v10191
  %v10193 = vrot.slane %v10192, 1
  %v10194 = vadd.f32 %v10192, %v10193
  %v10195 = vrcp.pop %v10131
  %v10196 = vmul.f32 %v10092, %v10195
  %v10197 = vmul.f32 %v10094, %v10195
  %v10198 = vrcp.pop %v10140
  %v10199 = vmul.f32 %v10096, %v10198
  %v10200 = vmul.f32 %v10098, %v10198
  %v10201 = vrcp.pop %v10149
  %v10202 = vmul.f32 %v10100, %v10201
  %v10203 = vmul.f32 %v10102, %v10201
  %v10204 = vrcp.pop %v10158
  %v10205 = vmul.f32 %v10104, %v10204
  %v10206 = vmul.f32 %v10106, %v10204
  %v10207 = vrcp.pop %v10167
  %v10208 = vmul.f32 %v10108, %v10207
  %v10209 = vmul.f32 %v10110, %v10207
  %v10210 = vrcp.pop %v10176
  %v10211 = vmul.f32 %v10112, %v10210
  %v10212 = vmul.f32 %v10114, %v10210
  %v10213 = vrcp.pop %v10185
  %v10214 = vmul.f32 %v10116, %v10213
  %v10215 = vmul.f32 %v10118, %v10213
  %v10216 = vrcp.pop %v10194
  %v10217 = vmul.f32 %v10120, %v10216
  %v10218 = vmul.f32 %v10122, %v10216
  %v10235 = vcombine.high %v10196, %v10196
  %v10237 = vunpack.c.l.s4 1966171168
  %v10238 = vunpack.c.0.s8 %v10237
  %v10239 = vlaneseq
  %v10240 = vshrl.u32 %v10239, 7
  %v10241 = vsub.s32 %v10238, %v10240
  %v10242 = vrot.slane %v10196, %v10241
  %v10244 = vunpack.c.l.s4 1966171168
  %v10245 = vunpack.c.0.s8 %v10244
  %v10246 = vlaneseq
  %v10247 = vshrl.u32 %v10246, 7
  %v10248 = vsub.s32 %v10245, %v10247
  %v10249 = vrot.slane %v10235, %v10248
  %v10250 = vcombine.high %v10242, %v10242
  %v10251 = vcombine.high %v10249, %v10249
  %v10253 = vunpack.c.l.s4 1966171168
  %v10254 = vunpack.c.0.s8 %v10253
  %v10255 = vlaneseq
  %v10256 = vshrl.u32 %v10255, 7
  %v10257 = vsub.s32 %v10254, %v10256
  %v10258 = vrot.slane %v10242, %v10257
  %v10260 = vunpack.c.l.s4 1966171168
  %v10261 = vunpack.c.0.s8 %v10260
  %v10262 = vlaneseq
  %v10263 = vshrl.u32 %v10262, 7
  %v10264 = vsub.s32 %v10261, %v10263
  %v10265 = vrot.slane %v10249, %v10264
  %v10267 = vunpack.c.l.s4 1966171168
  %v10268 = vunpack.c.0.s8 %v10267
  %v10269 = vlaneseq
  %v10270 = vshrl.u32 %v10269, 7
  %v10271 = vsub.s32 %v10268, %v10270
  %v10272 = vrot.slane %v10250, %v10271
  %v10274 = vunpack.c.l.s4 1966171168
  %v10275 = vunpack.c.0.s8 %v10274
  %v10276 = vlaneseq
  %v10277 = vshrl.u32 %v10276, 7
  %v10278 = vsub.s32 %v10275, %v10277
  %v10279 = vrot.slane %v10251, %v10278
  %v10280 = vcombine.high %v10258, %v10258
  %v10281 = vcombine.high %v10265, %v10265
  %v10282 = vcombine.high %v10272, %v10272
  %v10283 = vcombine.high %v10279, %v10279
  %v10285 = vunpack.c.l.s4 1966171168
  %v10286 = vunpack.c.0.s8 %v10285
  %v10287 = vlaneseq
  %v10288 = vshrl.u32 %v10287, 7
  %v10289 = vsub.s32 %v10286, %v10288
  %v10290 = vrot.slane %v10197, %v10289
  %v10291 = vcombine.high %v10290, %v10290
  %v10293 = vunpack.c.l.s4 1966171168
  %v10294 = vunpack.c.0.s8 %v10293
  %v10295 = vlaneseq
  %v10296 = vshrl.u32 %v10295, 7
  %v10297 = vsub.s32 %v10294, %v10296
  %v10298 = vrot.slane %v10290, %v10297
  %v10300 = vunpack.c.l.s4 1966171168
  %v10301 = vunpack.c.0.s8 %v10300
  %v10302 = vlaneseq
  %v10303 = vshrl.u32 %v10302, 7
  %v10304 = vsub.s32 %v10301, %v10303
  %v10305 = vrot.slane %v10291, %v10304
  %v10306 = vcombine.high %v10199, %v10199
  %v10308 = vunpack.c.l.s4 1966171168
  %v10309 = vunpack.c.0.s8 %v10308
  %v10310 = vlaneseq
  %v10311 = vshrl.u32 %v10310, 7
  %v10312 = vsub.s32 %v10309, %v10311
  %v10313 = vrot.slane %v10199, %v10312
  %v10315 = vunpack.c.l.s4 1966171168
  %v10316 = vunpack.c.0.s8 %v10315
  %v10317 = vlaneseq
  %v10318 = vshrl.u32 %v10317, 7
  %v10319 = vsub.s32 %v10316, %v10318
  %v10320 = vrot.slane %v10306, %v10319
  %v10321 = vcombine.high %v10313, %v10313
  %v10322 = vcombine.high %v10320, %v10320
  %v10324 = vunpack.c.l.s4 1966171168
  %v10325 = vunpack.c.0.s8 %v10324
  %v10326 = vlaneseq
  %v10327 = vshrl.u32 %v10326, 7
  %v10328 = vsub.s32 %v10325, %v10327
  %v10329 = vrot.slane %v10313, %v10328
  %v10331 = vunpack.c.l.s4 1966171168
  %v10332 = vunpack.c.0.s8 %v10331
  %v10333 = vlaneseq
  %v10334 = vshrl.u32 %v10333, 7
  %v10335 = vsub.s32 %v10332, %v10334
  %v10336 = vrot.slane %v10320, %v10335
  %v10338 = vunpack.c.l.s4 1966171168
  %v10339 = vunpack.c.0.s8 %v10338
  %v10340 = vlaneseq
  %v10341 = vshrl.u32 %v10340, 7
  %v10342 = vsub.s32 %v10339, %v10341
  %v10343 = vrot.slane %v10321, %v10342
  %v10345 = vunpack.c.l.s4 1966171168
  %v10346 = vunpack.c.0.s8 %v10345
  %v10347 = vlaneseq
  %v10348 = vshrl.u32 %v10347, 7
  %v10349 = vsub.s32 %v10346, %v10348
  %v10350 = vrot.slane %v10322, %v10349
  %v10351 = vcombine.high %v10329, %v10329
  %v10352 = vcombine.high %v10336, %v10336
  %v10353 = vcombine.high %v10343, %v10343
  %v10354 = vcombine.high %v10350, %v10350
  %v10356 = vunpack.c.l.s4 1966171168
  %v10357 = vunpack.c.0.s8 %v10356
  %v10358 = vlaneseq
  %v10359 = vshrl.u32 %v10358, 7
  %v10360 = vsub.s32 %v10357, %v10359
  %v10361 = vrot.slane %v10200, %v10360
  %v10362 = vcombine.high %v10361, %v10361
  %v10364 = vunpack.c.l.s4 1966171168
  %v10365 = vunpack.c.0.s8 %v10364
  %v10366 = vlaneseq
  %v10367 = vshrl.u32 %v10366, 7
  %v10368 = vsub.s32 %v10365, %v10367
  %v10369 = vrot.slane %v10361, %v10368
  %v10371 = vunpack.c.l.s4 1966171168
  %v10372 = vunpack.c.0.s8 %v10371
  %v10373 = vlaneseq
  %v10374 = vshrl.u32 %v10373, 7
  %v10375 = vsub.s32 %v10372, %v10374
  %v10376 = vrot.slane %v10362, %v10375
  %v10377 = vcombine.high %v10202, %v10202
  %v10379 = vunpack.c.l.s4 1966171168
  %v10380 = vunpack.c.0.s8 %v10379
  %v10381 = vlaneseq
  %v10382 = vshrl.u32 %v10381, 7
  %v10383 = vsub.s32 %v10380, %v10382
  %v10384 = vrot.slane %v10202, %v10383
  %v10386 = vunpack.c.l.s4 1966171168
  %v10387 = vunpack.c.0.s8 %v10386
  %v10388 = vlaneseq
  %v10389 = vshrl.u32 %v10388, 7
  %v10390 = vsub.s32 %v10387, %v10389
  %v10391 = vrot.slane %v10377, %v10390
  %v10392 = vcombine.high %v10384, %v10384
  %v10393 = vcombine.high %v10391, %v10391
  %v10395 = vunpack.c.l.s4 1966171168
  %v10396 = vunpack.c.0.s8 %v10395
  %v10397 = vlaneseq
  %v10398 = vshrl.u32 %v10397, 7
  %v10399 = vsub.s32 %v10396, %v10398
  %v10400 = vrot.slane %v10384, %v10399
  %v10402 = vunpack.c.l.s4 1966171168
  %v10403 = vunpack.c.0.s8 %v10402
  %v10404 = vlaneseq
  %v10405 = vshrl.u32 %v10404, 7
  %v10406 = vsub.s32 %v10403, %v10405
  %v10407 = vrot.slane %v10391, %v10406
  %v10409 = vunpack.c.l.s4 1966171168
  %v10410 = vunpack.c.0.s8 %v10409
  %v10411 = vlaneseq
  %v10412 = vshrl.u32 %v10411, 7
  %v10413 = vsub.s32 %v10410, %v10412
  %v10414 = vrot.slane %v10392, %v10413
  %v10416 = vunpack.c.l.s4 1966171168
  %v10417 = vunpack.c.0.s8 %v10416
  %v10418 = vlaneseq
  %v10419 = vshrl.u32 %v10418, 7
  %v10420 = vsub.s32 %v10417, %v10419
  %v10421 = vrot.slane %v10393, %v10420
  %v10422 = vcombine.high %v10400, %v10400
  %v10423 = vcombine.high %v10407, %v10407
  %v10424 = vcombine.high %v10414, %v10414
  %v10425 = vcombine.high %v10421, %v10421
  %v10427 = vunpack.c.l.s4 1966171168
  %v10428 = vunpack.c.0.s8 %v10427
  %v10429 = vlaneseq
  %v10430 = vshrl.u32 %v10429, 7
  %v10431 = vsub.s32 %v10428, %v10430
  %v10432 = vrot.slane %v10203, %v10431
  %v10433 = vcombine.high %v10432, %v10432
  %v10435 = vunpack.c.l.s4 1966171168
  %v10436 = vunpack.c.0.s8 %v10435
  %v10437 = vlaneseq
  %v10438 = vshrl.u32 %v10437, 7
  %v10439 = vsub.s32 %v10436, %v10438
  %v10440 = vrot.slane %v10432, %v10439
  %v10442 = vunpack.c.l.s4 1966171168
  %v10443 = vunpack.c.0.s8 %v10442
  %v10444 = vlaneseq
  %v10445 = vshrl.u32 %v10444, 7
  %v10446 = vsub.s32 %v10443, %v10445
  %v10447 = vrot.slane %v10433, %v10446
  %v10448 = vcombine.high %v10205, %v10205
  %v10450 = vunpack.c.l.s4 1966171168
  %v10451 = vunpack.c.0.s8 %v10450
  %v10452 = vlaneseq
  %v10453 = vshrl.u32 %v10452, 7
  %v10454 = vsub.s32 %v10451, %v10453
  %v10455 = vrot.slane %v10205, %v10454
  %v10457 = vunpack.c.l.s4 1966171168
  %v10458 = vunpack.c.0.s8 %v10457
  %v10459 = vlaneseq
  %v10460 = vshrl.u32 %v10459, 7
  %v10461 = vsub.s32 %v10458, %v10460
  %v10462 = vrot.slane %v10448, %v10461
  %v10463 = vcombine.high %v10455, %v10455
  %v10464 = vcombine.high %v10462, %v10462
  %v10466 = vunpack.c.l.s4 1966171168
  %v10467 = vunpack.c.0.s8 %v10466
  %v10468 = vlaneseq
  %v10469 = vshrl.u32 %v10468, 7
  %v10470 = vsub.s32 %v10467, %v10469
  %v10471 = vrot.slane %v10455, %v10470
  %v10473 = vunpack.c.l.s4 1966171168
  %v10474 = vunpack.c.0.s8 %v10473
  %v10475 = vlaneseq
  %v10476 = vshrl.u32 %v10475, 7
  %v10477 = vsub.s32 %v10474, %v10476
  %v10478 = vrot.slane %v10462, %v10477
  %v10480 = vunpack.c.l.s4 1966171168
  %v10481 = vunpack.c.0.s8 %v10480
  %v10482 = vlaneseq
  %v10483 = vshrl.u32 %v10482, 7
  %v10484 = vsub.s32 %v10481, %v10483
  %v10485 = vrot.slane %v10463, %v10484
  %v10487 = vunpack.c.l.s4 1966171168
  %v10488 = vunpack.c.0.s8 %v10487
  %v10489 = vlaneseq
  %v10490 = vshrl.u32 %v10489, 7
  %v10491 = vsub.s32 %v10488, %v10490
  %v10492 = vrot.slane %v10464, %v10491
  %v10493 = vcombine.high %v10471, %v10471
  %v10494 = vcombine.high %v10478, %v10478
  %v10495 = vcombine.high %v10485, %v10485
  %v10496 = vcombine.high %v10492, %v10492
  %v10498 = vunpack.c.l.s4 1966171168
  %v10499 = vunpack.c.0.s8 %v10498
  %v10500 = vlaneseq
  %v10501 = vshrl.u32 %v10500, 7
  %v10502 = vsub.s32 %v10499, %v10501
  %v10503 = vrot.slane %v10206, %v10502
  %v10504 = vcombine.high %v10503, %v10503
  %v10506 = vunpack.c.l.s4 1966171168
  %v10507 = vunpack.c.0.s8 %v10506
  %v10508 = vlaneseq
  %v10509 = vshrl.u32 %v10508, 7
  %v10510 = vsub.s32 %v10507, %v10509
  %v10511 = vrot.slane %v10503, %v10510
  %v10513 = vunpack.c.l.s4 1966171168
  %v10514 = vunpack.c.0.s8 %v10513
  %v10515 = vlaneseq
  %v10516 = vshrl.u32 %v10515, 7
  %v10517 = vsub.s32 %v10514, %v10516
  %v10518 = vrot.slane %v10504, %v10517
  %v10519 = vcombine.high %v10208, %v10208
  %v10521 = vunpack.c.l.s4 1966171168
  %v10522 = vunpack.c.0.s8 %v10521
  %v10523 = vlaneseq
  %v10524 = vshrl.u32 %v10523, 7
  %v10525 = vsub.s32 %v10522, %v10524
  %v10526 = vrot.slane %v10208, %v10525
  %v10528 = vunpack.c.l.s4 1966171168
  %v10529 = vunpack.c.0.s8 %v10528
  %v10530 = vlaneseq
  %v10531 = vshrl.u32 %v10530, 7
  %v10532 = vsub.s32 %v10529, %v10531
  %v10533 = vrot.slane %v10519, %v10532
  %v10534 = vcombine.high %v10526, %v10526
  %v10535 = vcombine.high %v10533, %v10533
  %v10537 = vunpack.c.l.s4 1966171168
  %v10538 = vunpack.c.0.s8 %v10537
  %v10539 = vlaneseq
  %v10540 = vshrl.u32 %v10539, 7
  %v10541 = vsub.s32 %v10538, %v10540
  %v10542 = vrot.slane %v10526, %v10541
  %v10544 = vunpack.c.l.s4 1966171168
  %v10545 = vunpack.c.0.s8 %v10544
  %v10546 = vlaneseq
  %v10547 = vshrl.u32 %v10546, 7
  %v10548 = vsub.s32 %v10545, %v10547
  %v10549 = vrot.slane %v10533, %v10548
  %v10551 = vunpack.c.l.s4 1966171168
  %v10552 = vunpack.c.0.s8 %v10551
  %v10553 = vlaneseq
  %v10554 = vshrl.u32 %v10553, 7
  %v10555 = vsub.s32 %v10552, %v10554
  %v10556 = vrot.slane %v10534, %v10555
  %v10558 = vunpack.c.l.s4 1966171168
  %v10559 = vunpack.c.0.s8 %v10558
  %v10560 = vlaneseq
  %v10561 = vshrl.u32 %v10560, 7
  %v10562 = vsub.s32 %v10559, %v10561
  %v10563 = vrot.slane %v10535, %v10562
  %v10564 = vcombine.high %v10542, %v10542
  %v10565 = vcombine.high %v10549, %v10549
  %v10566 = vcombine.high %v10556, %v10556
  %v10567 = vcombine.high %v10563, %v10563
  %v10569 = vunpack.c.l.s4 1966171168
  %v10570 = vunpack.c.0.s8 %v10569
  %v10571 = vlaneseq
  %v10572 = vshrl.u32 %v10571, 7
  %v10573 = vsub.s32 %v10570, %v10572
  %v10574 = vrot.slane %v10209, %v10573
  %v10575 = vcombine.high %v10574, %v10574
  %v10577 = vunpack.c.l.s4 1966171168
  %v10578 = vunpack.c.0.s8 %v10577
  %v10579 = vlaneseq
  %v10580 = vshrl.u32 %v10579, 7
  %v10581 = vsub.s32 %v10578, %v10580
  %v10582 = vrot.slane %v10574, %v10581
  %v10584 = vunpack.c.l.s4 1966171168
  %v10585 = vunpack.c.0.s8 %v10584
  %v10586 = vlaneseq
  %v10587 = vshrl.u32 %v10586, 7
  %v10588 = vsub.s32 %v10585, %v10587
  %v10589 = vrot.slane %v10575, %v10588
  %v10590 = vcombine.high %v10211, %v10211
  %v10592 = vunpack.c.l.s4 1966171168
  %v10593 = vunpack.c.0.s8 %v10592
  %v10594 = vlaneseq
  %v10595 = vshrl.u32 %v10594, 7
  %v10596 = vsub.s32 %v10593, %v10595
  %v10597 = vrot.slane %v10211, %v10596
  %v10599 = vunpack.c.l.s4 1966171168
  %v10600 = vunpack.c.0.s8 %v10599
  %v10601 = vlaneseq
  %v10602 = vshrl.u32 %v10601, 7
  %v10603 = vsub.s32 %v10600, %v10602
  %v10604 = vrot.slane %v10590, %v10603
  %v10605 = vcombine.high %v10597, %v10597
  %v10606 = vcombine.high %v10604, %v10604
  %v10608 = vunpack.c.l.s4 1966171168
  %v10609 = vunpack.c.0.s8 %v10608
  %v10610 = vlaneseq
  %v10611 = vshrl.u32 %v10610, 7
  %v10612 = vsub.s32 %v10609, %v10611
  %v10613 = vrot.slane %v10597, %v10612
  %v10615 = vunpack.c.l.s4 1966171168
  %v10616 = vunpack.c.0.s8 %v10615
  %v10617 = vlaneseq
  %v10618 = vshrl.u32 %v10617, 7
  %v10619 = vsub.s32 %v10616, %v10618
  %v10620 = vrot.slane %v10604, %v10619
  %v10622 = vunpack.c.l.s4 1966171168
  %v10623 = vunpack.c.0.s8 %v10622
  %v10624 = vlaneseq
  %v10625 = vshrl.u32 %v10624, 7
  %v10626 = vsub.s32 %v10623, %v10625
  %v10627 = vrot.slane %v10605, %v10626
  %v10629 = vunpack.c.l.s4 1966171168
  %v10630 = vunpack.c.0.s8 %v10629
  %v10631 = vlaneseq
  %v10632 = vshrl.u32 %v10631, 7
  %v10633 = vsub.s32 %v10630, %v10632
  %v10634 = vrot.slane %v10606, %v10633
  %v10635 = vcombine.high %v10613, %v10613
  %v10636 = vcombine.high %v10620, %v10620
  %v10637 = vcombine.high %v10627, %v10627
  %v10638 = vcombine.high %v10634, %v10634
  %v10640 = vunpack.c.l.s4 1966171168
  %v10641 = vunpack.c.0.s8 %v10640
  %v10642 = vlaneseq
  %v10643 = vshrl.u32 %v10642, 7
  %v10644 = vsub.s32 %v10641, %v10643
  %v10645 = vrot.slane %v10212, %v10644
  %v10646 = vcombine.high %v10645, %v10645
  %v10648 = vunpack.c.l.s4 1966171168
  %v10649 = vunpack.c.0.s8 %v10648
  %v10650 = vlaneseq
  %v10651 = vshrl.u32 %v10650, 7
  %v10652 = vsub.s32 %v10649, %v10651
  %v10653 = vrot.slane %v10645, %v10652
  %v10655 = vunpack.c.l.s4 1966171168
  %v10656 = vunpack.c.0.s8 %v10655
  %v10657 = vlaneseq
  %v10658 = vshrl.u32 %v10657, 7
  %v10659 = vsub.s32 %v10656, %v10658
  %v10660 = vrot.slane %v10646, %v10659
  %v10661 = vcombine.high %v10214, %v10214
  %v10663 = vunpack.c.l.s4 1966171168
  %v10664 = vunpack.c.0.s8 %v10663
  %v10665 = vlaneseq
  %v10666 = vshrl.u32 %v10665, 7
  %v10667 = vsub.s32 %v10664, %v10666
  %v10668 = vrot.slane %v10214, %v10667
  %v10670 = vunpack.c.l.s4 1966171168
  %v10671 = vunpack.c.0.s8 %v10670
  %v10672 = vlaneseq
  %v10673 = vshrl.u32 %v10672, 7
  %v10674 = vsub.s32 %v10671, %v10673
  %v10675 = vrot.slane %v10661, %v10674
  %v10676 = vcombine.high %v10668, %v10668
  %v10677 = vcombine.high %v10675, %v10675
  %v10679 = vunpack.c.l.s4 1966171168
  %v10680 = vunpack.c.0.s8 %v10679
  %v10681 = vlaneseq
  %v10682 = vshrl.u32 %v10681, 7
  %v10683 = vsub.s32 %v10680, %v10682
  %v10684 = vrot.slane %v10668, %v10683
  %v10686 = vunpack.c.l.s4 1966171168
  %v10687 = vunpack.c.0.s8 %v10686
  %v10688 = vlaneseq
  %v10689 = vshrl.u32 %v10688, 7
  %v10690 = vsub.s32 %v10687, %v10689
  %v10691 = vrot.slane %v10675, %v10690
  %v10693 = vunpack.c.l.s4 1966171168
  %v10694 = vunpack.c.0.s8 %v10693
  %v10695 = vlaneseq
  %v10696 = vshrl.u32 %v10695, 7
  %v10697 = vsub.s32 %v10694, %v10696
  %v10698 = vrot.slane %v10676, %v10697
  %v10700 = vunpack.c.l.s4 1966171168
  %v10701 = vunpack.c.0.s8 %v10700
  %v10702 = vlaneseq
  %v10703 = vshrl.u32 %v10702, 7
  %v10704 = vsub.s32 %v10701, %v10703
  %v10705 = vrot.slane %v10677, %v10704
  %v10706 = vcombine.high %v10684, %v10684
  %v10707 = vcombine.high %v10691, %v10691
  %v10708 = vcombine.high %v10698, %v10698
  %v10709 = vcombine.high %v10705, %v10705
  %v10711 = vunpack.c.l.s4 1966171168
  %v10712 = vunpack.c.0.s8 %v10711
  %v10713 = vlaneseq
  %v10714 = vshrl.u32 %v10713, 7
  %v10715 = vsub.s32 %v10712, %v10714
  %v10716 = vrot.slane %v10215, %v10715
  %v10717 = vcombine.high %v10716, %v10716
  %v10719 = vunpack.c.l.s4 1966171168
  %v10720 = vunpack.c.0.s8 %v10719
  %v10721 = vlaneseq
  %v10722 = vshrl.u32 %v10721, 7
  %v10723 = vsub.s32 %v10720, %v10722
  %v10724 = vrot.slane %v10716, %v10723
  %v10726 = vunpack.c.l.s4 1966171168
  %v10727 = vunpack.c.0.s8 %v10726
  %v10728 = vlaneseq
  %v10729 = vshrl.u32 %v10728, 7
  %v10730 = vsub.s32 %v10727, %v10729
  %v10731 = vrot.slane %v10717, %v10730
  %v10732 = vcombine.high %v10217, %v10217
  %v10734 = vunpack.c.l.s4 1966171168
  %v10735 = vunpack.c.0.s8 %v10734
  %v10736 = vlaneseq
  %v10737 = vshrl.u32 %v10736, 7
  %v10738 = vsub.s32 %v10735, %v10737
  %v10739 = vrot.slane %v10217, %v10738
  %v10741 = vunpack.c.l.s4 1966171168
  %v10742 = vunpack.c.0.s8 %v10741
  %v10743 = vlaneseq
  %v10744 = vshrl.u32 %v10743, 7
  %v10745 = vsub.s32 %v10742, %v10744
  %v10746 = vrot.slane %v10732, %v10745
  %v10747 = vcombine.high %v10739, %v10739
  %v10748 = vcombine.high %v10746, %v10746
  %v10750 = vunpack.c.l.s4 1966171168
  %v10751 = vunpack.c.0.s8 %v10750
  %v10752 = vlaneseq
  %v10753 = vshrl.u32 %v10752, 7
  %v10754 = vsub.s32 %v10751, %v10753
  %v10755 = vrot.slane %v10739, %v10754
  %v10757 = vunpack.c.l.s4 1966171168
  %v10758 = vunpack.c.0.s8 %v10757
  %v10759 = vlaneseq
  %v10760 = vshrl.u32 %v10759, 7
  %v10761 = vsub.s32 %v10758, %v10760
  %v10762 = vrot.slane %v10746, %v10761
  %v10764 = vunpack.c.l.s4 1966171168
  %v10765 = vunpack.c.0.s8 %v10764
  %v10766 = vlaneseq
  %v10767 = vshrl.u32 %v10766, 7
  %v10768 = vsub.s32 %v10765, %v10767
  %v10769 = vrot.slane %v10747, %v10768
  %v10771 = vunpack.c.l.s4 1966171168
  %v10772 = vunpack.c.0.s8 %v10771
  %v10773 = vlaneseq
  %v10774 = vshrl.u32 %v10773, 7
  %v10775 = vsub.s32 %v10772, %v10774
  %v10776 = vrot.slane %v10748, %v10775
  %v10777 = vcombine.high %v10755, %v10755
  %v10778 = vcombine.high %v10762, %v10762
  %v10779 = vcombine.high %v10769, %v10769
  %v10780 = vcombine.high %v10776, %v10776
  %v10782 = vunpack.c.l.s4 1966171168
  %v10783 = vunpack.c.0.s8 %v10782
  %v10784 = vlaneseq
  %v10785 = vshrl.u32 %v10784, 7
  %v10786 = vsub.s32 %v10783, %v10785
  %v10787 = vrot.slane %v10218, %v10786
  %v10788 = vcombine.high %v10787, %v10787
  %v10790 = vunpack.c.l.s4 1966171168
  %v10791 = vunpack.c.0.s8 %v10790
  %v10792 = vlaneseq
  %v10793 = vshrl.u32 %v10792, 7
  %v10794 = vsub.s32 %v10791, %v10793
  %v10795 = vrot.slane %v10787, %v10794
  %v10797 = vunpack.c.l.s4 1966171168
  %v10798 = vunpack.c.0.s8 %v10797
  %v10799 = vlaneseq
  %v10800 = vshrl.u32 %v10799, 7
  %v10801 = vsub.s32 %v10798, %v10800
  %v10802 = vrot.slane %v10788, %v10801
  %v10803 = vlaneseq
  %v10804 = vshrl.u32 %v10803, 7
  %v10805 = vsub.s32 0, %v10804
  %v10806 = vrot.slane %v10258, %v10805
  %v10807 = vlaneseq
  %v10808 = vshrl.u32 %v10807, 7
  %v10809 = vsub.s32 0, %v10808
  %v10810 = vrot.slane %v10272, %v10809
  %v10811 = vlaneseq
  %v10812 = vshrl.u32 %v10811, 7
  %v10813 = vsub.s32 0, %v10812
  %v10814 = vrot.slane %v10280, %v10813
  %v10815 = vlaneseq
  %v10816 = vshrl.u32 %v10815, 7
  %v10817 = vsub.s32 0, %v10816
  %v10818 = vrot.slane %v10282, %v10817
  %v10819 = vlaneseq
  %v10820 = vshrl.u32 %v10819, 7
  %v10821 = vsub.s32 0, %v10820
  %v10822 = vrot.slane %v10265, %v10821
  %v10823 = vlaneseq
  %v10824 = vshrl.u32 %v10823, 7
  %v10825 = vsub.s32 0, %v10824
  %v10826 = vrot.slane %v10279, %v10825
  %v10827 = vlaneseq
  %v10828 = vshrl.u32 %v10827, 7
  %v10829 = vsub.s32 0, %v10828
  %v10830 = vrot.slane %v10281, %v10829
  %v10831 = vlaneseq
  %v10832 = vshrl.u32 %v10831, 7
  %v10833 = vsub.s32 0, %v10832
  %v10834 = vrot.slane %v10283, %v10833
  %v10835 = vlaneseq
  %v10836 = vshrl.u32 %v10835, 7
  %v10837 = vsub.s32 0, %v10836
  %v10838 = vrot.slane %v10298, %v10837
  %v10839 = vlaneseq
  %v10840 = vshrl.u32 %v10839, 7
  %v10841 = vsub.s32 0, %v10840
  %v10842 = vrot.slane %v10305, %v10841
  %v10843 = vlaneseq
  %v10844 = vshrl.u32 %v10843, 7
  %v10845 = vsub.s32 0, %v10844
  %v10846 = vrot.slane %v10329, %v10845
  %v10847 = vlaneseq
  %v10848 = vshrl.u32 %v10847, 7
  %v10849 = vsub.s32 0, %v10848
  %v10850 = vrot.slane %v10343, %v10849
  %v10851 = vlaneseq
  %v10852 = vshrl.u32 %v10851, 7
  %v10853 = vsub.s32 0, %v10852
  %v10854 = vrot.slane %v10351, %v10853
  %v10855 = vlaneseq
  %v10856 = vshrl.u32 %v10855, 7
  %v10857 = vsub.s32 0, %v10856
  %v10858 = vrot.slane %v10353, %v10857
  %v10859 = vlaneseq
  %v10860 = vshrl.u32 %v10859, 7
  %v10861 = vsub.s32 0, %v10860
  %v10862 = vrot.slane %v10336, %v10861
  %v10863 = vlaneseq
  %v10864 = vshrl.u32 %v10863, 7
  %v10865 = vsub.s32 0, %v10864
  %v10866 = vrot.slane %v10350, %v10865
  %v10867 = vlaneseq
  %v10868 = vshrl.u32 %v10867, 7
  %v10869 = vsub.s32 0, %v10868
  %v10870 = vrot.slane %v10352, %v10869
  %v10871 = vlaneseq
  %v10872 = vshrl.u32 %v10871, 7
  %v10873 = vsub.s32 0, %v10872
  %v10874 = vrot.slane %v10354, %v10873
  %v10875 = vlaneseq
  %v10876 = vshrl.u32 %v10875, 7
  %v10877 = vsub.s32 0, %v10876
  %v10878 = vrot.slane %v10369, %v10877
  %v10879 = vlaneseq
  %v10880 = vshrl.u32 %v10879, 7
  %v10881 = vsub.s32 0, %v10880
  %v10882 = vrot.slane %v10376, %v10881
  %v10883 = vlaneseq
  %v10884 = vshrl.u32 %v10883, 7
  %v10885 = vsub.s32 0, %v10884
  %v10886 = vrot.slane %v10400, %v10885
  %v10887 = vlaneseq
  %v10888 = vshrl.u32 %v10887, 7
  %v10889 = vsub.s32 0, %v10888
  %v10890 = vrot.slane %v10414, %v10889
  %v10891 = vlaneseq
  %v10892 = vshrl.u32 %v10891, 7
  %v10893 = vsub.s32 0, %v10892
  %v10894 = vrot.slane %v10422, %v10893
  %v10895 = vlaneseq
  %v10896 = vshrl.u32 %v10895, 7
  %v10897 = vsub.s32 0, %v10896
  %v10898 = vrot.slane %v10424, %v10897
  %v10899 = vlaneseq
  %v10900 = vshrl.u32 %v10899, 7
  %v10901 = vsub.s32 0, %v10900
  %v10902 = vrot.slane %v10407, %v10901
  %v10903 = vlaneseq
  %v10904 = vshrl.u32 %v10903, 7
  %v10905 = vsub.s32 0, %v10904
  %v10906 = vrot.slane %v10421, %v10905
  %v10907 = vlaneseq
  %v10908 = vshrl.u32 %v10907, 7
  %v10909 = vsub.s32 0, %v10908
  %v10910 = vrot.slane %v10423, %v10909
  %v10911 = vlaneseq
  %v10912 = vshrl.u32 %v10911, 7
  %v10913 = vsub.s32 0, %v10912
  %v10914 = vrot.slane %v10425, %v10913
  %v10915 = vlaneseq
  %v10916 = vshrl.u32 %v10915, 7
  %v10917 = vsub.s32 0, %v10916
  %v10918 = vrot.slane %v10440, %v10917
  %v10919 = vlaneseq
  %v10920 = vshrl.u32 %v10919, 7
  %v10921 = vsub.s32 0, %v10920
  %v10922 = vrot.slane %v10447, %v10921
  %v10923 = vlaneseq
  %v10924 = vshrl.u32 %v10923, 7
  %v10925 = vsub.s32 0, %v10924
  %v10926 = vrot.slane %v10471, %v10925
  %v10927 = vlaneseq
  %v10928 = vshrl.u32 %v10927, 7
  %v10929 = vsub.s32 0, %v10928
  %v10930 = vrot.slane %v10485, %v10929
  %v10931 = vlaneseq
  %v10932 = vshrl.u32 %v10931, 7
  %v10933 = vsub.s32 0, %v10932
  %v10934 = vrot.slane %v10493, %v10933
  %v10935 = vlaneseq
  %v10936 = vshrl.u32 %v10935, 7
  %v10937 = vsub.s32 0, %v10936
  %v10938 = vrot.slane %v10495, %v10937
  %v10939 = vlaneseq
  %v10940 = vshrl.u32 %v10939, 7
  %v10941 = vsub.s32 0, %v10940
  %v10942 = vrot.slane %v10478, %v10941
  %v10943 = vlaneseq
  %v10944 = vshrl.u32 %v10943, 7
  %v10945 = vsub.s32 0, %v10944
  %v10946 = vrot.slane %v10492, %v10945
  %v10947 = vlaneseq
  %v10948 = vshrl.u32 %v10947, 7
  %v10949 = vsub.s32 0, %v10948
  %v10950 = vrot.slane %v10494, %v10949
  %v10951 = vlaneseq
  %v10952 = vshrl.u32 %v10951, 7
  %v10953 = vsub.s32 0, %v10952
  %v10954 = vrot.slane %v10496, %v10953
  %v10955 = vlaneseq
  %v10956 = vshrl.u32 %v10955, 7
  %v10957 = vsub.s32 0, %v10956
  %v10958 = vrot.slane %v10511, %v10957
  %v10959 = vlaneseq
  %v10960 = vshrl.u32 %v10959, 7
  %v10961 = vsub.s32 0, %v10960
  %v10962 = vrot.slane %v10518, %v10961
  %v10963 = vlaneseq
  %v10964 = vshrl.u32 %v10963, 7
  %v10965 = vsub.s32 0, %v10964
  %v10966 = vrot.slane %v10542, %v10965
  %v10967 = vlaneseq
  %v10968 = vshrl.u32 %v10967, 7
  %v10969 = vsub.s32 0, %v10968
  %v10970 = vrot.slane %v10556, %v10969
  %v10971 = vlaneseq
  %v10972 = vshrl.u32 %v10971, 7
  %v10973 = vsub.s32 0, %v10972
  %v10974 = vrot.slane %v10564, %v10973
  %v10975 = vlaneseq
  %v10976 = vshrl.u32 %v10975, 7
  %v10977 = vsub.s32 0, %v10976
  %v10978 = vrot.slane %v10566, %v10977
  %v10979 = vlaneseq
  %v10980 = vshrl.u32 %v10979, 7
  %v10981 = vsub.s32 0, %v10980
  %v10982 = vrot.slane %v10549, %v10981
  %v10983 = vlaneseq
  %v10984 = vshrl.u32 %v10983, 7
  %v10985 = vsub.s32 0, %v10984
  %v10986 = vrot.slane %v10563, %v10985
  %v10987 = vlaneseq
  %v10988 = vshrl.u32 %v10987, 7
  %v10989 = vsub.s32 0, %v10988
  %v10990 = vrot.slane %v10565, %v10989
  %v10991 = vlaneseq
  %v10992 = vshrl.u32 %v10991, 7
  %v10993 = vsub.s32 0, %v10992
  %v10994 = vrot.slane %v10567, %v10993
  %v10995 = vlaneseq
  %v10996 = vshrl.u32 %v10995, 7
  %v10997 = vsub.s32 0, %v10996
  %v10998 = vrot.slane %v10582, %v10997
  %v10999 = vlaneseq
  %v11000 = vshrl.u32 %v10999, 7
  %v11001 = vsub.s32 0, %v11000
  %v11002 = vrot.slane %v10589, %v11001
  %v11003 = vlaneseq
  %v11004 = vshrl.u32 %v11003, 7
  %v11005 = vsub.s32 0, %v11004
  %v11006 = vrot.slane %v10613, %v11005
  %v11007 = vlaneseq
  %v11008 = vshrl.u32 %v11007, 7
  %v11009 = vsub.s32 0, %v11008
  %v11010 = vrot.slane %v10627, %v11009
  %v11011 = vlaneseq
  %v11012 = vshrl.u32 %v11011, 7
  %v11013 = vsub.s32 0, %v11012
  %v11014 = vrot.slane %v10635, %v11013
  %v11015 = vlaneseq
  %v11016 = vshrl.u32 %v11015, 7
  %v11017 = vsub.s32 0, %v11016
  %v11018 = vrot.slane %v10637, %v11017
  %v11019 = vlaneseq
  %v11020 = vshrl.u32 %v11019, 7
  %v11021 = vsub.s32 0, %v11020
  %v11022 = vrot.slane %v10620, %v11021
  %v11023 = vlaneseq
  %v11024 = vshrl.u32 %v11023, 7
  %v11025 = vsub.s32 0, %v11024
  %v11026 = vrot.slane %v10634, %v11025
  %v11027 = vlaneseq
  %v11028 = vshrl.u32 %v11027, 7
  %v11029 = vsub.s32 0, %v11028
  %v11030 = vrot.slane %v10636, %v11029
  %v11031 = vlaneseq
  %v11032 = vshrl.u32 %v11031, 7
  %v11033 = vsub.s32 0, %v11032
  %v11034 = vrot.slane %v10638, %v11033
  %v11035 = vlaneseq
  %v11036 = vshrl.u32 %v11035, 7
  %v11037 = vsub.s32 0, %v11036
  %v11038 = vrot.slane %v10653, %v11037
  %v11039 = vlaneseq
  %v11040 = vshrl.u32 %v11039, 7
  %v11041 = vsub.s32 0, %v11040
  %v11042 = vrot.slane %v10660, %v11041
  %v11043 = vlaneseq
  %v11044 = vshrl.u32 %v11043, 7
  %v11045 = vsub.s32 0, %v11044
  %v11046 = vrot.slane %v10684, %v11045
  %v11047 = vlaneseq
  %v11048 = vshrl.u32 %v11047, 7
  %v11049 = vsub.s32 0, %v11048
  %v11050 = vrot.slane %v10698, %v11049
  %v11051 = vlaneseq
  %v11052 = vshrl.u32 %v11051, 7
  %v11053 = vsub.s32 0, %v11052
  %v11054 = vrot.slane %v10706, %v11053
  %v11055 = vlaneseq
  %v11056 = vshrl.u32 %v11055, 7
  %v11057 = vsub.s32 0, %v11056
  %v11058 = vrot.slane %v10708, %v11057
  %v11059 = vlaneseq
  %v11060 = vshrl.u32 %v11059, 7
  %v11061 = vsub.s32 0, %v11060
  %v11062 = vrot.slane %v10691, %v11061
  %v11063 = vlaneseq
  %v11064 = vshrl.u32 %v11063, 7
  %v11065 = vsub.s32 0, %v11064
  %v11066 = vrot.slane %v10705, %v11065
  %v11067 = vlaneseq
  %v11068 = vshrl.u32 %v11067, 7
  %v11069 = vsub.s32 0, %v11068
  %v11070 = vrot.slane %v10707, %v11069
  %v11071 = vlaneseq
  %v11072 = vshrl.u32 %v11071, 7
  %v11073 = vsub.s32 0, %v11072
  %v11074 = vrot.slane %v10709, %v11073
  %v11075 = vlaneseq
  %v11076 = vshrl.u32 %v11075, 7
  %v11077 = vsub.s32 0, %v11076
  %v11078 = vrot.slane %v10724, %v11077
  %v11079 = vlaneseq
  %v11080 = vshrl.u32 %v11079, 7
  %v11081 = vsub.s32 0, %v11080
  %v11082 = vrot.slane %v10731, %v11081
  %v11083 = vlaneseq
  %v11084 = vshrl.u32 %v11083, 7
  %v11085 = vsub.s32 0, %v11084
  %v11086 = vrot.slane %v10755, %v11085
  %v11087 = vlaneseq
  %v11088 = vshrl.u32 %v11087, 7
  %v11089 = vsub.s32 0, %v11088
  %v11090 = vrot.slane %v10769, %v11089
  %v11091 = vlaneseq
  %v11092 = vshrl.u32 %v11091, 7
  %v11093 = vsub.s32 0, %v11092
  %v11094 = vrot.slane %v10777, %v11093
  %v11095 = vlaneseq
  %v11096 = vshrl.u32 %v11095, 7
  %v11097 = vsub.s32 0, %v11096
  %v11098 = vrot.slane %v10779, %v11097
  %v11099 = vlaneseq
  %v11100 = vshrl.u32 %v11099, 7
  %v11101 = vsub.s32 0, %v11100
  %v11102 = vrot.slane %v10762, %v11101
  %v11103 = vlaneseq
  %v11104 = vshrl.u32 %v11103, 7
  %v11105 = vsub.s32 0, %v11104
  %v11106 = vrot.slane %v10776, %v11105
  %v11107 = vlaneseq
  %v11108 = vshrl.u32 %v11107, 7
  %v11109 = vsub.s32 0, %v11108
  %v11110 = vrot.slane %v10778, %v11109
  %v11111 = vlaneseq
  %v11112 = vshrl.u32 %v11111, 7
  %v11113 = vsub.s32 0, %v11112
  %v11114 = vrot.slane %v10780, %v11113
  %v11115 = vlaneseq
  %v11116 = vshrl.u32 %v11115, 7
  %v11117 = vsub.s32 0, %v11116
  %v11118 = vrot.slane %v10795, %v11117
  %v11119 = vlaneseq
  %v11120 = vshrl.u32 %v11119, 7
  %v11121 = vsub.s32 0, %v11120
  %v11122 = vrot.slane %v10802, %v11121
  %v11203 = vmul.f32 %v10806, %v972
  %v11204 = vmul.f32 %v10806, %v977
  %v11205 = vmul.f32 %v10810, %v982
  %v11206 = vmul.f32 %v10810, %v987
  %v11207 = vmul.f32 %v10814, %v992
  %v11208 = vmul.f32 %v10814, %v997
  %v11209 = vmul.f32 %v10818, %v1002
  %v11210 = vmul.f32 %v10818, %v1007
  %v11211 = vmul.f32 %v10822, %v1012
  %v11212 = vmul.f32 %v10822, %v1017
  %v11213 = vmul.f32 %v10826, %v1022
  %v11214 = vmul.f32 %v10826, %v1027
  %v11215 = vmul.f32 %v10830, %v1032
  %v11216 = vmul.f32 %v10830, %v1037
  %v11217 = vmul.f32 %v10834, %v1042
  %v11218 = vmul.f32 %v10834, %v1047
  %v11219 = vmul.f32 %v10838, %v1052
  %v11220 = vmul.f32 %v10838, %v1057
  %v11221 = vmul.f32 %v10842, %v1062
  %v11222 = vmul.f32 %v10842, %v1067
  %v11223 = vmul.f32 %v10846, %v1072
  %v11224 = vmul.f32 %v10846, %v1077
  %v11225 = vmul.f32 %v10850, %v1082
  %v11226 = vmul.f32 %v10850, %v1087
  %v11227 = vmul.f32 %v10854, %v1092
  %v11228 = vmul.f32 %v10854, %v1097
  %v11229 = vmul.f32 %v10858, %v1102
  %v11230 = vmul.f32 %v10858, %v1107
  %v11231 = vmul.f32 %v10862, %v1112
  %v11232 = vmul.f32 %v10862, %v1117
  %v11233 = vmul.f32 %v10866, %v1122
  %v11234 = vmul.f32 %v10866, %v1127
  %v11235 = vmul.f32 %v10870, %v1132
  %v11236 = vmul.f32 %v10870, %v1137
  %v11237 = vmul.f32 %v10874, %v1142
  %v11238 = vmul.f32 %v10874, %v1147
  %v11239 = vmul.f32 %v10878, %v1152
  %v11240 = vmul.f32 %v10878, %v1157
  %v11241 = vmul.f32 %v10882, %v1162
  %v11242 = vmul.f32 %v10882, %v1167
  %v11243 = vmul.f32 %v10886, %v1172
  %v11244 = vmul.f32 %v10886, %v1177
  %v11245 = vmul.f32 %v10890, %v1182
  %v11246 = vmul.f32 %v10890, %v1187
  %v11247 = vmul.f32 %v10894, %v1192
  %v11248 = vmul.f32 %v10894, %v1197
  %v11249 = vmul.f32 %v10898, %v1202
  %v11250 = vmul.f32 %v10898, %v1207
  %v11251 = vmul.f32 %v10902, %v1212
  %v11252 = vmul.f32 %v10902, %v1217
  %v11253 = vmul.f32 %v10906, %v1222
  %v11254 = vmul.f32 %v10906, %v1227
  %v11255 = vmul.f32 %v10910, %v1232
  %v11256 = vmul.f32 %v10910, %v1237
  %v11257 = vmul.f32 %v10914, %v1242
  %v11258 = vmul.f32 %v10914, %v1247
  %v11259 = vmul.f32 %v10918, %v1252
  %v11260 = vmul.f32 %v10918, %v1257
  %v11261 = vmul.f32 %v10922, %v1262
  %v11262 = vmul.f32 %v10922, %v1267
  %v11263 = vmul.f32 %v10926, %v1272
  %v11264 = vmul.f32 %v10926, %v1277
  %v11265 = vmul.f32 %v10930, %v1282
  %v11266 = vmul.f32 %v10930, %v1287
  %v11267 = vmul.f32 %v10934, %v1292
  %v11268 = vmul.f32 %v10934, %v1297
  %v11269 = vmul.f32 %v10938, %v1302
  %v11270 = vmul.f32 %v10938, %v1307
  %v11271 = vmul.f32 %v10942, %v1312
  %v11272 = vmul.f32 %v10942, %v1317
  %v11273 = vmul.f32 %v10946, %v1322
  %v11274 = vmul.f32 %v10946, %v1327
  %v11275 = vmul.f32 %v10950, %v1332
  %v11276 = vmul.f32 %v10950, %v1337
  %v11277 = vmul.f32 %v10954, %v1342
  %v11278 = vmul.f32 %v10954, %v1347
  %v11279 = vmul.f32 %v10958, %v1352
  %v11280 = vmul.f32 %v10958, %v1357
  %v11281 = vmul.f32 %v10962, %v1362
  %v11282 = vmul.f32 %v10962, %v1367
  %v11283 = vmul.f32 %v10966, %v1372
  %v11284 = vmul.f32 %v10966, %v1377
  %v11285 = vmul.f32 %v10970, %v1382
  %v11286 = vmul.f32 %v10970, %v1387
  %v11287 = vmul.f32 %v10974, %v1392
  %v11288 = vmul.f32 %v10974, %v1397
  %v11289 = vmul.f32 %v10978, %v1402
  %v11290 = vmul.f32 %v10978, %v1407
  %v11291 = vmul.f32 %v10982, %v1412
  %v11292 = vmul.f32 %v10982, %v1417
  %v11293 = vmul.f32 %v10986, %v1422
  %v11294 = vmul.f32 %v10986, %v1427
  %v11295 = vmul.f32 %v10990, %v1432
  %v11296 = vmul.f32 %v10990, %v1437
  %v11297 = vmul.f32 %v10994, %v1442
  %v11298 = vmul.f32 %v10994, %v1447
  %v11299 = vmul.f32 %v10998, %v1452
  %v11300 = vmul.f32 %v10998, %v1457
  %v11301 = vmul.f32 %v11002, %v1462
  %v11302 = vmul.f32 %v11002, %v1467
  %v11303 = vmul.f32 %v11006, %v1472
  %v11304 = vmul.f32 %v11006, %v1477
  %v11305 = vmul.f32 %v11010, %v1482
  %v11306 = vmul.f32 %v11010, %v1487
  %v11307 = vmul.f32 %v11014, %v1492
  %v11308 = vmul.f32 %v11014, %v1497
  %v11309 = vmul.f32 %v11018, %v1502
  %v11310 = vmul.f32 %v11018, %v1507
  %v11311 = vmul.f32 %v11022, %v1512
  %v11312 = vmul.f32 %v11022, %v1517
  %v11313 = vmul.f32 %v11026, %v1522
  %v11314 = vmul.f32 %v11026, %v1527
  %v11315 = vmul.f32 %v11030, %v1532
  %v11316 = vmul.f32 %v11030, %v1537
  %v11317 = vmul.f32 %v11034, %v1542
  %v11318 = vmul.f32 %v11034, %v1547
  %v11319 = vmul.f32 %v11038, %v1552
  %v11320 = vmul.f32 %v11038, %v1557
  %v11321 = vmul.f32 %v11042, %v1562
  %v11322 = vmul.f32 %v11042, %v1567
  %v11323 = vmul.f32 %v11046, %v1572
  %v11324 = vmul.f32 %v11046, %v1577
  %v11325 = vmul.f32 %v11050, %v1582
  %v11326 = vmul.f32 %v11050, %v1587
  %v11327 = vmul.f32 %v11054, %v1592
  %v11328 = vmul.f32 %v11054, %v1597
  %v11329 = vmul.f32 %v11058, %v1602
  %v11330 = vmul.f32 %v11058, %v1607
  %v11331 = vmul.f32 %v11062, %v1612
  %v11332 = vmul.f32 %v11062, %v1617
  %v11333 = vmul.f32 %v11066, %v1622
  %v11334 = vmul.f32 %v11066, %v1627
  %v11335 = vmul.f32 %v11070, %v1632
  %v11336 = vmul.f32 %v11070, %v1637
  %v11337 = vmul.f32 %v11074, %v1642
  %v11338 = vmul.f32 %v11074, %v1647
  %v11339 = vmul.f32 %v11078, %v1652
  %v11340 = vmul.f32 %v11078, %v1657
  %v11341 = vmul.f32 %v11082, %v1662
  %v11342 = vmul.f32 %v11082, %v1667
  %v11343 = vmul.f32 %v11086, %v1672
  %v11344 = vmul.f32 %v11086, %v1677
  %v11345 = vmul.f32 %v11090, %v1682
  %v11346 = vmul.f32 %v11090, %v1687
  %v11347 = vmul.f32 %v11094, %v1692
  %v11348 = vmul.f32 %v11094, %v1697
  %v11349 = vmul.f32 %v11098, %v1702
  %v11350 = vmul.f32 %v11098, %v1707
  %v11351 = vmul.f32 %v11102, %v1712
  %v11352 = vmul.f32 %v11102, %v1717
  %v11353 = vmul.f32 %v11106, %v1722
  %v11354 = vmul.f32 %v11106, %v1727
  %v11355 = vmul.f32 %v11110, %v1732
  %v11356 = vmul.f32 %v11110, %v1737
  %v11357 = vmul.f32 %v11114, %v1742
  %v11358 = vmul.f32 %v11114, %v1747
  %v11359 = vmul.f32 %v11118, %v1752
  %v11360 = vmul.f32 %v11118, %v1757
  %v11361 = vmul.f32 %v11122, %v1762
  %v11362 = vmul.f32 %v11122, %v1767
  %v11363 = vsel %vm2636, %v11203, 0.0
  %v11364 = vsel %vm2636, %v11223, 0.0
  %v11365 = vadd.f32 %v11363, %v11364
  %v11366 = vsel %vm2636, %v11243, 0.0
  %v11367 = vadd.f32 %v11365, %v11366
  %v11368 = vsel %vm2636, %v11263, 0.0
  %v11369 = vadd.f32 %v11367, %v11368
  %v11370 = vsel %vm2636, %v11283, 0.0
  %v11371 = vadd.f32 %v11369, %v11370
  %v11372 = vsel %vm2636, %v11303, 0.0
  %v11373 = vadd.f32 %v11371, %v11372
  %v11374 = vsel %vm2636, %v11323, 0.0
  %v11375 = vadd.f32 %v11373, %v11374
  %v11376 = vsel %vm2636, %v11343, 0.0
  %v11377 = vadd.f32 %v11375, %v11376
  %v11378 = vsel %vm2636, %v11204, 0.0
  %v11379 = vsel %vm2636, %v11224, 0.0
  %v11380 = vadd.f32 %v11378, %v11379
  %v11381 = vsel %vm2636, %v11244, 0.0
  %v11382 = vadd.f32 %v11380, %v11381
  %v11383 = vsel %vm2636, %v11264, 0.0
  %v11384 = vadd.f32 %v11382, %v11383
  %v11385 = vsel %vm2636, %v11284, 0.0
  %v11386 = vadd.f32 %v11384, %v11385
  %v11387 = vsel %vm2636, %v11304, 0.0
  %v11388 = vadd.f32 %v11386, %v11387
  %v11389 = vsel %vm2636, %v11324, 0.0
  %v11390 = vadd.f32 %v11388, %v11389
  %v11391 = vsel %vm2636, %v11344, 0.0
  %v11392 = vadd.f32 %v11390, %v11391
  %v11393 = vsel %vm2636, %v11205, 0.0
  %v11394 = vsel %vm2636, %v11225, 0.0
  %v11395 = vadd.f32 %v11393, %v11394
  %v11396 = vsel %vm2636, %v11245, 0.0
  %v11397 = vadd.f32 %v11395, %v11396
  %v11398 = vsel %vm2636, %v11265, 0.0
  %v11399 = vadd.f32 %v11397, %v11398
  %v11400 = vsel %vm2636, %v11285, 0.0
  %v11401 = vadd.f32 %v11399, %v11400
  %v11402 = vsel %vm2636, %v11305, 0.0
  %v11403 = vadd.f32 %v11401, %v11402
  %v11404 = vsel %vm2636, %v11325, 0.0
  %v11405 = vadd.f32 %v11403, %v11404
  %v11406 = vsel %vm2636, %v11345, 0.0
  %v11407 = vadd.f32 %v11405, %v11406
  %v11408 = vsel %vm2636, %v11206, 0.0
  %v11409 = vsel %vm2636, %v11226, 0.0
  %v11410 = vadd.f32 %v11408, %v11409
  %v11411 = vsel %vm2636, %v11246, 0.0
  %v11412 = vadd.f32 %v11410, %v11411
  %v11413 = vsel %vm2636, %v11266, 0.0
  %v11414 = vadd.f32 %v11412, %v11413
  %v11415 = vsel %vm2636, %v11286, 0.0
  %v11416 = vadd.f32 %v11414, %v11415
  %v11417 = vsel %vm2636, %v11306, 0.0
  %v11418 = vadd.f32 %v11416, %v11417
  %v11419 = vsel %vm2636, %v11326, 0.0
  %v11420 = vadd.f32 %v11418, %v11419
  %v11421 = vsel %vm2636, %v11346, 0.0
  %v11422 = vadd.f32 %v11420, %v11421
  %v11423 = vsel %vm2636, %v11207, 0.0
  %v11424 = vsel %vm2636, %v11227, 0.0
  %v11425 = vadd.f32 %v11423, %v11424
  %v11426 = vsel %vm2636, %v11247, 0.0
  %v11427 = vadd.f32 %v11425, %v11426
  %v11428 = vsel %vm2636, %v11267, 0.0
  %v11429 = vadd.f32 %v11427, %v11428
  %v11430 = vsel %vm2636, %v11287, 0.0
  %v11431 = vadd.f32 %v11429, %v11430
  %v11432 = vsel %vm2636, %v11307, 0.0
  %v11433 = vadd.f32 %v11431, %v11432
  %v11434 = vsel %vm2636, %v11327, 0.0
  %v11435 = vadd.f32 %v11433, %v11434
  %v11436 = vsel %vm2636, %v11347, 0.0
  %v11437 = vadd.f32 %v11435, %v11436
  %v11438 = vsel %vm2636, %v11208, 0.0
  %v11439 = vsel %vm2636, %v11228, 0.0
  %v11440 = vadd.f32 %v11438, %v11439
  %v11441 = vsel %vm2636, %v11248, 0.0
  %v11442 = vadd.f32 %v11440, %v11441
  %v11443 = vsel %vm2636, %v11268, 0.0
  %v11444 = vadd.f32 %v11442, %v11443
  %v11445 = vsel %vm2636, %v11288, 0.0
  %v11446 = vadd.f32 %v11444, %v11445
  %v11447 = vsel %vm2636, %v11308, 0.0
  %v11448 = vadd.f32 %v11446, %v11447
  %v11449 = vsel %vm2636, %v11328, 0.0
  %v11450 = vadd.f32 %v11448, %v11449
  %v11451 = vsel %vm2636, %v11348, 0.0
  %v11452 = vadd.f32 %v11450, %v11451
  %v11453 = vsel %vm2636, %v11209, 0.0
  %v11454 = vsel %vm2636, %v11229, 0.0
  %v11455 = vadd.f32 %v11453, %v11454
  %v11456 = vsel %vm2636, %v11249, 0.0
  %v11457 = vadd.f32 %v11455, %v11456
  %v11458 = vsel %vm2636, %v11269, 0.0
  %v11459 = vadd.f32 %v11457, %v11458
  %v11460 = vsel %vm2636, %v11289, 0.0
  %v11461 = vadd.f32 %v11459, %v11460
  %v11462 = vsel %vm2636, %v11309, 0.0
  %v11463 = vadd.f32 %v11461, %v11462
  %v11464 = vsel %vm2636, %v11329, 0.0
  %v11465 = vadd.f32 %v11463, %v11464
  %v11466 = vsel %vm2636, %v11349, 0.0
  %v11467 = vadd.f32 %v11465, %v11466
  %v11468 = vsel %vm2636, %v11210, 0.0
  %v11469 = vsel %vm2636, %v11230, 0.0
  %v11470 = vadd.f32 %v11468, %v11469
  %v11471 = vsel %vm2636, %v11250, 0.0
  %v11472 = vadd.f32 %v11470, %v11471
  %v11473 = vsel %vm2636, %v11270, 0.0
  %v11474 = vadd.f32 %v11472, %v11473
  %v11475 = vsel %vm2636, %v11290, 0.0
  %v11476 = vadd.f32 %v11474, %v11475
  %v11477 = vsel %vm2636, %v11310, 0.0
  %v11478 = vadd.f32 %v11476, %v11477
  %v11479 = vsel %vm2636, %v11330, 0.0
  %v11480 = vadd.f32 %v11478, %v11479
  %v11481 = vsel %vm2636, %v11350, 0.0
  %v11482 = vadd.f32 %v11480, %v11481
  %v11483 = vsel %vm2636, %v11211, 0.0
  %v11484 = vsel %vm2636, %v11231, 0.0
  %v11485 = vadd.f32 %v11483, %v11484
  %v11486 = vsel %vm2636, %v11251, 0.0
  %v11487 = vadd.f32 %v11485, %v11486
  %v11488 = vsel %vm2636, %v11271, 0.0
  %v11489 = vadd.f32 %v11487, %v11488
  %v11490 = vsel %vm2636, %v11291, 0.0
  %v11491 = vadd.f32 %v11489, %v11490
  %v11492 = vsel %vm2636, %v11311, 0.0
  %v11493 = vadd.f32 %v11491, %v11492
  %v11494 = vsel %vm2636, %v11331, 0.0
  %v11495 = vadd.f32 %v11493, %v11494
  %v11496 = vsel %vm2636, %v11351, 0.0
  %v11497 = vadd.f32 %v11495, %v11496
  %v11498 = vsel %vm2636, %v11212, 0.0
  %v11499 = vsel %vm2636, %v11232, 0.0
  %v11500 = vadd.f32 %v11498, %v11499
  %v11501 = vsel %vm2636, %v11252, 0.0
  %v11502 = vadd.f32 %v11500, %v11501
  %v11503 = vsel %vm2636, %v11272, 0.0
  %v11504 = vadd.f32 %v11502, %v11503
  %v11505 = vsel %vm2636, %v11292, 0.0
  %v11506 = vadd.f32 %v11504, %v11505
  %v11507 = vsel %vm2636, %v11312, 0.0
  %v11508 = vadd.f32 %v11506, %v11507
  %v11509 = vsel %vm2636, %v11332, 0.0
  %v11510 = vadd.f32 %v11508, %v11509
  %v11511 = vsel %vm2636, %v11352, 0.0
  %v11512 = vadd.f32 %v11510, %v11511
  %v11513 = vsel %vm2636, %v11213, 0.0
  %v11514 = vsel %vm2636, %v11233, 0.0
  %v11515 = vadd.f32 %v11513, %v11514
  %v11516 = vsel %vm2636, %v11253, 0.0
  %v11517 = vadd.f32 %v11515, %v11516
  %v11518 = vsel %vm2636, %v11273, 0.0
  %v11519 = vadd.f32 %v11517, %v11518
  %v11520 = vsel %vm2636, %v11293, 0.0
  %v11521 = vadd.f32 %v11519, %v11520
  %v11522 = vsel %vm2636, %v11313, 0.0
  %v11523 = vadd.f32 %v11521, %v11522
  %v11524 = vsel %vm2636, %v11333, 0.0
  %v11525 = vadd.f32 %v11523, %v11524
  %v11526 = vsel %vm2636, %v11353, 0.0
  %v11527 = vadd.f32 %v11525, %v11526
  %v11528 = vsel %vm2636, %v11214, 0.0
  %v11529 = vsel %vm2636, %v11234, 0.0
  %v11530 = vadd.f32 %v11528, %v11529
  %v11531 = vsel %vm2636, %v11254, 0.0
  %v11532 = vadd.f32 %v11530, %v11531
  %v11533 = vsel %vm2636, %v11274, 0.0
  %v11534 = vadd.f32 %v11532, %v11533
  %v11535 = vsel %vm2636, %v11294, 0.0
  %v11536 = vadd.f32 %v11534, %v11535
  %v11537 = vsel %vm2636, %v11314, 0.0
  %v11538 = vadd.f32 %v11536, %v11537
  %v11539 = vsel %vm2636, %v11334, 0.0
  %v11540 = vadd.f32 %v11538, %v11539
  %v11541 = vsel %vm2636, %v11354, 0.0
  %v11542 = vadd.f32 %v11540, %v11541
  %v11543 = vsel %vm2636, %v11215, 0.0
  %v11544 = vsel %vm2636, %v11235, 0.0
  %v11545 = vadd.f32 %v11543, %v11544
  %v11546 = vsel %vm2636, %v11255, 0.0
  %v11547 = vadd.f32 %v11545, %v11546
  %v11548 = vsel %vm2636, %v11275, 0.0
  %v11549 = vadd.f32 %v11547, %v11548
  %v11550 = vsel %vm2636, %v11295, 0.0
  %v11551 = vadd.f32 %v11549, %v11550
  %v11552 = vsel %vm2636, %v11315, 0.0
  %v11553 = vadd.f32 %v11551, %v11552
  %v11554 = vsel %vm2636, %v11335, 0.0
  %v11555 = vadd.f32 %v11553, %v11554
  %v11556 = vsel %vm2636, %v11355, 0.0
  %v11557 = vadd.f32 %v11555, %v11556
  %v11558 = vsel %vm2636, %v11216, 0.0
  %v11559 = vsel %vm2636, %v11236, 0.0
  %v11560 = vadd.f32 %v11558, %v11559
  %v11561 = vsel %vm2636, %v11256, 0.0
  %v11562 = vadd.f32 %v11560, %v11561
  %v11563 = vsel %vm2636, %v11276, 0.0
  %v11564 = vadd.f32 %v11562, %v11563
  %v11565 = vsel %vm2636, %v11296, 0.0
  %v11566 = vadd.f32 %v11564, %v11565
  %v11567 = vsel %vm2636, %v11316, 0.0
  %v11568 = vadd.f32 %v11566, %v11567
  %v11569 = vsel %vm2636, %v11336, 0.0
  %v11570 = vadd.f32 %v11568, %v11569
  %v11571 = vsel %vm2636, %v11356, 0.0
  %v11572 = vadd.f32 %v11570, %v11571
  %v11573 = vsel %vm2636, %v11217, 0.0
  %v11574 = vsel %vm2636, %v11237, 0.0
  %v11575 = vadd.f32 %v11573, %v11574
  %v11576 = vsel %vm2636, %v11257, 0.0
  %v11577 = vadd.f32 %v11575, %v11576
  %v11578 = vsel %vm2636, %v11277, 0.0
  %v11579 = vadd.f32 %v11577, %v11578
  %v11580 = vsel %vm2636, %v11297, 0.0
  %v11581 = vadd.f32 %v11579, %v11580
  %v11582 = vsel %vm2636, %v11317, 0.0
  %v11583 = vadd.f32 %v11581, %v11582
  %v11584 = vsel %vm2636, %v11337, 0.0
  %v11585 = vadd.f32 %v11583, %v11584
  %v11586 = vsel %vm2636, %v11357, 0.0
  %v11587 = vadd.f32 %v11585, %v11586
  %v11588 = vsel %vm2636, %v11218, 0.0
  %v11589 = vsel %vm2636, %v11238, 0.0
  %v11590 = vadd.f32 %v11588, %v11589
  %v11591 = vsel %vm2636, %v11258, 0.0
  %v11592 = vadd.f32 %v11590, %v11591
  %v11593 = vsel %vm2636, %v11278, 0.0
  %v11594 = vadd.f32 %v11592, %v11593
  %v11595 = vsel %vm2636, %v11298, 0.0
  %v11596 = vadd.f32 %v11594, %v11595
  %v11597 = vsel %vm2636, %v11318, 0.0
  %v11598 = vadd.f32 %v11596, %v11597
  %v11599 = vsel %vm2636, %v11338, 0.0
  %v11600 = vadd.f32 %v11598, %v11599
  %v11601 = vsel %vm2636, %v11358, 0.0
  %v11602 = vadd.f32 %v11600, %v11601
  %v11603 = vsel %vm2636, %v11219, 0.0
  %v11604 = vsel %vm2636, %v11239, 0.0
  %v11605 = vadd.f32 %v11603, %v11604
  %v11606 = vsel %vm2636, %v11259, 0.0
  %v11607 = vadd.f32 %v11605, %v11606
  %v11608 = vsel %vm2636, %v11279, 0.0
  %v11609 = vadd.f32 %v11607, %v11608
  %v11610 = vsel %vm2636, %v11299, 0.0
  %v11611 = vadd.f32 %v11609, %v11610
  %v11612 = vsel %vm2636, %v11319, 0.0
  %v11613 = vadd.f32 %v11611, %v11612
  %v11614 = vsel %vm2636, %v11339, 0.0
  %v11615 = vadd.f32 %v11613, %v11614
  %v11616 = vsel %vm2636, %v11359, 0.0
  %v11617 = vadd.f32 %v11615, %v11616
  %v11618 = vsel %vm2636, %v11220, 0.0
  %v11619 = vsel %vm2636, %v11240, 0.0
  %v11620 = vadd.f32 %v11618, %v11619
  %v11621 = vsel %vm2636, %v11260, 0.0
  %v11622 = vadd.f32 %v11620, %v11621
  %v11623 = vsel %vm2636, %v11280, 0.0
  %v11624 = vadd.f32 %v11622, %v11623
  %v11625 = vsel %vm2636, %v11300, 0.0
  %v11626 = vadd.f32 %v11624, %v11625
  %v11627 = vsel %vm2636, %v11320, 0.0
  %v11628 = vadd.f32 %v11626, %v11627
  %v11629 = vsel %vm2636, %v11340, 0.0
  %v11630 = vadd.f32 %v11628, %v11629
  %v11631 = vsel %vm2636, %v11360, 0.0
  %v11632 = vadd.f32 %v11630, %v11631
  %v11633 = vsel %vm2636, %v11221, 0.0
  %v11634 = vsel %vm2636, %v11241, 0.0
  %v11635 = vadd.f32 %v11633, %v11634
  %v11636 = vsel %vm2636, %v11261, 0.0
  %v11637 = vadd.f32 %v11635, %v11636
  %v11638 = vsel %vm2636, %v11281, 0.0
  %v11639 = vadd.f32 %v11637, %v11638
  %v11640 = vsel %vm2636, %v11301, 0.0
  %v11641 = vadd.f32 %v11639, %v11640
  %v11642 = vsel %vm2636, %v11321, 0.0
  %v11643 = vadd.f32 %v11641, %v11642
  %v11644 = vsel %vm2636, %v11341, 0.0
  %v11645 = vadd.f32 %v11643, %v11644
  %v11646 = vsel %vm2636, %v11361, 0.0
  %v11647 = vadd.f32 %v11645, %v11646
  %v11648 = vsel %vm2636, %v11222, 0.0
  %v11649 = vsel %vm2636, %v11242, 0.0
  %v11650 = vadd.f32 %v11648, %v11649
  %v11651 = vsel %vm2636, %v11262, 0.0
  %v11652 = vadd.f32 %v11650, %v11651
  %v11653 = vsel %vm2636, %v11282, 0.0
  %v11654 = vadd.f32 %v11652, %v11653
  %v11655 = vsel %vm2636, %v11302, 0.0
  %v11656 = vadd.f32 %v11654, %v11655
  %v11657 = vsel %vm2636, %v11322, 0.0
  %v11658 = vadd.f32 %v11656, %v11657
  %v11659 = vsel %vm2636, %v11342, 0.0
  %v11660 = vadd.f32 %v11658, %v11659
  %v11661 = vsel %vm2636, %v11362, 0.0
  %v11662 = vadd.f32 %v11660, %v11661
  %v11663 = vmul.f32 %v11377, %v11377
  %v11664 = vmul.f32 %v11392, %v11392
  %v11665 = vmul.f32 %v11407, %v11407
  %v11666 = vmul.f32 %v11422, %v11422
  %v11667 = vmul.f32 %v11437, %v11437
  %v11668 = vmul.f32 %v11452, %v11452
  %v11669 = vmul.f32 %v11467, %v11467
  %v11670 = vmul.f32 %v11482, %v11482
  %v11671 = vmul.f32 %v11497, %v11497
  %v11672 = vmul.f32 %v11512, %v11512
  %v11673 = vmul.f32 %v11527, %v11527
  %v11674 = vmul.f32 %v11542, %v11542
  %v11675 = vmul.f32 %v11557, %v11557
  %v11676 = vmul.f32 %v11572, %v11572
  %v11677 = vmul.f32 %v11587, %v11587
  %v11678 = vmul.f32 %v11602, %v11602
  %v11679 = vmul.f32 %v11617, %v11617
  %v11680 = vmul.f32 %v11632, %v11632
  %v11681 = vmul.f32 %v11647, %v11647
  %v11682 = vmul.f32 %v11662, %v11662
  %v11683 = vsel %vm2636, %v11663, 0.0
  %v11684 = vsel %vm2636, %v11664, 0.0
  %v11685 = vadd.f32 %v11683, %v11684
  %v11686 = vrot.slane %v11685, 4
  %v11687 = vadd.f32 %v11685, %v11686
  %v11688 = vrot.slane %v11687, 2
  %v11689 = vadd.f32 %v11687, %v11688
  %v11690 = vrot.slane %v11689, 1
  %v11691 = vadd.f32 %v11689, %v11690
  %v11692 = vsel %vm2636, %v11665, 0.0
  %v11693 = vsel %vm2636, %v11666, 0.0
  %v11694 = vadd.f32 %v11692, %v11693
  %v11695 = vrot.slane %v11694, 4
  %v11696 = vadd.f32 %v11694, %v11695
  %v11697 = vrot.slane %v11696, 2
  %v11698 = vadd.f32 %v11696, %v11697
  %v11699 = vrot.slane %v11698, 1
  %v11700 = vadd.f32 %v11698, %v11699
  %v11701 = vsel %vm2636, %v11667, 0.0
  %v11702 = vsel %vm2636, %v11668, 0.0
  %v11703 = vadd.f32 %v11701, %v11702
  %v11704 = vrot.slane %v11703, 4
  %v11705 = vadd.f32 %v11703, %v11704
  %v11706 = vrot.slane %v11705, 2
  %v11707 = vadd.f32 %v11705, %v11706
  %v11708 = vrot.slane %v11707, 1
  %v11709 = vadd.f32 %v11707, %v11708
  %v11710 = vsel %vm2636, %v11669, 0.0
  %v11711 = vsel %vm2636, %v11670, 0.0
  %v11712 = vadd.f32 %v11710, %v11711
  %v11713 = vrot.slane %v11712, 4
  %v11714 = vadd.f32 %v11712, %v11713
  %v11715 = vrot.slane %v11714, 2
  %v11716 = vadd.f32 %v11714, %v11715
  %v11717 = vrot.slane %v11716, 1
  %v11718 = vadd.f32 %v11716, %v11717
  %v11719 = vsel %vm2636, %v11671, 0.0
  %v11720 = vsel %vm2636, %v11672, 0.0
  %v11721 = vadd.f32 %v11719, %v11720
  %v11722 = vrot.slane %v11721, 4
  %v11723 = vadd.f32 %v11721, %v11722
  %v11724 = vrot.slane %v11723, 2
  %v11725 = vadd.f32 %v11723, %v11724
  %v11726 = vrot.slane %v11725, 1
  %v11727 = vadd.f32 %v11725, %v11726
  %v11728 = vsel %vm2636, %v11673, 0.0
  %v11729 = vsel %vm2636, %v11674, 0.0
  %v11730 = vadd.f32 %v11728, %v11729
  %v11731 = vrot.slane %v11730, 4
  %v11732 = vadd.f32 %v11730, %v11731
  %v11733 = vrot.slane %v11732, 2
  %v11734 = vadd.f32 %v11732, %v11733
  %v11735 = vrot.slane %v11734, 1
  %v11736 = vadd.f32 %v11734, %v11735
  %v11737 = vsel %vm2636, %v11675, 0.0
  %v11738 = vsel %vm2636, %v11676, 0.0
  %v11739 = vadd.f32 %v11737, %v11738
  %v11740 = vrot.slane %v11739, 4
  %v11741 = vadd.f32 %v11739, %v11740
  %v11742 = vrot.slane %v11741, 2
  %v11743 = vadd.f32 %v11741, %v11742
  %v11744 = vrot.slane %v11743, 1
  %v11745 = vadd.f32 %v11743, %v11744
  %v11746 = vsel %vm2636, %v11677, 0.0
  %v11747 = vsel %vm2636, %v11678, 0.0
  %v11748 = vadd.f32 %v11746, %v11747
  %v11749 = vrot.slane %v11748, 4
  %v11750 = vadd.f32 %v11748, %v11749
  %v11751 = vrot.slane %v11750, 2
  %v11752 = vadd.f32 %v11750, %v11751
  %v11753 = vrot.slane %v11752, 1
  %v11754 = vadd.f32 %v11752, %v11753
  %v11755 = vsel %vm2636, %v11679, 0.0
  %v11756 = vsel %vm2636, %v11680, 0.0
  %v11757 = vadd.f32 %v11755, %v11756
  %v11758 = vrot.slane %v11757, 4
  %v11759 = vadd.f32 %v11757, %v11758
  %v11760 = vrot.slane %v11759, 2
  %v11761 = vadd.f32 %v11759, %v11760
  %v11762 = vrot.slane %v11761, 1
  %v11763 = vadd.f32 %v11761, %v11762
  %v11764 = vsel %vm2636, %v11681, 0.0
  %v11765 = vsel %vm2636, %v11682, 0.0
  %v11766 = vadd.f32 %v11764, %v11765
  %v11767 = vrot.slane %v11766, 4
  %v11768 = vadd.f32 %v11766, %v11767
  %v11769 = vrot.slane %v11768, 2
  %v11770 = vadd.f32 %v11768, %v11769
  %v11771 = vrot.slane %v11770, 1
  %v11772 = vadd.f32 %v11770, %v11771
  %v11773 = vadd.f32 %v11691, 1.0
  %v11774 = vadd.f32 %v11700, 1.0
  %v11775 = vadd.f32 %v11709, 1.0
  %v11776 = vadd.f32 %v11718, 1.0
  %v11777 = vadd.f32 %v11727, 1.0
  %v11778 = vadd.f32 %v11736, 1.0
  %v11779 = vadd.f32 %v11745, 1.0
  %v11780 = vadd.f32 %v11754, 1.0
  %v11781 = vadd.f32 %v11763, 1.0
  %v11782 = vadd.f32 %v11772, 1.0
  %v11783 = vrcp.pop %v11773
  %v11784 = vmul.f32 %v11691, %v11783
  %v11785 = vrcp.pop %v11774
  %v11786 = vmul.f32 %v11700, %v11785
  %v11787 = vrcp.pop %v11775
  %v11788 = vmul.f32 %v11709, %v11787
  %v11789 = vrcp.pop %v11776
  %v11790 = vmul.f32 %v11718, %v11789
  %v11791 = vrcp.pop %v11777
  %v11792 = vmul.f32 %v11727, %v11791
  %v11793 = vrcp.pop %v11778
  %v11794 = vmul.f32 %v11736, %v11793
  %v11795 = vrcp.pop %v11779
  %v11796 = vmul.f32 %v11745, %v11795
  %v11797 = vrcp.pop %v11780
  %v11798 = vmul.f32 %v11754, %v11797
  %v11799 = vrcp.pop %v11781
  %v11800 = vmul.f32 %v11763, %v11799
  %v11801 = vrcp.pop %v11782
  %v11802 = vmul.f32 %v11772, %v11801
  %v11803 = vadd.f32 %v11691, 1e-12
  %v11804 = vadd.f32 %v11700, 1e-12
  %v11805 = vadd.f32 %v11709, 1e-12
  %v11806 = vadd.f32 %v11718, 1e-12
  %v11807 = vadd.f32 %v11727, 1e-12
  %v11808 = vadd.f32 %v11736, 1e-12
  %v11809 = vadd.f32 %v11745, 1e-12
  %v11810 = vadd.f32 %v11754, 1e-12
  %v11811 = vadd.f32 %v11763, 1e-12
  %v11812 = vadd.f32 %v11772, 1e-12
  %v11813 = vrsqrt.pop %v11803
  %v11814 = vrsqrt.pop %v11804
  %v11815 = vrsqrt.pop %v11805
  %v11816 = vrsqrt.pop %v11806
  %v11817 = vrsqrt.pop %v11807
  %v11818 = vrsqrt.pop %v11808
  %v11819 = vrsqrt.pop %v11809
  %v11820 = vrsqrt.pop %v11810
  %v11821 = vrsqrt.pop %v11811
  %v11822 = vrsqrt.pop %v11812
  %v11823 = vmul.f32 %v11784, %v11813
  %v11824 = vmul.f32 %v11786, %v11814
  %v11825 = vmul.f32 %v11788, %v11815
  %v11826 = vmul.f32 %v11790, %v11816
  %v11827 = vmul.f32 %v11792, %v11817
  %v11828 = vmul.f32 %v11794, %v11818
  %v11829 = vmul.f32 %v11796, %v11819
  %v11830 = vmul.f32 %v11798, %v11820
  %v11831 = vmul.f32 %v11800, %v11821
  %v11832 = vmul.f32 %v11802, %v11822
  %v11833 = vmul.f32 %v11377, %v11823
  %v11834 = vmul.f32 %v11392, %v11823
  %v11835 = vmul.f32 %v11407, %v11824
  %v11836 = vmul.f32 %v11422, %v11824
  %v11837 = vmul.f32 %v11437, %v11825
  %v11838 = vmul.f32 %v11452, %v11825
  %v11839 = vmul.f32 %v11467, %v11826
  %v11840 = vmul.f32 %v11482, %v11826
  %v11841 = vmul.f32 %v11497, %v11827
  %v11842 = vmul.f32 %v11512, %v11827
  %v11843 = vmul.f32 %v11527, %v11828
  %v11844 = vmul.f32 %v11542, %v11828
  %v11845 = vmul.f32 %v11557, %v11829
  %v11846 = vmul.f32 %v11572, %v11829
  %v11847 = vmul.f32 %v11587, %v11830
  %v11848 = vmul.f32 %v11602, %v11830
  %v11849 = vmul.f32 %v11617, %v11831
  %v11850 = vmul.f32 %v11632, %v11831
  %v11851 = vmul.f32 %v11647, %v11832
  %v11852 = vmul.f32 %v11662, %v11832
  %11853 = vst.msk [vmem:[%s3] sm:$0xff] %vm2636, %v11833
  %11854 = vst.msk [vmem:[%s3 + $0x8] sm:$0xff] %vm2636, %v11834
  %11855 = vst.msk [vmem:[%s3 + $0x10] sm:$0xff] %vm2636, %v11835
  %11856 = vst.msk [vmem:[%s3 + $0x18] sm:$0xff] %vm2636, %v11836
  %11857 = vst.msk [vmem:[%s3 + $0x20] sm:$0xff] %vm2636, %v11837
  %11858 = vst.msk [vmem:[%s3 + $0x28] sm:$0xff] %vm2636, %v11838
  %11859 = vst.msk [vmem:[%s3 + $0x30] sm:$0xff] %vm2636, %v11839
  %11860 = vst.msk [vmem:[%s3 + $0x38] sm:$0xff] %vm2636, %v11840
  %11861 = vst.msk [vmem:[%s3 + $0x40] sm:$0xff] %vm2636, %v11841
  %11862 = vst.msk [vmem:[%s3 + $0x48] sm:$0xff] %vm2636, %v11842
  %11863 = vst.msk [vmem:[%s3 + $0x50] sm:$0xff] %vm2636, %v11843
  %11864 = vst.msk [vmem:[%s3 + $0x58] sm:$0xff] %vm2636, %v11844
  %11865 = vst.msk [vmem:[%s3 + $0x60] sm:$0xff] %vm2636, %v11845
  %11866 = vst.msk [vmem:[%s3 + $0x68] sm:$0xff] %vm2636, %v11846
  %11867 = vst.msk [vmem:[%s3 + $0x70] sm:$0xff] %vm2636, %v11847
  %11868 = vst.msk [vmem:[%s3 + $0x78] sm:$0xff] %vm2636, %v11848
  %11869 = vst.msk [vmem:[%s3 + $0x80] sm:$0xff] %vm2636, %v11849
  %11870 = vst.msk [vmem:[%s3 + $0x88] sm:$0xff] %vm2636, %v11850
  %11871 = vst.msk [vmem:[%s3 + $0x90] sm:$0xff] %vm2636, %v11851
  %11872 = vst.msk [vmem:[%s3 + $0x98] sm:$0xff] %vm2636, %v11852
  %11873 = vst.msk [vmem:[%s4] sm:$0xff] %vm2636, %v10196
  %11874 = vst.msk [vmem:[%s4 + $0x8] sm:$0x3] %vm4191, %v10197
  %11875 = vst.msk [vmem:[%s4 + $0x10] sm:$0xff] %vm2636, %v10199
  %11876 = vst.msk [vmem:[%s4 + $0x18] sm:$0x3] %vm4191, %v10200
  %11877 = vst.msk [vmem:[%s4 + $0x20] sm:$0xff] %vm2636, %v10202
  %11878 = vst.msk [vmem:[%s4 + $0x28] sm:$0x3] %vm4191, %v10203
  %11879 = vst.msk [vmem:[%s4 + $0x30] sm:$0xff] %vm2636, %v10205
  %11880 = vst.msk [vmem:[%s4 + $0x38] sm:$0x3] %vm4191, %v10206
  %11881 = vst.msk [vmem:[%s4 + $0x40] sm:$0xff] %vm2636, %v10208
  %11882 = vst.msk [vmem:[%s4 + $0x48] sm:$0x3] %vm4191, %v10209
  %11883 = vst.msk [vmem:[%s4 + $0x50] sm:$0xff] %vm2636, %v10211
  %11884 = vst.msk [vmem:[%s4 + $0x58] sm:$0x3] %vm4191, %v10212
  %11885 = vst.msk [vmem:[%s4 + $0x60] sm:$0xff] %vm2636, %v10214
  %11886 = vst.msk [vmem:[%s4 + $0x68] sm:$0x3] %vm4191, %v10215
  %11887 = vst.msk [vmem:[%s4 + $0x70] sm:$0xff] %vm2636, %v10217
  %11888 = vst.msk [vmem:[%s4 + $0x78] sm:$0x3] %vm4191, %v10218
  // Predicated region
  $region14: #{caps_layer_forward.1} parent=0 // pred_check
    _
  $region15: #{caps_layer_forward.1} parent=0 // pred_check_branch
    %11890 = sbr.rel (0) target = $region17
  $region16: #{caps_layer_forward.1} parent=0 // pred_region
    _
  $region17: #{caps_layer_forward.1} parent=0 // pred_fallthru
    _
  // Predicated region
  $region18: #{caps_layer_forward.1} parent=0 // pred_check
    _
  $region19: #{caps_layer_forward.1} parent=0 // pred_check_branch
    %11892 = sbr.rel (0) target = $region21
  $region20: #{caps_layer_forward.1} parent=0 // pred_region
    _
  $region21: #{caps_layer_forward.1} parent=0 // pred_fallthru
    _
  // Predicated region
  $region22: #{caps_layer_forward.1} parent=0 // pred_check
    _
  $region23: #{caps_layer_forward.1} parent=0 // pred_check_branch
    %11894 = sbr.rel (0) target = $region25
  $region24: #{caps_layer_forward.1} parent=0 // pred_region
    _
  $region25: #{caps_layer_forward.1} parent=0 // pred_fallthru
    _
  // Predicated region
  $region26: #{caps_layer_forward.1} parent=0 // pred_check
    _
  $region27: #{caps_layer_forward.1} parent=0 // pred_check_branch
    %11896 = sbr.rel (0) target = $region29
  $region28: #{caps_layer_forward.1} parent=0 // pred_region
    _
  $region29: #{caps_layer_forward.1} parent=0 // pred_fallthru
    _

</llo_original>
